<compile_context>
chip_gen: v7x
topology: tpu7x:2x2x1
jax: 0.10.0
libtpu: 0.0.40
codegen_flags: <defaults>
</compile_context>

<pallas_src>
import functools

import jax
import jax.numpy as jnp
from jax import lax
from jax.experimental import pallas as pl
from jax.experimental.pallas import tpu as pltpu


# ----------------------------- fused Block8 kernel -----------------------------

def _block8_kernel(xb_ref, res_ref, mask_ref,
                   w0_ref, s0_ref, b0_ref,
                   w1_ref, s1_ref, b1_ref,
                   w13_ref, s13_ref, b13_ref,
                   w31_ref, s31_ref, b31_ref,
                   wpr_ref, bpr_ref,
                   o_ref,
                   cat_scr, shift_scr,
                   *, m, w_len, scale, apply_relu):
    j = pl.program_id(0)
    pad = w_len  # halo rows on each side of the flattened (N*H*W) axis

    @pl.when(j == 0)
    def _compute_branches():
        # zero once so halo rows stay exactly 0 for both shifted-tap convs
        shift_scr[...] = jnp.zeros(shift_scr.shape, shift_scr.dtype)

        xb = xb_ref[...]                                    # (M, 1792) bf16

        # branch0: 1x1 conv + folded BN + ReLU  -> cat plane 0
        a0 = jnp.dot(xb, w0_ref[...], preferred_element_type=jnp.float32)
        a0 = jnp.maximum(a0 * s0_ref[...] + b0_ref[...], 0.0)
        cat_scr[0] = a0.astype(jnp.bfloat16)

        # branch1 conv #1: 1x1 conv + BN + ReLU
        u = jnp.dot(xb, w1_ref[...], preferred_element_type=jnp.float32)
        u = jnp.maximum(u * s1_ref[...] + b1_ref[...], 0.0)

        # branch1 conv #2: (1,3) conv, padding (0,1)  -- taps folded in-kernel
        u_b = u.astype(jnp.bfloat16)
        shift_scr[pl.ds(pad, m), :] = u_b
        lo = shift_scr[pl.ds(pad - 1, m), :] * mask_ref[0]   # in[.., w-1]
        hi = shift_scr[pl.ds(pad + 1, m), :] * mask_ref[1]   # in[.., w+1]
        u = jnp.dot(lo, w13_ref[0], preferred_element_type=jnp.float32)
        u += jnp.dot(u_b, w13_ref[1], preferred_element_type=jnp.float32)
        u += jnp.dot(hi, w13_ref[2], preferred_element_type=jnp.float32)
        u = jnp.maximum(u * s13_ref[...] + b13_ref[...], 0.0)

        # branch1 conv #3: (3,1) conv, padding (1,0)
        u_b = u.astype(jnp.bfloat16)
        shift_scr[pl.ds(pad, m), :] = u_b
        lo = shift_scr[pl.ds(pad - w_len, m), :] * mask_ref[2]   # in[h-1, ..]
        hi = shift_scr[pl.ds(pad + w_len, m), :] * mask_ref[3]   # in[h+1, ..]
        u = jnp.dot(lo, w31_ref[0], preferred_element_type=jnp.float32)
        u += jnp.dot(u_b, w31_ref[1], preferred_element_type=jnp.float32)
        u += jnp.dot(hi, w31_ref[2], preferred_element_type=jnp.float32)
        u = jnp.maximum(u * s31_ref[...] + b31_ref[...], 0.0)
        cat_scr[1] = u.astype(jnp.bfloat16)                  # cat plane 1

    # 1x1 projection conv (384 -> 1792, with bias) on the "concatenated"
    # branches (two VMEM planes -> concat is free), fused with
    # out*scale + residual (+ ReLU).  wproj streams in tn-wide output tiles.
    acc = jnp.dot(cat_scr[0], wpr_ref[0], preferred_element_type=jnp.float32)
    acc += jnp.dot(cat_scr[1], wpr_ref[1], preferred_element_type=jnp.float32)
    out = (acc + bpr_ref[...]) * scale + res_ref[...]
    if apply_relu:
        out = jnp.maximum(out, 0.0)
    o_ref[...] = out


# ----------------------------- wrapper -----------------------------

def block8_forward(x_nchw, kp, *, scale=1.0, no_relu=False):
    n, cin, h, w = x_nchw.shape
    m = n * h * w
    cout = kp["bpr"].shape[1]     # 1792
    cb = kp["w0"].shape[1]        # 192 (branch width)

    x_nhwc = jnp.transpose(x_nchw, (0, 2, 3, 1)).astype(jnp.float32)
    res2d = x_nhwc.reshape(m, cin)               # residual path, f32
    xb2d = res2d.astype(jnp.bfloat16)            # MXU input, bf16

    # per-row boundary masks for the shifted-tap (1,3)/(3,1) convs
    midx = jnp.arange(m, dtype=jnp.int32)
    w_idx = midx % w
    h_idx = (midx // w) % h
    masks = jnp.stack([w_idx > 0, w_idx < w - 1, h_idx > 0, h_idx < h - 1],
                      axis=0).astype(jnp.bfloat16).reshape(4, m, 1)

    tn = 256 if cout % 256 == 0 else 128
    assert cout % tn == 0
    grid = (cout // tn,)

    kernel = functools.partial(_block8_kernel, m=m, w_len=w,
                               scale=float(scale), apply_relu=not no_relu)
    c2 = lambda j: (0, 0)
    c3 = lambda j: (0, 0, 0)

    out2d = pl.pallas_call(
        kernel,
        out_shape=jax.ShapeDtypeStruct((m, cout), jnp.float32),
        grid=grid,
        in_specs=[
            pl.BlockSpec((m, cin), c2),                     # x (bf16, resident)
            pl.BlockSpec((m, tn), lambda j: (0, j)),        # residual tile (f32)
            pl.BlockSpec((4, m, 1), c3),                    # boundary masks
            pl.BlockSpec((cin, cb), c2),                    # branch0 1x1 weight
            pl.BlockSpec((1, cb), c2),                      # branch0 BN scale
            pl.BlockSpec((1, cb), c2),                      # branch0 BN bias
            pl.BlockSpec((cin, cb), c2),                    # branch1_0 weight
            pl.BlockSpec((1, cb), c2),
            pl.BlockSpec((1, cb), c2),
            pl.BlockSpec((3, cb, cb), c3),                  # branch1_1 (1,3) taps
            pl.BlockSpec((1, cb), c2),
            pl.BlockSpec((1, cb), c2),
            pl.BlockSpec((3, cb, cb), c3),                  # branch1_2 (3,1) taps
            pl.BlockSpec((1, cb), c2),
            pl.BlockSpec((1, cb), c2),
            pl.BlockSpec((2, cb, tn), lambda j: (0, 0, j)), # projection weight
            pl.BlockSpec((1, tn), lambda j: (0, j)),        # projection bias
        ],
        out_specs=pl.BlockSpec((m, tn), lambda j: (0, j)),
        scratch_shapes=[
            pltpu.VMEM((2, m, cb), jnp.bfloat16),           # cat planes (x0, x1)
            pltpu.VMEM((m + 2 * w, cb), jnp.bfloat16),      # shift halo buffer
        ],
        compiler_params=pltpu.CompilerParams(
            dimension_semantics=("arbitrary",),
            vmem_limit_bytes=32 * 1024 * 1024),
    )(xb2d, res2d, masks,
      kp["w0"], kp["s0"], kp["b0"],
      kp["w1"], kp["s1"], kp["b1"],
      kp["w13"], kp["s13"], kp["b13"],
      kp["w31"], kp["s31"], kp["b31"],
      kp["wpr"], kp["bpr"])

    return jnp.transpose(out2d.reshape(n, h, w, cout), (0, 3, 1, 2))


# ----------------------------- parameter handling -----------------------------

def _fold_bn(bn, eps=1e-3):
    s = bn["gamma"] / jnp.sqrt(bn["var"] + eps)
    b = bn["beta"] - bn["mean"] * s
    return s, b


def prepare_block8_params(p):
    """PyTorch-layout f32 params -> kernel-ready bf16 weights + folded BN."""
    def conv1x1(cw):                   # (co, ci, 1, 1) -> (ci, co) bf16
        co, ci = cw.shape[0], cw.shape[1]
        return jnp.transpose(cw.reshape(co, ci), (1, 0)).astype(jnp.bfloat16)

    def taps(cw):                      # (co, ci, kh, kw) w/ 3 taps -> (3, ci, co)
        co, ci = cw.shape[0], cw.shape[1]
        return jnp.transpose(cw.reshape(co, ci, 3), (2, 1, 0)).astype(jnp.bfloat16)

    def row(v):
        return v.reshape(1, -1).astype(jnp.float32)

    kp = {}
    s, b = _fold_bn(p["b0"]["bn"]);   kp["w0"] = conv1x1(p["b0"]["w"]);   kp["s0"] = row(s);  kp["b0"] = row(b)
    s, b = _fold_bn(p["b1_0"]["bn"]); kp["w1"] = conv1x1(p["b1_0"]["w"]); kp["s1"] = row(s);  kp["b1"] = row(b)
    s, b = _fold_bn(p["b1_1"]["bn"]); kp["w13"] = taps(p["b1_1"]["w"]);   kp["s13"] = row(s); kp["b13"] = row(b)
    s, b = _fold_bn(p["b1_2"]["bn"]); kp["w31"] = taps(p["b1_2"]["w"]);   kp["s31"] = row(s); kp["b31"] = row(b)
    cw = p["conv"]["w"]                # (1792, 384, 1, 1)
    co, ci = cw.shape[0], cw.shape[1]
    kp["wpr"] = jnp.transpose(cw.reshape(co, ci), (1, 0)).reshape(2, ci // 2, co).astype(jnp.bfloat16)
    kp["bpr"] = p["conv"]["b"].reshape(1, co).astype(jnp.float32)
    return kp


def init_block8_params(key):
    keys = iter(jax.random.split(key, 32))

    def bn(c):
        return {"gamma": 1.0 + 0.1 * jax.random.normal(next(keys), (c,), jnp.float32),
                "beta": 0.1 * jax.random.normal(next(keys), (c,), jnp.float32),
                "mean": 0.05 * jax.random.normal(next(keys), (c,), jnp.float32),
                "var": 1.0 + 0.1 * jax.random.uniform(next(keys), (c,), jnp.float32)}

    def conv(ci, co, kh, kw):
        fan = ci * kh * kw
        return jax.random.normal(next(keys), (co, ci, kh, kw), jnp.float32) * jnp.sqrt(2.0 / fan)

    return {"b0":   {"w": conv(1792, 192, 1, 1), "bn": bn(192)},
            "b1_0": {"w": conv(1792, 192, 1, 1), "bn": bn(192)},
            "b1_1": {"w": conv(192, 192, 1, 3), "bn": bn(192)},
            "b1_2": {"w": conv(192, 192, 3, 1), "bn": bn(192)},
            "conv": {"w": jax.random.normal(next(keys), (1792, 384, 1, 1), jnp.float32) * jnp.sqrt(1.0 / 384),
                     "b": 0.05 * jax.random.normal(next(keys), (1792,), jnp.float32)}}


# ----------------------------- pure-JAX reference -----------------------------

def block8_reference(x, p, *, scale=1.0, no_relu=False):
    def bconv(x, w, bn, padding):
        y = lax.conv_general_dilated(x, w, (1, 1), padding,
                                     dimension_numbers=("NCHW", "OIHW", "NCHW"))
        s, b = _fold_bn(bn)
        return jnp.maximum(y * s[None, :, None, None] + b[None, :, None, None], 0.0)

    x0 = bconv(x, p["b0"]["w"], p["b0"]["bn"], [(0, 0), (0, 0)])
    x1 = bconv(x, p["b1_0"]["w"], p["b1_0"]["bn"], [(0, 0), (0, 0)])
    x1 = bconv(x1, p["b1_1"]["w"], p["b1_1"]["bn"], [(0, 0), (1, 1)])
    x1 = bconv(x1, p["b1_2"]["w"], p["b1_2"]["bn"], [(1, 1), (0, 0)])
    cat = jnp.concatenate([x0, x1], axis=1)
    out = lax.conv_general_dilated(cat, p["conv"]["w"], (1, 1), [(0, 0), (0, 0)],
                                   dimension_numbers=("NCHW", "OIHW", "NCHW"))
    out = out + p["conv"]["b"][None, :, None, None]
    out = out * scale + x
    if not no_relu:
        out = jnp.maximum(out, 0.0)
    return out


# ----------------------------- main -----------------------------

if __name__ == "__main__":
    key = jax.random.PRNGKey(0)
    p = init_block8_params(key)
    kp = prepare_block8_params(p)
    x = jax.random.normal(jax.random.fold_in(key, 7), (2, 1792, 8, 8), jnp.float32)

    fwd = jax.jit(functools.partial(block8_forward, scale=1.0, no_relu=False))
    out = jax.block_until_ready(fwd(x, kp))
    assert out.shape == x.shape, out.shape

    ref = jax.block_until_ready(
        jax.jit(functools.partial(block8_reference, scale=1.0, no_relu=False))(x, p))
    err = float(jnp.max(jnp.abs(out - ref)))
    # bf16 MXU inputs with f32 accumulation -> loose tolerance vs f32 reference
    assert err < 0.25, f"max abs error vs reference: {err}"
    print("KERNEL_OK")
</pallas_src>

<mosaic_0001>
module attributes {stable_mosaic.version = 11 : i64} {
  func.func @_block8_kernel(%arg0: i32, %arg1: memref<128x1792xbf16, #tpu.memory_space<vmem>>, %arg2: memref<128x256xf32, #tpu.memory_space<vmem>>, %arg3: memref<4x128x1xbf16, #tpu.memory_space<vmem>>, %arg4: memref<1792x192xbf16, #tpu.memory_space<vmem>>, %arg5: memref<1x192xf32, #tpu.memory_space<vmem>>, %arg6: memref<1x192xf32, #tpu.memory_space<vmem>>, %arg7: memref<1792x192xbf16, #tpu.memory_space<vmem>>, %arg8: memref<1x192xf32, #tpu.memory_space<vmem>>, %arg9: memref<1x192xf32, #tpu.memory_space<vmem>>, %arg10: memref<3x192x192xbf16, #tpu.memory_space<vmem>>, %arg11: memref<1x192xf32, #tpu.memory_space<vmem>>, %arg12: memref<1x192xf32, #tpu.memory_space<vmem>>, %arg13: memref<3x192x192xbf16, #tpu.memory_space<vmem>>, %arg14: memref<1x192xf32, #tpu.memory_space<vmem>>, %arg15: memref<1x192xf32, #tpu.memory_space<vmem>>, %arg16: memref<2x192x256xbf16, #tpu.memory_space<vmem>>, %arg17: memref<1x256xf32, #tpu.memory_space<vmem>>, %arg18: memref<128x256xf32, #tpu.memory_space<vmem>>, %arg19: memref<2x128x192xbf16, #tpu.memory_space<vmem>>, %arg20: memref<144x192xbf16, #tpu.memory_space<vmem>>) attributes {dimension_semantics = [#tpu.dimension_semantics<arbitrary>], iteration_bounds = array<i64: 7>, scalar_prefetch = 0 : i64, scratch_operands = 2 : i64, tpu.core_type = #tpu.core_type<tc>, window_params = [{pipeline_mode = #tpu.pipeline_mode<synchronous>, transform_indices = @transform_0, window_bounds = array<i64: 128, 1792>}, {transform_indices = @transform_1, window_bounds = array<i64: 128, 256>}, {pipeline_mode = #tpu.pipeline_mode<synchronous>, transform_indices = @transform_2, window_bounds = array<i64: 4, 128, 1>}, {pipeline_mode = #tpu.pipeline_mode<synchronous>, transform_indices = @transform_3, window_bounds = array<i64: 1792, 192>}, {pipeline_mode = #tpu.pipeline_mode<synchronous>, transform_indices = @transform_4, window_bounds = array<i64: 1, 192>}, {pipeline_mode = #tpu.pipeline_mode<synchronous>, transform_indices = @transform_5, window_bounds = array<i64: 1, 192>}, {pipeline_mode = #tpu.pipeline_mode<synchronous>, transform_indices = @transform_6, window_bounds = array<i64: 1792, 192>}, {pipeline_mode = #tpu.pipeline_mode<synchronous>, transform_indices = @transform_7, window_bounds = array<i64: 1, 192>}, {pipeline_mode = #tpu.pipeline_mode<synchronous>, transform_indices = @transform_8, window_bounds = array<i64: 1, 192>}, {pipeline_mode = #tpu.pipeline_mode<synchronous>, transform_indices = @transform_9, window_bounds = array<i64: 3, 192, 192>}, {pipeline_mode = #tpu.pipeline_mode<synchronous>, transform_indices = @transform_10, window_bounds = array<i64: 1, 192>}, {pipeline_mode = #tpu.pipeline_mode<synchronous>, transform_indices = @transform_11, window_bounds = array<i64: 1, 192>}, {pipeline_mode = #tpu.pipeline_mode<synchronous>, transform_indices = @transform_12, window_bounds = array<i64: 3, 192, 192>}, {pipeline_mode = #tpu.pipeline_mode<synchronous>, transform_indices = @transform_13, window_bounds = array<i64: 1, 192>}, {pipeline_mode = #tpu.pipeline_mode<synchronous>, transform_indices = @transform_14, window_bounds = array<i64: 1, 192>}, {transform_indices = @transform_15, window_bounds = array<i64: 2, 192, 256>}, {transform_indices = @transform_16, window_bounds = array<i64: 1, 256>}, {transform_indices = @transform_17, window_bounds = array<i64: 128, 256>}]} {
    %c0_i32 = arith.constant 0 : i32
    %0 = arith.cmpi eq, %arg0, %c0_i32 : i32
    %1 = arith.extui %0 : i1 to i32
    %c0_i32_0 = arith.constant 0 : i32
    %2 = arith.cmpi ne, %1, %c0_i32_0 : i32
    scf.if %2 {
      %cst_20 = arith.constant 0.000000e+00 : bf16
      %24 = vector.broadcast %cst_20 : bf16 to vector<144x192xbf16>
      %c0_21 = arith.constant 0 : index
      %c0_22 = arith.constant 0 : index
      %25 = vector.load %arg20[%c0_21, %c0_22] : memref<144x192xbf16, #tpu.memory_space<vmem>>, vector<144x192xbf16>
      tpu.vector_store %arg20[%c0_21, %c0_22], %24 {strides = array<i32>} : memref<144x192xbf16, #tpu.memory_space<vmem>>, vector<144x192xbf16>,
      %c0_23 = arith.constant 0 : index
      %c0_24 = arith.constant 0 : index
      %26 = vector.load %arg1[%c0_23, %c0_24] : memref<128x1792xbf16, #tpu.memory_space<vmem>>, vector<128x1792xbf16>
      %c0_25 = arith.constant 0 : index
      %c0_26 = arith.constant 0 : index
      %27 = vector.load %arg4[%c0_25, %c0_26] : memref<1792x192xbf16, #tpu.memory_space<vmem>>, vector<1792x192xbf16>
      %cst_27 = arith.constant dense<0.000000e+00> : vector<128x192xf32>
      %28 = tpu.matmul %26, %27, %cst_27 {dimension_numbers = #tpu.dot_dimension_numbers<[1], [0], [0], [1], [0, 0, 1, 1], [], []>} : vector<128x1792xbf16>, vector<1792x192xbf16>, vector<128x192xf32> -> vector<128x192xf32>
      %c0_28 = arith.constant 0 : index
      %c0_29 = arith.constant 0 : index
      %29 = vector.load %arg5[%c0_28, %c0_29] : memref<1x192xf32, #tpu.memory_space<vmem>>, vector<1x192xf32>
      %30 = vector.broadcast %29 : vector<1x192xf32> to vector<128x192xf32>
      %31 = arith.mulf %28, %30 : vector<128x192xf32>
      %c0_30 = arith.constant 0 : index
      %c0_31 = arith.constant 0 : index
      %32 = vector.load %arg6[%c0_30, %c0_31] : memref<1x192xf32, #tpu.memory_space<vmem>>, vector<1x192xf32>
      %33 = vector.broadcast %32 : vector<1x192xf32> to vector<128x192xf32>
      %34 = arith.addf %31, %33 : vector<128x192xf32>
      %cst_32 = arith.constant 0.000000e+00 : f32
      %35 = vector.broadcast %cst_32 : f32 to vector<128x192xf32>
      %36 = arith.maximumf %34, %35 : vector<128x192xf32>
      %37 = arith.truncf %36 : vector<128x192xf32> to vector<128x192xbf16>
      %c0_33 = arith.constant 0 : index
      %c0_34 = arith.constant 0 : index
      %c0_35 = arith.constant 0 : index
      %38 = vector.load %arg19[%c0_33, %c0_34, %c0_35] : memref<2x128x192xbf16, #tpu.memory_space<vmem>>, vector<1x128x192xbf16>
      %39 = vector.shape_cast %38 : vector<1x128x192xbf16> to vector<128x192xbf16>
      %40 = vector.shape_cast %37 : vector<128x192xbf16> to vector<1x128x192xbf16>
      tpu.vector_store %arg19[%c0_33, %c0_34, %c0_35], %40 {strides = array<i32>} : memref<2x128x192xbf16, #tpu.memory_space<vmem>>, vector<1x128x192xbf16>,
      %c0_36 = arith.constant 0 : index
      %c0_37 = arith.constant 0 : index
      %41 = vector.load %arg7[%c0_36, %c0_37] : memref<1792x192xbf16, #tpu.memory_space<vmem>>, vector<1792x192xbf16>
      %cst_38 = arith.constant dense<0.000000e+00> : vector<128x192xf32>
      %42 = tpu.matmul %26, %41, %cst_38 {dimension_numbers = #tpu.dot_dimension_numbers<[1], [0], [0], [1], [0, 0, 1, 1], [], []>} : vector<128x1792xbf16>, vector<1792x192xbf16>, vector<128x192xf32> -> vector<128x192xf32>
      %c0_39 = arith.constant 0 : index
      %c0_40 = arith.constant 0 : index
      %43 = vector.load %arg8[%c0_39, %c0_40] : memref<1x192xf32, #tpu.memory_space<vmem>>, vector<1x192xf32>
      %44 = vector.broadcast %43 : vector<1x192xf32> to vector<128x192xf32>
      %45 = arith.mulf %42, %44 : vector<128x192xf32>
      %c0_41 = arith.constant 0 : index
      %c0_42 = arith.constant 0 : index
      %46 = vector.load %arg9[%c0_41, %c0_42] : memref<1x192xf32, #tpu.memory_space<vmem>>, vector<1x192xf32>
      %47 = vector.broadcast %46 : vector<1x192xf32> to vector<128x192xf32>
      %48 = arith.addf %45, %47 : vector<128x192xf32>
      %cst_43 = arith.constant 0.000000e+00 : f32
      %49 = vector.broadcast %cst_43 : f32 to vector<128x192xf32>
      %50 = arith.maximumf %48, %49 : vector<128x192xf32>
      %51 = arith.truncf %50 : vector<128x192xf32> to vector<128x192xbf16>
      %c8 = arith.constant 8 : index
      %c0_44 = arith.constant 0 : index
      %52 = vector.load %arg20[%c8, %c0_44] : memref<144x192xbf16, #tpu.memory_space<vmem>>, vector<128x192xbf16>
      tpu.vector_store %arg20[%c8, %c0_44], %51 {strides = array<i32>} : memref<144x192xbf16, #tpu.memory_space<vmem>>, vector<128x192xbf16>,
      %c7 = arith.constant 7 : index
      %c0_45 = arith.constant 0 : index
      %53 = vector.load %arg20[%c7, %c0_45] : memref<144x192xbf16, #tpu.memory_space<vmem>>, vector<128x192xbf16>
      %c0_46 = arith.constant 0 : index
      %c0_47 = arith.constant 0 : index
      %c0_48 = arith.constant 0 : index
      %54 = vector.load %arg3[%c0_46, %c0_47, %c0_48] : memref<4x128x1xbf16, #tpu.memory_space<vmem>>, vector<1x128x1xbf16>
      %55 = vector.shape_cast %54 : vector<1x128x1xbf16> to vector<128x1xbf16>
      %56 = vector.broadcast %55 : vector<128x1xbf16> to vector<128x192xbf16>
      %57 = arith.mulf %53, %56 : vector<128x192xbf16>
      %c9 = arith.constant 9 : index
      %c0_49 = arith.constant 0 : index
      %58 = vector.load %arg20[%c9, %c0_49] : memref<144x192xbf16, #tpu.memory_space<vmem>>, vector<128x192xbf16>
      %c1_50 = arith.constant 1 : index
      %c0_51 = arith.constant 0 : index
      %c0_52 = arith.constant 0 : index
      %59 = vector.load %arg3[%c1_50, %c0_51, %c0_52] : memref<4x128x1xbf16, #tpu.memory_space<vmem>>, vector<1x128x1xbf16>
      %60 = vector.shape_cast %59 : vector<1x128x1xbf16> to vector<128x1xbf16>
      %61 = vector.broadcast %60 : vector<128x1xbf16> to vector<128x192xbf16>
      %62 = arith.mulf %58, %61 : vector<128x192xbf16>
      %c0_53 = arith.constant 0 : index
      %c0_54 = arith.constant 0 : index
      %c0_55 = arith.constant 0 : index
      %63 = vector.load %arg10[%c0_53, %c0_54, %c0_55] : memref<3x192x192xbf16, #tpu.memory_space<vmem>>, vector<1x192x192xbf16>
      %64 = vector.shape_cast %63 : vector<1x192x192xbf16> to vector<192x192xbf16>
      %cst_56 = arith.constant dense<0.000000e+00> : vector<128x192xf32>
      %65 = tpu.matmul %57, %64, %cst_56 {dimension_numbers = #tpu.dot_dimension_numbers<[1], [0], [0], [1], [0, 0, 1, 1], [], []>} : vector<128x192xbf16>, vector<192x192xbf16>, vector<128x192xf32> -> vector<128x192xf32>
      %c1_57 = arith.constant 1 : index
      %c0_58 = arith.constant 0 : index
      %c0_59 = arith.constant 0 : index
      %66 = vector.load %arg10[%c1_57, %c0_58, %c0_59] : memref<3x192x192xbf16, #tpu.memory_space<vmem>>, vector<1x192x192xbf16>
      %67 = vector.shape_cast %66 : vector<1x192x192xbf16> to vector<192x192xbf16>
      %cst_60 = arith.constant dense<0.000000e+00> : vector<128x192xf32>
      %68 = tpu.matmul %51, %67, %cst_60 {dimension_numbers = #tpu.dot_dimension_numbers<[1], [0], [0], [1], [0, 0, 1, 1], [], []>} : vector<128x192xbf16>, vector<192x192xbf16>, vector<128x192xf32> -> vector<128x192xf32>
      %69 = arith.addf %65, %68 : vector<128x192xf32>
      %c2 = arith.constant 2 : index
      %c0_61 = arith.constant 0 : index
      %c0_62 = arith.constant 0 : index
      %70 = vector.load %arg10[%c2, %c0_61, %c0_62] : memref<3x192x192xbf16, #tpu.memory_space<vmem>>, vector<1x192x192xbf16>
      %71 = vector.shape_cast %70 : vector<1x192x192xbf16> to vector<192x192xbf16>
      %cst_63 = arith.constant dense<0.000000e+00> : vector<128x192xf32>
      %72 = tpu.matmul %62, %71, %cst_63 {dimension_numbers = #tpu.dot_dimension_numbers<[1], [0], [0], [1], [0, 0, 1, 1], [], []>} : vector<128x192xbf16>, vector<192x192xbf16>, vector<128x192xf32> -> vector<128x192xf32>
      %73 = arith.addf %69, %72 : vector<128x192xf32>
      %c0_64 = arith.constant 0 : index
      %c0_65 = arith.constant 0 : index
      %74 = vector.load %arg11[%c0_64, %c0_65] : memref<1x192xf32, #tpu.memory_space<vmem>>, vector<1x192xf32>
      %75 = vector.broadcast %74 : vector<1x192xf32> to vector<128x192xf32>
      %76 = arith.mulf %73, %75 : vector<128x192xf32>
      %c0_66 = arith.constant 0 : index
      %c0_67 = arith.constant 0 : index
      %77 = vector.load %arg12[%c0_66, %c0_67] : memref<1x192xf32, #tpu.memory_space<vmem>>, vector<1x192xf32>
      %78 = vector.broadcast %77 : vector<1x192xf32> to vector<128x192xf32>
      %79 = arith.addf %76, %78 : vector<128x192xf32>
      %cst_68 = arith.constant 0.000000e+00 : f32
      %80 = vector.broadcast %cst_68 : f32 to vector<128x192xf32>
      %81 = arith.maximumf %79, %80 : vector<128x192xf32>
      %82 = arith.truncf %81 : vector<128x192xf32> to vector<128x192xbf16>
      %c8_69 = arith.constant 8 : index
      %c0_70 = arith.constant 0 : index
      %83 = vector.load %arg20[%c8_69, %c0_70] : memref<144x192xbf16, #tpu.memory_space<vmem>>, vector<128x192xbf16>
      tpu.vector_store %arg20[%c8_69, %c0_70], %82 {strides = array<i32>} : memref<144x192xbf16, #tpu.memory_space<vmem>>, vector<128x192xbf16>,
      %c0_71 = arith.constant 0 : index
      %c0_72 = arith.constant 0 : index
      %84 = vector.load %arg20[%c0_71, %c0_72] : memref<144x192xbf16, #tpu.memory_space<vmem>>, vector<128x192xbf16>
      %c2_73 = arith.constant 2 : index
      %c0_74 = arith.constant 0 : index
      %c0_75 = arith.constant 0 : index
      %85 = vector.load %arg3[%c2_73, %c0_74, %c0_75] : memref<4x128x1xbf16, #tpu.memory_space<vmem>>, vector<1x128x1xbf16>
      %86 = vector.shape_cast %85 : vector<1x128x1xbf16> to vector<128x1xbf16>
      %87 = vector.broadcast %86 : vector<128x1xbf16> to vector<128x192xbf16>
      %88 = arith.mulf %84, %87 : vector<128x192xbf16>
      %c16 = arith.constant 16 : index
      %c0_76 = arith.constant 0 : index
      %89 = vector.load %arg20[%c16, %c0_76] : memref<144x192xbf16, #tpu.memory_space<vmem>>, vector<128x192xbf16>
      %c3 = arith.constant 3 : index
      %c0_77 = arith.constant 0 : index
      %c0_78 = arith.constant 0 : index
      %90 = vector.load %arg3[%c3, %c0_77, %c0_78] : memref<4x128x1xbf16, #tpu.memory_space<vmem>>, vector<1x128x1xbf16>
      %91 = vector.shape_cast %90 : vector<1x128x1xbf16> to vector<128x1xbf16>
      %92 = vector.broadcast %91 : vector<128x1xbf16> to vector<128x192xbf16>
      %93 = arith.mulf %89, %92 : vector<128x192xbf16>
      %c0_79 = arith.constant 0 : index
      %c0_80 = arith.constant 0 : index
      %c0_81 = arith.constant 0 : index
      %94 = vector.load %arg13[%c0_79, %c0_80, %c0_81] : memref<3x192x192xbf16, #tpu.memory_space<vmem>>, vector<1x192x192xbf16>
      %95 = vector.shape_cast %94 : vector<1x192x192xbf16> to vector<192x192xbf16>
      %cst_82 = arith.constant dense<0.000000e+00> : vector<128x192xf32>
      %96 = tpu.matmul %88, %95, %cst_82 {dimension_numbers = #tpu.dot_dimension_numbers<[1], [0], [0], [1], [0, 0, 1, 1], [], []>} : vector<128x192xbf16>, vector<192x192xbf16>, vector<128x192xf32> -> vector<128x192xf32>
      %c1_83 = arith.constant 1 : index
      %c0_84 = arith.constant 0 : index
      %c0_85 = arith.constant 0 : index
      %97 = vector.load %arg13[%c1_83, %c0_84, %c0_85] : memref<3x192x192xbf16, #tpu.memory_space<vmem>>, vector<1x192x192xbf16>
      %98 = vector.shape_cast %97 : vector<1x192x192xbf16> to vector<192x192xbf16>
      %cst_86 = arith.constant dense<0.000000e+00> : vector<128x192xf32>
      %99 = tpu.matmul %82, %98, %cst_86 {dimension_numbers = #tpu.dot_dimension_numbers<[1], [0], [0], [1], [0, 0, 1, 1], [], []>} : vector<128x192xbf16>, vector<192x192xbf16>, vector<128x192xf32> -> vector<128x192xf32>
      %100 = arith.addf %96, %99 : vector<128x192xf32>
      %c2_87 = arith.constant 2 : index
      %c0_88 = arith.constant 0 : index
      %c0_89 = arith.constant 0 : index
      %101 = vector.load %arg13[%c2_87, %c0_88, %c0_89] : memref<3x192x192xbf16, #tpu.memory_space<vmem>>, vector<1x192x192xbf16>
      %102 = vector.shape_cast %101 : vector<1x192x192xbf16> to vector<192x192xbf16>
      %cst_90 = arith.constant dense<0.000000e+00> : vector<128x192xf32>
      %103 = tpu.matmul %93, %102, %cst_90 {dimension_numbers = #tpu.dot_dimension_numbers<[1], [0], [0], [1], [0, 0, 1, 1], [], []>} : vector<128x192xbf16>, vector<192x192xbf16>, vector<128x192xf32> -> vector<128x192xf32>
      %104 = arith.addf %100, %103 : vector<128x192xf32>
      %c0_91 = arith.constant 0 : index
      %c0_92 = arith.constant 0 : index
      %105 = vector.load %arg14[%c0_91, %c0_92] : memref<1x192xf32, #tpu.memory_space<vmem>>, vector<1x192xf32>
      %106 = vector.broadcast %105 : vector<1x192xf32> to vector<128x192xf32>
      %107 = arith.mulf %104, %106 : vector<128x192xf32>
      %c0_93 = arith.constant 0 : index
      %c0_94 = arith.constant 0 : index
      %108 = vector.load %arg15[%c0_93, %c0_94] : memref<1x192xf32, #tpu.memory_space<vmem>>, vector<1x192xf32>
      %109 = vector.broadcast %108 : vector<1x192xf32> to vector<128x192xf32>
      %110 = arith.addf %107, %109 : vector<128x192xf32>
      %cst_95 = arith.constant 0.000000e+00 : f32
      %111 = vector.broadcast %cst_95 : f32 to vector<128x192xf32>
      %112 = arith.maximumf %110, %111 : vector<128x192xf32>
      %113 = arith.truncf %112 : vector<128x192xf32> to vector<128x192xbf16>
      %c1_96 = arith.constant 1 : index
      %c0_97 = arith.constant 0 : index
      %c0_98 = arith.constant 0 : index
      %114 = vector.load %arg19[%c1_96, %c0_97, %c0_98] : memref<2x128x192xbf16, #tpu.memory_space<vmem>>, vector<1x128x192xbf16>
      %115 = vector.shape_cast %114 : vector<1x128x192xbf16> to vector<128x192xbf16>
      %116 = vector.shape_cast %113 : vector<128x192xbf16> to vector<1x128x192xbf16>
      tpu.vector_store %arg19[%c1_96, %c0_97, %c0_98], %116 {strides = array<i32>} : memref<2x128x192xbf16, #tpu.memory_space<vmem>>, vector<1x128x192xbf16>,
    } else {
    }
    %c0 = arith.constant 0 : index
    %c0_1 = arith.constant 0 : index
    %c0_2 = arith.constant 0 : index
    %3 = vector.load %arg19[%c0, %c0_1, %c0_2] : memref<2x128x192xbf16, #tpu.memory_space<vmem>>, vector<1x128x192xbf16>
    %4 = vector.shape_cast %3 : vector<1x128x192xbf16> to vector<128x192xbf16>
    %c0_3 = arith.constant 0 : index
    %c0_4 = arith.constant 0 : index
    %c0_5 = arith.constant 0 : index
    %5 = vector.load %arg16[%c0_3, %c0_4, %c0_5] : memref<2x192x256xbf16, #tpu.memory_space<vmem>>, vector<1x192x256xbf16>
    %6 = vector.shape_cast %5 : vector<1x192x256xbf16> to vector<192x256xbf16>
    %cst = arith.constant dense<0.000000e+00> : vector<128x256xf32>
    %7 = tpu.matmul %4, %6, %cst {dimension_numbers = #tpu.dot_dimension_numbers<[1], [0], [0], [1], [0, 0, 1, 1], [], []>} : vector<128x192xbf16>, vector<192x256xbf16>, vector<128x256xf32> -> vector<128x256xf32>
    %c1 = arith.constant 1 : index
    %c0_6 = arith.constant 0 : index
    %c0_7 = arith.constant 0 : index
    %8 = vector.load %arg19[%c1, %c0_6, %c0_7] : memref<2x128x192xbf16, #tpu.memory_space<vmem>>, vector<1x128x192xbf16>
    %9 = vector.shape_cast %8 : vector<1x128x192xbf16> to vector<128x192xbf16>
    %c1_8 = arith.constant 1 : index
    %c0_9 = arith.constant 0 : index
    %c0_10 = arith.constant 0 : index
    %10 = vector.load %arg16[%c1_8, %c0_9, %c0_10] : memref<2x192x256xbf16, #tpu.memory_space<vmem>>, vector<1x192x256xbf16>
    %11 = vector.shape_cast %10 : vector<1x192x256xbf16> to vector<192x256xbf16>
    %cst_11 = arith.constant dense<0.000000e+00> : vector<128x256xf32>
    %12 = tpu.matmul %9, %11, %cst_11 {dimension_numbers = #tpu.dot_dimension_numbers<[1], [0], [0], [1], [0, 0, 1, 1], [], []>} : vector<128x192xbf16>, vector<192x256xbf16>, vector<128x256xf32> -> vector<128x256xf32>
    %13 = arith.addf %7, %12 : vector<128x256xf32>
    %c0_12 = arith.constant 0 : index
    %c0_13 = arith.constant 0 : index
    %14 = vector.load %arg17[%c0_12, %c0_13] : memref<1x256xf32, #tpu.memory_space<vmem>>, vector<1x256xf32>
    %15 = vector.broadcast %14 : vector<1x256xf32> to vector<128x256xf32>
    %16 = arith.addf %13, %15 : vector<128x256xf32>
    %cst_14 = arith.constant 1.000000e+00 : f32
    %17 = vector.broadcast %cst_14 : f32 to vector<128x256xf32>
    %18 = arith.mulf %16, %17 : vector<128x256xf32>
    %c0_15 = arith.constant 0 : index
    %c0_16 = arith.constant 0 : index
    %19 = vector.load %arg2[%c0_15, %c0_16] : memref<128x256xf32, #tpu.memory_space<vmem>>, vector<128x256xf32>
    %20 = arith.addf %18, %19 : vector<128x256xf32>
    %cst_17 = arith.constant 0.000000e+00 : f32
    %21 = vector.broadcast %cst_17 : f32 to vector<128x256xf32>
    %22 = arith.maximumf %20, %21 : vector<128x256xf32>
    %c0_18 = arith.constant 0 : index
    %c0_19 = arith.constant 0 : index
    %23 = vector.load %arg18[%c0_18, %c0_19] : memref<128x256xf32, #tpu.memory_space<vmem>>, vector<128x256xf32>
    tpu.vector_store %arg18[%c0_18, %c0_19], %22 {strides = array<i32>} : memref<128x256xf32, #tpu.memory_space<vmem>>, vector<128x256xf32>,
    return
  }
  func.func @transform_0(%arg0: i32) -> (i32, i32) {
    %c0_i32 = arith.constant 0 : i32
    %c0_i32_0 = arith.constant 0 : i32
    %c0_i32_1 = arith.constant 0 : i32
    return %c0_i32, %c0_i32_0 : i32, i32
  }
  func.func @transform_1(%arg0: i32) -> (i32, i32) {
    %c0_i32 = arith.constant 0 : i32
    %c0_i32_0 = arith.constant 0 : i32
    return %c0_i32, %arg0 : i32, i32
  }
  func.func @transform_2(%arg0: i32) -> (i32, i32, i32) {
    %c0_i32 = arith.constant 0 : i32
    %c0_i32_0 = arith.constant 0 : i32
    %c0_i32_1 = arith.constant 0 : i32
    %c0_i32_2 = arith.constant 0 : i32
    return %c0_i32, %c0_i32_0, %c0_i32_1 : i32, i32, i32
  }
  func.func @transform_3(%arg0: i32) -> (i32, i32) {
    %c0_i32 = arith.constant 0 : i32
    %c0_i32_0 = arith.constant 0 : i32
    %c0_i32_1 = arith.constant 0 : i32
    return %c0_i32, %c0_i32_0 : i32, i32
  }
  func.func @transform_4(%arg0: i32) -> (i32, i32) {
    %c0_i32 = arith.constant 0 : i32
    %c0_i32_0 = arith.constant 0 : i32
    %c0_i32_1 = arith.constant 0 : i32
    return %c0_i32, %c0_i32_0 : i32, i32
  }
  func.func @transform_5(%arg0: i32) -> (i32, i32) {
    %c0_i32 = arith.constant 0 : i32
    %c0_i32_0 = arith.constant 0 : i32
    %c0_i32_1 = arith.constant 0 : i32
    return %c0_i32, %c0_i32_0 : i32, i32
  }
  func.func @transform_6(%arg0: i32) -> (i32, i32) {
    %c0_i32 = arith.constant 0 : i32
    %c0_i32_0 = arith.constant 0 : i32
    %c0_i32_1 = arith.constant 0 : i32
    return %c0_i32, %c0_i32_0 : i32, i32
  }
  func.func @transform_7(%arg0: i32) -> (i32, i32) {
    %c0_i32 = arith.constant 0 : i32
    %c0_i32_0 = arith.constant 0 : i32
    %c0_i32_1 = arith.constant 0 : i32
    return %c0_i32, %c0_i32_0 : i32, i32
  }
  func.func @transform_8(%arg0: i32) -> (i32, i32) {
    %c0_i32 = arith.constant 0 : i32
    %c0_i32_0 = arith.constant 0 : i32
    %c0_i32_1 = arith.constant 0 : i32
    return %c0_i32, %c0_i32_0 : i32, i32
  }
  func.func @transform_9(%arg0: i32) -> (i32, i32, i32) {
    %c0_i32 = arith.constant 0 : i32
    %c0_i32_0 = arith.constant 0 : i32
    %c0_i32_1 = arith.constant 0 : i32
    %c0_i32_2 = arith.constant 0 : i32
    return %c0_i32, %c0_i32_0, %c0_i32_1 : i32, i32, i32
  }
  func.func @transform_10(%arg0: i32) -> (i32, i32) {
    %c0_i32 = arith.constant 0 : i32
    %c0_i32_0 = arith.constant 0 : i32
    %c0_i32_1 = arith.constant 0 : i32
    return %c0_i32, %c0_i32_0 : i32, i32
  }
  func.func @transform_11(%arg0: i32) -> (i32, i32) {
    %c0_i32 = arith.constant 0 : i32
    %c0_i32_0 = arith.constant 0 : i32
    %c0_i32_1 = arith.constant 0 : i32
    return %c0_i32, %c0_i32_0 : i32, i32
  }
  func.func @transform_12(%arg0: i32) -> (i32, i32, i32) {
    %c0_i32 = arith.constant 0 : i32
    %c0_i32_0 = arith.constant 0 : i32
    %c0_i32_1 = arith.constant 0 : i32
    %c0_i32_2 = arith.constant 0 : i32
    return %c0_i32, %c0_i32_0, %c0_i32_1 : i32, i32, i32
  }
  func.func @transform_13(%arg0: i32) -> (i32, i32) {
    %c0_i32 = arith.constant 0 : i32
    %c0_i32_0 = arith.constant 0 : i32
    %c0_i32_1 = arith.constant 0 : i32
    return %c0_i32, %c0_i32_0 : i32, i32
  }
  func.func @transform_14(%arg0: i32) -> (i32, i32) {
    %c0_i32 = arith.constant 0 : i32
    %c0_i32_0 = arith.constant 0 : i32
    %c0_i32_1 = arith.constant 0 : i32
    return %c0_i32, %c0_i32_0 : i32, i32
  }
  func.func @transform_15(%arg0: i32) -> (i32, i32, i32) {
    %c0_i32 = arith.constant 0 : i32
    %c0_i32_0 = arith.constant 0 : i32
    %c0_i32_1 = arith.constant 0 : i32
    return %c0_i32, %c0_i32_0, %arg0 : i32, i32, i32
  }
  func.func @transform_16(%arg0: i32) -> (i32, i32) {
    %c0_i32 = arith.constant 0 : i32
    %c0_i32_0 = arith.constant 0 : i32
    return %c0_i32, %arg0 : i32, i32
  }
  func.func @transform_17(%arg0: i32) -> (i32, i32) {
    %c0_i32 = arith.constant 0 : i32
    %c0_i32_0 = arith.constant 0 : i32
    return %c0_i32, %arg0 : i32, i32
  }
}

</mosaic_0001>

<llo_original>
// kernel: block8_forward.1
$region0: #{block8_forward.1}
  #allocation0 [shape = 'u32[]', space=smem, size = 0x4, offset = 0x4, fixed_abs, tag = 'smem constant byte address 0x4 - core index']
  #allocation1 [shape = 'u32[144,128]{1,0:T(1,128)}', space=vmem, size = 0x12000, scoped, tag = 'internal scratch']
  #allocation2 [shape = 'bf16[2,128,192]{2,1,0:T(16,128)(2,1)}', space=vmem, size = 0x20000, scoped, tag = 'scratch operand']
  #allocation3 [shape = 'bf16[144,192]{1,0:T(16,128)(2,1)}', space=vmem, size = 0x12000, scoped, tag = 'scratch operand']
  %s0 = inlined_call_operand.vmem [shape: bf16[128,1792], index: 0, kind: input, shape index: {}]
  %s1 = inlined_call_operand.vmem [shape: f32[128,1792], index: 1, kind: input, shape index: {}]
  %s2 = inlined_call_operand.vmem [shape: bf16[4,128,1], index: 2, kind: input, shape index: {}]
  %s3 = inlined_call_operand.vmem [shape: bf16[1792,192], index: 3, kind: input, shape index: {}]
  %s4 = inlined_call_operand.vmem [shape: f32[1,192], index: 4, kind: input, shape index: {}]
  %s5 = inlined_call_operand.vmem [shape: f32[1,192], index: 5, kind: input, shape index: {}]
  %s6 = inlined_call_operand.vmem [shape: bf16[1792,192], index: 6, kind: input, shape index: {}]
  %s7 = inlined_call_operand.vmem [shape: f32[1,192], index: 7, kind: input, shape index: {}]
  %s8 = inlined_call_operand.vmem [shape: f32[1,192], index: 8, kind: input, shape index: {}]
  %s9 = inlined_call_operand.vmem [shape: bf16[3,192,192], index: 9, kind: input, shape index: {}]
  %s10 = inlined_call_operand.vmem [shape: f32[1,192], index: 10, kind: input, shape index: {}]
  %s11 = inlined_call_operand.vmem [shape: f32[1,192], index: 11, kind: input, shape index: {}]
  %s12 = inlined_call_operand.vmem [shape: bf16[3,192,192], index: 12, kind: input, shape index: {}]
  %s13 = inlined_call_operand.vmem [shape: f32[1,192], index: 13, kind: input, shape index: {}]
  %s14 = inlined_call_operand.vmem [shape: f32[1,192], index: 14, kind: input, shape index: {}]
  %s15 = inlined_call_operand.vmem [shape: bf16[2,192,1792], index: 15, kind: input, shape index: {}]
  %s16 = inlined_call_operand.vmem [shape: f32[1,1792], index: 16, kind: input, shape index: {}]
  %s17 = inlined_call_operand.hbm [shape: f32[128,1792], index: 17, kind: output, shape index: {}]
  %s18 = sld [smem:[#allocation0]]
  $region166: #{block8_forward.1} parent=0
    _
  %s20 = ssub.s32 1, %s18
  %s21 = scalar_select 0, %s20, %s18
  $region1: #{block8_forward.1} parent=0
    #allocation4 [shape = 'u8[262144]{0}', space=vmem, size = 0x40000, scoped, tag = 'input window, operand 1']
    #allocation5 [shape = 'u8[393216]{0}', space=vmem, size = 0x60000, scoped, tag = 'input window, operand 15']
    #allocation6 [shape = 'u8[262144]{0}', space=vmem, size = 0x40000, scoped, tag = 'output window, operand 0']
    #allocation7 [shape = 's32[2]{0}', space=sflag, size = 0x8, scoped, tag = 'scoped memory for block8_forward.1']
    %22 = vsyncpa [#allocation7], 0
    %s23 = scalar_lea.sflag [#allocation7], 1
    %24 = vsyncpa %s23, 0
    loop: start=0, step=1, limit=9
    $region2: #{block8_forward.1} parent=1 // loop_pre_header
      _
    $region3: #{block8_forward.1} parent=1 // loop_header
      %s26 = sphi 0, %s30
      %p27 = scmp.ge.s32.totalorder %s26, 9
      %s34 = sphi 0, %s34
      %s36 = sphi 0, %s34
      %s37 = sphi 0, %s36
      %s51 = sphi 0, %s37
      %s57 = sphi 0, %s59
      %s60 = sphi 0, %s57
      %s61 = sphi 0, %s60
      %s77 = sphi 0, %s61
      %s81 = sphi 0, %s81
      %s83 = sphi 0, %s81
      %s84 = sphi 0, %s83
      %s98 = sphi 0, %s84
      %s102 = sphi 0, %s102
      %s104 = sphi 0, %s102
      %s105 = sphi 0, %s104
      %s119 = sphi 0, %s105
      %s123 = sphi 0, %s123
      %s125 = sphi 0, %s123
      %s126 = sphi 0, %s125
      %s140 = sphi 0, %s126
      %s144 = sphi 0, %s144
      %s146 = sphi 0, %s144
      %s147 = sphi 0, %s146
      %s161 = sphi 0, %s147
      %s165 = sphi 0, %s165
      %s167 = sphi 0, %s165
      %s168 = sphi 0, %s167
      %s182 = sphi 0, %s168
      %s186 = sphi 0, %s186
      %s188 = sphi 0, %s186
      %s189 = sphi 0, %s188
      %s203 = sphi 0, %s189
      %s207 = sphi 0, %s207
      %s209 = sphi 0, %s207
      %s210 = sphi 0, %s209
      %s224 = sphi 0, %s210
      %s228 = sphi 0, %s228
      %s230 = sphi 0, %s228
      %s231 = sphi 0, %s230
      %s245 = sphi 0, %s231
      %s249 = sphi 0, %s249
      %s251 = sphi 0, %s249
      %s252 = sphi 0, %s251
      %s266 = sphi 0, %s252
      %s270 = sphi 0, %s270
      %s272 = sphi 0, %s270
      %s273 = sphi 0, %s272
      %s287 = sphi 0, %s273
      %s291 = sphi 0, %s291
      %s293 = sphi 0, %s291
      %s294 = sphi 0, %s293
      %s308 = sphi 0, %s294
      %s312 = sphi 0, %s312
      %s314 = sphi 0, %s312
      %s315 = sphi 0, %s314
      %s329 = sphi 0, %s315
      %s333 = sphi 0, %s333
      %s335 = sphi 0, %s333
      %s336 = sphi 0, %s335
      %s350 = sphi 0, %s336
      %s356 = sphi 0, %s358
      %s359 = sphi 0, %s356
      %s360 = sphi 0, %s359
      %s376 = sphi 0, %s360
      %s382 = sphi 0, %s384
      %s385 = sphi 0, %s382
      %s386 = sphi 0, %s385
      %s402 = sphi 0, %s386
      %s408 = sphi 0, %s410
      %s411 = sphi 0, %s408
      %s412 = sphi 0, %s411
      %s428 = sphi 0, %s412
    $region4: #{block8_forward.1} parent=1 // loop_header_branch
      %29 = sbr.rel (%p27) target = $region8
    $region5: #{block8_forward.1} parent=1 // loop_body
      %s31 = ssub.s32 %s26, 1
      %s32 = ssub.s32 %s26, 2
      %s33 = sadd.s32 %s26, 1
      %s35 = sadd.s32 %s34, 1
      %p38 = scmp.eq.s32.totalorder %s26, 6
      %p39 = scmp.ne.s32.totalorder %s34, %s36
      %p40 = scmp.eq.s32.totalorder %s26, 0
      %p41 = por %p39, %p40
      %p42 = scmp.ne.s32.totalorder %s34, %s36
      %p43 = scmp.eq.s32.totalorder %s31, 6
      %p44 = por %p42, %p43
      %p45 = scmp.ne.s32.totalorder %s36, %s37
      %p46 = scmp.eq.s32.totalorder %s31, 0
      %p47 = por %p45, %p46
      %p48 = scmp.ne.s32.totalorder %s36, %s37
      %p49 = scmp.eq.s32.totalorder %s32, 6
      %p50 = por %p48, %p49
      %p52 = scmp.ne.s32.totalorder %s37, %s51
      %p53 = scmp.eq.s32.totalorder %s32, 0
      %p54 = por %p52, %p53
      %s55 = ssub.s32 %s26, %s33
      %p56 = scmp.eq.s32.totalorder %s55, 0
      %s58 = sadd.s32 %s57, 1
      %s59 = scalar_select %p56, %s57, %s58
      %p62 = pneg %p56
      %p63 = scmp.eq.s32.totalorder %s26, 6
      %p64 = por %p62, %p63
      %p65 = scmp.ne.s32.totalorder %s57, %s60
      %p66 = scmp.eq.s32.totalorder %s26, 0
      %p67 = por %p65, %p66
      %p68 = scmp.ne.s32.totalorder %s57, %s60
      %p69 = scmp.eq.s32.totalorder %s31, 6
      %p70 = por %p68, %p69
      %p71 = scmp.ne.s32.totalorder %s60, %s61
      %p72 = scmp.eq.s32.totalorder %s31, 0
      %p73 = por %p71, %p72
      %p74 = scmp.ne.s32.totalorder %s60, %s61
      %p75 = scmp.eq.s32.totalorder %s32, 6
      %p76 = por %p74, %p75
      %p78 = scmp.ne.s32.totalorder %s61, %s77
      %p79 = scmp.eq.s32.totalorder %s32, 0
      %p80 = por %p78, %p79
      %s82 = sadd.s32 %s81, 1
      %p85 = scmp.eq.s32.totalorder %s26, 6
      %p86 = scmp.ne.s32.totalorder %s81, %s83
      %p87 = scmp.eq.s32.totalorder %s26, 0
      %p88 = por %p86, %p87
      %p89 = scmp.ne.s32.totalorder %s81, %s83
      %p90 = scmp.eq.s32.totalorder %s31, 6
      %p91 = por %p89, %p90
      %p92 = scmp.ne.s32.totalorder %s83, %s84
      %p93 = scmp.eq.s32.totalorder %s31, 0
      %p94 = por %p92, %p93
      %p95 = scmp.ne.s32.totalorder %s83, %s84
      %p96 = scmp.eq.s32.totalorder %s32, 6
      %p97 = por %p95, %p96
      %p99 = scmp.ne.s32.totalorder %s84, %s98
      %p100 = scmp.eq.s32.totalorder %s32, 0
      %p101 = por %p99, %p100
      %s103 = sadd.s32 %s102, 1
      %p106 = scmp.eq.s32.totalorder %s26, 6
      %p107 = scmp.ne.s32.totalorder %s102, %s104
      %p108 = scmp.eq.s32.totalorder %s26, 0
      %p109 = por %p107, %p108
      %p110 = scmp.ne.s32.totalorder %s102, %s104
      %p111 = scmp.eq.s32.totalorder %s31, 6
      %p112 = por %p110, %p111
      %p113 = scmp.ne.s32.totalorder %s104, %s105
      %p114 = scmp.eq.s32.totalorder %s31, 0
      %p115 = por %p113, %p114
      %p116 = scmp.ne.s32.totalorder %s104, %s105
      %p117 = scmp.eq.s32.totalorder %s32, 6
      %p118 = por %p116, %p117
      %p120 = scmp.ne.s32.totalorder %s105, %s119
      %p121 = scmp.eq.s32.totalorder %s32, 0
      %p122 = por %p120, %p121
      %s124 = sadd.s32 %s123, 1
      %p127 = scmp.eq.s32.totalorder %s26, 6
      %p128 = scmp.ne.s32.totalorder %s123, %s125
      %p129 = scmp.eq.s32.totalorder %s26, 0
      %p130 = por %p128, %p129
      %p131 = scmp.ne.s32.totalorder %s123, %s125
      %p132 = scmp.eq.s32.totalorder %s31, 6
      %p133 = por %p131, %p132
      %p134 = scmp.ne.s32.totalorder %s125, %s126
      %p135 = scmp.eq.s32.totalorder %s31, 0
      %p136 = por %p134, %p135
      %p137 = scmp.ne.s32.totalorder %s125, %s126
      %p138 = scmp.eq.s32.totalorder %s32, 6
      %p139 = por %p137, %p138
      %p141 = scmp.ne.s32.totalorder %s126, %s140
      %p142 = scmp.eq.s32.totalorder %s32, 0
      %p143 = por %p141, %p142
      %s145 = sadd.s32 %s144, 1
      %p148 = scmp.eq.s32.totalorder %s26, 6
      %p149 = scmp.ne.s32.totalorder %s144, %s146
      %p150 = scmp.eq.s32.totalorder %s26, 0
      %p151 = por %p149, %p150
      %p152 = scmp.ne.s32.totalorder %s144, %s146
      %p153 = scmp.eq.s32.totalorder %s31, 6
      %p154 = por %p152, %p153
      %p155 = scmp.ne.s32.totalorder %s146, %s147
      %p156 = scmp.eq.s32.totalorder %s31, 0
      %p157 = por %p155, %p156
      %p158 = scmp.ne.s32.totalorder %s146, %s147
      %p159 = scmp.eq.s32.totalorder %s32, 6
      %p160 = por %p158, %p159
      %p162 = scmp.ne.s32.totalorder %s147, %s161
      %p163 = scmp.eq.s32.totalorder %s32, 0
      %p164 = por %p162, %p163
      %s166 = sadd.s32 %s165, 1
      %p169 = scmp.eq.s32.totalorder %s26, 6
      %p170 = scmp.ne.s32.totalorder %s165, %s167
      %p171 = scmp.eq.s32.totalorder %s26, 0
      %p172 = por %p170, %p171
      %p173 = scmp.ne.s32.totalorder %s165, %s167
      %p174 = scmp.eq.s32.totalorder %s31, 6
      %p175 = por %p173, %p174
      %p176 = scmp.ne.s32.totalorder %s167, %s168
      %p177 = scmp.eq.s32.totalorder %s31, 0
      %p178 = por %p176, %p177
      %p179 = scmp.ne.s32.totalorder %s167, %s168
      %p180 = scmp.eq.s32.totalorder %s32, 6
      %p181 = por %p179, %p180
      %p183 = scmp.ne.s32.totalorder %s168, %s182
      %p184 = scmp.eq.s32.totalorder %s32, 0
      %p185 = por %p183, %p184
      %s187 = sadd.s32 %s186, 1
      %p190 = scmp.eq.s32.totalorder %s26, 6
      %p191 = scmp.ne.s32.totalorder %s186, %s188
      %p192 = scmp.eq.s32.totalorder %s26, 0
      %p193 = por %p191, %p192
      %p194 = scmp.ne.s32.totalorder %s186, %s188
      %p195 = scmp.eq.s32.totalorder %s31, 6
      %p196 = por %p194, %p195
      %p197 = scmp.ne.s32.totalorder %s188, %s189
      %p198 = scmp.eq.s32.totalorder %s31, 0
      %p199 = por %p197, %p198
      %p200 = scmp.ne.s32.totalorder %s188, %s189
      %p201 = scmp.eq.s32.totalorder %s32, 6
      %p202 = por %p200, %p201
      %p204 = scmp.ne.s32.totalorder %s189, %s203
      %p205 = scmp.eq.s32.totalorder %s32, 0
      %p206 = por %p204, %p205
      %s208 = sadd.s32 %s207, 1
      %p211 = scmp.eq.s32.totalorder %s26, 6
      %p212 = scmp.ne.s32.totalorder %s207, %s209
      %p213 = scmp.eq.s32.totalorder %s26, 0
      %p214 = por %p212, %p213
      %p215 = scmp.ne.s32.totalorder %s207, %s209
      %p216 = scmp.eq.s32.totalorder %s31, 6
      %p217 = por %p215, %p216
      %p218 = scmp.ne.s32.totalorder %s209, %s210
      %p219 = scmp.eq.s32.totalorder %s31, 0
      %p220 = por %p218, %p219
      %p221 = scmp.ne.s32.totalorder %s209, %s210
      %p222 = scmp.eq.s32.totalorder %s32, 6
      %p223 = por %p221, %p222
      %p225 = scmp.ne.s32.totalorder %s210, %s224
      %p226 = scmp.eq.s32.totalorder %s32, 0
      %p227 = por %p225, %p226
      %s229 = sadd.s32 %s228, 1
      %p232 = scmp.eq.s32.totalorder %s26, 6
      %p233 = scmp.ne.s32.totalorder %s228, %s230
      %p234 = scmp.eq.s32.totalorder %s26, 0
      %p235 = por %p233, %p234
      %p236 = scmp.ne.s32.totalorder %s228, %s230
      %p237 = scmp.eq.s32.totalorder %s31, 6
      %p238 = por %p236, %p237
      %p239 = scmp.ne.s32.totalorder %s230, %s231
      %p240 = scmp.eq.s32.totalorder %s31, 0
      %p241 = por %p239, %p240
      %p242 = scmp.ne.s32.totalorder %s230, %s231
      %p243 = scmp.eq.s32.totalorder %s32, 6
      %p244 = por %p242, %p243
      %p246 = scmp.ne.s32.totalorder %s231, %s245
      %p247 = scmp.eq.s32.totalorder %s32, 0
      %p248 = por %p246, %p247
      %s250 = sadd.s32 %s249, 1
      %p253 = scmp.eq.s32.totalorder %s26, 6
      %p254 = scmp.ne.s32.totalorder %s249, %s251
      %p255 = scmp.eq.s32.totalorder %s26, 0
      %p256 = por %p254, %p255
      %p257 = scmp.ne.s32.totalorder %s249, %s251
      %p258 = scmp.eq.s32.totalorder %s31, 6
      %p259 = por %p257, %p258
      %p260 = scmp.ne.s32.totalorder %s251, %s252
      %p261 = scmp.eq.s32.totalorder %s31, 0
      %p262 = por %p260, %p261
      %p263 = scmp.ne.s32.totalorder %s251, %s252
      %p264 = scmp.eq.s32.totalorder %s32, 6
      %p265 = por %p263, %p264
      %p267 = scmp.ne.s32.totalorder %s252, %s266
      %p268 = scmp.eq.s32.totalorder %s32, 0
      %p269 = por %p267, %p268
      %s271 = sadd.s32 %s270, 1
      %p274 = scmp.eq.s32.totalorder %s26, 6
      %p275 = scmp.ne.s32.totalorder %s270, %s272
      %p276 = scmp.eq.s32.totalorder %s26, 0
      %p277 = por %p275, %p276
      %p278 = scmp.ne.s32.totalorder %s270, %s272
      %p279 = scmp.eq.s32.totalorder %s31, 6
      %p280 = por %p278, %p279
      %p281 = scmp.ne.s32.totalorder %s272, %s273
      %p282 = scmp.eq.s32.totalorder %s31, 0
      %p283 = por %p281, %p282
      %p284 = scmp.ne.s32.totalorder %s272, %s273
      %p285 = scmp.eq.s32.totalorder %s32, 6
      %p286 = por %p284, %p285
      %p288 = scmp.ne.s32.totalorder %s273, %s287
      %p289 = scmp.eq.s32.totalorder %s32, 0
      %p290 = por %p288, %p289
      %s292 = sadd.s32 %s291, 1
      %p295 = scmp.eq.s32.totalorder %s26, 6
      %p296 = scmp.ne.s32.totalorder %s291, %s293
      %p297 = scmp.eq.s32.totalorder %s26, 0
      %p298 = por %p296, %p297
      %p299 = scmp.ne.s32.totalorder %s291, %s293
      %p300 = scmp.eq.s32.totalorder %s31, 6
      %p301 = por %p299, %p300
      %p302 = scmp.ne.s32.totalorder %s293, %s294
      %p303 = scmp.eq.s32.totalorder %s31, 0
      %p304 = por %p302, %p303
      %p305 = scmp.ne.s32.totalorder %s293, %s294
      %p306 = scmp.eq.s32.totalorder %s32, 6
      %p307 = por %p305, %p306
      %p309 = scmp.ne.s32.totalorder %s294, %s308
      %p310 = scmp.eq.s32.totalorder %s32, 0
      %p311 = por %p309, %p310
      %s313 = sadd.s32 %s312, 1
      %p316 = scmp.eq.s32.totalorder %s26, 6
      %p317 = scmp.ne.s32.totalorder %s312, %s314
      %p318 = scmp.eq.s32.totalorder %s26, 0
      %p319 = por %p317, %p318
      %p320 = scmp.ne.s32.totalorder %s312, %s314
      %p321 = scmp.eq.s32.totalorder %s31, 6
      %p322 = por %p320, %p321
      %p323 = scmp.ne.s32.totalorder %s314, %s315
      %p324 = scmp.eq.s32.totalorder %s31, 0
      %p325 = por %p323, %p324
      %p326 = scmp.ne.s32.totalorder %s314, %s315
      %p327 = scmp.eq.s32.totalorder %s32, 6
      %p328 = por %p326, %p327
      %p330 = scmp.ne.s32.totalorder %s315, %s329
      %p331 = scmp.eq.s32.totalorder %s32, 0
      %p332 = por %p330, %p331
      %s334 = sadd.s32 %s333, 1
      %p337 = scmp.eq.s32.totalorder %s26, 6
      %p338 = scmp.ne.s32.totalorder %s333, %s335
      %p339 = scmp.eq.s32.totalorder %s26, 0
      %p340 = por %p338, %p339
      %p341 = scmp.ne.s32.totalorder %s333, %s335
      %p342 = scmp.eq.s32.totalorder %s31, 6
      %p343 = por %p341, %p342
      %p344 = scmp.ne.s32.totalorder %s335, %s336
      %p345 = scmp.eq.s32.totalorder %s31, 0
      %p346 = por %p344, %p345
      %p347 = scmp.ne.s32.totalorder %s335, %s336
      %p348 = scmp.eq.s32.totalorder %s32, 6
      %p349 = por %p347, %p348
      %p351 = scmp.ne.s32.totalorder %s336, %s350
      %p352 = scmp.eq.s32.totalorder %s32, 0
      %p353 = por %p351, %p352
      %s354 = ssub.s32 %s26, %s33
      %p355 = scmp.eq.s32.totalorder %s354, 0
      %s357 = sadd.s32 %s356, 1
      %s358 = scalar_select %p355, %s356, %s357
      %p361 = pneg %p355
      %p362 = scmp.eq.s32.totalorder %s26, 6
      %p363 = por %p361, %p362
      %p364 = scmp.ne.s32.totalorder %s356, %s359
      %p365 = scmp.eq.s32.totalorder %s26, 0
      %p366 = por %p364, %p365
      %p367 = scmp.ne.s32.totalorder %s356, %s359
      %p368 = scmp.eq.s32.totalorder %s31, 6
      %p369 = por %p367, %p368
      %p370 = scmp.ne.s32.totalorder %s359, %s360
      %p371 = scmp.eq.s32.totalorder %s31, 0
      %p372 = por %p370, %p371
      %p373 = scmp.ne.s32.totalorder %s359, %s360
      %p374 = scmp.eq.s32.totalorder %s32, 6
      %p375 = por %p373, %p374
      %p377 = scmp.ne.s32.totalorder %s360, %s376
      %p378 = scmp.eq.s32.totalorder %s32, 0
      %p379 = por %p377, %p378
      %s380 = ssub.s32 %s26, %s33
      %p381 = scmp.eq.s32.totalorder %s380, 0
      %s383 = sadd.s32 %s382, 1
      %s384 = scalar_select %p381, %s382, %s383
      %p387 = pneg %p381
      %p388 = scmp.eq.s32.totalorder %s26, 6
      %p389 = por %p387, %p388
      %p390 = scmp.ne.s32.totalorder %s382, %s385
      %p391 = scmp.eq.s32.totalorder %s26, 0
      %p392 = por %p390, %p391
      %p393 = scmp.ne.s32.totalorder %s382, %s385
      %p394 = scmp.eq.s32.totalorder %s31, 6
      %p395 = por %p393, %p394
      %p396 = scmp.ne.s32.totalorder %s385, %s386
      %p397 = scmp.eq.s32.totalorder %s31, 0
      %p398 = por %p396, %p397
      %p399 = scmp.ne.s32.totalorder %s385, %s386
      %p400 = scmp.eq.s32.totalorder %s32, 6
      %p401 = por %p399, %p400
      %p403 = scmp.ne.s32.totalorder %s386, %s402
      %p404 = scmp.eq.s32.totalorder %s32, 0
      %p405 = por %p403, %p404
      %s406 = ssub.s32 %s26, %s33
      %p407 = scmp.eq.s32.totalorder %s406, 0
      %s409 = sadd.s32 %s408, 1
      %s410 = scalar_select %p407, %s408, %s409
      %p413 = pneg %p407
      %p414 = scmp.eq.s32.totalorder %s26, 6
      %p415 = por %p413, %p414
      %p416 = scmp.ne.s32.totalorder %s408, %s411
      %p417 = scmp.eq.s32.totalorder %s26, 0
      %p418 = por %p416, %p417
      %p419 = scmp.ne.s32.totalorder %s408, %s411
      %p420 = scmp.eq.s32.totalorder %s31, 6
      %p421 = por %p419, %p420
      %p422 = scmp.ne.s32.totalorder %s411, %s412
      %p423 = scmp.eq.s32.totalorder %s31, 0
      %p424 = por %p422, %p423
      %p425 = scmp.ne.s32.totalorder %s411, %s412
      %p426 = scmp.eq.s32.totalorder %s32, 6
      %p427 = por %p425, %p426
      %p429 = scmp.ne.s32.totalorder %s412, %s428
      %p430 = scmp.eq.s32.totalorder %s32, 0
      %p431 = por %p429, %p430
      %p432 = scmp.le.s32.totalorder 1, %s26
      %p433 = scmp.lt.s32.totalorder %s26, 8
      %p434 = pnand %p432, %p433
      %p435 = pneg %p434
      // Predicated region
      $region9: #{block8_forward.1} parent=5 // pred_check
        _
      $region10: #{block8_forward.1} parent=5 // pred_check_branch
        %437 = sbr.rel (%p434) target = $region12
      $region11: #{block8_forward.1} parent=5 // pred_region
        %s438 = ssub.s32 %s26, 1
        // Predicated region
        $region13: #{block8_forward.1} parent=11 // pred_check
          %p439 = pneg %p47
        $region14: #{block8_forward.1} parent=11 // pred_check_branch
          %441 = sbr.rel (%p439) target = $region16
        $region15: #{block8_forward.1} parent=11 // pred_region
          _
        $region16: #{block8_forward.1} parent=11 // pred_fallthru
          _
        // Predicated region
        $region17: #{block8_forward.1} parent=11 // pred_check
          %p442 = pneg %p94
        $region18: #{block8_forward.1} parent=11 // pred_check_branch
          %444 = sbr.rel (%p442) target = $region20
        $region19: #{block8_forward.1} parent=11 // pred_region
          _
        $region20: #{block8_forward.1} parent=11 // pred_fallthru
          _
        // Predicated region
        $region21: #{block8_forward.1} parent=11 // pred_check
          %p445 = pneg %p115
        $region22: #{block8_forward.1} parent=11 // pred_check_branch
          %447 = sbr.rel (%p445) target = $region24
        $region23: #{block8_forward.1} parent=11 // pred_region
          _
        $region24: #{block8_forward.1} parent=11 // pred_fallthru
          _
        // Predicated region
        $region25: #{block8_forward.1} parent=11 // pred_check
          %p448 = pneg %p136
        $region26: #{block8_forward.1} parent=11 // pred_check_branch
          %450 = sbr.rel (%p448) target = $region28
        $region27: #{block8_forward.1} parent=11 // pred_region
          _
        $region28: #{block8_forward.1} parent=11 // pred_fallthru
          _
        // Predicated region
        $region29: #{block8_forward.1} parent=11 // pred_check
          %p451 = pneg %p157
        $region30: #{block8_forward.1} parent=11 // pred_check_branch
          %453 = sbr.rel (%p451) target = $region32
        $region31: #{block8_forward.1} parent=11 // pred_region
          _
        $region32: #{block8_forward.1} parent=11 // pred_fallthru
          _
        // Predicated region
        $region33: #{block8_forward.1} parent=11 // pred_check
          %p454 = pneg %p178
        $region34: #{block8_forward.1} parent=11 // pred_check_branch
          %456 = sbr.rel (%p454) target = $region36
        $region35: #{block8_forward.1} parent=11 // pred_region
          _
        $region36: #{block8_forward.1} parent=11 // pred_fallthru
          _
        // Predicated region
        $region37: #{block8_forward.1} parent=11 // pred_check
          %p457 = pneg %p199
        $region38: #{block8_forward.1} parent=11 // pred_check_branch
          %459 = sbr.rel (%p457) target = $region40
        $region39: #{block8_forward.1} parent=11 // pred_region
          _
        $region40: #{block8_forward.1} parent=11 // pred_fallthru
          _
        // Predicated region
        $region41: #{block8_forward.1} parent=11 // pred_check
          %p460 = pneg %p220
        $region42: #{block8_forward.1} parent=11 // pred_check_branch
          %462 = sbr.rel (%p460) target = $region44
        $region43: #{block8_forward.1} parent=11 // pred_region
          _
        $region44: #{block8_forward.1} parent=11 // pred_fallthru
          _
        // Predicated region
        $region45: #{block8_forward.1} parent=11 // pred_check
          %p463 = pneg %p241
        $region46: #{block8_forward.1} parent=11 // pred_check_branch
          %465 = sbr.rel (%p463) target = $region48
        $region47: #{block8_forward.1} parent=11 // pred_region
          _
        $region48: #{block8_forward.1} parent=11 // pred_fallthru
          _
        // Predicated region
        $region49: #{block8_forward.1} parent=11 // pred_check
          %p466 = pneg %p262
        $region50: #{block8_forward.1} parent=11 // pred_check_branch
          %468 = sbr.rel (%p466) target = $region52
        $region51: #{block8_forward.1} parent=11 // pred_region
          _
        $region52: #{block8_forward.1} parent=11 // pred_fallthru
          _
        // Predicated region
        $region53: #{block8_forward.1} parent=11 // pred_check
          %p469 = pneg %p283
        $region54: #{block8_forward.1} parent=11 // pred_check_branch
          %471 = sbr.rel (%p469) target = $region56
        $region55: #{block8_forward.1} parent=11 // pred_region
          _
        $region56: #{block8_forward.1} parent=11 // pred_fallthru
          _
        // Predicated region
        $region57: #{block8_forward.1} parent=11 // pred_check
          %p472 = pneg %p304
        $region58: #{block8_forward.1} parent=11 // pred_check_branch
          %474 = sbr.rel (%p472) target = $region60
        $region59: #{block8_forward.1} parent=11 // pred_region
          _
        $region60: #{block8_forward.1} parent=11 // pred_fallthru
          _
        // Predicated region
        $region61: #{block8_forward.1} parent=11 // pred_check
          %p475 = pneg %p325
        $region62: #{block8_forward.1} parent=11 // pred_check_branch
          %477 = sbr.rel (%p475) target = $region64
        $region63: #{block8_forward.1} parent=11 // pred_region
          _
        $region64: #{block8_forward.1} parent=11 // pred_fallthru
          _
        // Predicated region
        $region65: #{block8_forward.1} parent=11 // pred_check
          %p478 = pneg %p346
        $region66: #{block8_forward.1} parent=11 // pred_check_branch
          %480 = sbr.rel (%p478) target = $region68
        $region67: #{block8_forward.1} parent=11 // pred_region
          _
        $region68: #{block8_forward.1} parent=11 // pred_fallthru
          _
      $region12: #{block8_forward.1} parent=5 // pred_fallthru
        _
      %p481 = scmp.lt.s32.totalorder %s26, 7
      // Predicated region
      $region69: #{block8_forward.1} parent=5 // pred_check
        %p482 = pneg %p481
      $region70: #{block8_forward.1} parent=5 // pred_check_branch
        %484 = sbr.rel (%p482) target = $region72
      $region71: #{block8_forward.1} parent=5 // pred_region
        // Predicated region
        $region73: #{block8_forward.1} parent=71 // pred_check
          %p485 = pneg %p67
        $region74: #{block8_forward.1} parent=71 // pred_check_branch
          %487 = sbr.rel (%p485) target = $region76
        $region75: #{block8_forward.1} parent=71 // pred_region
          %s488 = sand.u32 %s57, 1
          %s489 = sand.u32 %s57, 1
          %s490 = smul.addr %s489, 256
          %s491 = scalar_lea.vmem [#allocation4], %s490
          %s492 = smul.u32 2, %s26
          %s493 = smul.addr %s492, 8
          %s494 = scalar_lea.vmem %s1, %s493
          // Predicated region
          $region77: #{block8_forward.1} parent=75 // pred_check
            _
          $region78: #{block8_forward.1} parent=75 // pred_check_branch
            %496 = sbr.rel (0) target = $region80
          $region79: #{block8_forward.1} parent=75 // pred_region
            // Predicated region
            $region81: #{block8_forward.1} parent=79 // pred_check
              _
            $region82: #{block8_forward.1} parent=79 // pred_check_branch
              %498 = sbr.rel (0) target = $region84
            $region83: #{block8_forward.1} parent=79 // pred_region
              loop: start=0, step=1, limit=1
              $region85: #{block8_forward.1} parent=83 // loop_pre_header
                _
              $region86: #{block8_forward.1} parent=83 // loop_header
                %s500 = sphi 0, %s504
                %p501 = scmp.ge.s32.totalorder %s500, 1
                %s505 = sphi %s494, %s494
                %s506 = sphi %s491, %s491
              $region87: #{block8_forward.1} parent=83 // loop_header_branch
                %503 = sbr.rel (%p501) target = $region91
              $region88: #{block8_forward.1} parent=83 // loop_body
                %v507 = vld [vmem:[%s505] sm:$0xff]
                %508 = vst [vmem:[%s506] sm:$0xff] %v507
                %v509 = vld [vmem:[%s505 + $0x8] sm:$0xff]
                %510 = vst [vmem:[%s506 + $0x8] sm:$0xff] %v509
                %v511 = vld [vmem:[%s505 + $0x70] sm:$0xff]
                %512 = vst [vmem:[%s506 + $0x10] sm:$0xff] %v511
                %v513 = vld [vmem:[%s505 + $0x78] sm:$0xff]
                %514 = vst [vmem:[%s506 + $0x18] sm:$0xff] %v513
                %v515 = vld [vmem:[%s505 + $0xe0] sm:$0xff]
                %516 = vst [vmem:[%s506 + $0x20] sm:$0xff] %v515
                %v517 = vld [vmem:[%s505 + $0xe8] sm:$0xff]
                %518 = vst [vmem:[%s506 + $0x28] sm:$0xff] %v517
                %v519 = vld [vmem:[%s505 + $0x150] sm:$0xff]
                %520 = vst [vmem:[%s506 + $0x30] sm:$0xff] %v519
                %v521 = vld [vmem:[%s505 + $0x158] sm:$0xff]
                %522 = vst [vmem:[%s506 + $0x38] sm:$0xff] %v521
                %v523 = vld [vmem:[%s505 + $0x1c0] sm:$0xff]
                %524 = vst [vmem:[%s506 + $0x40] sm:$0xff] %v523
                %v525 = vld [vmem:[%s505 + $0x1c8] sm:$0xff]
                %526 = vst [vmem:[%s506 + $0x48] sm:$0xff] %v525
                %v527 = vld [vmem:[%s505 + $0x230] sm:$0xff]
                %528 = vst [vmem:[%s506 + $0x50] sm:$0xff] %v527
                %v529 = vld [vmem:[%s505 + $0x238] sm:$0xff]
                %530 = vst [vmem:[%s506 + $0x58] sm:$0xff] %v529
                %v531 = vld [vmem:[%s505 + $0x2a0] sm:$0xff]
                %532 = vst [vmem:[%s506 + $0x60] sm:$0xff] %v531
                %v533 = vld [vmem:[%s505 + $0x2a8] sm:$0xff]
                %534 = vst [vmem:[%s506 + $0x68] sm:$0xff] %v533
                %v535 = vld [vmem:[%s505 + $0x310] sm:$0xff]
                %536 = vst [vmem:[%s506 + $0x70] sm:$0xff] %v535
                %v537 = vld [vmem:[%s505 + $0x318] sm:$0xff]
                %538 = vst [vmem:[%s506 + $0x78] sm:$0xff] %v537
                %v539 = vld [vmem:[%s505 + $0x380] sm:$0xff]
                %540 = vst [vmem:[%s506 + $0x80] sm:$0xff] %v539
                %v541 = vld [vmem:[%s505 + $0x388] sm:$0xff]
                %542 = vst [vmem:[%s506 + $0x88] sm:$0xff] %v541
                %v543 = vld [vmem:[%s505 + $0x3f0] sm:$0xff]
                %544 = vst [vmem:[%s506 + $0x90] sm:$0xff] %v543
                %v545 = vld [vmem:[%s505 + $0x3f8] sm:$0xff]
                %546 = vst [vmem:[%s506 + $0x98] sm:$0xff] %v545
                %v547 = vld [vmem:[%s505 + $0x460] sm:$0xff]
                %548 = vst [vmem:[%s506 + $0xa0] sm:$0xff] %v547
                %v549 = vld [vmem:[%s505 + $0x468] sm:$0xff]
                %550 = vst [vmem:[%s506 + $0xa8] sm:$0xff] %v549
                %v551 = vld [vmem:[%s505 + $0x4d0] sm:$0xff]
                %552 = vst [vmem:[%s506 + $0xb0] sm:$0xff] %v551
                %v553 = vld [vmem:[%s505 + $0x4d8] sm:$0xff]
                %554 = vst [vmem:[%s506 + $0xb8] sm:$0xff] %v553
                %v555 = vld [vmem:[%s505 + $0x540] sm:$0xff]
                %556 = vst [vmem:[%s506 + $0xc0] sm:$0xff] %v555
                %v557 = vld [vmem:[%s505 + $0x548] sm:$0xff]
                %558 = vst [vmem:[%s506 + $0xc8] sm:$0xff] %v557
                %v559 = vld [vmem:[%s505 + $0x5b0] sm:$0xff]
                %560 = vst [vmem:[%s506 + $0xd0] sm:$0xff] %v559
                %v561 = vld [vmem:[%s505 + $0x5b8] sm:$0xff]
                %562 = vst [vmem:[%s506 + $0xd8] sm:$0xff] %v561
                %v563 = vld [vmem:[%s505 + $0x620] sm:$0xff]
                %564 = vst [vmem:[%s506 + $0xe0] sm:$0xff] %v563
                %v565 = vld [vmem:[%s505 + $0x628] sm:$0xff]
                %566 = vst [vmem:[%s506 + $0xe8] sm:$0xff] %v565
                %v567 = vld [vmem:[%s505 + $0x690] sm:$0xff]
                %568 = vst [vmem:[%s506 + $0xf0] sm:$0xff] %v567
                %v569 = vld [vmem:[%s505 + $0x698] sm:$0xff]
                %570 = vst [vmem:[%s506 + $0xf8] sm:$0xff] %v569
              $region89: #{block8_forward.1} parent=83 // loop_footer
                %s504 = sadd.s32 1, %s500
              $region90: #{block8_forward.1} parent=83 // loop_footer_branch
                %499 = sbr.rel target = $region86
              $region91: #{block8_forward.1} parent=83 // loop_exit
                _
            $region84: #{block8_forward.1} parent=79 // pred_fallthru
              _
            // Predicated region
            $region92: #{block8_forward.1} parent=79 // pred_check
              _
            $region93: #{block8_forward.1} parent=79 // pred_check_branch
              %572 = sbr.rel target = $region95
            $region94: #{block8_forward.1} parent=79 // pred_region
              _
            $region95: #{block8_forward.1} parent=79 // pred_fallthru
              _
          $region80: #{block8_forward.1} parent=75 // pred_fallthru
            _
          %573 = vnop
        $region76: #{block8_forward.1} parent=71 // pred_fallthru
          _
        // Predicated region
        $region96: #{block8_forward.1} parent=71 // pred_check
          %p574 = pneg %p366
        $region97: #{block8_forward.1} parent=71 // pred_check_branch
          %576 = sbr.rel (%p574) target = $region99
        $region98: #{block8_forward.1} parent=71 // pred_region
          %s577 = sand.u32 %s356, 1
          %s578 = sand.u32 %s356, 1
          %s579 = smul.addr %s578, 384
          %s580 = scalar_lea.vmem [#allocation5], %s579
          %s581 = smul.u32 2, %s26
          %s582 = smul.addr %s581, 4
          %s583 = scalar_lea.vmem %s15, %s582
          // Predicated region
          $region100: #{block8_forward.1} parent=98 // pred_check
            _
          $region101: #{block8_forward.1} parent=98 // pred_check_branch
            %585 = sbr.rel (0) target = $region103
          $region102: #{block8_forward.1} parent=98 // pred_region
            // Predicated region
            $region104: #{block8_forward.1} parent=102 // pred_check
              _
            $region105: #{block8_forward.1} parent=102 // pred_check_branch
              %587 = sbr.rel (0) target = $region107
            $region106: #{block8_forward.1} parent=102 // pred_region
              // Predicated region
              $region119: #{block8_forward.1} parent=106 // pred_check
                _
              $region120: #{block8_forward.1} parent=106 // pred_check_branch
                %696 = sbr.rel (0) target = $region122
              $region121: #{block8_forward.1} parent=106 // pred_region
                loop: start=0, step=1, limit=1
                $region123: #{block8_forward.1} parent=121 // loop_pre_header
                  _
                $region124: #{block8_forward.1} parent=121 // loop_header
                  %s698 = sphi 0, %s702
                  %p699 = scmp.ge.s32.totalorder %s698, 1
                  %s703 = sphi %s583, %s583
                  %s704 = sphi %s580, %s580
                $region125: #{block8_forward.1} parent=121 // loop_header_branch
                  %701 = sbr.rel (%p699) target = $region129
                $region126: #{block8_forward.1} parent=121 // loop_body
                  %v705 = vld [vmem:[%s703] sm:$0xff]
                  %706 = vst [vmem:[%s704] sm:$0xff] %v705
                  %v707 = vld [vmem:[%s703 + $0x38] sm:$0xff]
                  %708 = vst [vmem:[%s704 + $0x8] sm:$0xff] %v707
                  %v709 = vld [vmem:[%s703 + $0x70] sm:$0xff]
                  %710 = vst [vmem:[%s704 + $0x10] sm:$0xff] %v709
                  %v711 = vld [vmem:[%s703 + $0xa8] sm:$0xff]
                  %712 = vst [vmem:[%s704 + $0x18] sm:$0xff] %v711
                  %v713 = vld [vmem:[%s703 + $0xe0] sm:$0xff]
                  %714 = vst [vmem:[%s704 + $0x20] sm:$0xff] %v713
                  %v715 = vld [vmem:[%s703 + $0x118] sm:$0xff]
                  %716 = vst [vmem:[%s704 + $0x28] sm:$0xff] %v715
                  %v717 = vld [vmem:[%s703 + $0x150] sm:$0xff]
                  %718 = vst [vmem:[%s704 + $0x30] sm:$0xff] %v717
                  %v719 = vld [vmem:[%s703 + $0x188] sm:$0xff]
                  %720 = vst [vmem:[%s704 + $0x38] sm:$0xff] %v719
                  %v721 = vld [vmem:[%s703 + $0x1c0] sm:$0xff]
                  %722 = vst [vmem:[%s704 + $0x40] sm:$0xff] %v721
                  %v723 = vld [vmem:[%s703 + $0x1f8] sm:$0xff]
                  %724 = vst [vmem:[%s704 + $0x48] sm:$0xff] %v723
                  %v725 = vld [vmem:[%s703 + $0x230] sm:$0xff]
                  %726 = vst [vmem:[%s704 + $0x50] sm:$0xff] %v725
                  %v727 = vld [vmem:[%s703 + $0x268] sm:$0xff]
                  %728 = vst [vmem:[%s704 + $0x58] sm:$0xff] %v727
                  %v729 = vld [vmem:[%s703 + $0x2a0] sm:$0xff]
                  %730 = vst [vmem:[%s704 + $0x60] sm:$0xff] %v729
                  %v731 = vld [vmem:[%s703 + $0x2d8] sm:$0xff]
                  %732 = vst [vmem:[%s704 + $0x68] sm:$0xff] %v731
                  %v733 = vld [vmem:[%s703 + $0x310] sm:$0xff]
                  %734 = vst [vmem:[%s704 + $0x70] sm:$0xff] %v733
                  %v735 = vld [vmem:[%s703 + $0x348] sm:$0xff]
                  %736 = vst [vmem:[%s704 + $0x78] sm:$0xff] %v735
                  %v737 = vld [vmem:[%s703 + $0x380] sm:$0xff]
                  %738 = vst [vmem:[%s704 + $0x80] sm:$0xff] %v737
                  %v739 = vld [vmem:[%s703 + $0x3b8] sm:$0xff]
                  %740 = vst [vmem:[%s704 + $0x88] sm:$0xff] %v739
                  %v741 = vld [vmem:[%s703 + $0x3f0] sm:$0xff]
                  %742 = vst [vmem:[%s704 + $0x90] sm:$0xff] %v741
                  %v743 = vld [vmem:[%s703 + $0x428] sm:$0xff]
                  %744 = vst [vmem:[%s704 + $0x98] sm:$0xff] %v743
                  %v745 = vld [vmem:[%s703 + $0x460] sm:$0xff]
                  %746 = vst [vmem:[%s704 + $0xa0] sm:$0xff] %v745
                  %v747 = vld [vmem:[%s703 + $0x498] sm:$0xff]
                  %748 = vst [vmem:[%s704 + $0xa8] sm:$0xff] %v747
                  %v749 = vld [vmem:[%s703 + $0x4d0] sm:$0xff]
                  %750 = vst [vmem:[%s704 + $0xb0] sm:$0xff] %v749
                  %v751 = vld [vmem:[%s703 + $0x508] sm:$0xff]
                  %752 = vst [vmem:[%s704 + $0xb8] sm:$0xff] %v751
                  %v753 = vld [vmem:[%s703 + $0x540] sm:$0xff]
                  %754 = vst [vmem:[%s704 + $0xc0] sm:$0xff] %v753
                  %v755 = vld [vmem:[%s703 + $0x578] sm:$0xff]
                  %756 = vst [vmem:[%s704 + $0xc8] sm:$0xff] %v755
                  %v757 = vld [vmem:[%s703 + $0x5b0] sm:$0xff]
                  %758 = vst [vmem:[%s704 + $0xd0] sm:$0xff] %v757
                  %v759 = vld [vmem:[%s703 + $0x5e8] sm:$0xff]
                  %760 = vst [vmem:[%s704 + $0xd8] sm:$0xff] %v759
                  %v761 = vld [vmem:[%s703 + $0x620] sm:$0xff]
                  %762 = vst [vmem:[%s704 + $0xe0] sm:$0xff] %v761
                  %v763 = vld [vmem:[%s703 + $0x658] sm:$0xff]
                  %764 = vst [vmem:[%s704 + $0xe8] sm:$0xff] %v763
                  %v765 = vld [vmem:[%s703 + $0x690] sm:$0xff]
                  %766 = vst [vmem:[%s704 + $0xf0] sm:$0xff] %v765
                  %v767 = vld [vmem:[%s703 + $0x6c8] sm:$0xff]
                  %768 = vst [vmem:[%s704 + $0xf8] sm:$0xff] %v767
                  %v769 = vld [vmem:[%s703 + $0x700] sm:$0xff]
                  %770 = vst [vmem:[%s704 + $0x100] sm:$0xff] %v769
                  %v771 = vld [vmem:[%s703 + $0x738] sm:$0xff]
                  %772 = vst [vmem:[%s704 + $0x108] sm:$0xff] %v771
                  %v773 = vld [vmem:[%s703 + $0x770] sm:$0xff]
                  %774 = vst [vmem:[%s704 + $0x110] sm:$0xff] %v773
                  %v775 = vld [vmem:[%s703 + $0x7a8] sm:$0xff]
                  %776 = vst [vmem:[%s704 + $0x118] sm:$0xff] %v775
                  %v777 = vld [vmem:[%s703 + $0x7e0] sm:$0xff]
                  %778 = vst [vmem:[%s704 + $0x120] sm:$0xff] %v777
                  %v779 = vld [vmem:[%s703 + $0x818] sm:$0xff]
                  %780 = vst [vmem:[%s704 + $0x128] sm:$0xff] %v779
                  %v781 = vld [vmem:[%s703 + $0x850] sm:$0xff]
                  %782 = vst [vmem:[%s704 + $0x130] sm:$0xff] %v781
                  %v783 = vld [vmem:[%s703 + $0x888] sm:$0xff]
                  %784 = vst [vmem:[%s704 + $0x138] sm:$0xff] %v783
                  %v785 = vld [vmem:[%s703 + $0x8c0] sm:$0xff]
                  %786 = vst [vmem:[%s704 + $0x140] sm:$0xff] %v785
                  %v787 = vld [vmem:[%s703 + $0x8f8] sm:$0xff]
                  %788 = vst [vmem:[%s704 + $0x148] sm:$0xff] %v787
                  %v789 = vld [vmem:[%s703 + $0x930] sm:$0xff]
                  %790 = vst [vmem:[%s704 + $0x150] sm:$0xff] %v789
                  %v791 = vld [vmem:[%s703 + $0x968] sm:$0xff]
                  %792 = vst [vmem:[%s704 + $0x158] sm:$0xff] %v791
                  %v793 = vld [vmem:[%s703 + $0x9a0] sm:$0xff]
                  %794 = vst [vmem:[%s704 + $0x160] sm:$0xff] %v793
                  %v795 = vld [vmem:[%s703 + $0x9d8] sm:$0xff]
                  %796 = vst [vmem:[%s704 + $0x168] sm:$0xff] %v795
                  %v797 = vld [vmem:[%s703 + $0xa10] sm:$0xff]
                  %798 = vst [vmem:[%s704 + $0x170] sm:$0xff] %v797
                  %v799 = vld [vmem:[%s703 + $0xa48] sm:$0xff]
                  %800 = vst [vmem:[%s704 + $0x178] sm:$0xff] %v799
                $region127: #{block8_forward.1} parent=121 // loop_footer
                  %s702 = sadd.s32 1, %s698
                $region128: #{block8_forward.1} parent=121 // loop_footer_branch
                  %697 = sbr.rel target = $region124
                $region129: #{block8_forward.1} parent=121 // loop_exit
                  _
              $region122: #{block8_forward.1} parent=106 // pred_fallthru
                _
              // Predicated region
              $region130: #{block8_forward.1} parent=106 // pred_check
                _
              $region131: #{block8_forward.1} parent=106 // pred_check_branch
                %802 = sbr.rel target = $region133
              $region132: #{block8_forward.1} parent=106 // pred_region
                _
              $region133: #{block8_forward.1} parent=106 // pred_fallthru
                _
            $region107: #{block8_forward.1} parent=102 // pred_fallthru
              _
            // Predicated region
            $region108: #{block8_forward.1} parent=102 // pred_check
              _
            $region109: #{block8_forward.1} parent=102 // pred_check_branch
              %589 = sbr.rel target = $region111
            $region110: #{block8_forward.1} parent=102 // pred_region
              loop: start=0, step=1, limit=1
              $region112: #{block8_forward.1} parent=110 // loop_pre_header
                _
              $region113: #{block8_forward.1} parent=110 // loop_header
                %s592 = sphi 0, %s596
                %p593 = scmp.ge.s32.totalorder %s592, 1
                %s597 = sphi %s583, %s583
                %s598 = sphi %s580, %s580
              $region114: #{block8_forward.1} parent=110 // loop_header_branch
                %595 = sbr.rel (%p593) target = $region118
              $region115: #{block8_forward.1} parent=110 // loop_body
                %v599 = vld [vmem:[%s597] sm:$0xff]
                %600 = vst [vmem:[%s598] sm:$0xff] %v599
                %v601 = vld [vmem:[%s597 + $0x38] sm:$0xff]
                %602 = vst [vmem:[%s598 + $0x8] sm:$0xff] %v601
                %v603 = vld [vmem:[%s597 + $0x70] sm:$0xff]
                %604 = vst [vmem:[%s598 + $0x10] sm:$0xff] %v603
                %v605 = vld [vmem:[%s597 + $0xa8] sm:$0xff]
                %606 = vst [vmem:[%s598 + $0x18] sm:$0xff] %v605
                %v607 = vld [vmem:[%s597 + $0xe0] sm:$0xff]
                %608 = vst [vmem:[%s598 + $0x20] sm:$0xff] %v607
                %v609 = vld [vmem:[%s597 + $0x118] sm:$0xff]
                %610 = vst [vmem:[%s598 + $0x28] sm:$0xff] %v609
                %v611 = vld [vmem:[%s597 + $0x150] sm:$0xff]
                %612 = vst [vmem:[%s598 + $0x30] sm:$0xff] %v611
                %v613 = vld [vmem:[%s597 + $0x188] sm:$0xff]
                %614 = vst [vmem:[%s598 + $0x38] sm:$0xff] %v613
                %v615 = vld [vmem:[%s597 + $0x1c0] sm:$0xff]
                %616 = vst [vmem:[%s598 + $0x40] sm:$0xff] %v615
                %v617 = vld [vmem:[%s597 + $0x1f8] sm:$0xff]
                %618 = vst [vmem:[%s598 + $0x48] sm:$0xff] %v617
                %v619 = vld [vmem:[%s597 + $0x230] sm:$0xff]
                %620 = vst [vmem:[%s598 + $0x50] sm:$0xff] %v619
                %v621 = vld [vmem:[%s597 + $0x268] sm:$0xff]
                %622 = vst [vmem:[%s598 + $0x58] sm:$0xff] %v621
                %v623 = vld [vmem:[%s597 + $0x2a0] sm:$0xff]
                %624 = vst [vmem:[%s598 + $0x60] sm:$0xff] %v623
                %v625 = vld [vmem:[%s597 + $0x2d8] sm:$0xff]
                %626 = vst [vmem:[%s598 + $0x68] sm:$0xff] %v625
                %v627 = vld [vmem:[%s597 + $0x310] sm:$0xff]
                %628 = vst [vmem:[%s598 + $0x70] sm:$0xff] %v627
                %v629 = vld [vmem:[%s597 + $0x348] sm:$0xff]
                %630 = vst [vmem:[%s598 + $0x78] sm:$0xff] %v629
                %v631 = vld [vmem:[%s597 + $0x380] sm:$0xff]
                %632 = vst [vmem:[%s598 + $0x80] sm:$0xff] %v631
                %v633 = vld [vmem:[%s597 + $0x3b8] sm:$0xff]
                %634 = vst [vmem:[%s598 + $0x88] sm:$0xff] %v633
                %v635 = vld [vmem:[%s597 + $0x3f0] sm:$0xff]
                %636 = vst [vmem:[%s598 + $0x90] sm:$0xff] %v635
                %v637 = vld [vmem:[%s597 + $0x428] sm:$0xff]
                %638 = vst [vmem:[%s598 + $0x98] sm:$0xff] %v637
                %v639 = vld [vmem:[%s597 + $0x460] sm:$0xff]
                %640 = vst [vmem:[%s598 + $0xa0] sm:$0xff] %v639
                %v641 = vld [vmem:[%s597 + $0x498] sm:$0xff]
                %642 = vst [vmem:[%s598 + $0xa8] sm:$0xff] %v641
                %v643 = vld [vmem:[%s597 + $0x4d0] sm:$0xff]
                %644 = vst [vmem:[%s598 + $0xb0] sm:$0xff] %v643
                %v645 = vld [vmem:[%s597 + $0x508] sm:$0xff]
                %646 = vst [vmem:[%s598 + $0xb8] sm:$0xff] %v645
                %v647 = vld [vmem:[%s597 + $0x540] sm:$0xff]
                %648 = vst [vmem:[%s598 + $0xc0] sm:$0xff] %v647
                %v649 = vld [vmem:[%s597 + $0x578] sm:$0xff]
                %650 = vst [vmem:[%s598 + $0xc8] sm:$0xff] %v649
                %v651 = vld [vmem:[%s597 + $0x5b0] sm:$0xff]
                %652 = vst [vmem:[%s598 + $0xd0] sm:$0xff] %v651
                %v653 = vld [vmem:[%s597 + $0x5e8] sm:$0xff]
                %654 = vst [vmem:[%s598 + $0xd8] sm:$0xff] %v653
                %v655 = vld [vmem:[%s597 + $0x620] sm:$0xff]
                %656 = vst [vmem:[%s598 + $0xe0] sm:$0xff] %v655
                %v657 = vld [vmem:[%s597 + $0x658] sm:$0xff]
                %658 = vst [vmem:[%s598 + $0xe8] sm:$0xff] %v657
                %v659 = vld [vmem:[%s597 + $0x690] sm:$0xff]
                %660 = vst [vmem:[%s598 + $0xf0] sm:$0xff] %v659
                %v661 = vld [vmem:[%s597 + $0x6c8] sm:$0xff]
                %662 = vst [vmem:[%s598 + $0xf8] sm:$0xff] %v661
                %v663 = vld [vmem:[%s597 + $0x700] sm:$0xff]
                %664 = vst [vmem:[%s598 + $0x100] sm:$0xff] %v663
                %v665 = vld [vmem:[%s597 + $0x738] sm:$0xff]
                %666 = vst [vmem:[%s598 + $0x108] sm:$0xff] %v665
                %v667 = vld [vmem:[%s597 + $0x770] sm:$0xff]
                %668 = vst [vmem:[%s598 + $0x110] sm:$0xff] %v667
                %v669 = vld [vmem:[%s597 + $0x7a8] sm:$0xff]
                %670 = vst [vmem:[%s598 + $0x118] sm:$0xff] %v669
                %v671 = vld [vmem:[%s597 + $0x7e0] sm:$0xff]
                %672 = vst [vmem:[%s598 + $0x120] sm:$0xff] %v671
                %v673 = vld [vmem:[%s597 + $0x818] sm:$0xff]
                %674 = vst [vmem:[%s598 + $0x128] sm:$0xff] %v673
                %v675 = vld [vmem:[%s597 + $0x850] sm:$0xff]
                %676 = vst [vmem:[%s598 + $0x130] sm:$0xff] %v675
                %v677 = vld [vmem:[%s597 + $0x888] sm:$0xff]
                %678 = vst [vmem:[%s598 + $0x138] sm:$0xff] %v677
                %v679 = vld [vmem:[%s597 + $0x8c0] sm:$0xff]
                %680 = vst [vmem:[%s598 + $0x140] sm:$0xff] %v679
                %v681 = vld [vmem:[%s597 + $0x8f8] sm:$0xff]
                %682 = vst [vmem:[%s598 + $0x148] sm:$0xff] %v681
                %v683 = vld [vmem:[%s597 + $0x930] sm:$0xff]
                %684 = vst [vmem:[%s598 + $0x150] sm:$0xff] %v683
                %v685 = vld [vmem:[%s597 + $0x968] sm:$0xff]
                %686 = vst [vmem:[%s598 + $0x158] sm:$0xff] %v685
                %v687 = vld [vmem:[%s597 + $0x9a0] sm:$0xff]
                %688 = vst [vmem:[%s598 + $0x160] sm:$0xff] %v687
                %v689 = vld [vmem:[%s597 + $0x9d8] sm:$0xff]
                %690 = vst [vmem:[%s598 + $0x168] sm:$0xff] %v689
                %v691 = vld [vmem:[%s597 + $0xa10] sm:$0xff]
                %692 = vst [vmem:[%s598 + $0x170] sm:$0xff] %v691
                %v693 = vld [vmem:[%s597 + $0xa48] sm:$0xff]
                %694 = vst [vmem:[%s598 + $0x178] sm:$0xff] %v693
              $region116: #{block8_forward.1} parent=110 // loop_footer
                %s596 = sadd.s32 1, %s592
              $region117: #{block8_forward.1} parent=110 // loop_footer_branch
                %591 = sbr.rel target = $region113
              $region118: #{block8_forward.1} parent=110 // loop_exit
                _
            $region111: #{block8_forward.1} parent=102 // pred_fallthru
              _
          $region103: #{block8_forward.1} parent=98 // pred_fallthru
            _
          %803 = vnop
        $region99: #{block8_forward.1} parent=71 // pred_fallthru
          _
        // Predicated region
        $region134: #{block8_forward.1} parent=71 // pred_check
          %p804 = pneg %p392
        $region135: #{block8_forward.1} parent=71 // pred_check_branch
          %806 = sbr.rel (%p804) target = $region137
        $region136: #{block8_forward.1} parent=71 // pred_region
          %s807 = smul.u32 2, %s26
          %p808 = scmp.lt.s32.totalorder %s807, 13
          %s809 = scalar_select %p808, %s807, 13
          %s810 = scalar_lea.vmem %s16, %s809
          %s811 = smul.u32 2, %s26
        $region137: #{block8_forward.1} parent=71 // pred_fallthru
          _
      $region72: #{block8_forward.1} parent=5 // pred_fallthru
        _
      %p812 = scmp.le.s32.totalorder 1, %s26
      %p813 = scmp.lt.s32.totalorder %s26, 8
      %p814 = pnand %p812, %p813
      %p815 = pneg %p814
      // Predicated region
      $region138: #{block8_forward.1} parent=5 // pred_check
        _
      $region139: #{block8_forward.1} parent=5 // pred_check_branch
        %817 = sbr.rel (%p814) target = $region141
      $region140: #{block8_forward.1} parent=5 // pred_region
        %s818 = ssub.s32 %s26, 1
        %s819 = sand.u32 %s60, 1
        %s820 = sand.u32 %s60, 1
        %s821 = smul.addr %s820, 256
        %s822 = scalar_lea.vmem [#allocation4], %s821
        // Predicated region
        $region142: #{block8_forward.1} parent=140 // pred_check
          %p823 = pneg %p73
        $region143: #{block8_forward.1} parent=140 // pred_check_branch
          %825 = sbr.rel (%p823) target = $region145
        $region144: #{block8_forward.1} parent=140 // pred_region
          _
        $region145: #{block8_forward.1} parent=140 // pred_fallthru
          _
        %s826 = sand.u32 %s359, 1
        %s827 = sand.u32 %s359, 1
        %s828 = smul.addr %s827, 384
        %s829 = scalar_lea.vmem [#allocation5], %s828
        // Predicated region
        $region146: #{block8_forward.1} parent=140 // pred_check
          %p830 = pneg %p372
        $region147: #{block8_forward.1} parent=140 // pred_check_branch
          %832 = sbr.rel (%p830) target = $region149
        $region148: #{block8_forward.1} parent=140 // pred_region
          _
        $region149: #{block8_forward.1} parent=140 // pred_fallthru
          _
        %p833 = pneg %p47
        %p834 = pneg %p44
        %s835 = sand.u32 %s60, 1
        %s836 = sand.u32 %s60, 1
        %s837 = smul.addr %s836, 256
        %s838 = scalar_lea.vmem [#allocation4], %s837
        %p839 = pneg %p73
        %p840 = pneg %p70
        %p841 = pneg %p94
        %p842 = pneg %p91
        %p843 = pneg %p115
        %p844 = pneg %p112
        %p845 = pneg %p136
        %p846 = pneg %p133
        %p847 = pneg %p157
        %p848 = pneg %p154
        %p849 = pneg %p178
        %p850 = pneg %p175
        %p851 = pneg %p199
        %p852 = pneg %p196
        %p853 = pneg %p220
        %p854 = pneg %p217
        %p855 = pneg %p241
        %p856 = pneg %p238
        %p857 = pneg %p262
        %p858 = pneg %p259
        %p859 = pneg %p283
        %p860 = pneg %p280
        %p861 = pneg %p304
        %p862 = pneg %p301
        %p863 = pneg %p325
        %p864 = pneg %p322
        %p865 = pneg %p346
        %p866 = pneg %p343
        %s867 = sand.u32 %s359, 1
        %s868 = sand.u32 %s359, 1
        %s869 = smul.addr %s868, 384
        %s870 = scalar_lea.vmem [#allocation5], %s869
        %p871 = pneg %p372
        %p872 = pneg %p369
        %s873 = smul.u32 2, %s31
        %p874 = scmp.lt.s32.totalorder %s873, 13
        %s875 = scalar_select %p874, %s873, 13
        %s876 = scalar_lea.vmem %s16, %s875
        %p877 = pneg %p398
        %p878 = pneg %p395
        %p879 = pneg %p424
        %p880 = pneg %p421
        %s881 = sand.u32 %s411, 1
        %s882 = scalar_lea.sflag [#allocation7], %s881
        %s883 = sand.u32 %s411, 1
        %s884 = smul.addr %s883, 256
        %s885 = scalar_lea.vmem [#allocation6], %s884
        %s886 = smul.u32 2, %s31
        %s887 = smul.u32 2, %s31
        %s888 = smul.u32 2, %s31
        %p889 = scmp.lt.s32.totalorder %s888, 13
        %s890 = scalar_select %p889, %s888, 13
        %s891 = scalar_lea.vmem %s16, %s890
        %s892 = smul.u32 2, %s31
        %s893 = smul.u32 2, %s31
        %p895 = scmp.eq.s32.totalorder %s31, 0
        // Predicated region
        $region150: #{block8_forward.1} parent=140 // pred_check
          %p896 = pneg %p895
        $region151: #{block8_forward.1} parent=140 // pred_check_branch
          %898 = sbr.rel (%p896) target = $region153
        $region152: #{block8_forward.1} parent=140 // pred_region
          %899 = vst [vmem:[#allocation3] sm:$0xff] 0
          %vm900 = vcmask 523264
          %901 = vst.msk [vmem:[#allocation3 + $0x8] sm:$0xff] %vm900, 0
          %902 = vst [vmem:[#allocation3 + $0x10] sm:$0xff] 0
          %903 = vst.msk [vmem:[#allocation3 + $0x18] sm:$0xff] %vm900, 0
          %904 = vst [vmem:[#allocation3 + $0x20] sm:$0xff] 0
          %905 = vst.msk [vmem:[#allocation3 + $0x28] sm:$0xff] %vm900, 0
          %906 = vst [vmem:[#allocation3 + $0x30] sm:$0xff] 0
          %907 = vst.msk [vmem:[#allocation3 + $0x38] sm:$0xff] %vm900, 0
          %908 = vst [vmem:[#allocation3 + $0x40] sm:$0xff] 0
          %909 = vst.msk [vmem:[#allocation3 + $0x48] sm:$0xff] %vm900, 0
          %910 = vst [vmem:[#allocation3 + $0x50] sm:$0xff] 0
          %911 = vst.msk [vmem:[#allocation3 + $0x58] sm:$0xff] %vm900, 0
          %912 = vst [vmem:[#allocation3 + $0x60] sm:$0xff] 0
          %913 = vst.msk [vmem:[#allocation3 + $0x68] sm:$0xff] %vm900, 0
          %914 = vst [vmem:[#allocation3 + $0x70] sm:$0xff] 0
          %915 = vst.msk [vmem:[#allocation3 + $0x78] sm:$0xff] %vm900, 0
          %916 = vst [vmem:[#allocation3 + $0x80] sm:$0xff] 0
          %917 = vst.msk [vmem:[#allocation3 + $0x88] sm:$0xff] %vm900, 0
          %v918 = vld [vmem:[%s0] sm:$0xff]
          %v919 = vld [vmem:[%s0 + $0x8] sm:$0xff]
          %v920 = vld [vmem:[%s0 + $0x10] sm:$0xff]
          %v921 = vld [vmem:[%s0 + $0x18] sm:$0xff]
          %v922 = vld [vmem:[%s0 + $0x20] sm:$0xff]
          %v923 = vld [vmem:[%s0 + $0x28] sm:$0xff]
          %v924 = vld [vmem:[%s0 + $0x30] sm:$0xff]
          %v925 = vld [vmem:[%s0 + $0x38] sm:$0xff]
          %v926 = vld [vmem:[%s0 + $0x40] sm:$0xff]
          %v927 = vld [vmem:[%s0 + $0x48] sm:$0xff]
          %v928 = vld [vmem:[%s0 + $0x50] sm:$0xff]
          %v929 = vld [vmem:[%s0 + $0x58] sm:$0xff]
          %v930 = vld [vmem:[%s0 + $0x60] sm:$0xff]
          %v931 = vld [vmem:[%s0 + $0x68] sm:$0xff]
          %v932 = vld [vmem:[%s0 + $0x70] sm:$0xff]
          %v933 = vld [vmem:[%s0 + $0x78] sm:$0xff]
          %v934 = vld [vmem:[%s0 + $0x80] sm:$0xff]
          %v935 = vld [vmem:[%s0 + $0x88] sm:$0xff]
          %v936 = vld [vmem:[%s0 + $0x90] sm:$0xff]
          %v937 = vld [vmem:[%s0 + $0x98] sm:$0xff]
          %v938 = vld [vmem:[%s0 + $0xa0] sm:$0xff]
          %v939 = vld [vmem:[%s0 + $0xa8] sm:$0xff]
          %v940 = vld [vmem:[%s0 + $0xb0] sm:$0xff]
          %v941 = vld [vmem:[%s0 + $0xb8] sm:$0xff]
          %v942 = vld [vmem:[%s0 + $0xc0] sm:$0xff]
          %v943 = vld [vmem:[%s0 + $0xc8] sm:$0xff]
          %v944 = vld [vmem:[%s0 + $0xd0] sm:$0xff]
          %v945 = vld [vmem:[%s0 + $0xd8] sm:$0xff]
          %v946 = vld [vmem:[%s0 + $0xe0] sm:$0xff]
          %v947 = vld [vmem:[%s0 + $0xe8] sm:$0xff]
          %v948 = vld [vmem:[%s0 + $0xf0] sm:$0xff]
          %v949 = vld [vmem:[%s0 + $0xf8] sm:$0xff]
          %v950 = vld [vmem:[%s0 + $0x100] sm:$0xff]
          %v951 = vld [vmem:[%s0 + $0x108] sm:$0xff]
          %v952 = vld [vmem:[%s0 + $0x110] sm:$0xff]
          %v953 = vld [vmem:[%s0 + $0x118] sm:$0xff]
          %v954 = vld [vmem:[%s0 + $0x120] sm:$0xff]
          %v955 = vld [vmem:[%s0 + $0x128] sm:$0xff]
          %v956 = vld [vmem:[%s0 + $0x130] sm:$0xff]
          %v957 = vld [vmem:[%s0 + $0x138] sm:$0xff]
          %v958 = vld [vmem:[%s0 + $0x140] sm:$0xff]
          %v959 = vld [vmem:[%s0 + $0x148] sm:$0xff]
          %v960 = vld [vmem:[%s0 + $0x150] sm:$0xff]
          %v961 = vld [vmem:[%s0 + $0x158] sm:$0xff]
          %v962 = vld [vmem:[%s0 + $0x160] sm:$0xff]
          %v963 = vld [vmem:[%s0 + $0x168] sm:$0xff]
          %v964 = vld [vmem:[%s0 + $0x170] sm:$0xff]
          %v965 = vld [vmem:[%s0 + $0x178] sm:$0xff]
          %v966 = vld [vmem:[%s0 + $0x180] sm:$0xff]
          %v967 = vld [vmem:[%s0 + $0x188] sm:$0xff]
          %v968 = vld [vmem:[%s0 + $0x190] sm:$0xff]
          %v969 = vld [vmem:[%s0 + $0x198] sm:$0xff]
          %v970 = vld [vmem:[%s0 + $0x1a0] sm:$0xff]
          %v971 = vld [vmem:[%s0 + $0x1a8] sm:$0xff]
          %v972 = vld [vmem:[%s0 + $0x1b0] sm:$0xff]
          %v973 = vld [vmem:[%s0 + $0x1b8] sm:$0xff]
          %v974 = vld [vmem:[%s0 + $0x1c0] sm:$0xff]
          %v975 = vld [vmem:[%s0 + $0x1c8] sm:$0xff]
          %v976 = vld [vmem:[%s0 + $0x1d0] sm:$0xff]
          %v977 = vld [vmem:[%s0 + $0x1d8] sm:$0xff]
          %v978 = vld [vmem:[%s0 + $0x1e0] sm:$0xff]
          %v979 = vld [vmem:[%s0 + $0x1e8] sm:$0xff]
          %v980 = vld [vmem:[%s0 + $0x1f0] sm:$0xff]
          %v981 = vld [vmem:[%s0 + $0x1f8] sm:$0xff]
          %v982 = vld [vmem:[%s0 + $0x200] sm:$0xff]
          %v983 = vld [vmem:[%s0 + $0x208] sm:$0xff]
          %v984 = vld [vmem:[%s0 + $0x210] sm:$0xff]
          %v985 = vld [vmem:[%s0 + $0x218] sm:$0xff]
          %v986 = vld [vmem:[%s0 + $0x220] sm:$0xff]
          %v987 = vld [vmem:[%s0 + $0x228] sm:$0xff]
          %v988 = vld [vmem:[%s0 + $0x230] sm:$0xff]
          %v989 = vld [vmem:[%s0 + $0x238] sm:$0xff]
          %v990 = vld [vmem:[%s0 + $0x240] sm:$0xff]
          %v991 = vld [vmem:[%s0 + $0x248] sm:$0xff]
          %v992 = vld [vmem:[%s0 + $0x250] sm:$0xff]
          %v993 = vld [vmem:[%s0 + $0x258] sm:$0xff]
          %v994 = vld [vmem:[%s0 + $0x260] sm:$0xff]
          %v995 = vld [vmem:[%s0 + $0x268] sm:$0xff]
          %v996 = vld [vmem:[%s0 + $0x270] sm:$0xff]
          %v997 = vld [vmem:[%s0 + $0x278] sm:$0xff]
          %v998 = vld [vmem:[%s0 + $0x280] sm:$0xff]
          %v999 = vld [vmem:[%s0 + $0x288] sm:$0xff]
          %v1000 = vld [vmem:[%s0 + $0x290] sm:$0xff]
          %v1001 = vld [vmem:[%s0 + $0x298] sm:$0xff]
          %v1002 = vld [vmem:[%s0 + $0x2a0] sm:$0xff]
          %v1003 = vld [vmem:[%s0 + $0x2a8] sm:$0xff]
          %v1004 = vld [vmem:[%s0 + $0x2b0] sm:$0xff]
          %v1005 = vld [vmem:[%s0 + $0x2b8] sm:$0xff]
          %v1006 = vld [vmem:[%s0 + $0x2c0] sm:$0xff]
          %v1007 = vld [vmem:[%s0 + $0x2c8] sm:$0xff]
          %v1008 = vld [vmem:[%s0 + $0x2d0] sm:$0xff]
          %v1009 = vld [vmem:[%s0 + $0x2d8] sm:$0xff]
          %v1010 = vld [vmem:[%s0 + $0x2e0] sm:$0xff]
          %v1011 = vld [vmem:[%s0 + $0x2e8] sm:$0xff]
          %v1012 = vld [vmem:[%s0 + $0x2f0] sm:$0xff]
          %v1013 = vld [vmem:[%s0 + $0x2f8] sm:$0xff]
          %v1014 = vld [vmem:[%s0 + $0x300] sm:$0xff]
          %v1015 = vld [vmem:[%s0 + $0x308] sm:$0xff]
          %v1016 = vld [vmem:[%s0 + $0x310] sm:$0xff]
          %v1017 = vld [vmem:[%s0 + $0x318] sm:$0xff]
          %v1018 = vld [vmem:[%s0 + $0x320] sm:$0xff]
          %v1019 = vld [vmem:[%s0 + $0x328] sm:$0xff]
          %v1020 = vld [vmem:[%s0 + $0x330] sm:$0xff]
          %v1021 = vld [vmem:[%s0 + $0x338] sm:$0xff]
          %v1022 = vld [vmem:[%s0 + $0x340] sm:$0xff]
          %v1023 = vld [vmem:[%s0 + $0x348] sm:$0xff]
          %v1024 = vld [vmem:[%s0 + $0x350] sm:$0xff]
          %v1025 = vld [vmem:[%s0 + $0x358] sm:$0xff]
          %v1026 = vld [vmem:[%s0 + $0x360] sm:$0xff]
          %v1027 = vld [vmem:[%s0 + $0x368] sm:$0xff]
          %v1028 = vld [vmem:[%s0 + $0x370] sm:$0xff]
          %v1029 = vld [vmem:[%s0 + $0x378] sm:$0xff]
          %v1030 = vld [vmem:[%s3] sm:$0xff]
          %v1031 = vld [vmem:[%s3 + $0x8] sm:$0xff]
          %v1032 = vld [vmem:[%s3 + $0x10] sm:$0xff]
          %v1033 = vld [vmem:[%s3 + $0x18] sm:$0xff]
          %v1034 = vld [vmem:[%s3 + $0x20] sm:$0xff]
          %v1035 = vld [vmem:[%s3 + $0x28] sm:$0xff]
          %v1036 = vld [vmem:[%s3 + $0x30] sm:$0xff]
          %v1037 = vld [vmem:[%s3 + $0x38] sm:$0xff]
          %v1038 = vld [vmem:[%s3 + $0x40] sm:$0xff]
          %v1039 = vld [vmem:[%s3 + $0x48] sm:$0xff]
          %v1040 = vld [vmem:[%s3 + $0x50] sm:$0xff]
          %v1041 = vld [vmem:[%s3 + $0x58] sm:$0xff]
          %v1042 = vld [vmem:[%s3 + $0x60] sm:$0xff]
          %v1043 = vld [vmem:[%s3 + $0x68] sm:$0xff]
          %v1044 = vld [vmem:[%s3 + $0x70] sm:$0xff]
          %v1045 = vld [vmem:[%s3 + $0x78] sm:$0xff]
          %v1046 = vld [vmem:[%s3 + $0x80] sm:$0xff]
          %v1047 = vld [vmem:[%s3 + $0x88] sm:$0xff]
          %v1048 = vld [vmem:[%s3 + $0x90] sm:$0xff]
          %v1049 = vld [vmem:[%s3 + $0x98] sm:$0xff]
          %v1050 = vld [vmem:[%s3 + $0xa0] sm:$0xff]
          %v1051 = vld [vmem:[%s3 + $0xa8] sm:$0xff]
          %v1052 = vld [vmem:[%s3 + $0xb0] sm:$0xff]
          %v1053 = vld [vmem:[%s3 + $0xb8] sm:$0xff]
          %v1054 = vld [vmem:[%s3 + $0xc0] sm:$0xff]
          %v1055 = vld [vmem:[%s3 + $0xc8] sm:$0xff]
          %v1056 = vld [vmem:[%s3 + $0xd0] sm:$0xff]
          %v1057 = vld [vmem:[%s3 + $0xd8] sm:$0xff]
          %v1058 = vld [vmem:[%s3 + $0xe0] sm:$0xff]
          %v1059 = vld [vmem:[%s3 + $0xe8] sm:$0xff]
          %v1060 = vld [vmem:[%s3 + $0xf0] sm:$0xff]
          %v1061 = vld [vmem:[%s3 + $0xf8] sm:$0xff]
          %v1062 = vld [vmem:[%s3 + $0x100] sm:$0xff]
          %v1063 = vld [vmem:[%s3 + $0x108] sm:$0xff]
          %v1064 = vld [vmem:[%s3 + $0x110] sm:$0xff]
          %v1065 = vld [vmem:[%s3 + $0x118] sm:$0xff]
          %v1066 = vld [vmem:[%s3 + $0x120] sm:$0xff]
          %v1067 = vld [vmem:[%s3 + $0x128] sm:$0xff]
          %v1068 = vld [vmem:[%s3 + $0x130] sm:$0xff]
          %v1069 = vld [vmem:[%s3 + $0x138] sm:$0xff]
          %v1070 = vld [vmem:[%s3 + $0x140] sm:$0xff]
          %v1071 = vld [vmem:[%s3 + $0x148] sm:$0xff]
          %v1072 = vld [vmem:[%s3 + $0x150] sm:$0xff]
          %v1073 = vld [vmem:[%s3 + $0x158] sm:$0xff]
          %v1074 = vld [vmem:[%s3 + $0x160] sm:$0xff]
          %v1075 = vld [vmem:[%s3 + $0x168] sm:$0xff]
          %v1076 = vld [vmem:[%s3 + $0x170] sm:$0xff]
          %v1077 = vld [vmem:[%s3 + $0x178] sm:$0xff]
          %v1078 = vld [vmem:[%s3 + $0x180] sm:$0xff]
          %v1079 = vld [vmem:[%s3 + $0x188] sm:$0xff]
          %v1080 = vld [vmem:[%s3 + $0x190] sm:$0xff]
          %v1081 = vld [vmem:[%s3 + $0x198] sm:$0xff]
          %v1082 = vld [vmem:[%s3 + $0x1a0] sm:$0xff]
          %v1083 = vld [vmem:[%s3 + $0x1a8] sm:$0xff]
          %v1084 = vld [vmem:[%s3 + $0x1b0] sm:$0xff]
          %v1085 = vld [vmem:[%s3 + $0x1b8] sm:$0xff]
          %v1086 = vld [vmem:[%s3 + $0x1c0] sm:$0xff]
          %v1087 = vld [vmem:[%s3 + $0x1c8] sm:$0xff]
          %v1088 = vld [vmem:[%s3 + $0x1d0] sm:$0xff]
          %v1089 = vld [vmem:[%s3 + $0x1d8] sm:$0xff]
          %v1090 = vld [vmem:[%s3 + $0x1e0] sm:$0xff]
          %v1091 = vld [vmem:[%s3 + $0x1e8] sm:$0xff]
          %v1092 = vld [vmem:[%s3 + $0x1f0] sm:$0xff]
          %v1093 = vld [vmem:[%s3 + $0x1f8] sm:$0xff]
          %v1094 = vld [vmem:[%s3 + $0x200] sm:$0xff]
          %v1095 = vld [vmem:[%s3 + $0x208] sm:$0xff]
          %v1096 = vld [vmem:[%s3 + $0x210] sm:$0xff]
          %v1097 = vld [vmem:[%s3 + $0x218] sm:$0xff]
          %v1098 = vld [vmem:[%s3 + $0x220] sm:$0xff]
          %v1099 = vld [vmem:[%s3 + $0x228] sm:$0xff]
          %v1100 = vld [vmem:[%s3 + $0x230] sm:$0xff]
          %v1101 = vld [vmem:[%s3 + $0x238] sm:$0xff]
          %v1102 = vld [vmem:[%s3 + $0x240] sm:$0xff]
          %v1103 = vld [vmem:[%s3 + $0x248] sm:$0xff]
          %v1104 = vld [vmem:[%s3 + $0x250] sm:$0xff]
          %v1105 = vld [vmem:[%s3 + $0x258] sm:$0xff]
          %v1106 = vld [vmem:[%s3 + $0x260] sm:$0xff]
          %v1107 = vld [vmem:[%s3 + $0x268] sm:$0xff]
          %v1108 = vld [vmem:[%s3 + $0x270] sm:$0xff]
          %v1109 = vld [vmem:[%s3 + $0x278] sm:$0xff]
          %v1110 = vld [vmem:[%s3 + $0x280] sm:$0xff]
          %v1111 = vld [vmem:[%s3 + $0x288] sm:$0xff]
          %v1112 = vld [vmem:[%s3 + $0x290] sm:$0xff]
          %v1113 = vld [vmem:[%s3 + $0x298] sm:$0xff]
          %v1114 = vld [vmem:[%s3 + $0x2a0] sm:$0xff]
          %v1115 = vld [vmem:[%s3 + $0x2a8] sm:$0xff]
          %v1116 = vld [vmem:[%s3 + $0x2b0] sm:$0xff]
          %v1117 = vld [vmem:[%s3 + $0x2b8] sm:$0xff]
          %v1118 = vld [vmem:[%s3 + $0x2c0] sm:$0xff]
          %v1119 = vld [vmem:[%s3 + $0x2c8] sm:$0xff]
          %v1120 = vld [vmem:[%s3 + $0x2d0] sm:$0xff]
          %v1121 = vld [vmem:[%s3 + $0x2d8] sm:$0xff]
          %v1122 = vld [vmem:[%s3 + $0x2e0] sm:$0xff]
          %v1123 = vld [vmem:[%s3 + $0x2e8] sm:$0xff]
          %v1124 = vld [vmem:[%s3 + $0x2f0] sm:$0xff]
          %v1125 = vld [vmem:[%s3 + $0x2f8] sm:$0xff]
          %v1126 = vld [vmem:[%s3 + $0x300] sm:$0xff]
          %v1127 = vld [vmem:[%s3 + $0x308] sm:$0xff]
          %v1128 = vld [vmem:[%s3 + $0x310] sm:$0xff]
          %v1129 = vld [vmem:[%s3 + $0x318] sm:$0xff]
          %v1130 = vld [vmem:[%s3 + $0x320] sm:$0xff]
          %v1131 = vld [vmem:[%s3 + $0x328] sm:$0xff]
          %v1132 = vld [vmem:[%s3 + $0x330] sm:$0xff]
          %v1133 = vld [vmem:[%s3 + $0x338] sm:$0xff]
          %v1134 = vld [vmem:[%s3 + $0x340] sm:$0xff]
          %v1135 = vld [vmem:[%s3 + $0x348] sm:$0xff]
          %v1136 = vld [vmem:[%s3 + $0x350] sm:$0xff]
          %v1137 = vld [vmem:[%s3 + $0x358] sm:$0xff]
          %v1138 = vld [vmem:[%s3 + $0x360] sm:$0xff]
          %v1139 = vld [vmem:[%s3 + $0x368] sm:$0xff]
          %v1140 = vld [vmem:[%s3 + $0x370] sm:$0xff]
          %v1141 = vld [vmem:[%s3 + $0x378] sm:$0xff]
          %v1142 = vld [vmem:[%s3 + $0x380] sm:$0xff]
          %v1143 = vld [vmem:[%s3 + $0x388] sm:$0xff]
          %v1144 = vld [vmem:[%s3 + $0x390] sm:$0xff]
          %v1145 = vld [vmem:[%s3 + $0x398] sm:$0xff]
          %v1146 = vld [vmem:[%s3 + $0x3a0] sm:$0xff]
          %v1147 = vld [vmem:[%s3 + $0x3a8] sm:$0xff]
          %v1148 = vld [vmem:[%s3 + $0x3b0] sm:$0xff]
          %v1149 = vld [vmem:[%s3 + $0x3b8] sm:$0xff]
          %v1150 = vld [vmem:[%s3 + $0x3c0] sm:$0xff]
          %v1151 = vld [vmem:[%s3 + $0x3c8] sm:$0xff]
          %v1152 = vld [vmem:[%s3 + $0x3d0] sm:$0xff]
          %v1153 = vld [vmem:[%s3 + $0x3d8] sm:$0xff]
          %v1154 = vld [vmem:[%s3 + $0x3e0] sm:$0xff]
          %v1155 = vld [vmem:[%s3 + $0x3e8] sm:$0xff]
          %v1156 = vld [vmem:[%s3 + $0x3f0] sm:$0xff]
          %v1157 = vld [vmem:[%s3 + $0x3f8] sm:$0xff]
          %v1158 = vld [vmem:[%s3 + $0x400] sm:$0xff]
          %v1159 = vld [vmem:[%s3 + $0x408] sm:$0xff]
          %v1160 = vld [vmem:[%s3 + $0x410] sm:$0xff]
          %v1161 = vld [vmem:[%s3 + $0x418] sm:$0xff]
          %v1162 = vld [vmem:[%s3 + $0x420] sm:$0xff]
          %v1163 = vld [vmem:[%s3 + $0x428] sm:$0xff]
          %v1164 = vld [vmem:[%s3 + $0x430] sm:$0xff]
          %v1165 = vld [vmem:[%s3 + $0x438] sm:$0xff]
          %v1166 = vld [vmem:[%s3 + $0x440] sm:$0xff]
          %v1167 = vld [vmem:[%s3 + $0x448] sm:$0xff]
          %v1168 = vld [vmem:[%s3 + $0x450] sm:$0xff]
          %v1169 = vld [vmem:[%s3 + $0x458] sm:$0xff]
          %v1170 = vld [vmem:[%s3 + $0x460] sm:$0xff]
          %v1171 = vld [vmem:[%s3 + $0x468] sm:$0xff]
          %v1172 = vld [vmem:[%s3 + $0x470] sm:$0xff]
          %v1173 = vld [vmem:[%s3 + $0x478] sm:$0xff]
          %v1174 = vld [vmem:[%s3 + $0x480] sm:$0xff]
          %v1175 = vld [vmem:[%s3 + $0x488] sm:$0xff]
          %v1176 = vld [vmem:[%s3 + $0x490] sm:$0xff]
          %v1177 = vld [vmem:[%s3 + $0x498] sm:$0xff]
          %v1178 = vld [vmem:[%s3 + $0x4a0] sm:$0xff]
          %v1179 = vld [vmem:[%s3 + $0x4a8] sm:$0xff]
          %v1180 = vld [vmem:[%s3 + $0x4b0] sm:$0xff]
          %v1181 = vld [vmem:[%s3 + $0x4b8] sm:$0xff]
          %v1182 = vld [vmem:[%s3 + $0x4c0] sm:$0xff]
          %v1183 = vld [vmem:[%s3 + $0x4c8] sm:$0xff]
          %v1184 = vld [vmem:[%s3 + $0x4d0] sm:$0xff]
          %v1185 = vld [vmem:[%s3 + $0x4d8] sm:$0xff]
          %v1186 = vld [vmem:[%s3 + $0x4e0] sm:$0xff]
          %v1187 = vld [vmem:[%s3 + $0x4e8] sm:$0xff]
          %v1188 = vld [vmem:[%s3 + $0x4f0] sm:$0xff]
          %v1189 = vld [vmem:[%s3 + $0x4f8] sm:$0xff]
          %v1190 = vld [vmem:[%s3 + $0x500] sm:$0xff]
          %v1191 = vld [vmem:[%s3 + $0x508] sm:$0xff]
          %v1192 = vld [vmem:[%s3 + $0x510] sm:$0xff]
          %v1193 = vld [vmem:[%s3 + $0x518] sm:$0xff]
          %v1194 = vld [vmem:[%s3 + $0x520] sm:$0xff]
          %v1195 = vld [vmem:[%s3 + $0x528] sm:$0xff]
          %v1196 = vld [vmem:[%s3 + $0x530] sm:$0xff]
          %v1197 = vld [vmem:[%s3 + $0x538] sm:$0xff]
          %v1198 = vld [vmem:[%s3 + $0x540] sm:$0xff]
          %v1199 = vld [vmem:[%s3 + $0x548] sm:$0xff]
          %v1200 = vld [vmem:[%s3 + $0x550] sm:$0xff]
          %v1201 = vld [vmem:[%s3 + $0x558] sm:$0xff]
          %v1202 = vld [vmem:[%s3 + $0x560] sm:$0xff]
          %v1203 = vld [vmem:[%s3 + $0x568] sm:$0xff]
          %v1204 = vld [vmem:[%s3 + $0x570] sm:$0xff]
          %v1205 = vld [vmem:[%s3 + $0x578] sm:$0xff]
          %v1206 = vld [vmem:[%s3 + $0x580] sm:$0xff]
          %v1207 = vld [vmem:[%s3 + $0x588] sm:$0xff]
          %v1208 = vld [vmem:[%s3 + $0x590] sm:$0xff]
          %v1209 = vld [vmem:[%s3 + $0x598] sm:$0xff]
          %v1210 = vld [vmem:[%s3 + $0x5a0] sm:$0xff]
          %v1211 = vld [vmem:[%s3 + $0x5a8] sm:$0xff]
          %v1212 = vld [vmem:[%s3 + $0x5b0] sm:$0xff]
          %v1213 = vld [vmem:[%s3 + $0x5b8] sm:$0xff]
          %v1214 = vld [vmem:[%s3 + $0x5c0] sm:$0xff]
          %v1215 = vld [vmem:[%s3 + $0x5c8] sm:$0xff]
          %v1216 = vld [vmem:[%s3 + $0x5d0] sm:$0xff]
          %v1217 = vld [vmem:[%s3 + $0x5d8] sm:$0xff]
          %v1218 = vld [vmem:[%s3 + $0x5e0] sm:$0xff]
          %v1219 = vld [vmem:[%s3 + $0x5e8] sm:$0xff]
          %v1220 = vld [vmem:[%s3 + $0x5f0] sm:$0xff]
          %v1221 = vld [vmem:[%s3 + $0x5f8] sm:$0xff]
          %v1222 = vld [vmem:[%s3 + $0x600] sm:$0xff]
          %v1223 = vld [vmem:[%s3 + $0x608] sm:$0xff]
          %v1224 = vld [vmem:[%s3 + $0x610] sm:$0xff]
          %v1225 = vld [vmem:[%s3 + $0x618] sm:$0xff]
          %v1226 = vld [vmem:[%s3 + $0x620] sm:$0xff]
          %v1227 = vld [vmem:[%s3 + $0x628] sm:$0xff]
          %v1228 = vld [vmem:[%s3 + $0x630] sm:$0xff]
          %v1229 = vld [vmem:[%s3 + $0x638] sm:$0xff]
          %v1230 = vld [vmem:[%s3 + $0x640] sm:$0xff]
          %v1231 = vld [vmem:[%s3 + $0x648] sm:$0xff]
          %v1232 = vld [vmem:[%s3 + $0x650] sm:$0xff]
          %v1233 = vld [vmem:[%s3 + $0x658] sm:$0xff]
          %v1234 = vld [vmem:[%s3 + $0x660] sm:$0xff]
          %v1235 = vld [vmem:[%s3 + $0x668] sm:$0xff]
          %v1236 = vld [vmem:[%s3 + $0x670] sm:$0xff]
          %v1237 = vld [vmem:[%s3 + $0x678] sm:$0xff]
          %v1238 = vld [vmem:[%s3 + $0x680] sm:$0xff]
          %v1239 = vld [vmem:[%s3 + $0x688] sm:$0xff]
          %v1240 = vld [vmem:[%s3 + $0x690] sm:$0xff]
          %v1241 = vld [vmem:[%s3 + $0x698] sm:$0xff]
          %v1242 = vld [vmem:[%s3 + $0x6a0] sm:$0xff]
          %v1243 = vld [vmem:[%s3 + $0x6a8] sm:$0xff]
          %v1244 = vld [vmem:[%s3 + $0x6b0] sm:$0xff]
          %v1245 = vld [vmem:[%s3 + $0x6b8] sm:$0xff]
          %v1246 = vld [vmem:[%s3 + $0x6c0] sm:$0xff]
          %v1247 = vld [vmem:[%s3 + $0x6c8] sm:$0xff]
          %v1248 = vld [vmem:[%s3 + $0x6d0] sm:$0xff]
          %v1249 = vld [vmem:[%s3 + $0x6d8] sm:$0xff]
          %v1250 = vld [vmem:[%s3 + $0x6e0] sm:$0xff]
          %v1251 = vld [vmem:[%s3 + $0x6e8] sm:$0xff]
          %v1252 = vld [vmem:[%s3 + $0x6f0] sm:$0xff]
          %v1253 = vld [vmem:[%s3 + $0x6f8] sm:$0xff]
          %v1366 = vunpack.c.l.b16 %v918
          %v1367 = vunpack.c.h.b16 %v918
          %v1368 = vunpack.c.l.b16 %v919
          %v1369 = vunpack.c.h.b16 %v919
          %v1370 = vunpack.c.l.b16 %v920
          %v1371 = vunpack.c.h.b16 %v920
          %v1372 = vunpack.c.l.b16 %v921
          %v1373 = vunpack.c.h.b16 %v921
          %v1374 = vunpack.c.l.b16 %v922
          %v1375 = vunpack.c.h.b16 %v922
          %v1376 = vunpack.c.l.b16 %v923
          %v1377 = vunpack.c.h.b16 %v923
          %v1378 = vunpack.c.l.b16 %v924
          %v1379 = vunpack.c.h.b16 %v924
          %v1380 = vunpack.c.l.b16 %v925
          %v1381 = vunpack.c.h.b16 %v925
          %v1382 = vunpack.c.l.b16 %v926
          %v1383 = vunpack.c.h.b16 %v926
          %v1384 = vunpack.c.l.b16 %v927
          %v1385 = vunpack.c.h.b16 %v927
          %v1386 = vunpack.c.l.b16 %v928
          %v1387 = vunpack.c.h.b16 %v928
          %v1388 = vunpack.c.l.b16 %v929
          %v1389 = vunpack.c.h.b16 %v929
          %v1390 = vunpack.c.l.b16 %v930
          %v1391 = vunpack.c.h.b16 %v930
          %v1392 = vunpack.c.l.b16 %v931
          %v1393 = vunpack.c.h.b16 %v931
          %v1394 = vunpack.c.l.b16 %v932
          %v1395 = vunpack.c.h.b16 %v932
          %v1396 = vunpack.c.l.b16 %v933
          %v1397 = vunpack.c.h.b16 %v933
          %v1398 = vunpack.c.l.b16 %v934
          %v1399 = vunpack.c.h.b16 %v934
          %v1400 = vunpack.c.l.b16 %v935
          %v1401 = vunpack.c.h.b16 %v935
          %v1402 = vunpack.c.l.b16 %v936
          %v1403 = vunpack.c.h.b16 %v936
          %v1404 = vunpack.c.l.b16 %v937
          %v1405 = vunpack.c.h.b16 %v937
          %v1406 = vunpack.c.l.b16 %v938
          %v1407 = vunpack.c.h.b16 %v938
          %v1408 = vunpack.c.l.b16 %v939
          %v1409 = vunpack.c.h.b16 %v939
          %v1410 = vunpack.c.l.b16 %v940
          %v1411 = vunpack.c.h.b16 %v940
          %v1412 = vunpack.c.l.b16 %v941
          %v1413 = vunpack.c.h.b16 %v941
          %v1414 = vunpack.c.l.b16 %v942
          %v1415 = vunpack.c.h.b16 %v942
          %v1416 = vunpack.c.l.b16 %v943
          %v1417 = vunpack.c.h.b16 %v943
          %v1418 = vunpack.c.l.b16 %v944
          %v1419 = vunpack.c.h.b16 %v944
          %v1420 = vunpack.c.l.b16 %v945
          %v1421 = vunpack.c.h.b16 %v945
          %v1422 = vunpack.c.l.b16 %v946
          %v1423 = vunpack.c.h.b16 %v946
          %v1424 = vunpack.c.l.b16 %v947
          %v1425 = vunpack.c.h.b16 %v947
          %v1426 = vunpack.c.l.b16 %v948
          %v1427 = vunpack.c.h.b16 %v948
          %v1428 = vunpack.c.l.b16 %v949
          %v1429 = vunpack.c.h.b16 %v949
          %v1430 = vunpack.c.l.b16 %v950
          %v1431 = vunpack.c.h.b16 %v950
          %v1432 = vunpack.c.l.b16 %v951
          %v1433 = vunpack.c.h.b16 %v951
          %v1434 = vunpack.c.l.b16 %v952
          %v1435 = vunpack.c.h.b16 %v952
          %v1436 = vunpack.c.l.b16 %v953
          %v1437 = vunpack.c.h.b16 %v953
          %v1438 = vunpack.c.l.b16 %v954
          %v1439 = vunpack.c.h.b16 %v954
          %v1440 = vunpack.c.l.b16 %v955
          %v1441 = vunpack.c.h.b16 %v955
          %v1442 = vunpack.c.l.b16 %v956
          %v1443 = vunpack.c.h.b16 %v956
          %v1444 = vunpack.c.l.b16 %v957
          %v1445 = vunpack.c.h.b16 %v957
          %v1446 = vunpack.c.l.b16 %v958
          %v1447 = vunpack.c.h.b16 %v958
          %v1448 = vunpack.c.l.b16 %v959
          %v1449 = vunpack.c.h.b16 %v959
          %v1450 = vunpack.c.l.b16 %v960
          %v1451 = vunpack.c.h.b16 %v960
          %v1452 = vunpack.c.l.b16 %v961
          %v1453 = vunpack.c.h.b16 %v961
          %v1454 = vunpack.c.l.b16 %v962
          %v1455 = vunpack.c.h.b16 %v962
          %v1456 = vunpack.c.l.b16 %v963
          %v1457 = vunpack.c.h.b16 %v963
          %v1458 = vunpack.c.l.b16 %v964
          %v1459 = vunpack.c.h.b16 %v964
          %v1460 = vunpack.c.l.b16 %v965
          %v1461 = vunpack.c.h.b16 %v965
          %v1462 = vunpack.c.l.b16 %v966
          %v1463 = vunpack.c.h.b16 %v966
          %v1464 = vunpack.c.l.b16 %v967
          %v1465 = vunpack.c.h.b16 %v967
          %v1466 = vunpack.c.l.b16 %v968
          %v1467 = vunpack.c.h.b16 %v968
          %v1468 = vunpack.c.l.b16 %v969
          %v1469 = vunpack.c.h.b16 %v969
          %v1470 = vunpack.c.l.b16 %v970
          %v1471 = vunpack.c.h.b16 %v970
          %v1472 = vunpack.c.l.b16 %v971
          %v1473 = vunpack.c.h.b16 %v971
          %v1474 = vunpack.c.l.b16 %v972
          %v1475 = vunpack.c.h.b16 %v972
          %v1476 = vunpack.c.l.b16 %v973
          %v1477 = vunpack.c.h.b16 %v973
          %v1478 = vunpack.c.l.b16 %v974
          %v1479 = vunpack.c.h.b16 %v974
          %v1480 = vunpack.c.l.b16 %v975
          %v1481 = vunpack.c.h.b16 %v975
          %v1482 = vunpack.c.l.b16 %v976
          %v1483 = vunpack.c.h.b16 %v976
          %v1484 = vunpack.c.l.b16 %v977
          %v1485 = vunpack.c.h.b16 %v977
          %v1486 = vunpack.c.l.b16 %v978
          %v1487 = vunpack.c.h.b16 %v978
          %v1488 = vunpack.c.l.b16 %v979
          %v1489 = vunpack.c.h.b16 %v979
          %v1490 = vunpack.c.l.b16 %v980
          %v1491 = vunpack.c.h.b16 %v980
          %v1492 = vunpack.c.l.b16 %v981
          %v1493 = vunpack.c.h.b16 %v981
          %v1494 = vunpack.c.l.b16 %v982
          %v1495 = vunpack.c.h.b16 %v982
          %v1496 = vunpack.c.l.b16 %v983
          %v1497 = vunpack.c.h.b16 %v983
          %v1498 = vunpack.c.l.b16 %v984
          %v1499 = vunpack.c.h.b16 %v984
          %v1500 = vunpack.c.l.b16 %v985
          %v1501 = vunpack.c.h.b16 %v985
          %v1502 = vunpack.c.l.b16 %v986
          %v1503 = vunpack.c.h.b16 %v986
          %v1504 = vunpack.c.l.b16 %v987
          %v1505 = vunpack.c.h.b16 %v987
          %v1506 = vunpack.c.l.b16 %v988
          %v1507 = vunpack.c.h.b16 %v988
          %v1508 = vunpack.c.l.b16 %v989
          %v1509 = vunpack.c.h.b16 %v989
          %v1510 = vunpack.c.l.b16 %v990
          %v1511 = vunpack.c.h.b16 %v990
          %v1512 = vunpack.c.l.b16 %v991
          %v1513 = vunpack.c.h.b16 %v991
          %v1514 = vunpack.c.l.b16 %v992
          %v1515 = vunpack.c.h.b16 %v992
          %v1516 = vunpack.c.l.b16 %v993
          %v1517 = vunpack.c.h.b16 %v993
          %v1518 = vunpack.c.l.b16 %v994
          %v1519 = vunpack.c.h.b16 %v994
          %v1520 = vunpack.c.l.b16 %v995
          %v1521 = vunpack.c.h.b16 %v995
          %v1522 = vunpack.c.l.b16 %v996
          %v1523 = vunpack.c.h.b16 %v996
          %v1524 = vunpack.c.l.b16 %v997
          %v1525 = vunpack.c.h.b16 %v997
          %v1526 = vunpack.c.l.b16 %v998
          %v1527 = vunpack.c.h.b16 %v998
          %v1528 = vunpack.c.l.b16 %v999
          %v1529 = vunpack.c.h.b16 %v999
          %v1530 = vunpack.c.l.b16 %v1000
          %v1531 = vunpack.c.h.b16 %v1000
          %v1532 = vunpack.c.l.b16 %v1001
          %v1533 = vunpack.c.h.b16 %v1001
          %v1534 = vunpack.c.l.b16 %v1002
          %v1535 = vunpack.c.h.b16 %v1002
          %v1536 = vunpack.c.l.b16 %v1003
          %v1537 = vunpack.c.h.b16 %v1003
          %v1538 = vunpack.c.l.b16 %v1004
          %v1539 = vunpack.c.h.b16 %v1004
          %v1540 = vunpack.c.l.b16 %v1005
          %v1541 = vunpack.c.h.b16 %v1005
          %v1542 = vunpack.c.l.b16 %v1006
          %v1543 = vunpack.c.h.b16 %v1006
          %v1544 = vunpack.c.l.b16 %v1007
          %v1545 = vunpack.c.h.b16 %v1007
          %v1546 = vunpack.c.l.b16 %v1008
          %v1547 = vunpack.c.h.b16 %v1008
          %v1548 = vunpack.c.l.b16 %v1009
          %v1549 = vunpack.c.h.b16 %v1009
          %v1550 = vunpack.c.l.b16 %v1010
          %v1551 = vunpack.c.h.b16 %v1010
          %v1552 = vunpack.c.l.b16 %v1011
          %v1553 = vunpack.c.h.b16 %v1011
          %v1554 = vunpack.c.l.b16 %v1012
          %v1555 = vunpack.c.h.b16 %v1012
          %v1556 = vunpack.c.l.b16 %v1013
          %v1557 = vunpack.c.h.b16 %v1013
          %v1558 = vunpack.c.l.b16 %v1014
          %v1559 = vunpack.c.h.b16 %v1014
          %v1560 = vunpack.c.l.b16 %v1015
          %v1561 = vunpack.c.h.b16 %v1015
          %v1562 = vunpack.c.l.b16 %v1016
          %v1563 = vunpack.c.h.b16 %v1016
          %v1564 = vunpack.c.l.b16 %v1017
          %v1565 = vunpack.c.h.b16 %v1017
          %v1566 = vunpack.c.l.b16 %v1018
          %v1567 = vunpack.c.h.b16 %v1018
          %v1568 = vunpack.c.l.b16 %v1019
          %v1569 = vunpack.c.h.b16 %v1019
          %v1570 = vunpack.c.l.b16 %v1020
          %v1571 = vunpack.c.h.b16 %v1020
          %v1572 = vunpack.c.l.b16 %v1021
          %v1573 = vunpack.c.h.b16 %v1021
          %v1574 = vunpack.c.l.b16 %v1022
          %v1575 = vunpack.c.h.b16 %v1022
          %v1576 = vunpack.c.l.b16 %v1023
          %v1577 = vunpack.c.h.b16 %v1023
          %v1578 = vunpack.c.l.b16 %v1024
          %v1579 = vunpack.c.h.b16 %v1024
          %v1580 = vunpack.c.l.b16 %v1025
          %v1581 = vunpack.c.h.b16 %v1025
          %v1582 = vunpack.c.l.b16 %v1026
          %v1583 = vunpack.c.h.b16 %v1026
          %v1584 = vunpack.c.l.b16 %v1027
          %v1585 = vunpack.c.h.b16 %v1027
          %v1586 = vunpack.c.l.b16 %v1028
          %v1587 = vunpack.c.h.b16 %v1028
          %v1588 = vunpack.c.l.b16 %v1029
          %v1589 = vunpack.c.h.b16 %v1029
          %v1590 = vpack.c.b16 %v1380, %v1366
          %v1591 = vpack.c.b16 %v1381, %v1367
          %v1592 = vpack.c.b16 %v1382, %v1368
          %v1593 = vpack.c.b16 %v1383, %v1369
          %v1594 = vpack.c.b16 %v1384, %v1370
          %v1595 = vpack.c.b16 %v1385, %v1371
          %v1596 = vpack.c.b16 %v1386, %v1372
          %v1597 = vpack.c.b16 %v1387, %v1373
          %v1598 = vpack.c.b16 %v1388, %v1374
          %v1599 = vpack.c.b16 %v1389, %v1375
          %v1600 = vpack.c.b16 %v1390, %v1376
          %v1601 = vpack.c.b16 %v1391, %v1377
          %v1602 = vpack.c.b16 %v1392, %v1378
          %v1603 = vpack.c.b16 %v1393, %v1379
          %v1604 = vpack.c.b16 %v1408, %v1394
          %v1605 = vpack.c.b16 %v1409, %v1395
          %v1606 = vpack.c.b16 %v1410, %v1396
          %v1607 = vpack.c.b16 %v1411, %v1397
          %v1608 = vpack.c.b16 %v1412, %v1398
          %v1609 = vpack.c.b16 %v1413, %v1399
          %v1610 = vpack.c.b16 %v1414, %v1400
          %v1611 = vpack.c.b16 %v1415, %v1401
          %v1612 = vpack.c.b16 %v1416, %v1402
          %v1613 = vpack.c.b16 %v1417, %v1403
          %v1614 = vpack.c.b16 %v1418, %v1404
          %v1615 = vpack.c.b16 %v1419, %v1405
          %v1616 = vpack.c.b16 %v1420, %v1406
          %v1617 = vpack.c.b16 %v1421, %v1407
          %v1618 = vpack.c.b16 %v1436, %v1422
          %v1619 = vpack.c.b16 %v1437, %v1423
          %v1620 = vpack.c.b16 %v1438, %v1424
          %v1621 = vpack.c.b16 %v1439, %v1425
          %v1622 = vpack.c.b16 %v1440, %v1426
          %v1623 = vpack.c.b16 %v1441, %v1427
          %v1624 = vpack.c.b16 %v1442, %v1428
          %v1625 = vpack.c.b16 %v1443, %v1429
          %v1626 = vpack.c.b16 %v1444, %v1430
          %v1627 = vpack.c.b16 %v1445, %v1431
          %v1628 = vpack.c.b16 %v1446, %v1432
          %v1629 = vpack.c.b16 %v1447, %v1433
          %v1630 = vpack.c.b16 %v1448, %v1434
          %v1631 = vpack.c.b16 %v1449, %v1435
          %v1632 = vpack.c.b16 %v1464, %v1450
          %v1633 = vpack.c.b16 %v1465, %v1451
          %v1634 = vpack.c.b16 %v1466, %v1452
          %v1635 = vpack.c.b16 %v1467, %v1453
          %v1636 = vpack.c.b16 %v1468, %v1454
          %v1637 = vpack.c.b16 %v1469, %v1455
          %v1638 = vpack.c.b16 %v1470, %v1456
          %v1639 = vpack.c.b16 %v1471, %v1457
          %v1640 = vpack.c.b16 %v1472, %v1458
          %v1641 = vpack.c.b16 %v1473, %v1459
          %v1642 = vpack.c.b16 %v1474, %v1460
          %v1643 = vpack.c.b16 %v1475, %v1461
          %v1644 = vpack.c.b16 %v1476, %v1462
          %v1645 = vpack.c.b16 %v1477, %v1463
          %v1646 = vpack.c.b16 %v1492, %v1478
          %v1647 = vpack.c.b16 %v1493, %v1479
          %v1648 = vpack.c.b16 %v1494, %v1480
          %v1649 = vpack.c.b16 %v1495, %v1481
          %v1650 = vpack.c.b16 %v1496, %v1482
          %v1651 = vpack.c.b16 %v1497, %v1483
          %v1652 = vpack.c.b16 %v1498, %v1484
          %v1653 = vpack.c.b16 %v1499, %v1485
          %v1654 = vpack.c.b16 %v1500, %v1486
          %v1655 = vpack.c.b16 %v1501, %v1487
          %v1656 = vpack.c.b16 %v1502, %v1488
          %v1657 = vpack.c.b16 %v1503, %v1489
          %v1658 = vpack.c.b16 %v1504, %v1490
          %v1659 = vpack.c.b16 %v1505, %v1491
          %v1660 = vpack.c.b16 %v1520, %v1506
          %v1661 = vpack.c.b16 %v1521, %v1507
          %v1662 = vpack.c.b16 %v1522, %v1508
          %v1663 = vpack.c.b16 %v1523, %v1509
          %v1664 = vpack.c.b16 %v1524, %v1510
          %v1665 = vpack.c.b16 %v1525, %v1511
          %v1666 = vpack.c.b16 %v1526, %v1512
          %v1667 = vpack.c.b16 %v1527, %v1513
          %v1668 = vpack.c.b16 %v1528, %v1514
          %v1669 = vpack.c.b16 %v1529, %v1515
          %v1670 = vpack.c.b16 %v1530, %v1516
          %v1671 = vpack.c.b16 %v1531, %v1517
          %v1672 = vpack.c.b16 %v1532, %v1518
          %v1673 = vpack.c.b16 %v1533, %v1519
          %v1674 = vpack.c.b16 %v1548, %v1534
          %v1675 = vpack.c.b16 %v1549, %v1535
          %v1676 = vpack.c.b16 %v1550, %v1536
          %v1677 = vpack.c.b16 %v1551, %v1537
          %v1678 = vpack.c.b16 %v1552, %v1538
          %v1679 = vpack.c.b16 %v1553, %v1539
          %v1680 = vpack.c.b16 %v1554, %v1540
          %v1681 = vpack.c.b16 %v1555, %v1541
          %v1682 = vpack.c.b16 %v1556, %v1542
          %v1683 = vpack.c.b16 %v1557, %v1543
          %v1684 = vpack.c.b16 %v1558, %v1544
          %v1685 = vpack.c.b16 %v1559, %v1545
          %v1686 = vpack.c.b16 %v1560, %v1546
          %v1687 = vpack.c.b16 %v1561, %v1547
          %v1688 = vpack.c.b16 %v1576, %v1562
          %v1689 = vpack.c.b16 %v1577, %v1563
          %v1690 = vpack.c.b16 %v1578, %v1564
          %v1691 = vpack.c.b16 %v1579, %v1565
          %v1692 = vpack.c.b16 %v1580, %v1566
          %v1693 = vpack.c.b16 %v1581, %v1567
          %v1694 = vpack.c.b16 %v1582, %v1568
          %v1695 = vpack.c.b16 %v1583, %v1569
          %v1696 = vpack.c.b16 %v1584, %v1570
          %v1697 = vpack.c.b16 %v1585, %v1571
          %v1698 = vpack.c.b16 %v1586, %v1572
          %v1699 = vpack.c.b16 %v1587, %v1573
          %v1700 = vpack.c.b16 %v1588, %v1574
          %v1701 = vpack.c.b16 %v1589, %v1575
          %v2038 = vunpack.c.l.b16 %v1030
          %v2039 = vunpack.c.h.b16 %v1030
          %v2040 = vunpack.c.l.b16 %v1031
          %v2041 = vunpack.c.h.b16 %v1031
          %v2042 = vunpack.c.l.b16 %v1032
          %v2043 = vunpack.c.h.b16 %v1032
          %v2044 = vunpack.c.l.b16 %v1033
          %v2045 = vunpack.c.h.b16 %v1033
          %v2046 = vunpack.c.l.b16 %v1034
          %v2047 = vunpack.c.h.b16 %v1034
          %v2048 = vunpack.c.l.b16 %v1035
          %v2049 = vunpack.c.h.b16 %v1035
          %v2050 = vunpack.c.l.b16 %v1036
          %v2051 = vunpack.c.h.b16 %v1036
          %v2052 = vunpack.c.l.b16 %v1037
          %v2053 = vunpack.c.h.b16 %v1037
          %v2054 = vunpack.c.l.b16 %v1038
          %v2055 = vunpack.c.h.b16 %v1038
          %v2056 = vunpack.c.l.b16 %v1039
          %v2057 = vunpack.c.h.b16 %v1039
          %v2058 = vunpack.c.l.b16 %v1040
          %v2059 = vunpack.c.h.b16 %v1040
          %v2060 = vunpack.c.l.b16 %v1041
          %v2061 = vunpack.c.h.b16 %v1041
          %v2062 = vunpack.c.l.b16 %v1042
          %v2063 = vunpack.c.h.b16 %v1042
          %v2064 = vunpack.c.l.b16 %v1043
          %v2065 = vunpack.c.h.b16 %v1043
          %v2066 = vunpack.c.l.b16 %v1044
          %v2067 = vunpack.c.h.b16 %v1044
          %v2068 = vunpack.c.l.b16 %v1045
          %v2069 = vunpack.c.h.b16 %v1045
          %v2070 = vunpack.c.l.b16 %v1046
          %v2071 = vunpack.c.h.b16 %v1046
          %v2072 = vunpack.c.l.b16 %v1047
          %v2073 = vunpack.c.h.b16 %v1047
          %v2074 = vunpack.c.l.b16 %v1048
          %v2075 = vunpack.c.h.b16 %v1048
          %v2076 = vunpack.c.l.b16 %v1049
          %v2077 = vunpack.c.h.b16 %v1049
          %v2078 = vunpack.c.l.b16 %v1050
          %v2079 = vunpack.c.h.b16 %v1050
          %v2080 = vunpack.c.l.b16 %v1051
          %v2081 = vunpack.c.h.b16 %v1051
          %v2082 = vunpack.c.l.b16 %v1052
          %v2083 = vunpack.c.h.b16 %v1052
          %v2084 = vunpack.c.l.b16 %v1053
          %v2085 = vunpack.c.h.b16 %v1053
          %v2086 = vunpack.c.l.b16 %v1054
          %v2087 = vunpack.c.h.b16 %v1054
          %v2088 = vunpack.c.l.b16 %v1055
          %v2089 = vunpack.c.h.b16 %v1055
          %v2090 = vunpack.c.l.b16 %v1056
          %v2091 = vunpack.c.h.b16 %v1056
          %v2092 = vunpack.c.l.b16 %v1057
          %v2093 = vunpack.c.h.b16 %v1057
          %v2094 = vunpack.c.l.b16 %v1058
          %v2095 = vunpack.c.h.b16 %v1058
          %v2096 = vunpack.c.l.b16 %v1059
          %v2097 = vunpack.c.h.b16 %v1059
          %v2098 = vunpack.c.l.b16 %v1060
          %v2099 = vunpack.c.h.b16 %v1060
          %v2100 = vunpack.c.l.b16 %v1061
          %v2101 = vunpack.c.h.b16 %v1061
          %v2102 = vunpack.c.l.b16 %v1062
          %v2103 = vunpack.c.h.b16 %v1062
          %v2104 = vunpack.c.l.b16 %v1063
          %v2105 = vunpack.c.h.b16 %v1063
          %v2106 = vunpack.c.l.b16 %v1064
          %v2107 = vunpack.c.h.b16 %v1064
          %v2108 = vunpack.c.l.b16 %v1065
          %v2109 = vunpack.c.h.b16 %v1065
          %v2110 = vunpack.c.l.b16 %v1066
          %v2111 = vunpack.c.h.b16 %v1066
          %v2112 = vunpack.c.l.b16 %v1067
          %v2113 = vunpack.c.h.b16 %v1067
          %v2114 = vunpack.c.l.b16 %v1068
          %v2115 = vunpack.c.h.b16 %v1068
          %v2116 = vunpack.c.l.b16 %v1069
          %v2117 = vunpack.c.h.b16 %v1069
          %v2118 = vunpack.c.l.b16 %v1070
          %v2119 = vunpack.c.h.b16 %v1070
          %v2120 = vunpack.c.l.b16 %v1071
          %v2121 = vunpack.c.h.b16 %v1071
          %v2122 = vunpack.c.l.b16 %v1072
          %v2123 = vunpack.c.h.b16 %v1072
          %v2124 = vunpack.c.l.b16 %v1073
          %v2125 = vunpack.c.h.b16 %v1073
          %v2126 = vunpack.c.l.b16 %v1074
          %v2127 = vunpack.c.h.b16 %v1074
          %v2128 = vunpack.c.l.b16 %v1075
          %v2129 = vunpack.c.h.b16 %v1075
          %v2130 = vunpack.c.l.b16 %v1076
          %v2131 = vunpack.c.h.b16 %v1076
          %v2132 = vunpack.c.l.b16 %v1077
          %v2133 = vunpack.c.h.b16 %v1077
          %v2134 = vunpack.c.l.b16 %v1078
          %v2135 = vunpack.c.h.b16 %v1078
          %v2136 = vunpack.c.l.b16 %v1079
          %v2137 = vunpack.c.h.b16 %v1079
          %v2138 = vunpack.c.l.b16 %v1080
          %v2139 = vunpack.c.h.b16 %v1080
          %v2140 = vunpack.c.l.b16 %v1081
          %v2141 = vunpack.c.h.b16 %v1081
          %v2142 = vunpack.c.l.b16 %v1082
          %v2143 = vunpack.c.h.b16 %v1082
          %v2144 = vunpack.c.l.b16 %v1083
          %v2145 = vunpack.c.h.b16 %v1083
          %v2146 = vunpack.c.l.b16 %v1084
          %v2147 = vunpack.c.h.b16 %v1084
          %v2148 = vunpack.c.l.b16 %v1085
          %v2149 = vunpack.c.h.b16 %v1085
          %v2150 = vunpack.c.l.b16 %v1086
          %v2151 = vunpack.c.h.b16 %v1086
          %v2152 = vunpack.c.l.b16 %v1087
          %v2153 = vunpack.c.h.b16 %v1087
          %v2154 = vunpack.c.l.b16 %v1088
          %v2155 = vunpack.c.h.b16 %v1088
          %v2156 = vunpack.c.l.b16 %v1089
          %v2157 = vunpack.c.h.b16 %v1089
          %v2158 = vunpack.c.l.b16 %v1090
          %v2159 = vunpack.c.h.b16 %v1090
          %v2160 = vunpack.c.l.b16 %v1091
          %v2161 = vunpack.c.h.b16 %v1091
          %v2162 = vunpack.c.l.b16 %v1092
          %v2163 = vunpack.c.h.b16 %v1092
          %v2164 = vunpack.c.l.b16 %v1093
          %v2165 = vunpack.c.h.b16 %v1093
          %v2166 = vunpack.c.l.b16 %v1094
          %v2167 = vunpack.c.h.b16 %v1094
          %v2168 = vunpack.c.l.b16 %v1095
          %v2169 = vunpack.c.h.b16 %v1095
          %v2170 = vunpack.c.l.b16 %v1096
          %v2171 = vunpack.c.h.b16 %v1096
          %v2172 = vunpack.c.l.b16 %v1097
          %v2173 = vunpack.c.h.b16 %v1097
          %v2174 = vunpack.c.l.b16 %v1098
          %v2175 = vunpack.c.h.b16 %v1098
          %v2176 = vunpack.c.l.b16 %v1099
          %v2177 = vunpack.c.h.b16 %v1099
          %v2178 = vunpack.c.l.b16 %v1100
          %v2179 = vunpack.c.h.b16 %v1100
          %v2180 = vunpack.c.l.b16 %v1101
          %v2181 = vunpack.c.h.b16 %v1101
          %v2182 = vunpack.c.l.b16 %v1102
          %v2183 = vunpack.c.h.b16 %v1102
          %v2184 = vunpack.c.l.b16 %v1103
          %v2185 = vunpack.c.h.b16 %v1103
          %v2186 = vunpack.c.l.b16 %v1104
          %v2187 = vunpack.c.h.b16 %v1104
          %v2188 = vunpack.c.l.b16 %v1105
          %v2189 = vunpack.c.h.b16 %v1105
          %v2190 = vunpack.c.l.b16 %v1106
          %v2191 = vunpack.c.h.b16 %v1106
          %v2192 = vunpack.c.l.b16 %v1107
          %v2193 = vunpack.c.h.b16 %v1107
          %v2194 = vunpack.c.l.b16 %v1108
          %v2195 = vunpack.c.h.b16 %v1108
          %v2196 = vunpack.c.l.b16 %v1109
          %v2197 = vunpack.c.h.b16 %v1109
          %v2198 = vunpack.c.l.b16 %v1110
          %v2199 = vunpack.c.h.b16 %v1110
          %v2200 = vunpack.c.l.b16 %v1111
          %v2201 = vunpack.c.h.b16 %v1111
          %v2202 = vunpack.c.l.b16 %v1112
          %v2203 = vunpack.c.h.b16 %v1112
          %v2204 = vunpack.c.l.b16 %v1113
          %v2205 = vunpack.c.h.b16 %v1113
          %v2206 = vunpack.c.l.b16 %v1114
          %v2207 = vunpack.c.h.b16 %v1114
          %v2208 = vunpack.c.l.b16 %v1115
          %v2209 = vunpack.c.h.b16 %v1115
          %v2210 = vunpack.c.l.b16 %v1116
          %v2211 = vunpack.c.h.b16 %v1116
          %v2212 = vunpack.c.l.b16 %v1117
          %v2213 = vunpack.c.h.b16 %v1117
          %v2214 = vunpack.c.l.b16 %v1118
          %v2215 = vunpack.c.h.b16 %v1118
          %v2216 = vunpack.c.l.b16 %v1119
          %v2217 = vunpack.c.h.b16 %v1119
          %v2218 = vunpack.c.l.b16 %v1120
          %v2219 = vunpack.c.h.b16 %v1120
          %v2220 = vunpack.c.l.b16 %v1121
          %v2221 = vunpack.c.h.b16 %v1121
          %v2222 = vunpack.c.l.b16 %v1122
          %v2223 = vunpack.c.h.b16 %v1122
          %v2224 = vunpack.c.l.b16 %v1123
          %v2225 = vunpack.c.h.b16 %v1123
          %v2226 = vunpack.c.l.b16 %v1124
          %v2227 = vunpack.c.h.b16 %v1124
          %v2228 = vunpack.c.l.b16 %v1125
          %v2229 = vunpack.c.h.b16 %v1125
          %v2230 = vunpack.c.l.b16 %v1126
          %v2231 = vunpack.c.h.b16 %v1126
          %v2232 = vunpack.c.l.b16 %v1127
          %v2233 = vunpack.c.h.b16 %v1127
          %v2234 = vunpack.c.l.b16 %v1128
          %v2235 = vunpack.c.h.b16 %v1128
          %v2236 = vunpack.c.l.b16 %v1129
          %v2237 = vunpack.c.h.b16 %v1129
          %v2238 = vunpack.c.l.b16 %v1130
          %v2239 = vunpack.c.h.b16 %v1130
          %v2240 = vunpack.c.l.b16 %v1131
          %v2241 = vunpack.c.h.b16 %v1131
          %v2242 = vunpack.c.l.b16 %v1132
          %v2243 = vunpack.c.h.b16 %v1132
          %v2244 = vunpack.c.l.b16 %v1133
          %v2245 = vunpack.c.h.b16 %v1133
          %v2246 = vunpack.c.l.b16 %v1134
          %v2247 = vunpack.c.h.b16 %v1134
          %v2248 = vunpack.c.l.b16 %v1135
          %v2249 = vunpack.c.h.b16 %v1135
          %v2250 = vunpack.c.l.b16 %v1136
          %v2251 = vunpack.c.h.b16 %v1136
          %v2252 = vunpack.c.l.b16 %v1137
          %v2253 = vunpack.c.h.b16 %v1137
          %v2254 = vunpack.c.l.b16 %v1138
          %v2255 = vunpack.c.h.b16 %v1138
          %v2256 = vunpack.c.l.b16 %v1139
          %v2257 = vunpack.c.h.b16 %v1139
          %v2258 = vunpack.c.l.b16 %v1140
          %v2259 = vunpack.c.h.b16 %v1140
          %v2260 = vunpack.c.l.b16 %v1141
          %v2261 = vunpack.c.h.b16 %v1141
          %v2262 = vunpack.c.l.b16 %v1142
          %v2263 = vunpack.c.h.b16 %v1142
          %v2264 = vunpack.c.l.b16 %v1143
          %v2265 = vunpack.c.h.b16 %v1143
          %v2266 = vunpack.c.l.b16 %v1144
          %v2267 = vunpack.c.h.b16 %v1144
          %v2268 = vunpack.c.l.b16 %v1145
          %v2269 = vunpack.c.h.b16 %v1145
          %v2270 = vunpack.c.l.b16 %v1146
          %v2271 = vunpack.c.h.b16 %v1146
          %v2272 = vunpack.c.l.b16 %v1147
          %v2273 = vunpack.c.h.b16 %v1147
          %v2274 = vunpack.c.l.b16 %v1148
          %v2275 = vunpack.c.h.b16 %v1148
          %v2276 = vunpack.c.l.b16 %v1149
          %v2277 = vunpack.c.h.b16 %v1149
          %v2278 = vunpack.c.l.b16 %v1150
          %v2279 = vunpack.c.h.b16 %v1150
          %v2280 = vunpack.c.l.b16 %v1151
          %v2281 = vunpack.c.h.b16 %v1151
          %v2282 = vunpack.c.l.b16 %v1152
          %v2283 = vunpack.c.h.b16 %v1152
          %v2284 = vunpack.c.l.b16 %v1153
          %v2285 = vunpack.c.h.b16 %v1153
          %v2286 = vunpack.c.l.b16 %v1154
          %v2287 = vunpack.c.h.b16 %v1154
          %v2288 = vunpack.c.l.b16 %v1155
          %v2289 = vunpack.c.h.b16 %v1155
          %v2290 = vunpack.c.l.b16 %v1156
          %v2291 = vunpack.c.h.b16 %v1156
          %v2292 = vunpack.c.l.b16 %v1157
          %v2293 = vunpack.c.h.b16 %v1157
          %v2294 = vunpack.c.l.b16 %v1158
          %v2295 = vunpack.c.h.b16 %v1158
          %v2296 = vunpack.c.l.b16 %v1159
          %v2297 = vunpack.c.h.b16 %v1159
          %v2298 = vunpack.c.l.b16 %v1160
          %v2299 = vunpack.c.h.b16 %v1160
          %v2300 = vunpack.c.l.b16 %v1161
          %v2301 = vunpack.c.h.b16 %v1161
          %v2302 = vunpack.c.l.b16 %v1162
          %v2303 = vunpack.c.h.b16 %v1162
          %v2304 = vunpack.c.l.b16 %v1163
          %v2305 = vunpack.c.h.b16 %v1163
          %v2306 = vunpack.c.l.b16 %v1164
          %v2307 = vunpack.c.h.b16 %v1164
          %v2308 = vunpack.c.l.b16 %v1165
          %v2309 = vunpack.c.h.b16 %v1165
          %v2310 = vunpack.c.l.b16 %v1166
          %v2311 = vunpack.c.h.b16 %v1166
          %v2312 = vunpack.c.l.b16 %v1167
          %v2313 = vunpack.c.h.b16 %v1167
          %v2314 = vunpack.c.l.b16 %v1168
          %v2315 = vunpack.c.h.b16 %v1168
          %v2316 = vunpack.c.l.b16 %v1169
          %v2317 = vunpack.c.h.b16 %v1169
          %v2318 = vunpack.c.l.b16 %v1170
          %v2319 = vunpack.c.h.b16 %v1170
          %v2320 = vunpack.c.l.b16 %v1171
          %v2321 = vunpack.c.h.b16 %v1171
          %v2322 = vunpack.c.l.b16 %v1172
          %v2323 = vunpack.c.h.b16 %v1172
          %v2324 = vunpack.c.l.b16 %v1173
          %v2325 = vunpack.c.h.b16 %v1173
          %v2326 = vunpack.c.l.b16 %v1174
          %v2327 = vunpack.c.h.b16 %v1174
          %v2328 = vunpack.c.l.b16 %v1175
          %v2329 = vunpack.c.h.b16 %v1175
          %v2330 = vunpack.c.l.b16 %v1176
          %v2331 = vunpack.c.h.b16 %v1176
          %v2332 = vunpack.c.l.b16 %v1177
          %v2333 = vunpack.c.h.b16 %v1177
          %v2334 = vunpack.c.l.b16 %v1178
          %v2335 = vunpack.c.h.b16 %v1178
          %v2336 = vunpack.c.l.b16 %v1179
          %v2337 = vunpack.c.h.b16 %v1179
          %v2338 = vunpack.c.l.b16 %v1180
          %v2339 = vunpack.c.h.b16 %v1180
          %v2340 = vunpack.c.l.b16 %v1181
          %v2341 = vunpack.c.h.b16 %v1181
          %v2342 = vunpack.c.l.b16 %v1182
          %v2343 = vunpack.c.h.b16 %v1182
          %v2344 = vunpack.c.l.b16 %v1183
          %v2345 = vunpack.c.h.b16 %v1183
          %v2346 = vunpack.c.l.b16 %v1184
          %v2347 = vunpack.c.h.b16 %v1184
          %v2348 = vunpack.c.l.b16 %v1185
          %v2349 = vunpack.c.h.b16 %v1185
          %v2350 = vunpack.c.l.b16 %v1186
          %v2351 = vunpack.c.h.b16 %v1186
          %v2352 = vunpack.c.l.b16 %v1187
          %v2353 = vunpack.c.h.b16 %v1187
          %v2354 = vunpack.c.l.b16 %v1188
          %v2355 = vunpack.c.h.b16 %v1188
          %v2356 = vunpack.c.l.b16 %v1189
          %v2357 = vunpack.c.h.b16 %v1189
          %v2358 = vunpack.c.l.b16 %v1190
          %v2359 = vunpack.c.h.b16 %v1190
          %v2360 = vunpack.c.l.b16 %v1191
          %v2361 = vunpack.c.h.b16 %v1191
          %v2362 = vunpack.c.l.b16 %v1192
          %v2363 = vunpack.c.h.b16 %v1192
          %v2364 = vunpack.c.l.b16 %v1193
          %v2365 = vunpack.c.h.b16 %v1193
          %v2366 = vunpack.c.l.b16 %v1194
          %v2367 = vunpack.c.h.b16 %v1194
          %v2368 = vunpack.c.l.b16 %v1195
          %v2369 = vunpack.c.h.b16 %v1195
          %v2370 = vunpack.c.l.b16 %v1196
          %v2371 = vunpack.c.h.b16 %v1196
          %v2372 = vunpack.c.l.b16 %v1197
          %v2373 = vunpack.c.h.b16 %v1197
          %v2374 = vunpack.c.l.b16 %v1198
          %v2375 = vunpack.c.h.b16 %v1198
          %v2376 = vunpack.c.l.b16 %v1199
          %v2377 = vunpack.c.h.b16 %v1199
          %v2378 = vunpack.c.l.b16 %v1200
          %v2379 = vunpack.c.h.b16 %v1200
          %v2380 = vunpack.c.l.b16 %v1201
          %v2381 = vunpack.c.h.b16 %v1201
          %v2382 = vunpack.c.l.b16 %v1202
          %v2383 = vunpack.c.h.b16 %v1202
          %v2384 = vunpack.c.l.b16 %v1203
          %v2385 = vunpack.c.h.b16 %v1203
          %v2386 = vunpack.c.l.b16 %v1204
          %v2387 = vunpack.c.h.b16 %v1204
          %v2388 = vunpack.c.l.b16 %v1205
          %v2389 = vunpack.c.h.b16 %v1205
          %v2390 = vunpack.c.l.b16 %v1206
          %v2391 = vunpack.c.h.b16 %v1206
          %v2392 = vunpack.c.l.b16 %v1207
          %v2393 = vunpack.c.h.b16 %v1207
          %v2394 = vunpack.c.l.b16 %v1208
          %v2395 = vunpack.c.h.b16 %v1208
          %v2396 = vunpack.c.l.b16 %v1209
          %v2397 = vunpack.c.h.b16 %v1209
          %v2398 = vunpack.c.l.b16 %v1210
          %v2399 = vunpack.c.h.b16 %v1210
          %v2400 = vunpack.c.l.b16 %v1211
          %v2401 = vunpack.c.h.b16 %v1211
          %v2402 = vunpack.c.l.b16 %v1212
          %v2403 = vunpack.c.h.b16 %v1212
          %v2404 = vunpack.c.l.b16 %v1213
          %v2405 = vunpack.c.h.b16 %v1213
          %v2406 = vunpack.c.l.b16 %v1214
          %v2407 = vunpack.c.h.b16 %v1214
          %v2408 = vunpack.c.l.b16 %v1215
          %v2409 = vunpack.c.h.b16 %v1215
          %v2410 = vunpack.c.l.b16 %v1216
          %v2411 = vunpack.c.h.b16 %v1216
          %v2412 = vunpack.c.l.b16 %v1217
          %v2413 = vunpack.c.h.b16 %v1217
          %v2414 = vunpack.c.l.b16 %v1218
          %v2415 = vunpack.c.h.b16 %v1218
          %v2416 = vunpack.c.l.b16 %v1219
          %v2417 = vunpack.c.h.b16 %v1219
          %v2418 = vunpack.c.l.b16 %v1220
          %v2419 = vunpack.c.h.b16 %v1220
          %v2420 = vunpack.c.l.b16 %v1221
          %v2421 = vunpack.c.h.b16 %v1221
          %v2422 = vunpack.c.l.b16 %v1222
          %v2423 = vunpack.c.h.b16 %v1222
          %v2424 = vunpack.c.l.b16 %v1223
          %v2425 = vunpack.c.h.b16 %v1223
          %v2426 = vunpack.c.l.b16 %v1224
          %v2427 = vunpack.c.h.b16 %v1224
          %v2428 = vunpack.c.l.b16 %v1225
          %v2429 = vunpack.c.h.b16 %v1225
          %v2430 = vunpack.c.l.b16 %v1226
          %v2431 = vunpack.c.h.b16 %v1226
          %v2432 = vunpack.c.l.b16 %v1227
          %v2433 = vunpack.c.h.b16 %v1227
          %v2434 = vunpack.c.l.b16 %v1228
          %v2435 = vunpack.c.h.b16 %v1228
          %v2436 = vunpack.c.l.b16 %v1229
          %v2437 = vunpack.c.h.b16 %v1229
          %v2438 = vunpack.c.l.b16 %v1230
          %v2439 = vunpack.c.h.b16 %v1230
          %v2440 = vunpack.c.l.b16 %v1231
          %v2441 = vunpack.c.h.b16 %v1231
          %v2442 = vunpack.c.l.b16 %v1232
          %v2443 = vunpack.c.h.b16 %v1232
          %v2444 = vunpack.c.l.b16 %v1233
          %v2445 = vunpack.c.h.b16 %v1233
          %v2446 = vunpack.c.l.b16 %v1234
          %v2447 = vunpack.c.h.b16 %v1234
          %v2448 = vunpack.c.l.b16 %v1235
          %v2449 = vunpack.c.h.b16 %v1235
          %v2450 = vunpack.c.l.b16 %v1236
          %v2451 = vunpack.c.h.b16 %v1236
          %v2452 = vunpack.c.l.b16 %v1237
          %v2453 = vunpack.c.h.b16 %v1237
          %v2454 = vunpack.c.l.b16 %v1238
          %v2455 = vunpack.c.h.b16 %v1238
          %v2456 = vunpack.c.l.b16 %v1239
          %v2457 = vunpack.c.h.b16 %v1239
          %v2458 = vunpack.c.l.b16 %v1240
          %v2459 = vunpack.c.h.b16 %v1240
          %v2460 = vunpack.c.l.b16 %v1241
          %v2461 = vunpack.c.h.b16 %v1241
          %v2462 = vunpack.c.l.b16 %v1242
          %v2463 = vunpack.c.h.b16 %v1242
          %v2464 = vunpack.c.l.b16 %v1243
          %v2465 = vunpack.c.h.b16 %v1243
          %v2466 = vunpack.c.l.b16 %v1244
          %v2467 = vunpack.c.h.b16 %v1244
          %v2468 = vunpack.c.l.b16 %v1245
          %v2469 = vunpack.c.h.b16 %v1245
          %v2470 = vunpack.c.l.b16 %v1246
          %v2471 = vunpack.c.h.b16 %v1246
          %v2472 = vunpack.c.l.b16 %v1247
          %v2473 = vunpack.c.h.b16 %v1247
          %v2474 = vunpack.c.l.b16 %v1248
          %v2475 = vunpack.c.h.b16 %v1248
          %v2476 = vunpack.c.l.b16 %v1249
          %v2477 = vunpack.c.h.b16 %v1249
          %v2478 = vunpack.c.l.b16 %v1250
          %v2479 = vunpack.c.h.b16 %v1250
          %v2480 = vunpack.c.l.b16 %v1251
          %v2481 = vunpack.c.h.b16 %v1251
          %v2482 = vunpack.c.l.b16 %v1252
          %v2483 = vunpack.c.h.b16 %v1252
          %v2484 = vunpack.c.l.b16 %v1253
          %v2485 = vunpack.c.h.b16 %v1253
          %v2486 = vpack.c.b16 %v2040, %v2038
          %v2487 = vpack.c.b16 %v2041, %v2039
          %v2488 = vpack.c.b16 %v2044, %v2042
          %v2489 = vpack.c.b16 %v2045, %v2043
          %v2490 = vpack.c.b16 %v2048, %v2046
          %v2491 = vpack.c.b16 %v2049, %v2047
          %v2492 = vpack.c.b16 %v2052, %v2050
          %v2493 = vpack.c.b16 %v2053, %v2051
          %v2494 = vpack.c.b16 %v2056, %v2054
          %v2495 = vpack.c.b16 %v2057, %v2055
          %v2496 = vpack.c.b16 %v2060, %v2058
          %v2497 = vpack.c.b16 %v2061, %v2059
          %v2498 = vpack.c.b16 %v2064, %v2062
          %v2499 = vpack.c.b16 %v2065, %v2063
          %v2500 = vpack.c.b16 %v2068, %v2066
          %v2501 = vpack.c.b16 %v2069, %v2067
          %v2502 = vpack.c.b16 %v2072, %v2070
          %v2503 = vpack.c.b16 %v2073, %v2071
          %v2504 = vpack.c.b16 %v2076, %v2074
          %v2505 = vpack.c.b16 %v2077, %v2075
          %v2506 = vpack.c.b16 %v2080, %v2078
          %v2507 = vpack.c.b16 %v2081, %v2079
          %v2508 = vpack.c.b16 %v2084, %v2082
          %v2509 = vpack.c.b16 %v2085, %v2083
          %v2510 = vpack.c.b16 %v2088, %v2086
          %v2511 = vpack.c.b16 %v2089, %v2087
          %v2512 = vpack.c.b16 %v2092, %v2090
          %v2513 = vpack.c.b16 %v2093, %v2091
          %v2514 = vpack.c.b16 %v2096, %v2094
          %v2515 = vpack.c.b16 %v2097, %v2095
          %v2516 = vpack.c.b16 %v2100, %v2098
          %v2517 = vpack.c.b16 %v2101, %v2099
          %v2518 = vpack.c.b16 %v2104, %v2102
          %v2519 = vpack.c.b16 %v2105, %v2103
          %v2520 = vpack.c.b16 %v2108, %v2106
          %v2521 = vpack.c.b16 %v2109, %v2107
          %v2522 = vpack.c.b16 %v2112, %v2110
          %v2523 = vpack.c.b16 %v2113, %v2111
          %v2524 = vpack.c.b16 %v2116, %v2114
          %v2525 = vpack.c.b16 %v2117, %v2115
          %v2526 = vpack.c.b16 %v2120, %v2118
          %v2527 = vpack.c.b16 %v2121, %v2119
          %v2528 = vpack.c.b16 %v2124, %v2122
          %v2529 = vpack.c.b16 %v2125, %v2123
          %v2530 = vpack.c.b16 %v2128, %v2126
          %v2531 = vpack.c.b16 %v2129, %v2127
          %v2532 = vpack.c.b16 %v2132, %v2130
          %v2533 = vpack.c.b16 %v2133, %v2131
          %v2534 = vpack.c.b16 %v2136, %v2134
          %v2535 = vpack.c.b16 %v2137, %v2135
          %v2536 = vpack.c.b16 %v2140, %v2138
          %v2537 = vpack.c.b16 %v2141, %v2139
          %v2538 = vpack.c.b16 %v2144, %v2142
          %v2539 = vpack.c.b16 %v2145, %v2143
          %v2540 = vpack.c.b16 %v2148, %v2146
          %v2541 = vpack.c.b16 %v2149, %v2147
          %v2542 = vpack.c.b16 %v2152, %v2150
          %v2543 = vpack.c.b16 %v2153, %v2151
          %v2544 = vpack.c.b16 %v2156, %v2154
          %v2545 = vpack.c.b16 %v2157, %v2155
          %v2546 = vpack.c.b16 %v2160, %v2158
          %v2547 = vpack.c.b16 %v2161, %v2159
          %v2548 = vpack.c.b16 %v2164, %v2162
          %v2549 = vpack.c.b16 %v2165, %v2163
          %v2550 = vpack.c.b16 %v2168, %v2166
          %v2551 = vpack.c.b16 %v2169, %v2167
          %v2552 = vpack.c.b16 %v2172, %v2170
          %v2553 = vpack.c.b16 %v2173, %v2171
          %v2554 = vpack.c.b16 %v2176, %v2174
          %v2555 = vpack.c.b16 %v2177, %v2175
          %v2556 = vpack.c.b16 %v2180, %v2178
          %v2557 = vpack.c.b16 %v2181, %v2179
          %v2558 = vpack.c.b16 %v2184, %v2182
          %v2559 = vpack.c.b16 %v2185, %v2183
          %v2560 = vpack.c.b16 %v2188, %v2186
          %v2561 = vpack.c.b16 %v2189, %v2187
          %v2562 = vpack.c.b16 %v2192, %v2190
          %v2563 = vpack.c.b16 %v2193, %v2191
          %v2564 = vpack.c.b16 %v2196, %v2194
          %v2565 = vpack.c.b16 %v2197, %v2195
          %v2566 = vpack.c.b16 %v2200, %v2198
          %v2567 = vpack.c.b16 %v2201, %v2199
          %v2568 = vpack.c.b16 %v2204, %v2202
          %v2569 = vpack.c.b16 %v2205, %v2203
          %v2570 = vpack.c.b16 %v2208, %v2206
          %v2571 = vpack.c.b16 %v2209, %v2207
          %v2572 = vpack.c.b16 %v2212, %v2210
          %v2573 = vpack.c.b16 %v2213, %v2211
          %v2574 = vpack.c.b16 %v2216, %v2214
          %v2575 = vpack.c.b16 %v2217, %v2215
          %v2576 = vpack.c.b16 %v2220, %v2218
          %v2577 = vpack.c.b16 %v2221, %v2219
          %v2578 = vpack.c.b16 %v2224, %v2222
          %v2579 = vpack.c.b16 %v2225, %v2223
          %v2580 = vpack.c.b16 %v2228, %v2226
          %v2581 = vpack.c.b16 %v2229, %v2227
          %v2582 = vpack.c.b16 %v2232, %v2230
          %v2583 = vpack.c.b16 %v2233, %v2231
          %v2584 = vpack.c.b16 %v2236, %v2234
          %v2585 = vpack.c.b16 %v2237, %v2235
          %v2586 = vpack.c.b16 %v2240, %v2238
          %v2587 = vpack.c.b16 %v2241, %v2239
          %v2588 = vpack.c.b16 %v2244, %v2242
          %v2589 = vpack.c.b16 %v2245, %v2243
          %v2590 = vpack.c.b16 %v2248, %v2246
          %v2591 = vpack.c.b16 %v2249, %v2247
          %v2592 = vpack.c.b16 %v2252, %v2250
          %v2593 = vpack.c.b16 %v2253, %v2251
          %v2594 = vpack.c.b16 %v2256, %v2254
          %v2595 = vpack.c.b16 %v2257, %v2255
          %v2596 = vpack.c.b16 %v2260, %v2258
          %v2597 = vpack.c.b16 %v2261, %v2259
          %v2598 = vpack.c.b16 %v2264, %v2262
          %v2599 = vpack.c.b16 %v2265, %v2263
          %v2600 = vpack.c.b16 %v2268, %v2266
          %v2601 = vpack.c.b16 %v2269, %v2267
          %v2602 = vpack.c.b16 %v2272, %v2270
          %v2603 = vpack.c.b16 %v2273, %v2271
          %v2604 = vpack.c.b16 %v2276, %v2274
          %v2605 = vpack.c.b16 %v2277, %v2275
          %v2606 = vpack.c.b16 %v2280, %v2278
          %v2607 = vpack.c.b16 %v2281, %v2279
          %v2608 = vpack.c.b16 %v2284, %v2282
          %v2609 = vpack.c.b16 %v2285, %v2283
          %v2610 = vpack.c.b16 %v2288, %v2286
          %v2611 = vpack.c.b16 %v2289, %v2287
          %v2612 = vpack.c.b16 %v2292, %v2290
          %v2613 = vpack.c.b16 %v2293, %v2291
          %v2614 = vpack.c.b16 %v2296, %v2294
          %v2615 = vpack.c.b16 %v2297, %v2295
          %v2616 = vpack.c.b16 %v2300, %v2298
          %v2617 = vpack.c.b16 %v2301, %v2299
          %v2618 = vpack.c.b16 %v2304, %v2302
          %v2619 = vpack.c.b16 %v2305, %v2303
          %v2620 = vpack.c.b16 %v2308, %v2306
          %v2621 = vpack.c.b16 %v2309, %v2307
          %v2622 = vpack.c.b16 %v2312, %v2310
          %v2623 = vpack.c.b16 %v2313, %v2311
          %v2624 = vpack.c.b16 %v2316, %v2314
          %v2625 = vpack.c.b16 %v2317, %v2315
          %v2626 = vpack.c.b16 %v2320, %v2318
          %v2627 = vpack.c.b16 %v2321, %v2319
          %v2628 = vpack.c.b16 %v2324, %v2322
          %v2629 = vpack.c.b16 %v2325, %v2323
          %v2630 = vpack.c.b16 %v2328, %v2326
          %v2631 = vpack.c.b16 %v2329, %v2327
          %v2632 = vpack.c.b16 %v2332, %v2330
          %v2633 = vpack.c.b16 %v2333, %v2331
          %v2634 = vpack.c.b16 %v2336, %v2334
          %v2635 = vpack.c.b16 %v2337, %v2335
          %v2636 = vpack.c.b16 %v2340, %v2338
          %v2637 = vpack.c.b16 %v2341, %v2339
          %v2638 = vpack.c.b16 %v2344, %v2342
          %v2639 = vpack.c.b16 %v2345, %v2343
          %v2640 = vpack.c.b16 %v2348, %v2346
          %v2641 = vpack.c.b16 %v2349, %v2347
          %v2642 = vpack.c.b16 %v2352, %v2350
          %v2643 = vpack.c.b16 %v2353, %v2351
          %v2644 = vpack.c.b16 %v2356, %v2354
          %v2645 = vpack.c.b16 %v2357, %v2355
          %v2646 = vpack.c.b16 %v2360, %v2358
          %v2647 = vpack.c.b16 %v2361, %v2359
          %v2648 = vpack.c.b16 %v2364, %v2362
          %v2649 = vpack.c.b16 %v2365, %v2363
          %v2650 = vpack.c.b16 %v2368, %v2366
          %v2651 = vpack.c.b16 %v2369, %v2367
          %v2652 = vpack.c.b16 %v2372, %v2370
          %v2653 = vpack.c.b16 %v2373, %v2371
          %v2654 = vpack.c.b16 %v2376, %v2374
          %v2655 = vpack.c.b16 %v2377, %v2375
          %v2656 = vpack.c.b16 %v2380, %v2378
          %v2657 = vpack.c.b16 %v2381, %v2379
          %v2658 = vpack.c.b16 %v2384, %v2382
          %v2659 = vpack.c.b16 %v2385, %v2383
          %v2660 = vpack.c.b16 %v2388, %v2386
          %v2661 = vpack.c.b16 %v2389, %v2387
          %v2662 = vpack.c.b16 %v2392, %v2390
          %v2663 = vpack.c.b16 %v2393, %v2391
          %v2664 = vpack.c.b16 %v2396, %v2394
          %v2665 = vpack.c.b16 %v2397, %v2395
          %v2666 = vpack.c.b16 %v2400, %v2398
          %v2667 = vpack.c.b16 %v2401, %v2399
          %v2668 = vpack.c.b16 %v2404, %v2402
          %v2669 = vpack.c.b16 %v2405, %v2403
          %v2670 = vpack.c.b16 %v2408, %v2406
          %v2671 = vpack.c.b16 %v2409, %v2407
          %v2672 = vpack.c.b16 %v2412, %v2410
          %v2673 = vpack.c.b16 %v2413, %v2411
          %v2674 = vpack.c.b16 %v2416, %v2414
          %v2675 = vpack.c.b16 %v2417, %v2415
          %v2676 = vpack.c.b16 %v2420, %v2418
          %v2677 = vpack.c.b16 %v2421, %v2419
          %v2678 = vpack.c.b16 %v2424, %v2422
          %v2679 = vpack.c.b16 %v2425, %v2423
          %v2680 = vpack.c.b16 %v2428, %v2426
          %v2681 = vpack.c.b16 %v2429, %v2427
          %v2682 = vpack.c.b16 %v2432, %v2430
          %v2683 = vpack.c.b16 %v2433, %v2431
          %v2684 = vpack.c.b16 %v2436, %v2434
          %v2685 = vpack.c.b16 %v2437, %v2435
          %v2686 = vpack.c.b16 %v2440, %v2438
          %v2687 = vpack.c.b16 %v2441, %v2439
          %v2688 = vpack.c.b16 %v2444, %v2442
          %v2689 = vpack.c.b16 %v2445, %v2443
          %v2690 = vpack.c.b16 %v2448, %v2446
          %v2691 = vpack.c.b16 %v2449, %v2447
          %v2692 = vpack.c.b16 %v2452, %v2450
          %v2693 = vpack.c.b16 %v2453, %v2451
          %v2694 = vpack.c.b16 %v2456, %v2454
          %v2695 = vpack.c.b16 %v2457, %v2455
          %v2696 = vpack.c.b16 %v2460, %v2458
          %v2697 = vpack.c.b16 %v2461, %v2459
          %v2698 = vpack.c.b16 %v2464, %v2462
          %v2699 = vpack.c.b16 %v2465, %v2463
          %v2700 = vpack.c.b16 %v2468, %v2466
          %v2701 = vpack.c.b16 %v2469, %v2467
          %v2702 = vpack.c.b16 %v2472, %v2470
          %v2703 = vpack.c.b16 %v2473, %v2471
          %v2704 = vpack.c.b16 %v2476, %v2474
          %v2705 = vpack.c.b16 %v2477, %v2475
          %v2706 = vpack.c.b16 %v2480, %v2478
          %v2707 = vpack.c.b16 %v2481, %v2479
          %v2708 = vpack.c.b16 %v2484, %v2482
          %v2709 = vpack.c.b16 %v2485, %v2483
          %2934 = vmatprep.subr.bf16.mxu0 %v2487
          %2935 = vmatpush1.bf16.msra.mxu0 %v2486
          %2936 = vmatprep.subr.bf16.mxu0 %v2489
          %2937 = vmatpush1.bf16.msra.mxu0 %v2488
          %2938 = vmatprep.subr.bf16.mxu0 %v2491
          %2939 = vmatpush1.bf16.msra.mxu0 %v2490
          %2940 = vmatprep.subr.bf16.mxu0 %v2493
          %2941 = vmatpush1.bf16.msra.mxu0 %v2492
          %2942 = vmatprep.subr.bf16.mxu0 %v2495
          %2943 = vmatpush1.bf16.msra.mxu0 %v2494
          %2944 = vmatprep.subr.bf16.mxu0 %v2497
          %2945 = vmatpush1.bf16.msra.mxu0 %v2496
          %2946 = vmatprep.subr.bf16.mxu0 %v2499
          %2947 = vmatpush1.bf16.msra.mxu0 %v2498
          %2948 = vmatprep.subr.bf16.mxu0 %v2501
          %2949 = vmatpush1.bf16.msra.mxu0 %v2500
          %2950 = vmatprep.subr.bf16.mxu0 %v2503
          %2951 = vmatpush1.bf16.msra.mxu0 %v2502
          %2952 = vmatprep.subr.bf16.mxu0 %v2505
          %2953 = vmatpush1.bf16.msra.mxu0 %v2504
          %2954 = vmatprep.subr.bf16.mxu0 %v2507
          %2955 = vmatpush1.bf16.msra.mxu0 %v2506
          %2956 = vmatprep.subr.bf16.mxu0 %v2509
          %2957 = vmatpush1.bf16.msra.mxu0 %v2508
          %2958 = vmatprep.subr.bf16.mxu0 %v2511
          %2959 = vmatpush1.bf16.msra.mxu0 %v2510
          %2960 = vmatprep.subr.bf16.mxu0 %v2513
          %2961 = vmatpush1.bf16.msra.mxu0 %v2512
          %2962 = vmatprep.subr.bf16.mxu0 %v2515
          %2963 = vmatpush1.bf16.msra.mxu0 %v2514
          %2964 = vmatprep.subr.bf16.mxu0 %v2517
          %2965 = vmatpush1.bf16.msra.mxu0 %v2516
          %2966 = vmatprep.mubr.bf16.mxu0 %v1591
          %2967 = vmatmul.mubr.bf16.gmra.mrb[0].mxu0 %v1590
          %v2968 = vpop.f32.mrb[0].mxu0
          %v2969 = vadd.f32 0.0, %v2968
          %v2970 = vpop.f32.mrb[0].mxu0
          %v2971 = vadd.f32 0.0, %v2970
          %v2972 = vpop.f32.mrb[0].mxu0
          %v2973 = vadd.f32 0.0, %v2972
          %v2974 = vpop.f32.mrb[0].mxu0
          %v2975 = vadd.f32 0.0, %v2974
          %2976 = vmatprep.mubr.bf16.mxu0 %v1605
          %2977 = vmatmul.mubr.bf16.gmra.mrb[0].mxu0 %v1604
          %v2978 = vpop.f32.mrb[0].mxu0
          %v2979 = vadd.f32 0.0, %v2978
          %v2980 = vpop.f32.mrb[0].mxu0
          %v2981 = vadd.f32 0.0, %v2980
          %v2982 = vpop.f32.mrb[0].mxu0
          %v2983 = vadd.f32 0.0, %v2982
          %v2984 = vpop.f32.mrb[0].mxu0
          %v2985 = vadd.f32 0.0, %v2984
          %2986 = vmatprep.mubr.bf16.mxu0 %v1619
          %2987 = vmatmul.mubr.bf16.gmra.mrb[0].mxu0 %v1618
          %v2988 = vpop.f32.mrb[0].mxu0
          %v2989 = vadd.f32 0.0, %v2988
          %v2990 = vpop.f32.mrb[0].mxu0
          %v2991 = vadd.f32 0.0, %v2990
          %v2992 = vpop.f32.mrb[0].mxu0
          %v2993 = vadd.f32 0.0, %v2992
          %v2994 = vpop.f32.mrb[0].mxu0
          %v2995 = vadd.f32 0.0, %v2994
          %2996 = vmatprep.mubr.bf16.mxu0 %v1633
          %2997 = vmatmul.mubr.bf16.gmra.mrb[0].mxu0 %v1632
          %v2998 = vpop.f32.mrb[0].mxu0
          %v2999 = vadd.f32 0.0, %v2998
          %v3000 = vpop.f32.mrb[0].mxu0
          %v3001 = vadd.f32 0.0, %v3000
          %v3002 = vpop.f32.mrb[0].mxu0
          %v3003 = vadd.f32 0.0, %v3002
          %v3004 = vpop.f32.mrb[0].mxu0
          %v3005 = vadd.f32 0.0, %v3004
          %3006 = vmatprep.mubr.bf16.mxu0 %v1647
          %3007 = vmatmul.mubr.bf16.gmra.mrb[0].mxu0 %v1646
          %v3008 = vpop.f32.mrb[0].mxu0
          %v3009 = vadd.f32 0.0, %v3008
          %v3010 = vpop.f32.mrb[0].mxu0
          %v3011 = vadd.f32 0.0, %v3010
          %v3012 = vpop.f32.mrb[0].mxu0
          %v3013 = vadd.f32 0.0, %v3012
          %v3014 = vpop.f32.mrb[0].mxu0
          %v3015 = vadd.f32 0.0, %v3014
          %3016 = vmatprep.mubr.bf16.mxu0 %v1661
          %3017 = vmatmul.mubr.bf16.gmra.mrb[0].mxu0 %v1660
          %v3018 = vpop.f32.mrb[0].mxu0
          %v3019 = vadd.f32 0.0, %v3018
          %v3020 = vpop.f32.mrb[0].mxu0
          %v3021 = vadd.f32 0.0, %v3020
          %v3022 = vpop.f32.mrb[0].mxu0
          %v3023 = vadd.f32 0.0, %v3022
          %v3024 = vpop.f32.mrb[0].mxu0
          %v3025 = vadd.f32 0.0, %v3024
          %3026 = vmatprep.mubr.bf16.mxu0 %v1675
          %3027 = vmatmul.mubr.bf16.gmra.mrb[0].mxu0 %v1674
          %v3028 = vpop.f32.mrb[0].mxu0
          %v3029 = vadd.f32 0.0, %v3028
          %v3030 = vpop.f32.mrb[0].mxu0
          %v3031 = vadd.f32 0.0, %v3030
          %v3032 = vpop.f32.mrb[0].mxu0
          %v3033 = vadd.f32 0.0, %v3032
          %v3034 = vpop.f32.mrb[0].mxu0
          %v3035 = vadd.f32 0.0, %v3034
          %3036 = vmatprep.mubr.bf16.mxu0 %v1689
          %3037 = vmatmul.mubr.bf16.gmra.mrb[0].mxu0 %v1688
          %v3038 = vpop.f32.mrb[0].mxu0
          %v3039 = vadd.f32 0.0, %v3038
          %v3040 = vpop.f32.mrb[0].mxu0
          %v3041 = vadd.f32 0.0, %v3040
          %v3042 = vpop.f32.mrb[0].mxu0
          %v3043 = vadd.f32 0.0, %v3042
          %v3044 = vpop.f32.mrb[0].mxu0
          %v3045 = vadd.f32 0.0, %v3044
          %3046 = vdwg.mxu0
          %3047 = vmatprep.subr.bf16.mxu0 %v2519
          %3048 = vmatpush1.bf16.msra.mxu0 %v2518
          %3049 = vmatprep.subr.bf16.mxu0 %v2521
          %3050 = vmatpush1.bf16.msra.mxu0 %v2520
          %3051 = vmatprep.subr.bf16.mxu0 %v2523
          %3052 = vmatpush1.bf16.msra.mxu0 %v2522
          %3053 = vmatprep.subr.bf16.mxu0 %v2525
          %3054 = vmatpush1.bf16.msra.mxu0 %v2524
          %3055 = vmatprep.subr.bf16.mxu0 %v2527
          %3056 = vmatpush1.bf16.msra.mxu0 %v2526
          %3057 = vmatprep.subr.bf16.mxu0 %v2529
          %3058 = vmatpush1.bf16.msra.mxu0 %v2528
          %3059 = vmatprep.subr.bf16.mxu0 %v2531
          %3060 = vmatpush1.bf16.msra.mxu0 %v2530
          %3061 = vmatprep.subr.bf16.mxu0 %v2533
          %3062 = vmatpush1.bf16.msra.mxu0 %v2532
          %3063 = vmatprep.subr.bf16.mxu0 %v2535
          %3064 = vmatpush1.bf16.msra.mxu0 %v2534
          %3065 = vmatprep.subr.bf16.mxu0 %v2537
          %3066 = vmatpush1.bf16.msra.mxu0 %v2536
          %3067 = vmatprep.subr.bf16.mxu0 %v2539
          %3068 = vmatpush1.bf16.msra.mxu0 %v2538
          %3069 = vmatprep.subr.bf16.mxu0 %v2541
          %3070 = vmatpush1.bf16.msra.mxu0 %v2540
          %3071 = vmatprep.subr.bf16.mxu0 %v2543
          %3072 = vmatpush1.bf16.msra.mxu0 %v2542
          %3073 = vmatprep.subr.bf16.mxu0 %v2545
          %3074 = vmatpush1.bf16.msra.mxu0 %v2544
          %3075 = vmatprep.subr.bf16.mxu0 %v2547
          %3076 = vmatpush1.bf16.msra.mxu0 %v2546
          %3077 = vmatprep.subr.bf16.mxu0 %v2549
          %3078 = vmatpush1.bf16.msra.mxu0 %v2548
          %3079 = vmatprep.mubr.bf16.mxu0 %v1593
          %3080 = vmatmul.mubr.bf16.gmra.mrb[0].mxu0 %v1592
          %v3081 = vpop.f32.mrb[0].mxu0
          %v3082 = vadd.f32 %v2969, %v3081
          %v3083 = vpop.f32.mrb[0].mxu0
          %v3084 = vadd.f32 %v2971, %v3083
          %v3085 = vpop.f32.mrb[0].mxu0
          %v3086 = vadd.f32 %v2973, %v3085
          %v3087 = vpop.f32.mrb[0].mxu0
          %v3088 = vadd.f32 %v2975, %v3087
          %3089 = vmatprep.mubr.bf16.mxu0 %v1607
          %3090 = vmatmul.mubr.bf16.gmra.mrb[0].mxu0 %v1606
          %v3091 = vpop.f32.mrb[0].mxu0
          %v3092 = vadd.f32 %v2979, %v3091
          %v3093 = vpop.f32.mrb[0].mxu0
          %v3094 = vadd.f32 %v2981, %v3093
          %v3095 = vpop.f32.mrb[0].mxu0
          %v3096 = vadd.f32 %v2983, %v3095
          %v3097 = vpop.f32.mrb[0].mxu0
          %v3098 = vadd.f32 %v2985, %v3097
          %3099 = vmatprep.mubr.bf16.mxu0 %v1621
          %3100 = vmatmul.mubr.bf16.gmra.mrb[0].mxu0 %v1620
          %v3101 = vpop.f32.mrb[0].mxu0
          %v3102 = vadd.f32 %v2989, %v3101
          %v3103 = vpop.f32.mrb[0].mxu0
          %v3104 = vadd.f32 %v2991, %v3103
          %v3105 = vpop.f32.mrb[0].mxu0
          %v3106 = vadd.f32 %v2993, %v3105
          %v3107 = vpop.f32.mrb[0].mxu0
          %v3108 = vadd.f32 %v2995, %v3107
          %3109 = vmatprep.mubr.bf16.mxu0 %v1635
          %3110 = vmatmul.mubr.bf16.gmra.mrb[0].mxu0 %v1634
          %v3111 = vpop.f32.mrb[0].mxu0
          %v3112 = vadd.f32 %v2999, %v3111
          %v3113 = vpop.f32.mrb[0].mxu0
          %v3114 = vadd.f32 %v3001, %v3113
          %v3115 = vpop.f32.mrb[0].mxu0
          %v3116 = vadd.f32 %v3003, %v3115
          %v3117 = vpop.f32.mrb[0].mxu0
          %v3118 = vadd.f32 %v3005, %v3117
          %3119 = vmatprep.mubr.bf16.mxu0 %v1649
          %3120 = vmatmul.mubr.bf16.gmra.mrb[0].mxu0 %v1648
          %v3121 = vpop.f32.mrb[0].mxu0
          %v3122 = vadd.f32 %v3009, %v3121
          %v3123 = vpop.f32.mrb[0].mxu0
          %v3124 = vadd.f32 %v3011, %v3123
          %v3125 = vpop.f32.mrb[0].mxu0
          %v3126 = vadd.f32 %v3013, %v3125
          %v3127 = vpop.f32.mrb[0].mxu0
          %v3128 = vadd.f32 %v3015, %v3127
          %3129 = vmatprep.mubr.bf16.mxu0 %v1663
          %3130 = vmatmul.mubr.bf16.gmra.mrb[0].mxu0 %v1662
          %v3131 = vpop.f32.mrb[0].mxu0
          %v3132 = vadd.f32 %v3019, %v3131
          %v3133 = vpop.f32.mrb[0].mxu0
          %v3134 = vadd.f32 %v3021, %v3133
          %v3135 = vpop.f32.mrb[0].mxu0
          %v3136 = vadd.f32 %v3023, %v3135
          %v3137 = vpop.f32.mrb[0].mxu0
          %v3138 = vadd.f32 %v3025, %v3137
          %3139 = vmatprep.mubr.bf16.mxu0 %v1677
          %3140 = vmatmul.mubr.bf16.gmra.mrb[0].mxu0 %v1676
          %v3141 = vpop.f32.mrb[0].mxu0
          %v3142 = vadd.f32 %v3029, %v3141
          %v3143 = vpop.f32.mrb[0].mxu0
          %v3144 = vadd.f32 %v3031, %v3143
          %v3145 = vpop.f32.mrb[0].mxu0
          %v3146 = vadd.f32 %v3033, %v3145
          %v3147 = vpop.f32.mrb[0].mxu0
          %v3148 = vadd.f32 %v3035, %v3147
          %3149 = vmatprep.mubr.bf16.mxu0 %v1691
          %3150 = vmatmul.mubr.bf16.gmra.mrb[0].mxu0 %v1690
          %v3151 = vpop.f32.mrb[0].mxu0
          %v3152 = vadd.f32 %v3039, %v3151
          %v3153 = vpop.f32.mrb[0].mxu0
          %v3154 = vadd.f32 %v3041, %v3153
          %v3155 = vpop.f32.mrb[0].mxu0
          %v3156 = vadd.f32 %v3043, %v3155
          %v3157 = vpop.f32.mrb[0].mxu0
          %v3158 = vadd.f32 %v3045, %v3157
          %3159 = vdwg.mxu0
          %3160 = vmatprep.subr.bf16.mxu0 %v2551
          %3161 = vmatpush1.bf16.msra.mxu0 %v2550
          %3162 = vmatprep.subr.bf16.mxu0 %v2553
          %3163 = vmatpush1.bf16.msra.mxu0 %v2552
          %3164 = vmatprep.subr.bf16.mxu0 %v2555
          %3165 = vmatpush1.bf16.msra.mxu0 %v2554
          %3166 = vmatprep.subr.bf16.mxu0 %v2557
          %3167 = vmatpush1.bf16.msra.mxu0 %v2556
          %3168 = vmatprep.subr.bf16.mxu0 %v2559
          %3169 = vmatpush1.bf16.msra.mxu0 %v2558
          %3170 = vmatprep.subr.bf16.mxu0 %v2561
          %3171 = vmatpush1.bf16.msra.mxu0 %v2560
          %3172 = vmatprep.subr.bf16.mxu0 %v2563
          %3173 = vmatpush1.bf16.msra.mxu0 %v2562
          %3174 = vmatprep.subr.bf16.mxu0 %v2565
          %3175 = vmatpush1.bf16.msra.mxu0 %v2564
          %3176 = vmatprep.subr.bf16.mxu0 %v2567
          %3177 = vmatpush1.bf16.msra.mxu0 %v2566
          %3178 = vmatprep.subr.bf16.mxu0 %v2569
          %3179 = vmatpush1.bf16.msra.mxu0 %v2568
          %3180 = vmatprep.subr.bf16.mxu0 %v2571
          %3181 = vmatpush1.bf16.msra.mxu0 %v2570
          %3182 = vmatprep.subr.bf16.mxu0 %v2573
          %3183 = vmatpush1.bf16.msra.mxu0 %v2572
          %3184 = vmatprep.subr.bf16.mxu0 %v2575
          %3185 = vmatpush1.bf16.msra.mxu0 %v2574
          %3186 = vmatprep.subr.bf16.mxu0 %v2577
          %3187 = vmatpush1.bf16.msra.mxu0 %v2576
          %3188 = vmatprep.subr.bf16.mxu0 %v2579
          %3189 = vmatpush1.bf16.msra.mxu0 %v2578
          %3190 = vmatprep.subr.bf16.mxu0 %v2581
          %3191 = vmatpush1.bf16.msra.mxu0 %v2580
          %3192 = vmatprep.mubr.bf16.mxu0 %v1595
          %3193 = vmatmul.mubr.bf16.gmra.mrb[0].mxu0 %v1594
          %v3194 = vpop.f32.mrb[0].mxu0
          %v3195 = vadd.f32 %v3082, %v3194
          %v3196 = vpop.f32.mrb[0].mxu0
          %v3197 = vadd.f32 %v3084, %v3196
          %v3198 = vpop.f32.mrb[0].mxu0
          %v3199 = vadd.f32 %v3086, %v3198
          %v3200 = vpop.f32.mrb[0].mxu0
          %v3201 = vadd.f32 %v3088, %v3200
          %3202 = vmatprep.mubr.bf16.mxu0 %v1609
          %3203 = vmatmul.mubr.bf16.gmra.mrb[0].mxu0 %v1608
          %v3204 = vpop.f32.mrb[0].mxu0
          %v3205 = vadd.f32 %v3092, %v3204
          %v3206 = vpop.f32.mrb[0].mxu0
          %v3207 = vadd.f32 %v3094, %v3206
          %v3208 = vpop.f32.mrb[0].mxu0
          %v3209 = vadd.f32 %v3096, %v3208
          %v3210 = vpop.f32.mrb[0].mxu0
          %v3211 = vadd.f32 %v3098, %v3210
          %3212 = vmatprep.mubr.bf16.mxu0 %v1623
          %3213 = vmatmul.mubr.bf16.gmra.mrb[0].mxu0 %v1622
          %v3214 = vpop.f32.mrb[0].mxu0
          %v3215 = vadd.f32 %v3102, %v3214
          %v3216 = vpop.f32.mrb[0].mxu0
          %v3217 = vadd.f32 %v3104, %v3216
          %v3218 = vpop.f32.mrb[0].mxu0
          %v3219 = vadd.f32 %v3106, %v3218
          %v3220 = vpop.f32.mrb[0].mxu0
          %v3221 = vadd.f32 %v3108, %v3220
          %3222 = vmatprep.mubr.bf16.mxu0 %v1637
          %3223 = vmatmul.mubr.bf16.gmra.mrb[0].mxu0 %v1636
          %v3224 = vpop.f32.mrb[0].mxu0
          %v3225 = vadd.f32 %v3112, %v3224
          %v3226 = vpop.f32.mrb[0].mxu0
          %v3227 = vadd.f32 %v3114, %v3226
          %v3228 = vpop.f32.mrb[0].mxu0
          %v3229 = vadd.f32 %v3116, %v3228
          %v3230 = vpop.f32.mrb[0].mxu0
          %v3231 = vadd.f32 %v3118, %v3230
          %3232 = vmatprep.mubr.bf16.mxu0 %v1651
          %3233 = vmatmul.mubr.bf16.gmra.mrb[0].mxu0 %v1650
          %v3234 = vpop.f32.mrb[0].mxu0
          %v3235 = vadd.f32 %v3122, %v3234
          %v3236 = vpop.f32.mrb[0].mxu0
          %v3237 = vadd.f32 %v3124, %v3236
          %v3238 = vpop.f32.mrb[0].mxu0
          %v3239 = vadd.f32 %v3126, %v3238
          %v3240 = vpop.f32.mrb[0].mxu0
          %v3241 = vadd.f32 %v3128, %v3240
          %3242 = vmatprep.mubr.bf16.mxu0 %v1665
          %3243 = vmatmul.mubr.bf16.gmra.mrb[0].mxu0 %v1664
          %v3244 = vpop.f32.mrb[0].mxu0
          %v3245 = vadd.f32 %v3132, %v3244
          %v3246 = vpop.f32.mrb[0].mxu0
          %v3247 = vadd.f32 %v3134, %v3246
          %v3248 = vpop.f32.mrb[0].mxu0
          %v3249 = vadd.f32 %v3136, %v3248
          %v3250 = vpop.f32.mrb[0].mxu0
          %v3251 = vadd.f32 %v3138, %v3250
          %3252 = vmatprep.mubr.bf16.mxu0 %v1679
          %3253 = vmatmul.mubr.bf16.gmra.mrb[0].mxu0 %v1678
          %v3254 = vpop.f32.mrb[0].mxu0
          %v3255 = vadd.f32 %v3142, %v3254
          %v3256 = vpop.f32.mrb[0].mxu0
          %v3257 = vadd.f32 %v3144, %v3256
          %v3258 = vpop.f32.mrb[0].mxu0
          %v3259 = vadd.f32 %v3146, %v3258
          %v3260 = vpop.f32.mrb[0].mxu0
          %v3261 = vadd.f32 %v3148, %v3260
          %3262 = vmatprep.mubr.bf16.mxu0 %v1693
          %3263 = vmatmul.mubr.bf16.gmra.mrb[0].mxu0 %v1692
          %v3264 = vpop.f32.mrb[0].mxu0
          %v3265 = vadd.f32 %v3152, %v3264
          %v3266 = vpop.f32.mrb[0].mxu0
          %v3267 = vadd.f32 %v3154, %v3266
          %v3268 = vpop.f32.mrb[0].mxu0
          %v3269 = vadd.f32 %v3156, %v3268
          %v3270 = vpop.f32.mrb[0].mxu0
          %v3271 = vadd.f32 %v3158, %v3270
          %3272 = vdwg.mxu0
          %3273 = vmatprep.subr.bf16.mxu0 %v2583
          %3274 = vmatpush1.bf16.msra.mxu0 %v2582
          %3275 = vmatprep.subr.bf16.mxu0 %v2585
          %3276 = vmatpush1.bf16.msra.mxu0 %v2584
          %3277 = vmatprep.subr.bf16.mxu0 %v2587
          %3278 = vmatpush1.bf16.msra.mxu0 %v2586
          %3279 = vmatprep.subr.bf16.mxu0 %v2589
          %3280 = vmatpush1.bf16.msra.mxu0 %v2588
          %3281 = vmatprep.subr.bf16.mxu0 %v2591
          %3282 = vmatpush1.bf16.msra.mxu0 %v2590
          %3283 = vmatprep.subr.bf16.mxu0 %v2593
          %3284 = vmatpush1.bf16.msra.mxu0 %v2592
          %3285 = vmatprep.subr.bf16.mxu0 %v2595
          %3286 = vmatpush1.bf16.msra.mxu0 %v2594
          %3287 = vmatprep.subr.bf16.mxu0 %v2597
          %3288 = vmatpush1.bf16.msra.mxu0 %v2596
          %3289 = vmatprep.subr.bf16.mxu0 %v2599
          %3290 = vmatpush1.bf16.msra.mxu0 %v2598
          %3291 = vmatprep.subr.bf16.mxu0 %v2601
          %3292 = vmatpush1.bf16.msra.mxu0 %v2600
          %3293 = vmatprep.subr.bf16.mxu0 %v2603
          %3294 = vmatpush1.bf16.msra.mxu0 %v2602
          %3295 = vmatprep.subr.bf16.mxu0 %v2605
          %3296 = vmatpush1.bf16.msra.mxu0 %v2604
          %3297 = vmatprep.subr.bf16.mxu0 %v2607
          %3298 = vmatpush1.bf16.msra.mxu0 %v2606
          %3299 = vmatprep.subr.bf16.mxu0 %v2609
          %3300 = vmatpush1.bf16.msra.mxu0 %v2608
          %3301 = vmatprep.subr.bf16.mxu0 %v2611
          %3302 = vmatpush1.bf16.msra.mxu0 %v2610
          %3303 = vmatprep.subr.bf16.mxu0 %v2613
          %3304 = vmatpush1.bf16.msra.mxu0 %v2612
          %3305 = vmatprep.mubr.bf16.mxu0 %v1597
          %3306 = vmatmul.mubr.bf16.gmra.mrb[0].mxu0 %v1596
          %v3307 = vpop.f32.mrb[0].mxu0
          %v3308 = vadd.f32 %v3195, %v3307
          %v3309 = vpop.f32.mrb[0].mxu0
          %v3310 = vadd.f32 %v3197, %v3309
          %v3311 = vpop.f32.mrb[0].mxu0
          %v3312 = vadd.f32 %v3199, %v3311
          %v3313 = vpop.f32.mrb[0].mxu0
          %v3314 = vadd.f32 %v3201, %v3313
          %3315 = vmatprep.mubr.bf16.mxu0 %v1611
          %3316 = vmatmul.mubr.bf16.gmra.mrb[0].mxu0 %v1610
          %v3317 = vpop.f32.mrb[0].mxu0
          %v3318 = vadd.f32 %v3205, %v3317
          %v3319 = vpop.f32.mrb[0].mxu0
          %v3320 = vadd.f32 %v3207, %v3319
          %v3321 = vpop.f32.mrb[0].mxu0
          %v3322 = vadd.f32 %v3209, %v3321
          %v3323 = vpop.f32.mrb[0].mxu0
          %v3324 = vadd.f32 %v3211, %v3323
          %3325 = vmatprep.mubr.bf16.mxu0 %v1625
          %3326 = vmatmul.mubr.bf16.gmra.mrb[0].mxu0 %v1624
          %v3327 = vpop.f32.mrb[0].mxu0
          %v3328 = vadd.f32 %v3215, %v3327
          %v3329 = vpop.f32.mrb[0].mxu0
          %v3330 = vadd.f32 %v3217, %v3329
          %v3331 = vpop.f32.mrb[0].mxu0
          %v3332 = vadd.f32 %v3219, %v3331
          %v3333 = vpop.f32.mrb[0].mxu0
          %v3334 = vadd.f32 %v3221, %v3333
          %3335 = vmatprep.mubr.bf16.mxu0 %v1639
          %3336 = vmatmul.mubr.bf16.gmra.mrb[0].mxu0 %v1638
          %v3337 = vpop.f32.mrb[0].mxu0
          %v3338 = vadd.f32 %v3225, %v3337
          %v3339 = vpop.f32.mrb[0].mxu0
          %v3340 = vadd.f32 %v3227, %v3339
          %v3341 = vpop.f32.mrb[0].mxu0
          %v3342 = vadd.f32 %v3229, %v3341
          %v3343 = vpop.f32.mrb[0].mxu0
          %v3344 = vadd.f32 %v3231, %v3343
          %3345 = vmatprep.mubr.bf16.mxu0 %v1653
          %3346 = vmatmul.mubr.bf16.gmra.mrb[0].mxu0 %v1652
          %v3347 = vpop.f32.mrb[0].mxu0
          %v3348 = vadd.f32 %v3235, %v3347
          %v3349 = vpop.f32.mrb[0].mxu0
          %v3350 = vadd.f32 %v3237, %v3349
          %v3351 = vpop.f32.mrb[0].mxu0
          %v3352 = vadd.f32 %v3239, %v3351
          %v3353 = vpop.f32.mrb[0].mxu0
          %v3354 = vadd.f32 %v3241, %v3353
          %3355 = vmatprep.mubr.bf16.mxu0 %v1667
          %3356 = vmatmul.mubr.bf16.gmra.mrb[0].mxu0 %v1666
          %v3357 = vpop.f32.mrb[0].mxu0
          %v3358 = vadd.f32 %v3245, %v3357
          %v3359 = vpop.f32.mrb[0].mxu0
          %v3360 = vadd.f32 %v3247, %v3359
          %v3361 = vpop.f32.mrb[0].mxu0
          %v3362 = vadd.f32 %v3249, %v3361
          %v3363 = vpop.f32.mrb[0].mxu0
          %v3364 = vadd.f32 %v3251, %v3363
          %3365 = vmatprep.mubr.bf16.mxu0 %v1681
          %3366 = vmatmul.mubr.bf16.gmra.mrb[0].mxu0 %v1680
          %v3367 = vpop.f32.mrb[0].mxu0
          %v3368 = vadd.f32 %v3255, %v3367
          %v3369 = vpop.f32.mrb[0].mxu0
          %v3370 = vadd.f32 %v3257, %v3369
          %v3371 = vpop.f32.mrb[0].mxu0
          %v3372 = vadd.f32 %v3259, %v3371
          %v3373 = vpop.f32.mrb[0].mxu0
          %v3374 = vadd.f32 %v3261, %v3373
          %3375 = vmatprep.mubr.bf16.mxu0 %v1695
          %3376 = vmatmul.mubr.bf16.gmra.mrb[0].mxu0 %v1694
          %v3377 = vpop.f32.mrb[0].mxu0
          %v3378 = vadd.f32 %v3265, %v3377
          %v3379 = vpop.f32.mrb[0].mxu0
          %v3380 = vadd.f32 %v3267, %v3379
          %v3381 = vpop.f32.mrb[0].mxu0
          %v3382 = vadd.f32 %v3269, %v3381
          %v3383 = vpop.f32.mrb[0].mxu0
          %v3384 = vadd.f32 %v3271, %v3383
          %3385 = vdwg.mxu0
          %3386 = vmatprep.subr.bf16.mxu0 %v2615
          %3387 = vmatpush1.bf16.msra.mxu0 %v2614
          %3388 = vmatprep.subr.bf16.mxu0 %v2617
          %3389 = vmatpush1.bf16.msra.mxu0 %v2616
          %3390 = vmatprep.subr.bf16.mxu0 %v2619
          %3391 = vmatpush1.bf16.msra.mxu0 %v2618
          %3392 = vmatprep.subr.bf16.mxu0 %v2621
          %3393 = vmatpush1.bf16.msra.mxu0 %v2620
          %3394 = vmatprep.subr.bf16.mxu0 %v2623
          %3395 = vmatpush1.bf16.msra.mxu0 %v2622
          %3396 = vmatprep.subr.bf16.mxu0 %v2625
          %3397 = vmatpush1.bf16.msra.mxu0 %v2624
          %3398 = vmatprep.subr.bf16.mxu0 %v2627
          %3399 = vmatpush1.bf16.msra.mxu0 %v2626
          %3400 = vmatprep.subr.bf16.mxu0 %v2629
          %3401 = vmatpush1.bf16.msra.mxu0 %v2628
          %3402 = vmatprep.subr.bf16.mxu0 %v2631
          %3403 = vmatpush1.bf16.msra.mxu0 %v2630
          %3404 = vmatprep.subr.bf16.mxu0 %v2633
          %3405 = vmatpush1.bf16.msra.mxu0 %v2632
          %3406 = vmatprep.subr.bf16.mxu0 %v2635
          %3407 = vmatpush1.bf16.msra.mxu0 %v2634
          %3408 = vmatprep.subr.bf16.mxu0 %v2637
          %3409 = vmatpush1.bf16.msra.mxu0 %v2636
          %3410 = vmatprep.subr.bf16.mxu0 %v2639
          %3411 = vmatpush1.bf16.msra.mxu0 %v2638
          %3412 = vmatprep.subr.bf16.mxu0 %v2641
          %3413 = vmatpush1.bf16.msra.mxu0 %v2640
          %3414 = vmatprep.subr.bf16.mxu0 %v2643
          %3415 = vmatpush1.bf16.msra.mxu0 %v2642
          %3416 = vmatprep.subr.bf16.mxu0 %v2645
          %3417 = vmatpush1.bf16.msra.mxu0 %v2644
          %3418 = vmatprep.mubr.bf16.mxu0 %v1599
          %3419 = vmatmul.mubr.bf16.gmra.mrb[0].mxu0 %v1598
          %v3420 = vpop.f32.mrb[0].mxu0
          %v3421 = vadd.f32 %v3308, %v3420
          %v3422 = vpop.f32.mrb[0].mxu0
          %v3423 = vadd.f32 %v3310, %v3422
          %v3424 = vpop.f32.mrb[0].mxu0
          %v3425 = vadd.f32 %v3312, %v3424
          %v3426 = vpop.f32.mrb[0].mxu0
          %v3427 = vadd.f32 %v3314, %v3426
          %3428 = vmatprep.mubr.bf16.mxu0 %v1613
          %3429 = vmatmul.mubr.bf16.gmra.mrb[0].mxu0 %v1612
          %v3430 = vpop.f32.mrb[0].mxu0
          %v3431 = vadd.f32 %v3318, %v3430
          %v3432 = vpop.f32.mrb[0].mxu0
          %v3433 = vadd.f32 %v3320, %v3432
          %v3434 = vpop.f32.mrb[0].mxu0
          %v3435 = vadd.f32 %v3322, %v3434
          %v3436 = vpop.f32.mrb[0].mxu0
          %v3437 = vadd.f32 %v3324, %v3436
          %3438 = vmatprep.mubr.bf16.mxu0 %v1627
          %3439 = vmatmul.mubr.bf16.gmra.mrb[0].mxu0 %v1626
          %v3440 = vpop.f32.mrb[0].mxu0
          %v3441 = vadd.f32 %v3328, %v3440
          %v3442 = vpop.f32.mrb[0].mxu0
          %v3443 = vadd.f32 %v3330, %v3442
          %v3444 = vpop.f32.mrb[0].mxu0
          %v3445 = vadd.f32 %v3332, %v3444
          %v3446 = vpop.f32.mrb[0].mxu0
          %v3447 = vadd.f32 %v3334, %v3446
          %3448 = vmatprep.mubr.bf16.mxu0 %v1641
          %3449 = vmatmul.mubr.bf16.gmra.mrb[0].mxu0 %v1640
          %v3450 = vpop.f32.mrb[0].mxu0
          %v3451 = vadd.f32 %v3338, %v3450
          %v3452 = vpop.f32.mrb[0].mxu0
          %v3453 = vadd.f32 %v3340, %v3452
          %v3454 = vpop.f32.mrb[0].mxu0
          %v3455 = vadd.f32 %v3342, %v3454
          %v3456 = vpop.f32.mrb[0].mxu0
          %v3457 = vadd.f32 %v3344, %v3456
          %3458 = vmatprep.mubr.bf16.mxu0 %v1655
          %3459 = vmatmul.mubr.bf16.gmra.mrb[0].mxu0 %v1654
          %v3460 = vpop.f32.mrb[0].mxu0
          %v3461 = vadd.f32 %v3348, %v3460
          %v3462 = vpop.f32.mrb[0].mxu0
          %v3463 = vadd.f32 %v3350, %v3462
          %v3464 = vpop.f32.mrb[0].mxu0
          %v3465 = vadd.f32 %v3352, %v3464
          %v3466 = vpop.f32.mrb[0].mxu0
          %v3467 = vadd.f32 %v3354, %v3466
          %3468 = vmatprep.mubr.bf16.mxu0 %v1669
          %3469 = vmatmul.mubr.bf16.gmra.mrb[0].mxu0 %v1668
          %v3470 = vpop.f32.mrb[0].mxu0
          %v3471 = vadd.f32 %v3358, %v3470
          %v3472 = vpop.f32.mrb[0].mxu0
          %v3473 = vadd.f32 %v3360, %v3472
          %v3474 = vpop.f32.mrb[0].mxu0
          %v3475 = vadd.f32 %v3362, %v3474
          %v3476 = vpop.f32.mrb[0].mxu0
          %v3477 = vadd.f32 %v3364, %v3476
          %3478 = vmatprep.mubr.bf16.mxu0 %v1683
          %3479 = vmatmul.mubr.bf16.gmra.mrb[0].mxu0 %v1682
          %v3480 = vpop.f32.mrb[0].mxu0
          %v3481 = vadd.f32 %v3368, %v3480
          %v3482 = vpop.f32.mrb[0].mxu0
          %v3483 = vadd.f32 %v3370, %v3482
          %v3484 = vpop.f32.mrb[0].mxu0
          %v3485 = vadd.f32 %v3372, %v3484
          %v3486 = vpop.f32.mrb[0].mxu0
          %v3487 = vadd.f32 %v3374, %v3486
          %3488 = vmatprep.mubr.bf16.mxu0 %v1697
          %3489 = vmatmul.mubr.bf16.gmra.mrb[0].mxu0 %v1696
          %v3490 = vpop.f32.mrb[0].mxu0
          %v3491 = vadd.f32 %v3378, %v3490
          %v3492 = vpop.f32.mrb[0].mxu0
          %v3493 = vadd.f32 %v3380, %v3492
          %v3494 = vpop.f32.mrb[0].mxu0
          %v3495 = vadd.f32 %v3382, %v3494
          %v3496 = vpop.f32.mrb[0].mxu0
          %v3497 = vadd.f32 %v3384, %v3496
          %3498 = vdwg.mxu0
          %3499 = vmatprep.subr.bf16.mxu0 %v2647
          %3500 = vmatpush1.bf16.msra.mxu0 %v2646
          %3501 = vmatprep.subr.bf16.mxu0 %v2649
          %3502 = vmatpush1.bf16.msra.mxu0 %v2648
          %3503 = vmatprep.subr.bf16.mxu0 %v2651
          %3504 = vmatpush1.bf16.msra.mxu0 %v2650
          %3505 = vmatprep.subr.bf16.mxu0 %v2653
          %3506 = vmatpush1.bf16.msra.mxu0 %v2652
          %3507 = vmatprep.subr.bf16.mxu0 %v2655
          %3508 = vmatpush1.bf16.msra.mxu0 %v2654
          %3509 = vmatprep.subr.bf16.mxu0 %v2657
          %3510 = vmatpush1.bf16.msra.mxu0 %v2656
          %3511 = vmatprep.subr.bf16.mxu0 %v2659
          %3512 = vmatpush1.bf16.msra.mxu0 %v2658
          %3513 = vmatprep.subr.bf16.mxu0 %v2661
          %3514 = vmatpush1.bf16.msra.mxu0 %v2660
          %3515 = vmatprep.subr.bf16.mxu0 %v2663
          %3516 = vmatpush1.bf16.msra.mxu0 %v2662
          %3517 = vmatprep.subr.bf16.mxu0 %v2665
          %3518 = vmatpush1.bf16.msra.mxu0 %v2664
          %3519 = vmatprep.subr.bf16.mxu0 %v2667
          %3520 = vmatpush1.bf16.msra.mxu0 %v2666
          %3521 = vmatprep.subr.bf16.mxu0 %v2669
          %3522 = vmatpush1.bf16.msra.mxu0 %v2668
          %3523 = vmatprep.subr.bf16.mxu0 %v2671
          %3524 = vmatpush1.bf16.msra.mxu0 %v2670
          %3525 = vmatprep.subr.bf16.mxu0 %v2673
          %3526 = vmatpush1.bf16.msra.mxu0 %v2672
          %3527 = vmatprep.subr.bf16.mxu0 %v2675
          %3528 = vmatpush1.bf16.msra.mxu0 %v2674
          %3529 = vmatprep.subr.bf16.mxu0 %v2677
          %3530 = vmatpush1.bf16.msra.mxu0 %v2676
          %3531 = vmatprep.mubr.bf16.mxu0 %v1601
          %3532 = vmatmul.mubr.bf16.gmra.mrb[0].mxu0 %v1600
          %v3533 = vpop.f32.mrb[0].mxu0
          %v3534 = vadd.f32 %v3421, %v3533
          %v3535 = vpop.f32.mrb[0].mxu0
          %v3536 = vadd.f32 %v3423, %v3535
          %v3537 = vpop.f32.mrb[0].mxu0
          %v3538 = vadd.f32 %v3425, %v3537
          %v3539 = vpop.f32.mrb[0].mxu0
          %v3540 = vadd.f32 %v3427, %v3539
          %3541 = vmatprep.mubr.bf16.mxu0 %v1615
          %3542 = vmatmul.mubr.bf16.gmra.mrb[0].mxu0 %v1614
          %v3543 = vpop.f32.mrb[0].mxu0
          %v3544 = vadd.f32 %v3431, %v3543
          %v3545 = vpop.f32.mrb[0].mxu0
          %v3546 = vadd.f32 %v3433, %v3545
          %v3547 = vpop.f32.mrb[0].mxu0
          %v3548 = vadd.f32 %v3435, %v3547
          %v3549 = vpop.f32.mrb[0].mxu0
          %v3550 = vadd.f32 %v3437, %v3549
          %3551 = vmatprep.mubr.bf16.mxu0 %v1629
          %3552 = vmatmul.mubr.bf16.gmra.mrb[0].mxu0 %v1628
          %v3553 = vpop.f32.mrb[0].mxu0
          %v3554 = vadd.f32 %v3441, %v3553
          %v3555 = vpop.f32.mrb[0].mxu0
          %v3556 = vadd.f32 %v3443, %v3555
          %v3557 = vpop.f32.mrb[0].mxu0
          %v3558 = vadd.f32 %v3445, %v3557
          %v3559 = vpop.f32.mrb[0].mxu0
          %v3560 = vadd.f32 %v3447, %v3559
          %3561 = vmatprep.mubr.bf16.mxu0 %v1643
          %3562 = vmatmul.mubr.bf16.gmra.mrb[0].mxu0 %v1642
          %v3563 = vpop.f32.mrb[0].mxu0
          %v3564 = vadd.f32 %v3451, %v3563
          %v3565 = vpop.f32.mrb[0].mxu0
          %v3566 = vadd.f32 %v3453, %v3565
          %v3567 = vpop.f32.mrb[0].mxu0
          %v3568 = vadd.f32 %v3455, %v3567
          %v3569 = vpop.f32.mrb[0].mxu0
          %v3570 = vadd.f32 %v3457, %v3569
          %3571 = vmatprep.mubr.bf16.mxu0 %v1657
          %3572 = vmatmul.mubr.bf16.gmra.mrb[0].mxu0 %v1656
          %v3573 = vpop.f32.mrb[0].mxu0
          %v3574 = vadd.f32 %v3461, %v3573
          %v3575 = vpop.f32.mrb[0].mxu0
          %v3576 = vadd.f32 %v3463, %v3575
          %v3577 = vpop.f32.mrb[0].mxu0
          %v3578 = vadd.f32 %v3465, %v3577
          %v3579 = vpop.f32.mrb[0].mxu0
          %v3580 = vadd.f32 %v3467, %v3579
          %3581 = vmatprep.mubr.bf16.mxu0 %v1671
          %3582 = vmatmul.mubr.bf16.gmra.mrb[0].mxu0 %v1670
          %v3583 = vpop.f32.mrb[0].mxu0
          %v3584 = vadd.f32 %v3471, %v3583
          %v3585 = vpop.f32.mrb[0].mxu0
          %v3586 = vadd.f32 %v3473, %v3585
          %v3587 = vpop.f32.mrb[0].mxu0
          %v3588 = vadd.f32 %v3475, %v3587
          %v3589 = vpop.f32.mrb[0].mxu0
          %v3590 = vadd.f32 %v3477, %v3589
          %3591 = vmatprep.mubr.bf16.mxu0 %v1685
          %3592 = vmatmul.mubr.bf16.gmra.mrb[0].mxu0 %v1684
          %v3593 = vpop.f32.mrb[0].mxu0
          %v3594 = vadd.f32 %v3481, %v3593
          %v3595 = vpop.f32.mrb[0].mxu0
          %v3596 = vadd.f32 %v3483, %v3595
          %v3597 = vpop.f32.mrb[0].mxu0
          %v3598 = vadd.f32 %v3485, %v3597
          %v3599 = vpop.f32.mrb[0].mxu0
          %v3600 = vadd.f32 %v3487, %v3599
          %3601 = vmatprep.mubr.bf16.mxu0 %v1699
          %3602 = vmatmul.mubr.bf16.gmra.mrb[0].mxu0 %v1698
          %v3603 = vpop.f32.mrb[0].mxu0
          %v3604 = vadd.f32 %v3491, %v3603
          %v3605 = vpop.f32.mrb[0].mxu0
          %v3606 = vadd.f32 %v3493, %v3605
          %v3607 = vpop.f32.mrb[0].mxu0
          %v3608 = vadd.f32 %v3495, %v3607
          %v3609 = vpop.f32.mrb[0].mxu0
          %v3610 = vadd.f32 %v3497, %v3609
          %3611 = vdwg.mxu0
          %3612 = vmatprep.subr.bf16.mxu0 %v2679
          %3613 = vmatpush1.bf16.msra.mxu0 %v2678
          %3614 = vmatprep.subr.bf16.mxu0 %v2681
          %3615 = vmatpush1.bf16.msra.mxu0 %v2680
          %3616 = vmatprep.subr.bf16.mxu0 %v2683
          %3617 = vmatpush1.bf16.msra.mxu0 %v2682
          %3618 = vmatprep.subr.bf16.mxu0 %v2685
          %3619 = vmatpush1.bf16.msra.mxu0 %v2684
          %3620 = vmatprep.subr.bf16.mxu0 %v2687
          %3621 = vmatpush1.bf16.msra.mxu0 %v2686
          %3622 = vmatprep.subr.bf16.mxu0 %v2689
          %3623 = vmatpush1.bf16.msra.mxu0 %v2688
          %3624 = vmatprep.subr.bf16.mxu0 %v2691
          %3625 = vmatpush1.bf16.msra.mxu0 %v2690
          %3626 = vmatprep.subr.bf16.mxu0 %v2693
          %3627 = vmatpush1.bf16.msra.mxu0 %v2692
          %3628 = vmatprep.subr.bf16.mxu0 %v2695
          %3629 = vmatpush1.bf16.msra.mxu0 %v2694
          %3630 = vmatprep.subr.bf16.mxu0 %v2697
          %3631 = vmatpush1.bf16.msra.mxu0 %v2696
          %3632 = vmatprep.subr.bf16.mxu0 %v2699
          %3633 = vmatpush1.bf16.msra.mxu0 %v2698
          %3634 = vmatprep.subr.bf16.mxu0 %v2701
          %3635 = vmatpush1.bf16.msra.mxu0 %v2700
          %3636 = vmatprep.subr.bf16.mxu0 %v2703
          %3637 = vmatpush1.bf16.msra.mxu0 %v2702
          %3638 = vmatprep.subr.bf16.mxu0 %v2705
          %3639 = vmatpush1.bf16.msra.mxu0 %v2704
          %3640 = vmatprep.subr.bf16.mxu0 %v2707
          %3641 = vmatpush1.bf16.msra.mxu0 %v2706
          %3642 = vmatprep.subr.bf16.mxu0 %v2709
          %3643 = vmatpush1.bf16.msra.mxu0 %v2708
          %3644 = vmatprep.mubr.bf16.mxu0 %v1603
          %3645 = vmatmul.mubr.bf16.gmra.mrb[0].mxu0 %v1602
          %v3646 = vpop.f32.mrb[0].mxu0
          %v3647 = vadd.f32 %v3534, %v3646
          %v3648 = vpop.f32.mrb[0].mxu0
          %v3649 = vadd.f32 %v3536, %v3648
          %v3650 = vpop.f32.mrb[0].mxu0
          %v3651 = vadd.f32 %v3538, %v3650
          %v3652 = vpop.f32.mrb[0].mxu0
          %v3653 = vadd.f32 %v3540, %v3652
          %3654 = vmatprep.mubr.bf16.mxu0 %v1617
          %3655 = vmatmul.mubr.bf16.gmra.mrb[0].mxu0 %v1616
          %v3656 = vpop.f32.mrb[0].mxu0
          %v3657 = vadd.f32 %v3544, %v3656
          %v3658 = vpop.f32.mrb[0].mxu0
          %v3659 = vadd.f32 %v3546, %v3658
          %v3660 = vpop.f32.mrb[0].mxu0
          %v3661 = vadd.f32 %v3548, %v3660
          %v3662 = vpop.f32.mrb[0].mxu0
          %v3663 = vadd.f32 %v3550, %v3662
          %3664 = vmatprep.mubr.bf16.mxu0 %v1631
          %3665 = vmatmul.mubr.bf16.gmra.mrb[0].mxu0 %v1630
          %v3666 = vpop.f32.mrb[0].mxu0
          %v3667 = vadd.f32 %v3554, %v3666
          %v3668 = vpop.f32.mrb[0].mxu0
          %v3669 = vadd.f32 %v3556, %v3668
          %v3670 = vpop.f32.mrb[0].mxu0
          %v3671 = vadd.f32 %v3558, %v3670
          %v3672 = vpop.f32.mrb[0].mxu0
          %v3673 = vadd.f32 %v3560, %v3672
          %3674 = vmatprep.mubr.bf16.mxu0 %v1645
          %3675 = vmatmul.mubr.bf16.gmra.mrb[0].mxu0 %v1644
          %v3676 = vpop.f32.mrb[0].mxu0
          %v3677 = vadd.f32 %v3564, %v3676
          %v3678 = vpop.f32.mrb[0].mxu0
          %v3679 = vadd.f32 %v3566, %v3678
          %v3680 = vpop.f32.mrb[0].mxu0
          %v3681 = vadd.f32 %v3568, %v3680
          %v3682 = vpop.f32.mrb[0].mxu0
          %v3683 = vadd.f32 %v3570, %v3682
          %3684 = vmatprep.mubr.bf16.mxu0 %v1659
          %3685 = vmatmul.mubr.bf16.gmra.mrb[0].mxu0 %v1658
          %v3686 = vpop.f32.mrb[0].mxu0
          %v3687 = vadd.f32 %v3574, %v3686
          %v3688 = vpop.f32.mrb[0].mxu0
          %v3689 = vadd.f32 %v3576, %v3688
          %v3690 = vpop.f32.mrb[0].mxu0
          %v3691 = vadd.f32 %v3578, %v3690
          %v3692 = vpop.f32.mrb[0].mxu0
          %v3693 = vadd.f32 %v3580, %v3692
          %3694 = vmatprep.mubr.bf16.mxu0 %v1673
          %3695 = vmatmul.mubr.bf16.gmra.mrb[0].mxu0 %v1672
          %v3696 = vpop.f32.mrb[0].mxu0
          %v3697 = vadd.f32 %v3584, %v3696
          %v3698 = vpop.f32.mrb[0].mxu0
          %v3699 = vadd.f32 %v3586, %v3698
          %v3700 = vpop.f32.mrb[0].mxu0
          %v3701 = vadd.f32 %v3588, %v3700
          %v3702 = vpop.f32.mrb[0].mxu0
          %v3703 = vadd.f32 %v3590, %v3702
          %3704 = vmatprep.mubr.bf16.mxu0 %v1687
          %3705 = vmatmul.mubr.bf16.gmra.mrb[0].mxu0 %v1686
          %v3706 = vpop.f32.mrb[0].mxu0
          %v3707 = vadd.f32 %v3594, %v3706
          %v3708 = vpop.f32.mrb[0].mxu0
          %v3709 = vadd.f32 %v3596, %v3708
          %v3710 = vpop.f32.mrb[0].mxu0
          %v3711 = vadd.f32 %v3598, %v3710
          %v3712 = vpop.f32.mrb[0].mxu0
          %v3713 = vadd.f32 %v3600, %v3712
          %3714 = vmatprep.mubr.bf16.mxu0 %v1701
          %3715 = vmatmul.mubr.bf16.gmra.mrb[0].mxu0 %v1700
          %v3716 = vpop.f32.mrb[0].mxu0
          %v3717 = vadd.f32 %v3604, %v3716
          %v3718 = vpop.f32.mrb[0].mxu0
          %v3719 = vadd.f32 %v3606, %v3718
          %v3720 = vpop.f32.mrb[0].mxu0
          %v3721 = vadd.f32 %v3608, %v3720
          %v3722 = vpop.f32.mrb[0].mxu0
          %v3723 = vadd.f32 %v3610, %v3722
          %3724 = vdwg.mxu0
          %v3725 = vld [vmem:[%s4] sm:$0x3]
          %v3727 = vlaneseq
          %v3728 = vshrl.u32 %v3727, 7
          %v3729 = vsub.s32 0, %v3728
          %v3730 = vrot.slane %v3725, %v3729
          %v3731 = vlaneseq
          %v3732 = vshrl.u32 %v3731, 7
          %v3733 = vsub.s32 1, %v3732
          %v3734 = vrot.slane %v3725, %v3733
          %v3737 = vmul.f32 %v3647, %v3730
          %v3738 = vmul.f32 %v3649, %v3734
          %v3739 = vmul.f32 %v3651, %v3730
          %v3740 = vmul.f32 %v3653, %v3734
          %v3741 = vmul.f32 %v3657, %v3730
          %v3742 = vmul.f32 %v3659, %v3734
          %v3743 = vmul.f32 %v3661, %v3730
          %v3744 = vmul.f32 %v3663, %v3734
          %v3745 = vmul.f32 %v3667, %v3730
          %v3746 = vmul.f32 %v3669, %v3734
          %v3747 = vmul.f32 %v3671, %v3730
          %v3748 = vmul.f32 %v3673, %v3734
          %v3749 = vmul.f32 %v3677, %v3730
          %v3750 = vmul.f32 %v3679, %v3734
          %v3751 = vmul.f32 %v3681, %v3730
          %v3752 = vmul.f32 %v3683, %v3734
          %v3753 = vmul.f32 %v3687, %v3730
          %v3754 = vmul.f32 %v3689, %v3734
          %v3755 = vmul.f32 %v3691, %v3730
          %v3756 = vmul.f32 %v3693, %v3734
          %v3757 = vmul.f32 %v3697, %v3730
          %v3758 = vmul.f32 %v3699, %v3734
          %v3759 = vmul.f32 %v3701, %v3730
          %v3760 = vmul.f32 %v3703, %v3734
          %v3761 = vmul.f32 %v3707, %v3730
          %v3762 = vmul.f32 %v3709, %v3734
          %v3763 = vmul.f32 %v3711, %v3730
          %v3764 = vmul.f32 %v3713, %v3734
          %v3765 = vmul.f32 %v3717, %v3730
          %v3766 = vmul.f32 %v3719, %v3734
          %v3767 = vmul.f32 %v3721, %v3730
          %v3768 = vmul.f32 %v3723, %v3734
          %v3769 = vld [vmem:[%s5] sm:$0x3]
          %v3771 = vlaneseq
          %v3772 = vshrl.u32 %v3771, 7
          %v3773 = vsub.s32 0, %v3772
          %v3774 = vrot.slane %v3769, %v3773
          %v3775 = vlaneseq
          %v3776 = vshrl.u32 %v3775, 7
          %v3777 = vsub.s32 1, %v3776
          %v3778 = vrot.slane %v3769, %v3777
          %v3781 = vadd.f32 %v3737, %v3774
          %v3782 = vadd.f32 %v3738, %v3778
          %v3783 = vadd.f32 %v3739, %v3774
          %v3784 = vadd.f32 %v3740, %v3778
          %v3785 = vadd.f32 %v3741, %v3774
          %v3786 = vadd.f32 %v3742, %v3778
          %v3787 = vadd.f32 %v3743, %v3774
          %v3788 = vadd.f32 %v3744, %v3778
          %v3789 = vadd.f32 %v3745, %v3774
          %v3790 = vadd.f32 %v3746, %v3778
          %v3791 = vadd.f32 %v3747, %v3774
          %v3792 = vadd.f32 %v3748, %v3778
          %v3793 = vadd.f32 %v3749, %v3774
          %v3794 = vadd.f32 %v3750, %v3778
          %v3795 = vadd.f32 %v3751, %v3774
          %v3796 = vadd.f32 %v3752, %v3778
          %v3797 = vadd.f32 %v3753, %v3774
          %v3798 = vadd.f32 %v3754, %v3778
          %v3799 = vadd.f32 %v3755, %v3774
          %v3800 = vadd.f32 %v3756, %v3778
          %v3801 = vadd.f32 %v3757, %v3774
          %v3802 = vadd.f32 %v3758, %v3778
          %v3803 = vadd.f32 %v3759, %v3774
          %v3804 = vadd.f32 %v3760, %v3778
          %v3805 = vadd.f32 %v3761, %v3774
          %v3806 = vadd.f32 %v3762, %v3778
          %v3807 = vadd.f32 %v3763, %v3774
          %v3808 = vadd.f32 %v3764, %v3778
          %v3809 = vadd.f32 %v3765, %v3774
          %v3810 = vadd.f32 %v3766, %v3778
          %v3811 = vadd.f32 %v3767, %v3774
          %v3812 = vadd.f32 %v3768, %v3778
          %v3813 = vmax.f32 %v3781, 0.0
          %v3814 = vmax.f32 %v3782, 0.0
          %v3815 = vmax.f32 %v3783, 0.0
          %v3816 = vmax.f32 %v3784, 0.0
          %v3817 = vmax.f32 %v3785, 0.0
          %v3818 = vmax.f32 %v3786, 0.0
          %v3819 = vmax.f32 %v3787, 0.0
          %v3820 = vmax.f32 %v3788, 0.0
          %v3821 = vmax.f32 %v3789, 0.0
          %v3822 = vmax.f32 %v3790, 0.0
          %v3823 = vmax.f32 %v3791, 0.0
          %v3824 = vmax.f32 %v3792, 0.0
          %v3825 = vmax.f32 %v3793, 0.0
          %v3826 = vmax.f32 %v3794, 0.0
          %v3827 = vmax.f32 %v3795, 0.0
          %v3828 = vmax.f32 %v3796, 0.0
          %v3829 = vmax.f32 %v3797, 0.0
          %v3830 = vmax.f32 %v3798, 0.0
          %v3831 = vmax.f32 %v3799, 0.0
          %v3832 = vmax.f32 %v3800, 0.0
          %v3833 = vmax.f32 %v3801, 0.0
          %v3834 = vmax.f32 %v3802, 0.0
          %v3835 = vmax.f32 %v3803, 0.0
          %v3836 = vmax.f32 %v3804, 0.0
          %v3837 = vmax.f32 %v3805, 0.0
          %v3838 = vmax.f32 %v3806, 0.0
          %v3839 = vmax.f32 %v3807, 0.0
          %v3840 = vmax.f32 %v3808, 0.0
          %v3841 = vmax.f32 %v3809, 0.0
          %v3842 = vmax.f32 %v3810, 0.0
          %v3843 = vmax.f32 %v3811, 0.0
          %v3844 = vmax.f32 %v3812, 0.0
          %v3845 = vpack.c.bf16 %v3815, %v3813
          %v3846 = vpack.c.bf16 %v3816, %v3814
          %v3847 = vpack.c.bf16 %v3819, %v3817
          %v3848 = vpack.c.bf16 %v3820, %v3818
          %v3849 = vpack.c.bf16 %v3823, %v3821
          %v3850 = vpack.c.bf16 %v3824, %v3822
          %v3851 = vpack.c.bf16 %v3827, %v3825
          %v3852 = vpack.c.bf16 %v3828, %v3826
          %v3853 = vpack.c.bf16 %v3831, %v3829
          %v3854 = vpack.c.bf16 %v3832, %v3830
          %v3855 = vpack.c.bf16 %v3835, %v3833
          %v3856 = vpack.c.bf16 %v3836, %v3834
          %v3857 = vpack.c.bf16 %v3839, %v3837
          %v3858 = vpack.c.bf16 %v3840, %v3838
          %v3859 = vpack.c.bf16 %v3843, %v3841
          %v3860 = vpack.c.bf16 %v3844, %v3842
          %3861 = vst [vmem:[#allocation2] sm:$0xff] %v3845
          %3862 = vst.msk [vmem:[#allocation2 + $0x8] sm:$0xff] %vm900, %v3846
          %3863 = vst [vmem:[#allocation2 + $0x10] sm:$0xff] %v3847
          %3864 = vst.msk [vmem:[#allocation2 + $0x18] sm:$0xff] %vm900, %v3848
          %3865 = vst [vmem:[#allocation2 + $0x20] sm:$0xff] %v3849
          %3866 = vst.msk [vmem:[#allocation2 + $0x28] sm:$0xff] %vm900, %v3850
          %3867 = vst [vmem:[#allocation2 + $0x30] sm:$0xff] %v3851
          %3868 = vst.msk [vmem:[#allocation2 + $0x38] sm:$0xff] %vm900, %v3852
          %3869 = vst [vmem:[#allocation2 + $0x40] sm:$0xff] %v3853
          %3870 = vst.msk [vmem:[#allocation2 + $0x48] sm:$0xff] %vm900, %v3854
          %3871 = vst [vmem:[#allocation2 + $0x50] sm:$0xff] %v3855
          %3872 = vst.msk [vmem:[#allocation2 + $0x58] sm:$0xff] %vm900, %v3856
          %3873 = vst [vmem:[#allocation2 + $0x60] sm:$0xff] %v3857
          %3874 = vst.msk [vmem:[#allocation2 + $0x68] sm:$0xff] %vm900, %v3858
          %3875 = vst [vmem:[#allocation2 + $0x70] sm:$0xff] %v3859
          %3876 = vst.msk [vmem:[#allocation2 + $0x78] sm:$0xff] %vm900, %v3860
          %v3877 = vld [vmem:[%s6] sm:$0xff]
          %v3878 = vld [vmem:[%s6 + $0x8] sm:$0xff]
          %v3879 = vld [vmem:[%s6 + $0x10] sm:$0xff]
          %v3880 = vld [vmem:[%s6 + $0x18] sm:$0xff]
          %v3881 = vld [vmem:[%s6 + $0x20] sm:$0xff]
          %v3882 = vld [vmem:[%s6 + $0x28] sm:$0xff]
          %v3883 = vld [vmem:[%s6 + $0x30] sm:$0xff]
          %v3884 = vld [vmem:[%s6 + $0x38] sm:$0xff]
          %v3885 = vld [vmem:[%s6 + $0x40] sm:$0xff]
          %v3886 = vld [vmem:[%s6 + $0x48] sm:$0xff]
          %v3887 = vld [vmem:[%s6 + $0x50] sm:$0xff]
          %v3888 = vld [vmem:[%s6 + $0x58] sm:$0xff]
          %v3889 = vld [vmem:[%s6 + $0x60] sm:$0xff]
          %v3890 = vld [vmem:[%s6 + $0x68] sm:$0xff]
          %v3891 = vld [vmem:[%s6 + $0x70] sm:$0xff]
          %v3892 = vld [vmem:[%s6 + $0x78] sm:$0xff]
          %v3893 = vld [vmem:[%s6 + $0x80] sm:$0xff]
          %v3894 = vld [vmem:[%s6 + $0x88] sm:$0xff]
          %v3895 = vld [vmem:[%s6 + $0x90] sm:$0xff]
          %v3896 = vld [vmem:[%s6 + $0x98] sm:$0xff]
          %v3897 = vld [vmem:[%s6 + $0xa0] sm:$0xff]
          %v3898 = vld [vmem:[%s6 + $0xa8] sm:$0xff]
          %v3899 = vld [vmem:[%s6 + $0xb0] sm:$0xff]
          %v3900 = vld [vmem:[%s6 + $0xb8] sm:$0xff]
          %v3901 = vld [vmem:[%s6 + $0xc0] sm:$0xff]
          %v3902 = vld [vmem:[%s6 + $0xc8] sm:$0xff]
          %v3903 = vld [vmem:[%s6 + $0xd0] sm:$0xff]
          %v3904 = vld [vmem:[%s6 + $0xd8] sm:$0xff]
          %v3905 = vld [vmem:[%s6 + $0xe0] sm:$0xff]
          %v3906 = vld [vmem:[%s6 + $0xe8] sm:$0xff]
          %v3907 = vld [vmem:[%s6 + $0xf0] sm:$0xff]
          %v3908 = vld [vmem:[%s6 + $0xf8] sm:$0xff]
          %v3909 = vld [vmem:[%s6 + $0x100] sm:$0xff]
          %v3910 = vld [vmem:[%s6 + $0x108] sm:$0xff]
          %v3911 = vld [vmem:[%s6 + $0x110] sm:$0xff]
          %v3912 = vld [vmem:[%s6 + $0x118] sm:$0xff]
          %v3913 = vld [vmem:[%s6 + $0x120] sm:$0xff]
          %v3914 = vld [vmem:[%s6 + $0x128] sm:$0xff]
          %v3915 = vld [vmem:[%s6 + $0x130] sm:$0xff]
          %v3916 = vld [vmem:[%s6 + $0x138] sm:$0xff]
          %v3917 = vld [vmem:[%s6 + $0x140] sm:$0xff]
          %v3918 = vld [vmem:[%s6 + $0x148] sm:$0xff]
          %v3919 = vld [vmem:[%s6 + $0x150] sm:$0xff]
          %v3920 = vld [vmem:[%s6 + $0x158] sm:$0xff]
          %v3921 = vld [vmem:[%s6 + $0x160] sm:$0xff]
          %v3922 = vld [vmem:[%s6 + $0x168] sm:$0xff]
          %v3923 = vld [vmem:[%s6 + $0x170] sm:$0xff]
          %v3924 = vld [vmem:[%s6 + $0x178] sm:$0xff]
          %v3925 = vld [vmem:[%s6 + $0x180] sm:$0xff]
          %v3926 = vld [vmem:[%s6 + $0x188] sm:$0xff]
          %v3927 = vld [vmem:[%s6 + $0x190] sm:$0xff]
          %v3928 = vld [vmem:[%s6 + $0x198] sm:$0xff]
          %v3929 = vld [vmem:[%s6 + $0x1a0] sm:$0xff]
          %v3930 = vld [vmem:[%s6 + $0x1a8] sm:$0xff]
          %v3931 = vld [vmem:[%s6 + $0x1b0] sm:$0xff]
          %v3932 = vld [vmem:[%s6 + $0x1b8] sm:$0xff]
          %v3933 = vld [vmem:[%s6 + $0x1c0] sm:$0xff]
          %v3934 = vld [vmem:[%s6 + $0x1c8] sm:$0xff]
          %v3935 = vld [vmem:[%s6 + $0x1d0] sm:$0xff]
          %v3936 = vld [vmem:[%s6 + $0x1d8] sm:$0xff]
          %v3937 = vld [vmem:[%s6 + $0x1e0] sm:$0xff]
          %v3938 = vld [vmem:[%s6 + $0x1e8] sm:$0xff]
          %v3939 = vld [vmem:[%s6 + $0x1f0] sm:$0xff]
          %v3940 = vld [vmem:[%s6 + $0x1f8] sm:$0xff]
          %v3941 = vld [vmem:[%s6 + $0x200] sm:$0xff]
          %v3942 = vld [vmem:[%s6 + $0x208] sm:$0xff]
          %v3943 = vld [vmem:[%s6 + $0x210] sm:$0xff]
          %v3944 = vld [vmem:[%s6 + $0x218] sm:$0xff]
          %v3945 = vld [vmem:[%s6 + $0x220] sm:$0xff]
          %v3946 = vld [vmem:[%s6 + $0x228] sm:$0xff]
          %v3947 = vld [vmem:[%s6 + $0x230] sm:$0xff]
          %v3948 = vld [vmem:[%s6 + $0x238] sm:$0xff]
          %v3949 = vld [vmem:[%s6 + $0x240] sm:$0xff]
          %v3950 = vld [vmem:[%s6 + $0x248] sm:$0xff]
          %v3951 = vld [vmem:[%s6 + $0x250] sm:$0xff]
          %v3952 = vld [vmem:[%s6 + $0x258] sm:$0xff]
          %v3953 = vld [vmem:[%s6 + $0x260] sm:$0xff]
          %v3954 = vld [vmem:[%s6 + $0x268] sm:$0xff]
          %v3955 = vld [vmem:[%s6 + $0x270] sm:$0xff]
          %v3956 = vld [vmem:[%s6 + $0x278] sm:$0xff]
          %v3957 = vld [vmem:[%s6 + $0x280] sm:$0xff]
          %v3958 = vld [vmem:[%s6 + $0x288] sm:$0xff]
          %v3959 = vld [vmem:[%s6 + $0x290] sm:$0xff]
          %v3960 = vld [vmem:[%s6 + $0x298] sm:$0xff]
          %v3961 = vld [vmem:[%s6 + $0x2a0] sm:$0xff]
          %v3962 = vld [vmem:[%s6 + $0x2a8] sm:$0xff]
          %v3963 = vld [vmem:[%s6 + $0x2b0] sm:$0xff]
          %v3964 = vld [vmem:[%s6 + $0x2b8] sm:$0xff]
          %v3965 = vld [vmem:[%s6 + $0x2c0] sm:$0xff]
          %v3966 = vld [vmem:[%s6 + $0x2c8] sm:$0xff]
          %v3967 = vld [vmem:[%s6 + $0x2d0] sm:$0xff]
          %v3968 = vld [vmem:[%s6 + $0x2d8] sm:$0xff]
          %v3969 = vld [vmem:[%s6 + $0x2e0] sm:$0xff]
          %v3970 = vld [vmem:[%s6 + $0x2e8] sm:$0xff]
          %v3971 = vld [vmem:[%s6 + $0x2f0] sm:$0xff]
          %v3972 = vld [vmem:[%s6 + $0x2f8] sm:$0xff]
          %v3973 = vld [vmem:[%s6 + $0x300] sm:$0xff]
          %v3974 = vld [vmem:[%s6 + $0x308] sm:$0xff]
          %v3975 = vld [vmem:[%s6 + $0x310] sm:$0xff]
          %v3976 = vld [vmem:[%s6 + $0x318] sm:$0xff]
          %v3977 = vld [vmem:[%s6 + $0x320] sm:$0xff]
          %v3978 = vld [vmem:[%s6 + $0x328] sm:$0xff]
          %v3979 = vld [vmem:[%s6 + $0x330] sm:$0xff]
          %v3980 = vld [vmem:[%s6 + $0x338] sm:$0xff]
          %v3981 = vld [vmem:[%s6 + $0x340] sm:$0xff]
          %v3982 = vld [vmem:[%s6 + $0x348] sm:$0xff]
          %v3983 = vld [vmem:[%s6 + $0x350] sm:$0xff]
          %v3984 = vld [vmem:[%s6 + $0x358] sm:$0xff]
          %v3985 = vld [vmem:[%s6 + $0x360] sm:$0xff]
          %v3986 = vld [vmem:[%s6 + $0x368] sm:$0xff]
          %v3987 = vld [vmem:[%s6 + $0x370] sm:$0xff]
          %v3988 = vld [vmem:[%s6 + $0x378] sm:$0xff]
          %v3989 = vld [vmem:[%s6 + $0x380] sm:$0xff]
          %v3990 = vld [vmem:[%s6 + $0x388] sm:$0xff]
          %v3991 = vld [vmem:[%s6 + $0x390] sm:$0xff]
          %v3992 = vld [vmem:[%s6 + $0x398] sm:$0xff]
          %v3993 = vld [vmem:[%s6 + $0x3a0] sm:$0xff]
          %v3994 = vld [vmem:[%s6 + $0x3a8] sm:$0xff]
          %v3995 = vld [vmem:[%s6 + $0x3b0] sm:$0xff]
          %v3996 = vld [vmem:[%s6 + $0x3b8] sm:$0xff]
          %v3997 = vld [vmem:[%s6 + $0x3c0] sm:$0xff]
          %v3998 = vld [vmem:[%s6 + $0x3c8] sm:$0xff]
          %v3999 = vld [vmem:[%s6 + $0x3d0] sm:$0xff]
          %v4000 = vld [vmem:[%s6 + $0x3d8] sm:$0xff]
          %v4001 = vld [vmem:[%s6 + $0x3e0] sm:$0xff]
          %v4002 = vld [vmem:[%s6 + $0x3e8] sm:$0xff]
          %v4003 = vld [vmem:[%s6 + $0x3f0] sm:$0xff]
          %v4004 = vld [vmem:[%s6 + $0x3f8] sm:$0xff]
          %v4005 = vld [vmem:[%s6 + $0x400] sm:$0xff]
          %v4006 = vld [vmem:[%s6 + $0x408] sm:$0xff]
          %v4007 = vld [vmem:[%s6 + $0x410] sm:$0xff]
          %v4008 = vld [vmem:[%s6 + $0x418] sm:$0xff]
          %v4009 = vld [vmem:[%s6 + $0x420] sm:$0xff]
          %v4010 = vld [vmem:[%s6 + $0x428] sm:$0xff]
          %v4011 = vld [vmem:[%s6 + $0x430] sm:$0xff]
          %v4012 = vld [vmem:[%s6 + $0x438] sm:$0xff]
          %v4013 = vld [vmem:[%s6 + $0x440] sm:$0xff]
          %v4014 = vld [vmem:[%s6 + $0x448] sm:$0xff]
          %v4015 = vld [vmem:[%s6 + $0x450] sm:$0xff]
          %v4016 = vld [vmem:[%s6 + $0x458] sm:$0xff]
          %v4017 = vld [vmem:[%s6 + $0x460] sm:$0xff]
          %v4018 = vld [vmem:[%s6 + $0x468] sm:$0xff]
          %v4019 = vld [vmem:[%s6 + $0x470] sm:$0xff]
          %v4020 = vld [vmem:[%s6 + $0x478] sm:$0xff]
          %v4021 = vld [vmem:[%s6 + $0x480] sm:$0xff]
          %v4022 = vld [vmem:[%s6 + $0x488] sm:$0xff]
          %v4023 = vld [vmem:[%s6 + $0x490] sm:$0xff]
          %v4024 = vld [vmem:[%s6 + $0x498] sm:$0xff]
          %v4025 = vld [vmem:[%s6 + $0x4a0] sm:$0xff]
          %v4026 = vld [vmem:[%s6 + $0x4a8] sm:$0xff]
          %v4027 = vld [vmem:[%s6 + $0x4b0] sm:$0xff]
          %v4028 = vld [vmem:[%s6 + $0x4b8] sm:$0xff]
          %v4029 = vld [vmem:[%s6 + $0x4c0] sm:$0xff]
          %v4030 = vld [vmem:[%s6 + $0x4c8] sm:$0xff]
          %v4031 = vld [vmem:[%s6 + $0x4d0] sm:$0xff]
          %v4032 = vld [vmem:[%s6 + $0x4d8] sm:$0xff]
          %v4033 = vld [vmem:[%s6 + $0x4e0] sm:$0xff]
          %v4034 = vld [vmem:[%s6 + $0x4e8] sm:$0xff]
          %v4035 = vld [vmem:[%s6 + $0x4f0] sm:$0xff]
          %v4036 = vld [vmem:[%s6 + $0x4f8] sm:$0xff]
          %v4037 = vld [vmem:[%s6 + $0x500] sm:$0xff]
          %v4038 = vld [vmem:[%s6 + $0x508] sm:$0xff]
          %v4039 = vld [vmem:[%s6 + $0x510] sm:$0xff]
          %v4040 = vld [vmem:[%s6 + $0x518] sm:$0xff]
          %v4041 = vld [vmem:[%s6 + $0x520] sm:$0xff]
          %v4042 = vld [vmem:[%s6 + $0x528] sm:$0xff]
          %v4043 = vld [vmem:[%s6 + $0x530] sm:$0xff]
          %v4044 = vld [vmem:[%s6 + $0x538] sm:$0xff]
          %v4045 = vld [vmem:[%s6 + $0x540] sm:$0xff]
          %v4046 = vld [vmem:[%s6 + $0x548] sm:$0xff]
          %v4047 = vld [vmem:[%s6 + $0x550] sm:$0xff]
          %v4048 = vld [vmem:[%s6 + $0x558] sm:$0xff]
          %v4049 = vld [vmem:[%s6 + $0x560] sm:$0xff]
          %v4050 = vld [vmem:[%s6 + $0x568] sm:$0xff]
          %v4051 = vld [vmem:[%s6 + $0x570] sm:$0xff]
          %v4052 = vld [vmem:[%s6 + $0x578] sm:$0xff]
          %v4053 = vld [vmem:[%s6 + $0x580] sm:$0xff]
          %v4054 = vld [vmem:[%s6 + $0x588] sm:$0xff]
          %v4055 = vld [vmem:[%s6 + $0x590] sm:$0xff]
          %v4056 = vld [vmem:[%s6 + $0x598] sm:$0xff]
          %v4057 = vld [vmem:[%s6 + $0x5a0] sm:$0xff]
          %v4058 = vld [vmem:[%s6 + $0x5a8] sm:$0xff]
          %v4059 = vld [vmem:[%s6 + $0x5b0] sm:$0xff]
          %v4060 = vld [vmem:[%s6 + $0x5b8] sm:$0xff]
          %v4061 = vld [vmem:[%s6 + $0x5c0] sm:$0xff]
          %v4062 = vld [vmem:[%s6 + $0x5c8] sm:$0xff]
          %v4063 = vld [vmem:[%s6 + $0x5d0] sm:$0xff]
          %v4064 = vld [vmem:[%s6 + $0x5d8] sm:$0xff]
          %v4065 = vld [vmem:[%s6 + $0x5e0] sm:$0xff]
          %v4066 = vld [vmem:[%s6 + $0x5e8] sm:$0xff]
          %v4067 = vld [vmem:[%s6 + $0x5f0] sm:$0xff]
          %v4068 = vld [vmem:[%s6 + $0x5f8] sm:$0xff]
          %v4069 = vld [vmem:[%s6 + $0x600] sm:$0xff]
          %v4070 = vld [vmem:[%s6 + $0x608] sm:$0xff]
          %v4071 = vld [vmem:[%s6 + $0x610] sm:$0xff]
          %v4072 = vld [vmem:[%s6 + $0x618] sm:$0xff]
          %v4073 = vld [vmem:[%s6 + $0x620] sm:$0xff]
          %v4074 = vld [vmem:[%s6 + $0x628] sm:$0xff]
          %v4075 = vld [vmem:[%s6 + $0x630] sm:$0xff]
          %v4076 = vld [vmem:[%s6 + $0x638] sm:$0xff]
          %v4077 = vld [vmem:[%s6 + $0x640] sm:$0xff]
          %v4078 = vld [vmem:[%s6 + $0x648] sm:$0xff]
          %v4079 = vld [vmem:[%s6 + $0x650] sm:$0xff]
          %v4080 = vld [vmem:[%s6 + $0x658] sm:$0xff]
          %v4081 = vld [vmem:[%s6 + $0x660] sm:$0xff]
          %v4082 = vld [vmem:[%s6 + $0x668] sm:$0xff]
          %v4083 = vld [vmem:[%s6 + $0x670] sm:$0xff]
          %v4084 = vld [vmem:[%s6 + $0x678] sm:$0xff]
          %v4085 = vld [vmem:[%s6 + $0x680] sm:$0xff]
          %v4086 = vld [vmem:[%s6 + $0x688] sm:$0xff]
          %v4087 = vld [vmem:[%s6 + $0x690] sm:$0xff]
          %v4088 = vld [vmem:[%s6 + $0x698] sm:$0xff]
          %v4089 = vld [vmem:[%s6 + $0x6a0] sm:$0xff]
          %v4090 = vld [vmem:[%s6 + $0x6a8] sm:$0xff]
          %v4091 = vld [vmem:[%s6 + $0x6b0] sm:$0xff]
          %v4092 = vld [vmem:[%s6 + $0x6b8] sm:$0xff]
          %v4093 = vld [vmem:[%s6 + $0x6c0] sm:$0xff]
          %v4094 = vld [vmem:[%s6 + $0x6c8] sm:$0xff]
          %v4095 = vld [vmem:[%s6 + $0x6d0] sm:$0xff]
          %v4096 = vld [vmem:[%s6 + $0x6d8] sm:$0xff]
          %v4097 = vld [vmem:[%s6 + $0x6e0] sm:$0xff]
          %v4098 = vld [vmem:[%s6 + $0x6e8] sm:$0xff]
          %v4099 = vld [vmem:[%s6 + $0x6f0] sm:$0xff]
          %v4100 = vld [vmem:[%s6 + $0x6f8] sm:$0xff]
          %v4325 = vunpack.c.l.b16 %v3877
          %v4326 = vunpack.c.h.b16 %v3877
          %v4327 = vunpack.c.l.b16 %v3878
          %v4328 = vunpack.c.h.b16 %v3878
          %v4329 = vunpack.c.l.b16 %v3879
          %v4330 = vunpack.c.h.b16 %v3879
          %v4331 = vunpack.c.l.b16 %v3880
          %v4332 = vunpack.c.h.b16 %v3880
          %v4333 = vunpack.c.l.b16 %v3881
          %v4334 = vunpack.c.h.b16 %v3881
          %v4335 = vunpack.c.l.b16 %v3882
          %v4336 = vunpack.c.h.b16 %v3882
          %v4337 = vunpack.c.l.b16 %v3883
          %v4338 = vunpack.c.h.b16 %v3883
          %v4339 = vunpack.c.l.b16 %v3884
          %v4340 = vunpack.c.h.b16 %v3884
          %v4341 = vunpack.c.l.b16 %v3885
          %v4342 = vunpack.c.h.b16 %v3885
          %v4343 = vunpack.c.l.b16 %v3886
          %v4344 = vunpack.c.h.b16 %v3886
          %v4345 = vunpack.c.l.b16 %v3887
          %v4346 = vunpack.c.h.b16 %v3887
          %v4347 = vunpack.c.l.b16 %v3888
          %v4348 = vunpack.c.h.b16 %v3888
          %v4349 = vunpack.c.l.b16 %v3889
          %v4350 = vunpack.c.h.b16 %v3889
          %v4351 = vunpack.c.l.b16 %v3890
          %v4352 = vunpack.c.h.b16 %v3890
          %v4353 = vunpack.c.l.b16 %v3891
          %v4354 = vunpack.c.h.b16 %v3891
          %v4355 = vunpack.c.l.b16 %v3892
          %v4356 = vunpack.c.h.b16 %v3892
          %v4357 = vunpack.c.l.b16 %v3893
          %v4358 = vunpack.c.h.b16 %v3893
          %v4359 = vunpack.c.l.b16 %v3894
          %v4360 = vunpack.c.h.b16 %v3894
          %v4361 = vunpack.c.l.b16 %v3895
          %v4362 = vunpack.c.h.b16 %v3895
          %v4363 = vunpack.c.l.b16 %v3896
          %v4364 = vunpack.c.h.b16 %v3896
          %v4365 = vunpack.c.l.b16 %v3897
          %v4366 = vunpack.c.h.b16 %v3897
          %v4367 = vunpack.c.l.b16 %v3898
          %v4368 = vunpack.c.h.b16 %v3898
          %v4369 = vunpack.c.l.b16 %v3899
          %v4370 = vunpack.c.h.b16 %v3899
          %v4371 = vunpack.c.l.b16 %v3900
          %v4372 = vunpack.c.h.b16 %v3900
          %v4373 = vunpack.c.l.b16 %v3901
          %v4374 = vunpack.c.h.b16 %v3901
          %v4375 = vunpack.c.l.b16 %v3902
          %v4376 = vunpack.c.h.b16 %v3902
          %v4377 = vunpack.c.l.b16 %v3903
          %v4378 = vunpack.c.h.b16 %v3903
          %v4379 = vunpack.c.l.b16 %v3904
          %v4380 = vunpack.c.h.b16 %v3904
          %v4381 = vunpack.c.l.b16 %v3905
          %v4382 = vunpack.c.h.b16 %v3905
          %v4383 = vunpack.c.l.b16 %v3906
          %v4384 = vunpack.c.h.b16 %v3906
          %v4385 = vunpack.c.l.b16 %v3907
          %v4386 = vunpack.c.h.b16 %v3907
          %v4387 = vunpack.c.l.b16 %v3908
          %v4388 = vunpack.c.h.b16 %v3908
          %v4389 = vunpack.c.l.b16 %v3909
          %v4390 = vunpack.c.h.b16 %v3909
          %v4391 = vunpack.c.l.b16 %v3910
          %v4392 = vunpack.c.h.b16 %v3910
          %v4393 = vunpack.c.l.b16 %v3911
          %v4394 = vunpack.c.h.b16 %v3911
          %v4395 = vunpack.c.l.b16 %v3912
          %v4396 = vunpack.c.h.b16 %v3912
          %v4397 = vunpack.c.l.b16 %v3913
          %v4398 = vunpack.c.h.b16 %v3913
          %v4399 = vunpack.c.l.b16 %v3914
          %v4400 = vunpack.c.h.b16 %v3914
          %v4401 = vunpack.c.l.b16 %v3915
          %v4402 = vunpack.c.h.b16 %v3915
          %v4403 = vunpack.c.l.b16 %v3916
          %v4404 = vunpack.c.h.b16 %v3916
          %v4405 = vunpack.c.l.b16 %v3917
          %v4406 = vunpack.c.h.b16 %v3917
          %v4407 = vunpack.c.l.b16 %v3918
          %v4408 = vunpack.c.h.b16 %v3918
          %v4409 = vunpack.c.l.b16 %v3919
          %v4410 = vunpack.c.h.b16 %v3919
          %v4411 = vunpack.c.l.b16 %v3920
          %v4412 = vunpack.c.h.b16 %v3920
          %v4413 = vunpack.c.l.b16 %v3921
          %v4414 = vunpack.c.h.b16 %v3921
          %v4415 = vunpack.c.l.b16 %v3922
          %v4416 = vunpack.c.h.b16 %v3922
          %v4417 = vunpack.c.l.b16 %v3923
          %v4418 = vunpack.c.h.b16 %v3923
          %v4419 = vunpack.c.l.b16 %v3924
          %v4420 = vunpack.c.h.b16 %v3924
          %v4421 = vunpack.c.l.b16 %v3925
          %v4422 = vunpack.c.h.b16 %v3925
          %v4423 = vunpack.c.l.b16 %v3926
          %v4424 = vunpack.c.h.b16 %v3926
          %v4425 = vunpack.c.l.b16 %v3927
          %v4426 = vunpack.c.h.b16 %v3927
          %v4427 = vunpack.c.l.b16 %v3928
          %v4428 = vunpack.c.h.b16 %v3928
          %v4429 = vunpack.c.l.b16 %v3929
          %v4430 = vunpack.c.h.b16 %v3929
          %v4431 = vunpack.c.l.b16 %v3930
          %v4432 = vunpack.c.h.b16 %v3930
          %v4433 = vunpack.c.l.b16 %v3931
          %v4434 = vunpack.c.h.b16 %v3931
          %v4435 = vunpack.c.l.b16 %v3932
          %v4436 = vunpack.c.h.b16 %v3932
          %v4437 = vunpack.c.l.b16 %v3933
          %v4438 = vunpack.c.h.b16 %v3933
          %v4439 = vunpack.c.l.b16 %v3934
          %v4440 = vunpack.c.h.b16 %v3934
          %v4441 = vunpack.c.l.b16 %v3935
          %v4442 = vunpack.c.h.b16 %v3935
          %v4443 = vunpack.c.l.b16 %v3936
          %v4444 = vunpack.c.h.b16 %v3936
          %v4445 = vunpack.c.l.b16 %v3937
          %v4446 = vunpack.c.h.b16 %v3937
          %v4447 = vunpack.c.l.b16 %v3938
          %v4448 = vunpack.c.h.b16 %v3938
          %v4449 = vunpack.c.l.b16 %v3939
          %v4450 = vunpack.c.h.b16 %v3939
          %v4451 = vunpack.c.l.b16 %v3940
          %v4452 = vunpack.c.h.b16 %v3940
          %v4453 = vunpack.c.l.b16 %v3941
          %v4454 = vunpack.c.h.b16 %v3941
          %v4455 = vunpack.c.l.b16 %v3942
          %v4456 = vunpack.c.h.b16 %v3942
          %v4457 = vunpack.c.l.b16 %v3943
          %v4458 = vunpack.c.h.b16 %v3943
          %v4459 = vunpack.c.l.b16 %v3944
          %v4460 = vunpack.c.h.b16 %v3944
          %v4461 = vunpack.c.l.b16 %v3945
          %v4462 = vunpack.c.h.b16 %v3945
          %v4463 = vunpack.c.l.b16 %v3946
          %v4464 = vunpack.c.h.b16 %v3946
          %v4465 = vunpack.c.l.b16 %v3947
          %v4466 = vunpack.c.h.b16 %v3947
          %v4467 = vunpack.c.l.b16 %v3948
          %v4468 = vunpack.c.h.b16 %v3948
          %v4469 = vunpack.c.l.b16 %v3949
          %v4470 = vunpack.c.h.b16 %v3949
          %v4471 = vunpack.c.l.b16 %v3950
          %v4472 = vunpack.c.h.b16 %v3950
          %v4473 = vunpack.c.l.b16 %v3951
          %v4474 = vunpack.c.h.b16 %v3951
          %v4475 = vunpack.c.l.b16 %v3952
          %v4476 = vunpack.c.h.b16 %v3952
          %v4477 = vunpack.c.l.b16 %v3953
          %v4478 = vunpack.c.h.b16 %v3953
          %v4479 = vunpack.c.l.b16 %v3954
          %v4480 = vunpack.c.h.b16 %v3954
          %v4481 = vunpack.c.l.b16 %v3955
          %v4482 = vunpack.c.h.b16 %v3955
          %v4483 = vunpack.c.l.b16 %v3956
          %v4484 = vunpack.c.h.b16 %v3956
          %v4485 = vunpack.c.l.b16 %v3957
          %v4486 = vunpack.c.h.b16 %v3957
          %v4487 = vunpack.c.l.b16 %v3958
          %v4488 = vunpack.c.h.b16 %v3958
          %v4489 = vunpack.c.l.b16 %v3959
          %v4490 = vunpack.c.h.b16 %v3959
          %v4491 = vunpack.c.l.b16 %v3960
          %v4492 = vunpack.c.h.b16 %v3960
          %v4493 = vunpack.c.l.b16 %v3961
          %v4494 = vunpack.c.h.b16 %v3961
          %v4495 = vunpack.c.l.b16 %v3962
          %v4496 = vunpack.c.h.b16 %v3962
          %v4497 = vunpack.c.l.b16 %v3963
          %v4498 = vunpack.c.h.b16 %v3963
          %v4499 = vunpack.c.l.b16 %v3964
          %v4500 = vunpack.c.h.b16 %v3964
          %v4501 = vunpack.c.l.b16 %v3965
          %v4502 = vunpack.c.h.b16 %v3965
          %v4503 = vunpack.c.l.b16 %v3966
          %v4504 = vunpack.c.h.b16 %v3966
          %v4505 = vunpack.c.l.b16 %v3967
          %v4506 = vunpack.c.h.b16 %v3967
          %v4507 = vunpack.c.l.b16 %v3968
          %v4508 = vunpack.c.h.b16 %v3968
          %v4509 = vunpack.c.l.b16 %v3969
          %v4510 = vunpack.c.h.b16 %v3969
          %v4511 = vunpack.c.l.b16 %v3970
          %v4512 = vunpack.c.h.b16 %v3970
          %v4513 = vunpack.c.l.b16 %v3971
          %v4514 = vunpack.c.h.b16 %v3971
          %v4515 = vunpack.c.l.b16 %v3972
          %v4516 = vunpack.c.h.b16 %v3972
          %v4517 = vunpack.c.l.b16 %v3973
          %v4518 = vunpack.c.h.b16 %v3973
          %v4519 = vunpack.c.l.b16 %v3974
          %v4520 = vunpack.c.h.b16 %v3974
          %v4521 = vunpack.c.l.b16 %v3975
          %v4522 = vunpack.c.h.b16 %v3975
          %v4523 = vunpack.c.l.b16 %v3976
          %v4524 = vunpack.c.h.b16 %v3976
          %v4525 = vunpack.c.l.b16 %v3977
          %v4526 = vunpack.c.h.b16 %v3977
          %v4527 = vunpack.c.l.b16 %v3978
          %v4528 = vunpack.c.h.b16 %v3978
          %v4529 = vunpack.c.l.b16 %v3979
          %v4530 = vunpack.c.h.b16 %v3979
          %v4531 = vunpack.c.l.b16 %v3980
          %v4532 = vunpack.c.h.b16 %v3980
          %v4533 = vunpack.c.l.b16 %v3981
          %v4534 = vunpack.c.h.b16 %v3981
          %v4535 = vunpack.c.l.b16 %v3982
          %v4536 = vunpack.c.h.b16 %v3982
          %v4537 = vunpack.c.l.b16 %v3983
          %v4538 = vunpack.c.h.b16 %v3983
          %v4539 = vunpack.c.l.b16 %v3984
          %v4540 = vunpack.c.h.b16 %v3984
          %v4541 = vunpack.c.l.b16 %v3985
          %v4542 = vunpack.c.h.b16 %v3985
          %v4543 = vunpack.c.l.b16 %v3986
          %v4544 = vunpack.c.h.b16 %v3986
          %v4545 = vunpack.c.l.b16 %v3987
          %v4546 = vunpack.c.h.b16 %v3987
          %v4547 = vunpack.c.l.b16 %v3988
          %v4548 = vunpack.c.h.b16 %v3988
          %v4549 = vunpack.c.l.b16 %v3989
          %v4550 = vunpack.c.h.b16 %v3989
          %v4551 = vunpack.c.l.b16 %v3990
          %v4552 = vunpack.c.h.b16 %v3990
          %v4553 = vunpack.c.l.b16 %v3991
          %v4554 = vunpack.c.h.b16 %v3991
          %v4555 = vunpack.c.l.b16 %v3992
          %v4556 = vunpack.c.h.b16 %v3992
          %v4557 = vunpack.c.l.b16 %v3993
          %v4558 = vunpack.c.h.b16 %v3993
          %v4559 = vunpack.c.l.b16 %v3994
          %v4560 = vunpack.c.h.b16 %v3994
          %v4561 = vunpack.c.l.b16 %v3995
          %v4562 = vunpack.c.h.b16 %v3995
          %v4563 = vunpack.c.l.b16 %v3996
          %v4564 = vunpack.c.h.b16 %v3996
          %v4565 = vunpack.c.l.b16 %v3997
          %v4566 = vunpack.c.h.b16 %v3997
          %v4567 = vunpack.c.l.b16 %v3998
          %v4568 = vunpack.c.h.b16 %v3998
          %v4569 = vunpack.c.l.b16 %v3999
          %v4570 = vunpack.c.h.b16 %v3999
          %v4571 = vunpack.c.l.b16 %v4000
          %v4572 = vunpack.c.h.b16 %v4000
          %v4573 = vunpack.c.l.b16 %v4001
          %v4574 = vunpack.c.h.b16 %v4001
          %v4575 = vunpack.c.l.b16 %v4002
          %v4576 = vunpack.c.h.b16 %v4002
          %v4577 = vunpack.c.l.b16 %v4003
          %v4578 = vunpack.c.h.b16 %v4003
          %v4579 = vunpack.c.l.b16 %v4004
          %v4580 = vunpack.c.h.b16 %v4004
          %v4581 = vunpack.c.l.b16 %v4005
          %v4582 = vunpack.c.h.b16 %v4005
          %v4583 = vunpack.c.l.b16 %v4006
          %v4584 = vunpack.c.h.b16 %v4006
          %v4585 = vunpack.c.l.b16 %v4007
          %v4586 = vunpack.c.h.b16 %v4007
          %v4587 = vunpack.c.l.b16 %v4008
          %v4588 = vunpack.c.h.b16 %v4008
          %v4589 = vunpack.c.l.b16 %v4009
          %v4590 = vunpack.c.h.b16 %v4009
          %v4591 = vunpack.c.l.b16 %v4010
          %v4592 = vunpack.c.h.b16 %v4010
          %v4593 = vunpack.c.l.b16 %v4011
          %v4594 = vunpack.c.h.b16 %v4011
          %v4595 = vunpack.c.l.b16 %v4012
          %v4596 = vunpack.c.h.b16 %v4012
          %v4597 = vunpack.c.l.b16 %v4013
          %v4598 = vunpack.c.h.b16 %v4013
          %v4599 = vunpack.c.l.b16 %v4014
          %v4600 = vunpack.c.h.b16 %v4014
          %v4601 = vunpack.c.l.b16 %v4015
          %v4602 = vunpack.c.h.b16 %v4015
          %v4603 = vunpack.c.l.b16 %v4016
          %v4604 = vunpack.c.h.b16 %v4016
          %v4605 = vunpack.c.l.b16 %v4017
          %v4606 = vunpack.c.h.b16 %v4017
          %v4607 = vunpack.c.l.b16 %v4018
          %v4608 = vunpack.c.h.b16 %v4018
          %v4609 = vunpack.c.l.b16 %v4019
          %v4610 = vunpack.c.h.b16 %v4019
          %v4611 = vunpack.c.l.b16 %v4020
          %v4612 = vunpack.c.h.b16 %v4020
          %v4613 = vunpack.c.l.b16 %v4021
          %v4614 = vunpack.c.h.b16 %v4021
          %v4615 = vunpack.c.l.b16 %v4022
          %v4616 = vunpack.c.h.b16 %v4022
          %v4617 = vunpack.c.l.b16 %v4023
          %v4618 = vunpack.c.h.b16 %v4023
          %v4619 = vunpack.c.l.b16 %v4024
          %v4620 = vunpack.c.h.b16 %v4024
          %v4621 = vunpack.c.l.b16 %v4025
          %v4622 = vunpack.c.h.b16 %v4025
          %v4623 = vunpack.c.l.b16 %v4026
          %v4624 = vunpack.c.h.b16 %v4026
          %v4625 = vunpack.c.l.b16 %v4027
          %v4626 = vunpack.c.h.b16 %v4027
          %v4627 = vunpack.c.l.b16 %v4028
          %v4628 = vunpack.c.h.b16 %v4028
          %v4629 = vunpack.c.l.b16 %v4029
          %v4630 = vunpack.c.h.b16 %v4029
          %v4631 = vunpack.c.l.b16 %v4030
          %v4632 = vunpack.c.h.b16 %v4030
          %v4633 = vunpack.c.l.b16 %v4031
          %v4634 = vunpack.c.h.b16 %v4031
          %v4635 = vunpack.c.l.b16 %v4032
          %v4636 = vunpack.c.h.b16 %v4032
          %v4637 = vunpack.c.l.b16 %v4033
          %v4638 = vunpack.c.h.b16 %v4033
          %v4639 = vunpack.c.l.b16 %v4034
          %v4640 = vunpack.c.h.b16 %v4034
          %v4641 = vunpack.c.l.b16 %v4035
          %v4642 = vunpack.c.h.b16 %v4035
          %v4643 = vunpack.c.l.b16 %v4036
          %v4644 = vunpack.c.h.b16 %v4036
          %v4645 = vunpack.c.l.b16 %v4037
          %v4646 = vunpack.c.h.b16 %v4037
          %v4647 = vunpack.c.l.b16 %v4038
          %v4648 = vunpack.c.h.b16 %v4038
          %v4649 = vunpack.c.l.b16 %v4039
          %v4650 = vunpack.c.h.b16 %v4039
          %v4651 = vunpack.c.l.b16 %v4040
          %v4652 = vunpack.c.h.b16 %v4040
          %v4653 = vunpack.c.l.b16 %v4041
          %v4654 = vunpack.c.h.b16 %v4041
          %v4655 = vunpack.c.l.b16 %v4042
          %v4656 = vunpack.c.h.b16 %v4042
          %v4657 = vunpack.c.l.b16 %v4043
          %v4658 = vunpack.c.h.b16 %v4043
          %v4659 = vunpack.c.l.b16 %v4044
          %v4660 = vunpack.c.h.b16 %v4044
          %v4661 = vunpack.c.l.b16 %v4045
          %v4662 = vunpack.c.h.b16 %v4045
          %v4663 = vunpack.c.l.b16 %v4046
          %v4664 = vunpack.c.h.b16 %v4046
          %v4665 = vunpack.c.l.b16 %v4047
          %v4666 = vunpack.c.h.b16 %v4047
          %v4667 = vunpack.c.l.b16 %v4048
          %v4668 = vunpack.c.h.b16 %v4048
          %v4669 = vunpack.c.l.b16 %v4049
          %v4670 = vunpack.c.h.b16 %v4049
          %v4671 = vunpack.c.l.b16 %v4050
          %v4672 = vunpack.c.h.b16 %v4050
          %v4673 = vunpack.c.l.b16 %v4051
          %v4674 = vunpack.c.h.b16 %v4051
          %v4675 = vunpack.c.l.b16 %v4052
          %v4676 = vunpack.c.h.b16 %v4052
          %v4677 = vunpack.c.l.b16 %v4053
          %v4678 = vunpack.c.h.b16 %v4053
          %v4679 = vunpack.c.l.b16 %v4054
          %v4680 = vunpack.c.h.b16 %v4054
          %v4681 = vunpack.c.l.b16 %v4055
          %v4682 = vunpack.c.h.b16 %v4055
          %v4683 = vunpack.c.l.b16 %v4056
          %v4684 = vunpack.c.h.b16 %v4056
          %v4685 = vunpack.c.l.b16 %v4057
          %v4686 = vunpack.c.h.b16 %v4057
          %v4687 = vunpack.c.l.b16 %v4058
          %v4688 = vunpack.c.h.b16 %v4058
          %v4689 = vunpack.c.l.b16 %v4059
          %v4690 = vunpack.c.h.b16 %v4059
          %v4691 = vunpack.c.l.b16 %v4060
          %v4692 = vunpack.c.h.b16 %v4060
          %v4693 = vunpack.c.l.b16 %v4061
          %v4694 = vunpack.c.h.b16 %v4061
          %v4695 = vunpack.c.l.b16 %v4062
          %v4696 = vunpack.c.h.b16 %v4062
          %v4697 = vunpack.c.l.b16 %v4063
          %v4698 = vunpack.c.h.b16 %v4063
          %v4699 = vunpack.c.l.b16 %v4064
          %v4700 = vunpack.c.h.b16 %v4064
          %v4701 = vunpack.c.l.b16 %v4065
          %v4702 = vunpack.c.h.b16 %v4065
          %v4703 = vunpack.c.l.b16 %v4066
          %v4704 = vunpack.c.h.b16 %v4066
          %v4705 = vunpack.c.l.b16 %v4067
          %v4706 = vunpack.c.h.b16 %v4067
          %v4707 = vunpack.c.l.b16 %v4068
          %v4708 = vunpack.c.h.b16 %v4068
          %v4709 = vunpack.c.l.b16 %v4069
          %v4710 = vunpack.c.h.b16 %v4069
          %v4711 = vunpack.c.l.b16 %v4070
          %v4712 = vunpack.c.h.b16 %v4070
          %v4713 = vunpack.c.l.b16 %v4071
          %v4714 = vunpack.c.h.b16 %v4071
          %v4715 = vunpack.c.l.b16 %v4072
          %v4716 = vunpack.c.h.b16 %v4072
          %v4717 = vunpack.c.l.b16 %v4073
          %v4718 = vunpack.c.h.b16 %v4073
          %v4719 = vunpack.c.l.b16 %v4074
          %v4720 = vunpack.c.h.b16 %v4074
          %v4721 = vunpack.c.l.b16 %v4075
          %v4722 = vunpack.c.h.b16 %v4075
          %v4723 = vunpack.c.l.b16 %v4076
          %v4724 = vunpack.c.h.b16 %v4076
          %v4725 = vunpack.c.l.b16 %v4077
          %v4726 = vunpack.c.h.b16 %v4077
          %v4727 = vunpack.c.l.b16 %v4078
          %v4728 = vunpack.c.h.b16 %v4078
          %v4729 = vunpack.c.l.b16 %v4079
          %v4730 = vunpack.c.h.b16 %v4079
          %v4731 = vunpack.c.l.b16 %v4080
          %v4732 = vunpack.c.h.b16 %v4080
          %v4733 = vunpack.c.l.b16 %v4081
          %v4734 = vunpack.c.h.b16 %v4081
          %v4735 = vunpack.c.l.b16 %v4082
          %v4736 = vunpack.c.h.b16 %v4082
          %v4737 = vunpack.c.l.b16 %v4083
          %v4738 = vunpack.c.h.b16 %v4083
          %v4739 = vunpack.c.l.b16 %v4084
          %v4740 = vunpack.c.h.b16 %v4084
          %v4741 = vunpack.c.l.b16 %v4085
          %v4742 = vunpack.c.h.b16 %v4085
          %v4743 = vunpack.c.l.b16 %v4086
          %v4744 = vunpack.c.h.b16 %v4086
          %v4745 = vunpack.c.l.b16 %v4087
          %v4746 = vunpack.c.h.b16 %v4087
          %v4747 = vunpack.c.l.b16 %v4088
          %v4748 = vunpack.c.h.b16 %v4088
          %v4749 = vunpack.c.l.b16 %v4089
          %v4750 = vunpack.c.h.b16 %v4089
          %v4751 = vunpack.c.l.b16 %v4090
          %v4752 = vunpack.c.h.b16 %v4090
          %v4753 = vunpack.c.l.b16 %v4091
          %v4754 = vunpack.c.h.b16 %v4091
          %v4755 = vunpack.c.l.b16 %v4092
          %v4756 = vunpack.c.h.b16 %v4092
          %v4757 = vunpack.c.l.b16 %v4093
          %v4758 = vunpack.c.h.b16 %v4093
          %v4759 = vunpack.c.l.b16 %v4094
          %v4760 = vunpack.c.h.b16 %v4094
          %v4761 = vunpack.c.l.b16 %v4095
          %v4762 = vunpack.c.h.b16 %v4095
          %v4763 = vunpack.c.l.b16 %v4096
          %v4764 = vunpack.c.h.b16 %v4096
          %v4765 = vunpack.c.l.b16 %v4097
          %v4766 = vunpack.c.h.b16 %v4097
          %v4767 = vunpack.c.l.b16 %v4098
          %v4768 = vunpack.c.h.b16 %v4098
          %v4769 = vunpack.c.l.b16 %v4099
          %v4770 = vunpack.c.h.b16 %v4099
          %v4771 = vunpack.c.l.b16 %v4100
          %v4772 = vunpack.c.h.b16 %v4100
          %v4773 = vpack.c.b16 %v4327, %v4325
          %v4774 = vpack.c.b16 %v4328, %v4326
          %v4775 = vpack.c.b16 %v4331, %v4329
          %v4776 = vpack.c.b16 %v4332, %v4330
          %v4777 = vpack.c.b16 %v4335, %v4333
          %v4778 = vpack.c.b16 %v4336, %v4334
          %v4779 = vpack.c.b16 %v4339, %v4337
          %v4780 = vpack.c.b16 %v4340, %v4338
          %v4781 = vpack.c.b16 %v4343, %v4341
          %v4782 = vpack.c.b16 %v4344, %v4342
          %v4783 = vpack.c.b16 %v4347, %v4345
          %v4784 = vpack.c.b16 %v4348, %v4346
          %v4785 = vpack.c.b16 %v4351, %v4349
          %v4786 = vpack.c.b16 %v4352, %v4350
          %v4787 = vpack.c.b16 %v4355, %v4353
          %v4788 = vpack.c.b16 %v4356, %v4354
          %v4789 = vpack.c.b16 %v4359, %v4357
          %v4790 = vpack.c.b16 %v4360, %v4358
          %v4791 = vpack.c.b16 %v4363, %v4361
          %v4792 = vpack.c.b16 %v4364, %v4362
          %v4793 = vpack.c.b16 %v4367, %v4365
          %v4794 = vpack.c.b16 %v4368, %v4366
          %v4795 = vpack.c.b16 %v4371, %v4369
          %v4796 = vpack.c.b16 %v4372, %v4370
          %v4797 = vpack.c.b16 %v4375, %v4373
          %v4798 = vpack.c.b16 %v4376, %v4374
          %v4799 = vpack.c.b16 %v4379, %v4377
          %v4800 = vpack.c.b16 %v4380, %v4378
          %v4801 = vpack.c.b16 %v4383, %v4381
          %v4802 = vpack.c.b16 %v4384, %v4382
          %v4803 = vpack.c.b16 %v4387, %v4385
          %v4804 = vpack.c.b16 %v4388, %v4386
          %v4805 = vpack.c.b16 %v4391, %v4389
          %v4806 = vpack.c.b16 %v4392, %v4390
          %v4807 = vpack.c.b16 %v4395, %v4393
          %v4808 = vpack.c.b16 %v4396, %v4394
          %v4809 = vpack.c.b16 %v4399, %v4397
          %v4810 = vpack.c.b16 %v4400, %v4398
          %v4811 = vpack.c.b16 %v4403, %v4401
          %v4812 = vpack.c.b16 %v4404, %v4402
          %v4813 = vpack.c.b16 %v4407, %v4405
          %v4814 = vpack.c.b16 %v4408, %v4406
          %v4815 = vpack.c.b16 %v4411, %v4409
          %v4816 = vpack.c.b16 %v4412, %v4410
          %v4817 = vpack.c.b16 %v4415, %v4413
          %v4818 = vpack.c.b16 %v4416, %v4414
          %v4819 = vpack.c.b16 %v4419, %v4417
          %v4820 = vpack.c.b16 %v4420, %v4418
          %v4821 = vpack.c.b16 %v4423, %v4421
          %v4822 = vpack.c.b16 %v4424, %v4422
          %v4823 = vpack.c.b16 %v4427, %v4425
          %v4824 = vpack.c.b16 %v4428, %v4426
          %v4825 = vpack.c.b16 %v4431, %v4429
          %v4826 = vpack.c.b16 %v4432, %v4430
          %v4827 = vpack.c.b16 %v4435, %v4433
          %v4828 = vpack.c.b16 %v4436, %v4434
          %v4829 = vpack.c.b16 %v4439, %v4437
          %v4830 = vpack.c.b16 %v4440, %v4438
          %v4831 = vpack.c.b16 %v4443, %v4441
          %v4832 = vpack.c.b16 %v4444, %v4442
          %v4833 = vpack.c.b16 %v4447, %v4445
          %v4834 = vpack.c.b16 %v4448, %v4446
          %v4835 = vpack.c.b16 %v4451, %v4449
          %v4836 = vpack.c.b16 %v4452, %v4450
          %v4837 = vpack.c.b16 %v4455, %v4453
          %v4838 = vpack.c.b16 %v4456, %v4454
          %v4839 = vpack.c.b16 %v4459, %v4457
          %v4840 = vpack.c.b16 %v4460, %v4458
          %v4841 = vpack.c.b16 %v4463, %v4461
          %v4842 = vpack.c.b16 %v4464, %v4462
          %v4843 = vpack.c.b16 %v4467, %v4465
          %v4844 = vpack.c.b16 %v4468, %v4466
          %v4845 = vpack.c.b16 %v4471, %v4469
          %v4846 = vpack.c.b16 %v4472, %v4470
          %v4847 = vpack.c.b16 %v4475, %v4473
          %v4848 = vpack.c.b16 %v4476, %v4474
          %v4849 = vpack.c.b16 %v4479, %v4477
          %v4850 = vpack.c.b16 %v4480, %v4478
          %v4851 = vpack.c.b16 %v4483, %v4481
          %v4852 = vpack.c.b16 %v4484, %v4482
          %v4853 = vpack.c.b16 %v4487, %v4485
          %v4854 = vpack.c.b16 %v4488, %v4486
          %v4855 = vpack.c.b16 %v4491, %v4489
          %v4856 = vpack.c.b16 %v4492, %v4490
          %v4857 = vpack.c.b16 %v4495, %v4493
          %v4858 = vpack.c.b16 %v4496, %v4494
          %v4859 = vpack.c.b16 %v4499, %v4497
          %v4860 = vpack.c.b16 %v4500, %v4498
          %v4861 = vpack.c.b16 %v4503, %v4501
          %v4862 = vpack.c.b16 %v4504, %v4502
          %v4863 = vpack.c.b16 %v4507, %v4505
          %v4864 = vpack.c.b16 %v4508, %v4506
          %v4865 = vpack.c.b16 %v4511, %v4509
          %v4866 = vpack.c.b16 %v4512, %v4510
          %v4867 = vpack.c.b16 %v4515, %v4513
          %v4868 = vpack.c.b16 %v4516, %v4514
          %v4869 = vpack.c.b16 %v4519, %v4517
          %v4870 = vpack.c.b16 %v4520, %v4518
          %v4871 = vpack.c.b16 %v4523, %v4521
          %v4872 = vpack.c.b16 %v4524, %v4522
          %v4873 = vpack.c.b16 %v4527, %v4525
          %v4874 = vpack.c.b16 %v4528, %v4526
          %v4875 = vpack.c.b16 %v4531, %v4529
          %v4876 = vpack.c.b16 %v4532, %v4530
          %v4877 = vpack.c.b16 %v4535, %v4533
          %v4878 = vpack.c.b16 %v4536, %v4534
          %v4879 = vpack.c.b16 %v4539, %v4537
          %v4880 = vpack.c.b16 %v4540, %v4538
          %v4881 = vpack.c.b16 %v4543, %v4541
          %v4882 = vpack.c.b16 %v4544, %v4542
          %v4883 = vpack.c.b16 %v4547, %v4545
          %v4884 = vpack.c.b16 %v4548, %v4546
          %v4885 = vpack.c.b16 %v4551, %v4549
          %v4886 = vpack.c.b16 %v4552, %v4550
          %v4887 = vpack.c.b16 %v4555, %v4553
          %v4888 = vpack.c.b16 %v4556, %v4554
          %v4889 = vpack.c.b16 %v4559, %v4557
          %v4890 = vpack.c.b16 %v4560, %v4558
          %v4891 = vpack.c.b16 %v4563, %v4561
          %v4892 = vpack.c.b16 %v4564, %v4562
          %v4893 = vpack.c.b16 %v4567, %v4565
          %v4894 = vpack.c.b16 %v4568, %v4566
          %v4895 = vpack.c.b16 %v4571, %v4569
          %v4896 = vpack.c.b16 %v4572, %v4570
          %v4897 = vpack.c.b16 %v4575, %v4573
          %v4898 = vpack.c.b16 %v4576, %v4574
          %v4899 = vpack.c.b16 %v4579, %v4577
          %v4900 = vpack.c.b16 %v4580, %v4578
          %v4901 = vpack.c.b16 %v4583, %v4581
          %v4902 = vpack.c.b16 %v4584, %v4582
          %v4903 = vpack.c.b16 %v4587, %v4585
          %v4904 = vpack.c.b16 %v4588, %v4586
          %v4905 = vpack.c.b16 %v4591, %v4589
          %v4906 = vpack.c.b16 %v4592, %v4590
          %v4907 = vpack.c.b16 %v4595, %v4593
          %v4908 = vpack.c.b16 %v4596, %v4594
          %v4909 = vpack.c.b16 %v4599, %v4597
          %v4910 = vpack.c.b16 %v4600, %v4598
          %v4911 = vpack.c.b16 %v4603, %v4601
          %v4912 = vpack.c.b16 %v4604, %v4602
          %v4913 = vpack.c.b16 %v4607, %v4605
          %v4914 = vpack.c.b16 %v4608, %v4606
          %v4915 = vpack.c.b16 %v4611, %v4609
          %v4916 = vpack.c.b16 %v4612, %v4610
          %v4917 = vpack.c.b16 %v4615, %v4613
          %v4918 = vpack.c.b16 %v4616, %v4614
          %v4919 = vpack.c.b16 %v4619, %v4617
          %v4920 = vpack.c.b16 %v4620, %v4618
          %v4921 = vpack.c.b16 %v4623, %v4621
          %v4922 = vpack.c.b16 %v4624, %v4622
          %v4923 = vpack.c.b16 %v4627, %v4625
          %v4924 = vpack.c.b16 %v4628, %v4626
          %v4925 = vpack.c.b16 %v4631, %v4629
          %v4926 = vpack.c.b16 %v4632, %v4630
          %v4927 = vpack.c.b16 %v4635, %v4633
          %v4928 = vpack.c.b16 %v4636, %v4634
          %v4929 = vpack.c.b16 %v4639, %v4637
          %v4930 = vpack.c.b16 %v4640, %v4638
          %v4931 = vpack.c.b16 %v4643, %v4641
          %v4932 = vpack.c.b16 %v4644, %v4642
          %v4933 = vpack.c.b16 %v4647, %v4645
          %v4934 = vpack.c.b16 %v4648, %v4646
          %v4935 = vpack.c.b16 %v4651, %v4649
          %v4936 = vpack.c.b16 %v4652, %v4650
          %v4937 = vpack.c.b16 %v4655, %v4653
          %v4938 = vpack.c.b16 %v4656, %v4654
          %v4939 = vpack.c.b16 %v4659, %v4657
          %v4940 = vpack.c.b16 %v4660, %v4658
          %v4941 = vpack.c.b16 %v4663, %v4661
          %v4942 = vpack.c.b16 %v4664, %v4662
          %v4943 = vpack.c.b16 %v4667, %v4665
          %v4944 = vpack.c.b16 %v4668, %v4666
          %v4945 = vpack.c.b16 %v4671, %v4669
          %v4946 = vpack.c.b16 %v4672, %v4670
          %v4947 = vpack.c.b16 %v4675, %v4673
          %v4948 = vpack.c.b16 %v4676, %v4674
          %v4949 = vpack.c.b16 %v4679, %v4677
          %v4950 = vpack.c.b16 %v4680, %v4678
          %v4951 = vpack.c.b16 %v4683, %v4681
          %v4952 = vpack.c.b16 %v4684, %v4682
          %v4953 = vpack.c.b16 %v4687, %v4685
          %v4954 = vpack.c.b16 %v4688, %v4686
          %v4955 = vpack.c.b16 %v4691, %v4689
          %v4956 = vpack.c.b16 %v4692, %v4690
          %v4957 = vpack.c.b16 %v4695, %v4693
          %v4958 = vpack.c.b16 %v4696, %v4694
          %v4959 = vpack.c.b16 %v4699, %v4697
          %v4960 = vpack.c.b16 %v4700, %v4698
          %v4961 = vpack.c.b16 %v4703, %v4701
          %v4962 = vpack.c.b16 %v4704, %v4702
          %v4963 = vpack.c.b16 %v4707, %v4705
          %v4964 = vpack.c.b16 %v4708, %v4706
          %v4965 = vpack.c.b16 %v4711, %v4709
          %v4966 = vpack.c.b16 %v4712, %v4710
          %v4967 = vpack.c.b16 %v4715, %v4713
          %v4968 = vpack.c.b16 %v4716, %v4714
          %v4969 = vpack.c.b16 %v4719, %v4717
          %v4970 = vpack.c.b16 %v4720, %v4718
          %v4971 = vpack.c.b16 %v4723, %v4721
          %v4972 = vpack.c.b16 %v4724, %v4722
          %v4973 = vpack.c.b16 %v4727, %v4725
          %v4974 = vpack.c.b16 %v4728, %v4726
          %v4975 = vpack.c.b16 %v4731, %v4729
          %v4976 = vpack.c.b16 %v4732, %v4730
          %v4977 = vpack.c.b16 %v4735, %v4733
          %v4978 = vpack.c.b16 %v4736, %v4734
          %v4979 = vpack.c.b16 %v4739, %v4737
          %v4980 = vpack.c.b16 %v4740, %v4738
          %v4981 = vpack.c.b16 %v4743, %v4741
          %v4982 = vpack.c.b16 %v4744, %v4742
          %v4983 = vpack.c.b16 %v4747, %v4745
          %v4984 = vpack.c.b16 %v4748, %v4746
          %v4985 = vpack.c.b16 %v4751, %v4749
          %v4986 = vpack.c.b16 %v4752, %v4750
          %v4987 = vpack.c.b16 %v4755, %v4753
          %v4988 = vpack.c.b16 %v4756, %v4754
          %v4989 = vpack.c.b16 %v4759, %v4757
          %v4990 = vpack.c.b16 %v4760, %v4758
          %v4991 = vpack.c.b16 %v4763, %v4761
          %v4992 = vpack.c.b16 %v4764, %v4762
          %v4993 = vpack.c.b16 %v4767, %v4765
          %v4994 = vpack.c.b16 %v4768, %v4766
          %v4995 = vpack.c.b16 %v4771, %v4769
          %v4996 = vpack.c.b16 %v4772, %v4770
          %5221 = vmatprep.subr.bf16.mxu0 %v4774
          %5222 = vmatpush1.bf16.msra.mxu0 %v4773
          %5223 = vmatprep.subr.bf16.mxu0 %v4776
          %5224 = vmatpush1.bf16.msra.mxu0 %v4775
          %5225 = vmatprep.subr.bf16.mxu0 %v4778
          %5226 = vmatpush1.bf16.msra.mxu0 %v4777
          %5227 = vmatprep.subr.bf16.mxu0 %v4780
          %5228 = vmatpush1.bf16.msra.mxu0 %v4779
          %5229 = vmatprep.subr.bf16.mxu0 %v4782
          %5230 = vmatpush1.bf16.msra.mxu0 %v4781
          %5231 = vmatprep.subr.bf16.mxu0 %v4784
          %5232 = vmatpush1.bf16.msra.mxu0 %v4783
          %5233 = vmatprep.subr.bf16.mxu0 %v4786
          %5234 = vmatpush1.bf16.msra.mxu0 %v4785
          %5235 = vmatprep.subr.bf16.mxu0 %v4788
          %5236 = vmatpush1.bf16.msra.mxu0 %v4787
          %5237 = vmatprep.subr.bf16.mxu0 %v4790
          %5238 = vmatpush1.bf16.msra.mxu0 %v4789
          %5239 = vmatprep.subr.bf16.mxu0 %v4792
          %5240 = vmatpush1.bf16.msra.mxu0 %v4791
          %5241 = vmatprep.subr.bf16.mxu0 %v4794
          %5242 = vmatpush1.bf16.msra.mxu0 %v4793
          %5243 = vmatprep.subr.bf16.mxu0 %v4796
          %5244 = vmatpush1.bf16.msra.mxu0 %v4795
          %5245 = vmatprep.subr.bf16.mxu0 %v4798
          %5246 = vmatpush1.bf16.msra.mxu0 %v4797
          %5247 = vmatprep.subr.bf16.mxu0 %v4800
          %5248 = vmatpush1.bf16.msra.mxu0 %v4799
          %5249 = vmatprep.subr.bf16.mxu0 %v4802
          %5250 = vmatpush1.bf16.msra.mxu0 %v4801
          %5251 = vmatprep.subr.bf16.mxu0 %v4804
          %5252 = vmatpush1.bf16.msra.mxu0 %v4803
          %5253 = vmatprep.mubr.bf16.mxu0 %v1591
          %5254 = vmatmul.mubr.bf16.gmra.mrb[0].mxu0 %v1590
          %v5255 = vpop.f32.mrb[0].mxu0
          %v5256 = vadd.f32 0.0, %v5255
          %v5257 = vpop.f32.mrb[0].mxu0
          %v5258 = vadd.f32 0.0, %v5257
          %v5259 = vpop.f32.mrb[0].mxu0
          %v5260 = vadd.f32 0.0, %v5259
          %v5261 = vpop.f32.mrb[0].mxu0
          %v5262 = vadd.f32 0.0, %v5261
          %5263 = vmatprep.mubr.bf16.mxu0 %v1605
          %5264 = vmatmul.mubr.bf16.gmra.mrb[0].mxu0 %v1604
          %v5265 = vpop.f32.mrb[0].mxu0
          %v5266 = vadd.f32 0.0, %v5265
          %v5267 = vpop.f32.mrb[0].mxu0
          %v5268 = vadd.f32 0.0, %v5267
          %v5269 = vpop.f32.mrb[0].mxu0
          %v5270 = vadd.f32 0.0, %v5269
          %v5271 = vpop.f32.mrb[0].mxu0
          %v5272 = vadd.f32 0.0, %v5271
          %5273 = vmatprep.mubr.bf16.mxu0 %v1619
          %5274 = vmatmul.mubr.bf16.gmra.mrb[0].mxu0 %v1618
          %v5275 = vpop.f32.mrb[0].mxu0
          %v5276 = vadd.f32 0.0, %v5275
          %v5277 = vpop.f32.mrb[0].mxu0
          %v5278 = vadd.f32 0.0, %v5277
          %v5279 = vpop.f32.mrb[0].mxu0
          %v5280 = vadd.f32 0.0, %v5279
          %v5281 = vpop.f32.mrb[0].mxu0
          %v5282 = vadd.f32 0.0, %v5281
          %5283 = vmatprep.mubr.bf16.mxu0 %v1633
          %5284 = vmatmul.mubr.bf16.gmra.mrb[0].mxu0 %v1632
          %v5285 = vpop.f32.mrb[0].mxu0
          %v5286 = vadd.f32 0.0, %v5285
          %v5287 = vpop.f32.mrb[0].mxu0
          %v5288 = vadd.f32 0.0, %v5287
          %v5289 = vpop.f32.mrb[0].mxu0
          %v5290 = vadd.f32 0.0, %v5289
          %v5291 = vpop.f32.mrb[0].mxu0
          %v5292 = vadd.f32 0.0, %v5291
          %5293 = vmatprep.mubr.bf16.mxu0 %v1647
          %5294 = vmatmul.mubr.bf16.gmra.mrb[0].mxu0 %v1646
          %v5295 = vpop.f32.mrb[0].mxu0
          %v5296 = vadd.f32 0.0, %v5295
          %v5297 = vpop.f32.mrb[0].mxu0
          %v5298 = vadd.f32 0.0, %v5297
          %v5299 = vpop.f32.mrb[0].mxu0
          %v5300 = vadd.f32 0.0, %v5299
          %v5301 = vpop.f32.mrb[0].mxu0
          %v5302 = vadd.f32 0.0, %v5301
          %5303 = vmatprep.mubr.bf16.mxu0 %v1661
          %5304 = vmatmul.mubr.bf16.gmra.mrb[0].mxu0 %v1660
          %v5305 = vpop.f32.mrb[0].mxu0
          %v5306 = vadd.f32 0.0, %v5305
          %v5307 = vpop.f32.mrb[0].mxu0
          %v5308 = vadd.f32 0.0, %v5307
          %v5309 = vpop.f32.mrb[0].mxu0
          %v5310 = vadd.f32 0.0, %v5309
          %v5311 = vpop.f32.mrb[0].mxu0
          %v5312 = vadd.f32 0.0, %v5311
          %5313 = vmatprep.mubr.bf16.mxu0 %v1675
          %5314 = vmatmul.mubr.bf16.gmra.mrb[0].mxu0 %v1674
          %v5315 = vpop.f32.mrb[0].mxu0
          %v5316 = vadd.f32 0.0, %v5315
          %v5317 = vpop.f32.mrb[0].mxu0
          %v5318 = vadd.f32 0.0, %v5317
          %v5319 = vpop.f32.mrb[0].mxu0
          %v5320 = vadd.f32 0.0, %v5319
          %v5321 = vpop.f32.mrb[0].mxu0
          %v5322 = vadd.f32 0.0, %v5321
          %5323 = vmatprep.mubr.bf16.mxu0 %v1689
          %5324 = vmatmul.mubr.bf16.gmra.mrb[0].mxu0 %v1688
          %v5325 = vpop.f32.mrb[0].mxu0
          %v5326 = vadd.f32 0.0, %v5325
          %v5327 = vpop.f32.mrb[0].mxu0
          %v5328 = vadd.f32 0.0, %v5327
          %v5329 = vpop.f32.mrb[0].mxu0
          %v5330 = vadd.f32 0.0, %v5329
          %v5331 = vpop.f32.mrb[0].mxu0
          %v5332 = vadd.f32 0.0, %v5331
          %5333 = vdwg.mxu0
          %5334 = vmatprep.subr.bf16.mxu0 %v4806
          %5335 = vmatpush1.bf16.msra.mxu0 %v4805
          %5336 = vmatprep.subr.bf16.mxu0 %v4808
          %5337 = vmatpush1.bf16.msra.mxu0 %v4807
          %5338 = vmatprep.subr.bf16.mxu0 %v4810
          %5339 = vmatpush1.bf16.msra.mxu0 %v4809
          %5340 = vmatprep.subr.bf16.mxu0 %v4812
          %5341 = vmatpush1.bf16.msra.mxu0 %v4811
          %5342 = vmatprep.subr.bf16.mxu0 %v4814
          %5343 = vmatpush1.bf16.msra.mxu0 %v4813
          %5344 = vmatprep.subr.bf16.mxu0 %v4816
          %5345 = vmatpush1.bf16.msra.mxu0 %v4815
          %5346 = vmatprep.subr.bf16.mxu0 %v4818
          %5347 = vmatpush1.bf16.msra.mxu0 %v4817
          %5348 = vmatprep.subr.bf16.mxu0 %v4820
          %5349 = vmatpush1.bf16.msra.mxu0 %v4819
          %5350 = vmatprep.subr.bf16.mxu0 %v4822
          %5351 = vmatpush1.bf16.msra.mxu0 %v4821
          %5352 = vmatprep.subr.bf16.mxu0 %v4824
          %5353 = vmatpush1.bf16.msra.mxu0 %v4823
          %5354 = vmatprep.subr.bf16.mxu0 %v4826
          %5355 = vmatpush1.bf16.msra.mxu0 %v4825
          %5356 = vmatprep.subr.bf16.mxu0 %v4828
          %5357 = vmatpush1.bf16.msra.mxu0 %v4827
          %5358 = vmatprep.subr.bf16.mxu0 %v4830
          %5359 = vmatpush1.bf16.msra.mxu0 %v4829
          %5360 = vmatprep.subr.bf16.mxu0 %v4832
          %5361 = vmatpush1.bf16.msra.mxu0 %v4831
          %5362 = vmatprep.subr.bf16.mxu0 %v4834
          %5363 = vmatpush1.bf16.msra.mxu0 %v4833
          %5364 = vmatprep.subr.bf16.mxu0 %v4836
          %5365 = vmatpush1.bf16.msra.mxu0 %v4835
          %5366 = vmatprep.mubr.bf16.mxu0 %v1593
          %5367 = vmatmul.mubr.bf16.gmra.mrb[0].mxu0 %v1592
          %v5368 = vpop.f32.mrb[0].mxu0
          %v5369 = vadd.f32 %v5256, %v5368
          %v5370 = vpop.f32.mrb[0].mxu0
          %v5371 = vadd.f32 %v5258, %v5370
          %v5372 = vpop.f32.mrb[0].mxu0
          %v5373 = vadd.f32 %v5260, %v5372
          %v5374 = vpop.f32.mrb[0].mxu0
          %v5375 = vadd.f32 %v5262, %v5374
          %5376 = vmatprep.mubr.bf16.mxu0 %v1607
          %5377 = vmatmul.mubr.bf16.gmra.mrb[0].mxu0 %v1606
          %v5378 = vpop.f32.mrb[0].mxu0
          %v5379 = vadd.f32 %v5266, %v5378
          %v5380 = vpop.f32.mrb[0].mxu0
          %v5381 = vadd.f32 %v5268, %v5380
          %v5382 = vpop.f32.mrb[0].mxu0
          %v5383 = vadd.f32 %v5270, %v5382
          %v5384 = vpop.f32.mrb[0].mxu0
          %v5385 = vadd.f32 %v5272, %v5384
          %5386 = vmatprep.mubr.bf16.mxu0 %v1621
          %5387 = vmatmul.mubr.bf16.gmra.mrb[0].mxu0 %v1620
          %v5388 = vpop.f32.mrb[0].mxu0
          %v5389 = vadd.f32 %v5276, %v5388
          %v5390 = vpop.f32.mrb[0].mxu0
          %v5391 = vadd.f32 %v5278, %v5390
          %v5392 = vpop.f32.mrb[0].mxu0
          %v5393 = vadd.f32 %v5280, %v5392
          %v5394 = vpop.f32.mrb[0].mxu0
          %v5395 = vadd.f32 %v5282, %v5394
          %5396 = vmatprep.mubr.bf16.mxu0 %v1635
          %5397 = vmatmul.mubr.bf16.gmra.mrb[0].mxu0 %v1634
          %v5398 = vpop.f32.mrb[0].mxu0
          %v5399 = vadd.f32 %v5286, %v5398
          %v5400 = vpop.f32.mrb[0].mxu0
          %v5401 = vadd.f32 %v5288, %v5400
          %v5402 = vpop.f32.mrb[0].mxu0
          %v5403 = vadd.f32 %v5290, %v5402
          %v5404 = vpop.f32.mrb[0].mxu0
          %v5405 = vadd.f32 %v5292, %v5404
          %5406 = vmatprep.mubr.bf16.mxu0 %v1649
          %5407 = vmatmul.mubr.bf16.gmra.mrb[0].mxu0 %v1648
          %v5408 = vpop.f32.mrb[0].mxu0
          %v5409 = vadd.f32 %v5296, %v5408
          %v5410 = vpop.f32.mrb[0].mxu0
          %v5411 = vadd.f32 %v5298, %v5410
          %v5412 = vpop.f32.mrb[0].mxu0
          %v5413 = vadd.f32 %v5300, %v5412
          %v5414 = vpop.f32.mrb[0].mxu0
          %v5415 = vadd.f32 %v5302, %v5414
          %5416 = vmatprep.mubr.bf16.mxu0 %v1663
          %5417 = vmatmul.mubr.bf16.gmra.mrb[0].mxu0 %v1662
          %v5418 = vpop.f32.mrb[0].mxu0
          %v5419 = vadd.f32 %v5306, %v5418
          %v5420 = vpop.f32.mrb[0].mxu0
          %v5421 = vadd.f32 %v5308, %v5420
          %v5422 = vpop.f32.mrb[0].mxu0
          %v5423 = vadd.f32 %v5310, %v5422
          %v5424 = vpop.f32.mrb[0].mxu0
          %v5425 = vadd.f32 %v5312, %v5424
          %5426 = vmatprep.mubr.bf16.mxu0 %v1677
          %5427 = vmatmul.mubr.bf16.gmra.mrb[0].mxu0 %v1676
          %v5428 = vpop.f32.mrb[0].mxu0
          %v5429 = vadd.f32 %v5316, %v5428
          %v5430 = vpop.f32.mrb[0].mxu0
          %v5431 = vadd.f32 %v5318, %v5430
          %v5432 = vpop.f32.mrb[0].mxu0
          %v5433 = vadd.f32 %v5320, %v5432
          %v5434 = vpop.f32.mrb[0].mxu0
          %v5435 = vadd.f32 %v5322, %v5434
          %5436 = vmatprep.mubr.bf16.mxu0 %v1691
          %5437 = vmatmul.mubr.bf16.gmra.mrb[0].mxu0 %v1690
          %v5438 = vpop.f32.mrb[0].mxu0
          %v5439 = vadd.f32 %v5326, %v5438
          %v5440 = vpop.f32.mrb[0].mxu0
          %v5441 = vadd.f32 %v5328, %v5440
          %v5442 = vpop.f32.mrb[0].mxu0
          %v5443 = vadd.f32 %v5330, %v5442
          %v5444 = vpop.f32.mrb[0].mxu0
          %v5445 = vadd.f32 %v5332, %v5444
          %5446 = vdwg.mxu0
          %5447 = vmatprep.subr.bf16.mxu0 %v4838
          %5448 = vmatpush1.bf16.msra.mxu0 %v4837
          %5449 = vmatprep.subr.bf16.mxu0 %v4840
          %5450 = vmatpush1.bf16.msra.mxu0 %v4839
          %5451 = vmatprep.subr.bf16.mxu0 %v4842
          %5452 = vmatpush1.bf16.msra.mxu0 %v4841
          %5453 = vmatprep.subr.bf16.mxu0 %v4844
          %5454 = vmatpush1.bf16.msra.mxu0 %v4843
          %5455 = vmatprep.subr.bf16.mxu0 %v4846
          %5456 = vmatpush1.bf16.msra.mxu0 %v4845
          %5457 = vmatprep.subr.bf16.mxu0 %v4848
          %5458 = vmatpush1.bf16.msra.mxu0 %v4847
          %5459 = vmatprep.subr.bf16.mxu0 %v4850
          %5460 = vmatpush1.bf16.msra.mxu0 %v4849
          %5461 = vmatprep.subr.bf16.mxu0 %v4852
          %5462 = vmatpush1.bf16.msra.mxu0 %v4851
          %5463 = vmatprep.subr.bf16.mxu0 %v4854
          %5464 = vmatpush1.bf16.msra.mxu0 %v4853
          %5465 = vmatprep.subr.bf16.mxu0 %v4856
          %5466 = vmatpush1.bf16.msra.mxu0 %v4855
          %5467 = vmatprep.subr.bf16.mxu0 %v4858
          %5468 = vmatpush1.bf16.msra.mxu0 %v4857
          %5469 = vmatprep.subr.bf16.mxu0 %v4860
          %5470 = vmatpush1.bf16.msra.mxu0 %v4859
          %5471 = vmatprep.subr.bf16.mxu0 %v4862
          %5472 = vmatpush1.bf16.msra.mxu0 %v4861
          %5473 = vmatprep.subr.bf16.mxu0 %v4864
          %5474 = vmatpush1.bf16.msra.mxu0 %v4863
          %5475 = vmatprep.subr.bf16.mxu0 %v4866
          %5476 = vmatpush1.bf16.msra.mxu0 %v4865
          %5477 = vmatprep.subr.bf16.mxu0 %v4868
          %5478 = vmatpush1.bf16.msra.mxu0 %v4867
          %5479 = vmatprep.mubr.bf16.mxu0 %v1595
          %5480 = vmatmul.mubr.bf16.gmra.mrb[0].mxu0 %v1594
          %v5481 = vpop.f32.mrb[0].mxu0
          %v5482 = vadd.f32 %v5369, %v5481
          %v5483 = vpop.f32.mrb[0].mxu0
          %v5484 = vadd.f32 %v5371, %v5483
          %v5485 = vpop.f32.mrb[0].mxu0
          %v5486 = vadd.f32 %v5373, %v5485
          %v5487 = vpop.f32.mrb[0].mxu0
          %v5488 = vadd.f32 %v5375, %v5487
          %5489 = vmatprep.mubr.bf16.mxu0 %v1609
          %5490 = vmatmul.mubr.bf16.gmra.mrb[0].mxu0 %v1608
          %v5491 = vpop.f32.mrb[0].mxu0
          %v5492 = vadd.f32 %v5379, %v5491
          %v5493 = vpop.f32.mrb[0].mxu0
          %v5494 = vadd.f32 %v5381, %v5493
          %v5495 = vpop.f32.mrb[0].mxu0
          %v5496 = vadd.f32 %v5383, %v5495
          %v5497 = vpop.f32.mrb[0].mxu0
          %v5498 = vadd.f32 %v5385, %v5497
          %5499 = vmatprep.mubr.bf16.mxu0 %v1623
          %5500 = vmatmul.mubr.bf16.gmra.mrb[0].mxu0 %v1622
          %v5501 = vpop.f32.mrb[0].mxu0
          %v5502 = vadd.f32 %v5389, %v5501
          %v5503 = vpop.f32.mrb[0].mxu0
          %v5504 = vadd.f32 %v5391, %v5503
          %v5505 = vpop.f32.mrb[0].mxu0
          %v5506 = vadd.f32 %v5393, %v5505
          %v5507 = vpop.f32.mrb[0].mxu0
          %v5508 = vadd.f32 %v5395, %v5507
          %5509 = vmatprep.mubr.bf16.mxu0 %v1637
          %5510 = vmatmul.mubr.bf16.gmra.mrb[0].mxu0 %v1636
          %v5511 = vpop.f32.mrb[0].mxu0
          %v5512 = vadd.f32 %v5399, %v5511
          %v5513 = vpop.f32.mrb[0].mxu0
          %v5514 = vadd.f32 %v5401, %v5513
          %v5515 = vpop.f32.mrb[0].mxu0
          %v5516 = vadd.f32 %v5403, %v5515
          %v5517 = vpop.f32.mrb[0].mxu0
          %v5518 = vadd.f32 %v5405, %v5517
          %5519 = vmatprep.mubr.bf16.mxu0 %v1651
          %5520 = vmatmul.mubr.bf16.gmra.mrb[0].mxu0 %v1650
          %v5521 = vpop.f32.mrb[0].mxu0
          %v5522 = vadd.f32 %v5409, %v5521
          %v5523 = vpop.f32.mrb[0].mxu0
          %v5524 = vadd.f32 %v5411, %v5523
          %v5525 = vpop.f32.mrb[0].mxu0
          %v5526 = vadd.f32 %v5413, %v5525
          %v5527 = vpop.f32.mrb[0].mxu0
          %v5528 = vadd.f32 %v5415, %v5527
          %5529 = vmatprep.mubr.bf16.mxu0 %v1665
          %5530 = vmatmul.mubr.bf16.gmra.mrb[0].mxu0 %v1664
          %v5531 = vpop.f32.mrb[0].mxu0
          %v5532 = vadd.f32 %v5419, %v5531
          %v5533 = vpop.f32.mrb[0].mxu0
          %v5534 = vadd.f32 %v5421, %v5533
          %v5535 = vpop.f32.mrb[0].mxu0
          %v5536 = vadd.f32 %v5423, %v5535
          %v5537 = vpop.f32.mrb[0].mxu0
          %v5538 = vadd.f32 %v5425, %v5537
          %5539 = vmatprep.mubr.bf16.mxu0 %v1679
          %5540 = vmatmul.mubr.bf16.gmra.mrb[0].mxu0 %v1678
          %v5541 = vpop.f32.mrb[0].mxu0
          %v5542 = vadd.f32 %v5429, %v5541
          %v5543 = vpop.f32.mrb[0].mxu0
          %v5544 = vadd.f32 %v5431, %v5543
          %v5545 = vpop.f32.mrb[0].mxu0
          %v5546 = vadd.f32 %v5433, %v5545
          %v5547 = vpop.f32.mrb[0].mxu0
          %v5548 = vadd.f32 %v5435, %v5547
          %5549 = vmatprep.mubr.bf16.mxu0 %v1693
          %5550 = vmatmul.mubr.bf16.gmra.mrb[0].mxu0 %v1692
          %v5551 = vpop.f32.mrb[0].mxu0
          %v5552 = vadd.f32 %v5439, %v5551
          %v5553 = vpop.f32.mrb[0].mxu0
          %v5554 = vadd.f32 %v5441, %v5553
          %v5555 = vpop.f32.mrb[0].mxu0
          %v5556 = vadd.f32 %v5443, %v5555
          %v5557 = vpop.f32.mrb[0].mxu0
          %v5558 = vadd.f32 %v5445, %v5557
          %5559 = vdwg.mxu0
          %5560 = vmatprep.subr.bf16.mxu0 %v4870
          %5561 = vmatpush1.bf16.msra.mxu0 %v4869
          %5562 = vmatprep.subr.bf16.mxu0 %v4872
          %5563 = vmatpush1.bf16.msra.mxu0 %v4871
          %5564 = vmatprep.subr.bf16.mxu0 %v4874
          %5565 = vmatpush1.bf16.msra.mxu0 %v4873
          %5566 = vmatprep.subr.bf16.mxu0 %v4876
          %5567 = vmatpush1.bf16.msra.mxu0 %v4875
          %5568 = vmatprep.subr.bf16.mxu0 %v4878
          %5569 = vmatpush1.bf16.msra.mxu0 %v4877
          %5570 = vmatprep.subr.bf16.mxu0 %v4880
          %5571 = vmatpush1.bf16.msra.mxu0 %v4879
          %5572 = vmatprep.subr.bf16.mxu0 %v4882
          %5573 = vmatpush1.bf16.msra.mxu0 %v4881
          %5574 = vmatprep.subr.bf16.mxu0 %v4884
          %5575 = vmatpush1.bf16.msra.mxu0 %v4883
          %5576 = vmatprep.subr.bf16.mxu0 %v4886
          %5577 = vmatpush1.bf16.msra.mxu0 %v4885
          %5578 = vmatprep.subr.bf16.mxu0 %v4888
          %5579 = vmatpush1.bf16.msra.mxu0 %v4887
          %5580 = vmatprep.subr.bf16.mxu0 %v4890
          %5581 = vmatpush1.bf16.msra.mxu0 %v4889
          %5582 = vmatprep.subr.bf16.mxu0 %v4892
          %5583 = vmatpush1.bf16.msra.mxu0 %v4891
          %5584 = vmatprep.subr.bf16.mxu0 %v4894
          %5585 = vmatpush1.bf16.msra.mxu0 %v4893
          %5586 = vmatprep.subr.bf16.mxu0 %v4896
          %5587 = vmatpush1.bf16.msra.mxu0 %v4895
          %5588 = vmatprep.subr.bf16.mxu0 %v4898
          %5589 = vmatpush1.bf16.msra.mxu0 %v4897
          %5590 = vmatprep.subr.bf16.mxu0 %v4900
          %5591 = vmatpush1.bf16.msra.mxu0 %v4899
          %5592 = vmatprep.mubr.bf16.mxu0 %v1597
          %5593 = vmatmul.mubr.bf16.gmra.mrb[0].mxu0 %v1596
          %v5594 = vpop.f32.mrb[0].mxu0
          %v5595 = vadd.f32 %v5482, %v5594
          %v5596 = vpop.f32.mrb[0].mxu0
          %v5597 = vadd.f32 %v5484, %v5596
          %v5598 = vpop.f32.mrb[0].mxu0
          %v5599 = vadd.f32 %v5486, %v5598
          %v5600 = vpop.f32.mrb[0].mxu0
          %v5601 = vadd.f32 %v5488, %v5600
          %5602 = vmatprep.mubr.bf16.mxu0 %v1611
          %5603 = vmatmul.mubr.bf16.gmra.mrb[0].mxu0 %v1610
          %v5604 = vpop.f32.mrb[0].mxu0
          %v5605 = vadd.f32 %v5492, %v5604
          %v5606 = vpop.f32.mrb[0].mxu0
          %v5607 = vadd.f32 %v5494, %v5606
          %v5608 = vpop.f32.mrb[0].mxu0
          %v5609 = vadd.f32 %v5496, %v5608
          %v5610 = vpop.f32.mrb[0].mxu0
          %v5611 = vadd.f32 %v5498, %v5610
          %5612 = vmatprep.mubr.bf16.mxu0 %v1625
          %5613 = vmatmul.mubr.bf16.gmra.mrb[0].mxu0 %v1624
          %v5614 = vpop.f32.mrb[0].mxu0
          %v5615 = vadd.f32 %v5502, %v5614
          %v5616 = vpop.f32.mrb[0].mxu0
          %v5617 = vadd.f32 %v5504, %v5616
          %v5618 = vpop.f32.mrb[0].mxu0
          %v5619 = vadd.f32 %v5506, %v5618
          %v5620 = vpop.f32.mrb[0].mxu0
          %v5621 = vadd.f32 %v5508, %v5620
          %5622 = vmatprep.mubr.bf16.mxu0 %v1639
          %5623 = vmatmul.mubr.bf16.gmra.mrb[0].mxu0 %v1638
          %v5624 = vpop.f32.mrb[0].mxu0
          %v5625 = vadd.f32 %v5512, %v5624
          %v5626 = vpop.f32.mrb[0].mxu0
          %v5627 = vadd.f32 %v5514, %v5626
          %v5628 = vpop.f32.mrb[0].mxu0
          %v5629 = vadd.f32 %v5516, %v5628
          %v5630 = vpop.f32.mrb[0].mxu0
          %v5631 = vadd.f32 %v5518, %v5630
          %5632 = vmatprep.mubr.bf16.mxu0 %v1653
          %5633 = vmatmul.mubr.bf16.gmra.mrb[0].mxu0 %v1652
          %v5634 = vpop.f32.mrb[0].mxu0
          %v5635 = vadd.f32 %v5522, %v5634
          %v5636 = vpop.f32.mrb[0].mxu0
          %v5637 = vadd.f32 %v5524, %v5636
          %v5638 = vpop.f32.mrb[0].mxu0
          %v5639 = vadd.f32 %v5526, %v5638
          %v5640 = vpop.f32.mrb[0].mxu0
          %v5641 = vadd.f32 %v5528, %v5640
          %5642 = vmatprep.mubr.bf16.mxu0 %v1667
          %5643 = vmatmul.mubr.bf16.gmra.mrb[0].mxu0 %v1666
          %v5644 = vpop.f32.mrb[0].mxu0
          %v5645 = vadd.f32 %v5532, %v5644
          %v5646 = vpop.f32.mrb[0].mxu0
          %v5647 = vadd.f32 %v5534, %v5646
          %v5648 = vpop.f32.mrb[0].mxu0
          %v5649 = vadd.f32 %v5536, %v5648
          %v5650 = vpop.f32.mrb[0].mxu0
          %v5651 = vadd.f32 %v5538, %v5650
          %5652 = vmatprep.mubr.bf16.mxu0 %v1681
          %5653 = vmatmul.mubr.bf16.gmra.mrb[0].mxu0 %v1680
          %v5654 = vpop.f32.mrb[0].mxu0
          %v5655 = vadd.f32 %v5542, %v5654
          %v5656 = vpop.f32.mrb[0].mxu0
          %v5657 = vadd.f32 %v5544, %v5656
          %v5658 = vpop.f32.mrb[0].mxu0
          %v5659 = vadd.f32 %v5546, %v5658
          %v5660 = vpop.f32.mrb[0].mxu0
          %v5661 = vadd.f32 %v5548, %v5660
          %5662 = vmatprep.mubr.bf16.mxu0 %v1695
          %5663 = vmatmul.mubr.bf16.gmra.mrb[0].mxu0 %v1694
          %v5664 = vpop.f32.mrb[0].mxu0
          %v5665 = vadd.f32 %v5552, %v5664
          %v5666 = vpop.f32.mrb[0].mxu0
          %v5667 = vadd.f32 %v5554, %v5666
          %v5668 = vpop.f32.mrb[0].mxu0
          %v5669 = vadd.f32 %v5556, %v5668
          %v5670 = vpop.f32.mrb[0].mxu0
          %v5671 = vadd.f32 %v5558, %v5670
          %5672 = vdwg.mxu0
          %5673 = vmatprep.subr.bf16.mxu0 %v4902
          %5674 = vmatpush1.bf16.msra.mxu0 %v4901
          %5675 = vmatprep.subr.bf16.mxu0 %v4904
          %5676 = vmatpush1.bf16.msra.mxu0 %v4903
          %5677 = vmatprep.subr.bf16.mxu0 %v4906
          %5678 = vmatpush1.bf16.msra.mxu0 %v4905
          %5679 = vmatprep.subr.bf16.mxu0 %v4908
          %5680 = vmatpush1.bf16.msra.mxu0 %v4907
          %5681 = vmatprep.subr.bf16.mxu0 %v4910
          %5682 = vmatpush1.bf16.msra.mxu0 %v4909
          %5683 = vmatprep.subr.bf16.mxu0 %v4912
          %5684 = vmatpush1.bf16.msra.mxu0 %v4911
          %5685 = vmatprep.subr.bf16.mxu0 %v4914
          %5686 = vmatpush1.bf16.msra.mxu0 %v4913
          %5687 = vmatprep.subr.bf16.mxu0 %v4916
          %5688 = vmatpush1.bf16.msra.mxu0 %v4915
          %5689 = vmatprep.subr.bf16.mxu0 %v4918
          %5690 = vmatpush1.bf16.msra.mxu0 %v4917
          %5691 = vmatprep.subr.bf16.mxu0 %v4920
          %5692 = vmatpush1.bf16.msra.mxu0 %v4919
          %5693 = vmatprep.subr.bf16.mxu0 %v4922
          %5694 = vmatpush1.bf16.msra.mxu0 %v4921
          %5695 = vmatprep.subr.bf16.mxu0 %v4924
          %5696 = vmatpush1.bf16.msra.mxu0 %v4923
          %5697 = vmatprep.subr.bf16.mxu0 %v4926
          %5698 = vmatpush1.bf16.msra.mxu0 %v4925
          %5699 = vmatprep.subr.bf16.mxu0 %v4928
          %5700 = vmatpush1.bf16.msra.mxu0 %v4927
          %5701 = vmatprep.subr.bf16.mxu0 %v4930
          %5702 = vmatpush1.bf16.msra.mxu0 %v4929
          %5703 = vmatprep.subr.bf16.mxu0 %v4932
          %5704 = vmatpush1.bf16.msra.mxu0 %v4931
          %5705 = vmatprep.mubr.bf16.mxu0 %v1599
          %5706 = vmatmul.mubr.bf16.gmra.mrb[0].mxu0 %v1598
          %v5707 = vpop.f32.mrb[0].mxu0
          %v5708 = vadd.f32 %v5595, %v5707
          %v5709 = vpop.f32.mrb[0].mxu0
          %v5710 = vadd.f32 %v5597, %v5709
          %v5711 = vpop.f32.mrb[0].mxu0
          %v5712 = vadd.f32 %v5599, %v5711
          %v5713 = vpop.f32.mrb[0].mxu0
          %v5714 = vadd.f32 %v5601, %v5713
          %5715 = vmatprep.mubr.bf16.mxu0 %v1613
          %5716 = vmatmul.mubr.bf16.gmra.mrb[0].mxu0 %v1612
          %v5717 = vpop.f32.mrb[0].mxu0
          %v5718 = vadd.f32 %v5605, %v5717
          %v5719 = vpop.f32.mrb[0].mxu0
          %v5720 = vadd.f32 %v5607, %v5719
          %v5721 = vpop.f32.mrb[0].mxu0
          %v5722 = vadd.f32 %v5609, %v5721
          %v5723 = vpop.f32.mrb[0].mxu0
          %v5724 = vadd.f32 %v5611, %v5723
          %5725 = vmatprep.mubr.bf16.mxu0 %v1627
          %5726 = vmatmul.mubr.bf16.gmra.mrb[0].mxu0 %v1626
          %v5727 = vpop.f32.mrb[0].mxu0
          %v5728 = vadd.f32 %v5615, %v5727
          %v5729 = vpop.f32.mrb[0].mxu0
          %v5730 = vadd.f32 %v5617, %v5729
          %v5731 = vpop.f32.mrb[0].mxu0
          %v5732 = vadd.f32 %v5619, %v5731
          %v5733 = vpop.f32.mrb[0].mxu0
          %v5734 = vadd.f32 %v5621, %v5733
          %5735 = vmatprep.mubr.bf16.mxu0 %v1641
          %5736 = vmatmul.mubr.bf16.gmra.mrb[0].mxu0 %v1640
          %v5737 = vpop.f32.mrb[0].mxu0
          %v5738 = vadd.f32 %v5625, %v5737
          %v5739 = vpop.f32.mrb[0].mxu0
          %v5740 = vadd.f32 %v5627, %v5739
          %v5741 = vpop.f32.mrb[0].mxu0
          %v5742 = vadd.f32 %v5629, %v5741
          %v5743 = vpop.f32.mrb[0].mxu0
          %v5744 = vadd.f32 %v5631, %v5743
          %5745 = vmatprep.mubr.bf16.mxu0 %v1655
          %5746 = vmatmul.mubr.bf16.gmra.mrb[0].mxu0 %v1654
          %v5747 = vpop.f32.mrb[0].mxu0
          %v5748 = vadd.f32 %v5635, %v5747
          %v5749 = vpop.f32.mrb[0].mxu0
          %v5750 = vadd.f32 %v5637, %v5749
          %v5751 = vpop.f32.mrb[0].mxu0
          %v5752 = vadd.f32 %v5639, %v5751
          %v5753 = vpop.f32.mrb[0].mxu0
          %v5754 = vadd.f32 %v5641, %v5753
          %5755 = vmatprep.mubr.bf16.mxu0 %v1669
          %5756 = vmatmul.mubr.bf16.gmra.mrb[0].mxu0 %v1668
          %v5757 = vpop.f32.mrb[0].mxu0
          %v5758 = vadd.f32 %v5645, %v5757
          %v5759 = vpop.f32.mrb[0].mxu0
          %v5760 = vadd.f32 %v5647, %v5759
          %v5761 = vpop.f32.mrb[0].mxu0
          %v5762 = vadd.f32 %v5649, %v5761
          %v5763 = vpop.f32.mrb[0].mxu0
          %v5764 = vadd.f32 %v5651, %v5763
          %5765 = vmatprep.mubr.bf16.mxu0 %v1683
          %5766 = vmatmul.mubr.bf16.gmra.mrb[0].mxu0 %v1682
          %v5767 = vpop.f32.mrb[0].mxu0
          %v5768 = vadd.f32 %v5655, %v5767
          %v5769 = vpop.f32.mrb[0].mxu0
          %v5770 = vadd.f32 %v5657, %v5769
          %v5771 = vpop.f32.mrb[0].mxu0
          %v5772 = vadd.f32 %v5659, %v5771
          %v5773 = vpop.f32.mrb[0].mxu0
          %v5774 = vadd.f32 %v5661, %v5773
          %5775 = vmatprep.mubr.bf16.mxu0 %v1697
          %5776 = vmatmul.mubr.bf16.gmra.mrb[0].mxu0 %v1696
          %v5777 = vpop.f32.mrb[0].mxu0
          %v5778 = vadd.f32 %v5665, %v5777
          %v5779 = vpop.f32.mrb[0].mxu0
          %v5780 = vadd.f32 %v5667, %v5779
          %v5781 = vpop.f32.mrb[0].mxu0
          %v5782 = vadd.f32 %v5669, %v5781
          %v5783 = vpop.f32.mrb[0].mxu0
          %v5784 = vadd.f32 %v5671, %v5783
          %5785 = vdwg.mxu0
          %5786 = vmatprep.subr.bf16.mxu0 %v4934
          %5787 = vmatpush1.bf16.msra.mxu0 %v4933
          %5788 = vmatprep.subr.bf16.mxu0 %v4936
          %5789 = vmatpush1.bf16.msra.mxu0 %v4935
          %5790 = vmatprep.subr.bf16.mxu0 %v4938
          %5791 = vmatpush1.bf16.msra.mxu0 %v4937
          %5792 = vmatprep.subr.bf16.mxu0 %v4940
          %5793 = vmatpush1.bf16.msra.mxu0 %v4939
          %5794 = vmatprep.subr.bf16.mxu0 %v4942
          %5795 = vmatpush1.bf16.msra.mxu0 %v4941
          %5796 = vmatprep.subr.bf16.mxu0 %v4944
          %5797 = vmatpush1.bf16.msra.mxu0 %v4943
          %5798 = vmatprep.subr.bf16.mxu0 %v4946
          %5799 = vmatpush1.bf16.msra.mxu0 %v4945
          %5800 = vmatprep.subr.bf16.mxu0 %v4948
          %5801 = vmatpush1.bf16.msra.mxu0 %v4947
          %5802 = vmatprep.subr.bf16.mxu0 %v4950
          %5803 = vmatpush1.bf16.msra.mxu0 %v4949
          %5804 = vmatprep.subr.bf16.mxu0 %v4952
          %5805 = vmatpush1.bf16.msra.mxu0 %v4951
          %5806 = vmatprep.subr.bf16.mxu0 %v4954
          %5807 = vmatpush1.bf16.msra.mxu0 %v4953
          %5808 = vmatprep.subr.bf16.mxu0 %v4956
          %5809 = vmatpush1.bf16.msra.mxu0 %v4955
          %5810 = vmatprep.subr.bf16.mxu0 %v4958
          %5811 = vmatpush1.bf16.msra.mxu0 %v4957
          %5812 = vmatprep.subr.bf16.mxu0 %v4960
          %5813 = vmatpush1.bf16.msra.mxu0 %v4959
          %5814 = vmatprep.subr.bf16.mxu0 %v4962
          %5815 = vmatpush1.bf16.msra.mxu0 %v4961
          %5816 = vmatprep.subr.bf16.mxu0 %v4964
          %5817 = vmatpush1.bf16.msra.mxu0 %v4963
          %5818 = vmatprep.mubr.bf16.mxu0 %v1601
          %5819 = vmatmul.mubr.bf16.gmra.mrb[0].mxu0 %v1600
          %v5820 = vpop.f32.mrb[0].mxu0
          %v5821 = vadd.f32 %v5708, %v5820
          %v5822 = vpop.f32.mrb[0].mxu0
          %v5823 = vadd.f32 %v5710, %v5822
          %v5824 = vpop.f32.mrb[0].mxu0
          %v5825 = vadd.f32 %v5712, %v5824
          %v5826 = vpop.f32.mrb[0].mxu0
          %v5827 = vadd.f32 %v5714, %v5826
          %5828 = vmatprep.mubr.bf16.mxu0 %v1615
          %5829 = vmatmul.mubr.bf16.gmra.mrb[0].mxu0 %v1614
          %v5830 = vpop.f32.mrb[0].mxu0
          %v5831 = vadd.f32 %v5718, %v5830
          %v5832 = vpop.f32.mrb[0].mxu0
          %v5833 = vadd.f32 %v5720, %v5832
          %v5834 = vpop.f32.mrb[0].mxu0
          %v5835 = vadd.f32 %v5722, %v5834
          %v5836 = vpop.f32.mrb[0].mxu0
          %v5837 = vadd.f32 %v5724, %v5836
          %5838 = vmatprep.mubr.bf16.mxu0 %v1629
          %5839 = vmatmul.mubr.bf16.gmra.mrb[0].mxu0 %v1628
          %v5840 = vpop.f32.mrb[0].mxu0
          %v5841 = vadd.f32 %v5728, %v5840
          %v5842 = vpop.f32.mrb[0].mxu0
          %v5843 = vadd.f32 %v5730, %v5842
          %v5844 = vpop.f32.mrb[0].mxu0
          %v5845 = vadd.f32 %v5732, %v5844
          %v5846 = vpop.f32.mrb[0].mxu0
          %v5847 = vadd.f32 %v5734, %v5846
          %5848 = vmatprep.mubr.bf16.mxu0 %v1643
          %5849 = vmatmul.mubr.bf16.gmra.mrb[0].mxu0 %v1642
          %v5850 = vpop.f32.mrb[0].mxu0
          %v5851 = vadd.f32 %v5738, %v5850
          %v5852 = vpop.f32.mrb[0].mxu0
          %v5853 = vadd.f32 %v5740, %v5852
          %v5854 = vpop.f32.mrb[0].mxu0
          %v5855 = vadd.f32 %v5742, %v5854
          %v5856 = vpop.f32.mrb[0].mxu0
          %v5857 = vadd.f32 %v5744, %v5856
          %5858 = vmatprep.mubr.bf16.mxu0 %v1657
          %5859 = vmatmul.mubr.bf16.gmra.mrb[0].mxu0 %v1656
          %v5860 = vpop.f32.mrb[0].mxu0
          %v5861 = vadd.f32 %v5748, %v5860
          %v5862 = vpop.f32.mrb[0].mxu0
          %v5863 = vadd.f32 %v5750, %v5862
          %v5864 = vpop.f32.mrb[0].mxu0
          %v5865 = vadd.f32 %v5752, %v5864
          %v5866 = vpop.f32.mrb[0].mxu0
          %v5867 = vadd.f32 %v5754, %v5866
          %5868 = vmatprep.mubr.bf16.mxu0 %v1671
          %5869 = vmatmul.mubr.bf16.gmra.mrb[0].mxu0 %v1670
          %v5870 = vpop.f32.mrb[0].mxu0
          %v5871 = vadd.f32 %v5758, %v5870
          %v5872 = vpop.f32.mrb[0].mxu0
          %v5873 = vadd.f32 %v5760, %v5872
          %v5874 = vpop.f32.mrb[0].mxu0
          %v5875 = vadd.f32 %v5762, %v5874
          %v5876 = vpop.f32.mrb[0].mxu0
          %v5877 = vadd.f32 %v5764, %v5876
          %5878 = vmatprep.mubr.bf16.mxu0 %v1685
          %5879 = vmatmul.mubr.bf16.gmra.mrb[0].mxu0 %v1684
          %v5880 = vpop.f32.mrb[0].mxu0
          %v5881 = vadd.f32 %v5768, %v5880
          %v5882 = vpop.f32.mrb[0].mxu0
          %v5883 = vadd.f32 %v5770, %v5882
          %v5884 = vpop.f32.mrb[0].mxu0
          %v5885 = vadd.f32 %v5772, %v5884
          %v5886 = vpop.f32.mrb[0].mxu0
          %v5887 = vadd.f32 %v5774, %v5886
          %5888 = vmatprep.mubr.bf16.mxu0 %v1699
          %5889 = vmatmul.mubr.bf16.gmra.mrb[0].mxu0 %v1698
          %v5890 = vpop.f32.mrb[0].mxu0
          %v5891 = vadd.f32 %v5778, %v5890
          %v5892 = vpop.f32.mrb[0].mxu0
          %v5893 = vadd.f32 %v5780, %v5892
          %v5894 = vpop.f32.mrb[0].mxu0
          %v5895 = vadd.f32 %v5782, %v5894
          %v5896 = vpop.f32.mrb[0].mxu0
          %v5897 = vadd.f32 %v5784, %v5896
          %5898 = vdwg.mxu0
          %5899 = vmatprep.subr.bf16.mxu0 %v4966
          %5900 = vmatpush1.bf16.msra.mxu0 %v4965
          %5901 = vmatprep.subr.bf16.mxu0 %v4968
          %5902 = vmatpush1.bf16.msra.mxu0 %v4967
          %5903 = vmatprep.subr.bf16.mxu0 %v4970
          %5904 = vmatpush1.bf16.msra.mxu0 %v4969
          %5905 = vmatprep.subr.bf16.mxu0 %v4972
          %5906 = vmatpush1.bf16.msra.mxu0 %v4971
          %5907 = vmatprep.subr.bf16.mxu0 %v4974
          %5908 = vmatpush1.bf16.msra.mxu0 %v4973
          %5909 = vmatprep.subr.bf16.mxu0 %v4976
          %5910 = vmatpush1.bf16.msra.mxu0 %v4975
          %5911 = vmatprep.subr.bf16.mxu0 %v4978
          %5912 = vmatpush1.bf16.msra.mxu0 %v4977
          %5913 = vmatprep.subr.bf16.mxu0 %v4980
          %5914 = vmatpush1.bf16.msra.mxu0 %v4979
          %5915 = vmatprep.subr.bf16.mxu0 %v4982
          %5916 = vmatpush1.bf16.msra.mxu0 %v4981
          %5917 = vmatprep.subr.bf16.mxu0 %v4984
          %5918 = vmatpush1.bf16.msra.mxu0 %v4983
          %5919 = vmatprep.subr.bf16.mxu0 %v4986
          %5920 = vmatpush1.bf16.msra.mxu0 %v4985
          %5921 = vmatprep.subr.bf16.mxu0 %v4988
          %5922 = vmatpush1.bf16.msra.mxu0 %v4987
          %5923 = vmatprep.subr.bf16.mxu0 %v4990
          %5924 = vmatpush1.bf16.msra.mxu0 %v4989
          %5925 = vmatprep.subr.bf16.mxu0 %v4992
          %5926 = vmatpush1.bf16.msra.mxu0 %v4991
          %5927 = vmatprep.subr.bf16.mxu0 %v4994
          %5928 = vmatpush1.bf16.msra.mxu0 %v4993
          %5929 = vmatprep.subr.bf16.mxu0 %v4996
          %5930 = vmatpush1.bf16.msra.mxu0 %v4995
          %5931 = vmatprep.mubr.bf16.mxu0 %v1603
          %5932 = vmatmul.mubr.bf16.gmra.mrb[0].mxu0 %v1602
          %v5933 = vpop.f32.mrb[0].mxu0
          %v5934 = vadd.f32 %v5821, %v5933
          %v5935 = vpop.f32.mrb[0].mxu0
          %v5936 = vadd.f32 %v5823, %v5935
          %v5937 = vpop.f32.mrb[0].mxu0
          %v5938 = vadd.f32 %v5825, %v5937
          %v5939 = vpop.f32.mrb[0].mxu0
          %v5940 = vadd.f32 %v5827, %v5939
          %5941 = vmatprep.mubr.bf16.mxu0 %v1617
          %5942 = vmatmul.mubr.bf16.gmra.mrb[0].mxu0 %v1616
          %v5943 = vpop.f32.mrb[0].mxu0
          %v5944 = vadd.f32 %v5831, %v5943
          %v5945 = vpop.f32.mrb[0].mxu0
          %v5946 = vadd.f32 %v5833, %v5945
          %v5947 = vpop.f32.mrb[0].mxu0
          %v5948 = vadd.f32 %v5835, %v5947
          %v5949 = vpop.f32.mrb[0].mxu0
          %v5950 = vadd.f32 %v5837, %v5949
          %5951 = vmatprep.mubr.bf16.mxu0 %v1631
          %5952 = vmatmul.mubr.bf16.gmra.mrb[0].mxu0 %v1630
          %v5953 = vpop.f32.mrb[0].mxu0
          %v5954 = vadd.f32 %v5841, %v5953
          %v5955 = vpop.f32.mrb[0].mxu0
          %v5956 = vadd.f32 %v5843, %v5955
          %v5957 = vpop.f32.mrb[0].mxu0
          %v5958 = vadd.f32 %v5845, %v5957
          %v5959 = vpop.f32.mrb[0].mxu0
          %v5960 = vadd.f32 %v5847, %v5959
          %5961 = vmatprep.mubr.bf16.mxu0 %v1645
          %5962 = vmatmul.mubr.bf16.gmra.mrb[0].mxu0 %v1644
          %v5963 = vpop.f32.mrb[0].mxu0
          %v5964 = vadd.f32 %v5851, %v5963
          %v5965 = vpop.f32.mrb[0].mxu0
          %v5966 = vadd.f32 %v5853, %v5965
          %v5967 = vpop.f32.mrb[0].mxu0
          %v5968 = vadd.f32 %v5855, %v5967
          %v5969 = vpop.f32.mrb[0].mxu0
          %v5970 = vadd.f32 %v5857, %v5969
          %5971 = vmatprep.mubr.bf16.mxu0 %v1659
          %5972 = vmatmul.mubr.bf16.gmra.mrb[0].mxu0 %v1658
          %v5973 = vpop.f32.mrb[0].mxu0
          %v5974 = vadd.f32 %v5861, %v5973
          %v5975 = vpop.f32.mrb[0].mxu0
          %v5976 = vadd.f32 %v5863, %v5975
          %v5977 = vpop.f32.mrb[0].mxu0
          %v5978 = vadd.f32 %v5865, %v5977
          %v5979 = vpop.f32.mrb[0].mxu0
          %v5980 = vadd.f32 %v5867, %v5979
          %5981 = vmatprep.mubr.bf16.mxu0 %v1673
          %5982 = vmatmul.mubr.bf16.gmra.mrb[0].mxu0 %v1672
          %v5983 = vpop.f32.mrb[0].mxu0
          %v5984 = vadd.f32 %v5871, %v5983
          %v5985 = vpop.f32.mrb[0].mxu0
          %v5986 = vadd.f32 %v5873, %v5985
          %v5987 = vpop.f32.mrb[0].mxu0
          %v5988 = vadd.f32 %v5875, %v5987
          %v5989 = vpop.f32.mrb[0].mxu0
          %v5990 = vadd.f32 %v5877, %v5989
          %5991 = vmatprep.mubr.bf16.mxu0 %v1687
          %5992 = vmatmul.mubr.bf16.gmra.mrb[0].mxu0 %v1686
          %v5993 = vpop.f32.mrb[0].mxu0
          %v5994 = vadd.f32 %v5881, %v5993
          %v5995 = vpop.f32.mrb[0].mxu0
          %v5996 = vadd.f32 %v5883, %v5995
          %v5997 = vpop.f32.mrb[0].mxu0
          %v5998 = vadd.f32 %v5885, %v5997
          %v5999 = vpop.f32.mrb[0].mxu0
          %v6000 = vadd.f32 %v5887, %v5999
          %6001 = vmatprep.mubr.bf16.mxu0 %v1701
          %6002 = vmatmul.mubr.bf16.gmra.mrb[0].mxu0 %v1700
          %v6003 = vpop.f32.mrb[0].mxu0
          %v6004 = vadd.f32 %v5891, %v6003
          %v6005 = vpop.f32.mrb[0].mxu0
          %v6006 = vadd.f32 %v5893, %v6005
          %v6007 = vpop.f32.mrb[0].mxu0
          %v6008 = vadd.f32 %v5895, %v6007
          %v6009 = vpop.f32.mrb[0].mxu0
          %v6010 = vadd.f32 %v5897, %v6009
          %6011 = vdwg.mxu0
          %v6012 = vld [vmem:[%s7] sm:$0x3]
          %v6014 = vlaneseq
          %v6015 = vshrl.u32 %v6014, 7
          %v6016 = vsub.s32 0, %v6015
          %v6017 = vrot.slane %v6012, %v6016
          %v6018 = vlaneseq
          %v6019 = vshrl.u32 %v6018, 7
          %v6020 = vsub.s32 1, %v6019
          %v6021 = vrot.slane %v6012, %v6020
          %v6024 = vmul.f32 %v5934, %v6017
          %v6025 = vmul.f32 %v5936, %v6021
          %v6026 = vmul.f32 %v5938, %v6017
          %v6027 = vmul.f32 %v5940, %v6021
          %v6028 = vmul.f32 %v5944, %v6017
          %v6029 = vmul.f32 %v5946, %v6021
          %v6030 = vmul.f32 %v5948, %v6017
          %v6031 = vmul.f32 %v5950, %v6021
          %v6032 = vmul.f32 %v5954, %v6017
          %v6033 = vmul.f32 %v5956, %v6021
          %v6034 = vmul.f32 %v5958, %v6017
          %v6035 = vmul.f32 %v5960, %v6021
          %v6036 = vmul.f32 %v5964, %v6017
          %v6037 = vmul.f32 %v5966, %v6021
          %v6038 = vmul.f32 %v5968, %v6017
          %v6039 = vmul.f32 %v5970, %v6021
          %v6040 = vmul.f32 %v5974, %v6017
          %v6041 = vmul.f32 %v5976, %v6021
          %v6042 = vmul.f32 %v5978, %v6017
          %v6043 = vmul.f32 %v5980, %v6021
          %v6044 = vmul.f32 %v5984, %v6017
          %v6045 = vmul.f32 %v5986, %v6021
          %v6046 = vmul.f32 %v5988, %v6017
          %v6047 = vmul.f32 %v5990, %v6021
          %v6048 = vmul.f32 %v5994, %v6017
          %v6049 = vmul.f32 %v5996, %v6021
          %v6050 = vmul.f32 %v5998, %v6017
          %v6051 = vmul.f32 %v6000, %v6021
          %v6052 = vmul.f32 %v6004, %v6017
          %v6053 = vmul.f32 %v6006, %v6021
          %v6054 = vmul.f32 %v6008, %v6017
          %v6055 = vmul.f32 %v6010, %v6021
          %v6056 = vld [vmem:[%s8] sm:$0x3]
          %v6058 = vlaneseq
          %v6059 = vshrl.u32 %v6058, 7
          %v6060 = vsub.s32 0, %v6059
          %v6061 = vrot.slane %v6056, %v6060
          %v6062 = vlaneseq
          %v6063 = vshrl.u32 %v6062, 7
          %v6064 = vsub.s32 1, %v6063
          %v6065 = vrot.slane %v6056, %v6064
          %v6068 = vadd.f32 %v6024, %v6061
          %v6069 = vadd.f32 %v6025, %v6065
          %v6070 = vadd.f32 %v6026, %v6061
          %v6071 = vadd.f32 %v6027, %v6065
          %v6072 = vadd.f32 %v6028, %v6061
          %v6073 = vadd.f32 %v6029, %v6065
          %v6074 = vadd.f32 %v6030, %v6061
          %v6075 = vadd.f32 %v6031, %v6065
          %v6076 = vadd.f32 %v6032, %v6061
          %v6077 = vadd.f32 %v6033, %v6065
          %v6078 = vadd.f32 %v6034, %v6061
          %v6079 = vadd.f32 %v6035, %v6065
          %v6080 = vadd.f32 %v6036, %v6061
          %v6081 = vadd.f32 %v6037, %v6065
          %v6082 = vadd.f32 %v6038, %v6061
          %v6083 = vadd.f32 %v6039, %v6065
          %v6084 = vadd.f32 %v6040, %v6061
          %v6085 = vadd.f32 %v6041, %v6065
          %v6086 = vadd.f32 %v6042, %v6061
          %v6087 = vadd.f32 %v6043, %v6065
          %v6088 = vadd.f32 %v6044, %v6061
          %v6089 = vadd.f32 %v6045, %v6065
          %v6090 = vadd.f32 %v6046, %v6061
          %v6091 = vadd.f32 %v6047, %v6065
          %v6092 = vadd.f32 %v6048, %v6061
          %v6093 = vadd.f32 %v6049, %v6065
          %v6094 = vadd.f32 %v6050, %v6061
          %v6095 = vadd.f32 %v6051, %v6065
          %v6096 = vadd.f32 %v6052, %v6061
          %v6097 = vadd.f32 %v6053, %v6065
          %v6098 = vadd.f32 %v6054, %v6061
          %v6099 = vadd.f32 %v6055, %v6065
          %v6100 = vmax.f32 %v6068, 0.0
          %v6101 = vmax.f32 %v6069, 0.0
          %v6102 = vmax.f32 %v6070, 0.0
          %v6103 = vmax.f32 %v6071, 0.0
          %v6104 = vmax.f32 %v6072, 0.0
          %v6105 = vmax.f32 %v6073, 0.0
          %v6106 = vmax.f32 %v6074, 0.0
          %v6107 = vmax.f32 %v6075, 0.0
          %v6108 = vmax.f32 %v6076, 0.0
          %v6109 = vmax.f32 %v6077, 0.0
          %v6110 = vmax.f32 %v6078, 0.0
          %v6111 = vmax.f32 %v6079, 0.0
          %v6112 = vmax.f32 %v6080, 0.0
          %v6113 = vmax.f32 %v6081, 0.0
          %v6114 = vmax.f32 %v6082, 0.0
          %v6115 = vmax.f32 %v6083, 0.0
          %v6116 = vmax.f32 %v6084, 0.0
          %v6117 = vmax.f32 %v6085, 0.0
          %v6118 = vmax.f32 %v6086, 0.0
          %v6119 = vmax.f32 %v6087, 0.0
          %v6120 = vmax.f32 %v6088, 0.0
          %v6121 = vmax.f32 %v6089, 0.0
          %v6122 = vmax.f32 %v6090, 0.0
          %v6123 = vmax.f32 %v6091, 0.0
          %v6124 = vmax.f32 %v6092, 0.0
          %v6125 = vmax.f32 %v6093, 0.0
          %v6126 = vmax.f32 %v6094, 0.0
          %v6127 = vmax.f32 %v6095, 0.0
          %v6128 = vmax.f32 %v6096, 0.0
          %v6129 = vmax.f32 %v6097, 0.0
          %v6130 = vmax.f32 %v6098, 0.0
          %v6131 = vmax.f32 %v6099, 0.0
          %v6132 = vpack.c.bf16 %v6102, %v6100
          %v6133 = vpack.c.bf16 %v6103, %v6101
          %v6134 = vpack.c.bf16 %v6106, %v6104
          %v6135 = vpack.c.bf16 %v6107, %v6105
          %v6136 = vpack.c.bf16 %v6110, %v6108
          %v6137 = vpack.c.bf16 %v6111, %v6109
          %v6138 = vpack.c.bf16 %v6114, %v6112
          %v6139 = vpack.c.bf16 %v6115, %v6113
          %v6140 = vpack.c.bf16 %v6118, %v6116
          %v6141 = vpack.c.bf16 %v6119, %v6117
          %v6142 = vpack.c.bf16 %v6122, %v6120
          %v6143 = vpack.c.bf16 %v6123, %v6121
          %v6144 = vpack.c.bf16 %v6126, %v6124
          %v6145 = vpack.c.bf16 %v6127, %v6125
          %v6146 = vpack.c.bf16 %v6130, %v6128
          %v6147 = vpack.c.bf16 %v6131, %v6129
          %vm6164 = vcmask 1043456
          %v6165 = vrot.slane %v6132, 4
          %v6166 = vrot.slane %v6133, 4
          %v6167 = vrot.slane %v6134, 4
          %v6168 = vsel %vm6164, %v6165, %v6167
          %v6169 = vrot.slane %v6135, 4
          %v6170 = vsel %vm6164, %v6166, %v6169
          %v6171 = vrot.slane %v6136, 4
          %v6172 = vsel %vm6164, %v6167, %v6171
          %v6173 = vrot.slane %v6137, 4
          %v6174 = vsel %vm6164, %v6169, %v6173
          %v6175 = vrot.slane %v6138, 4
          %v6176 = vsel %vm6164, %v6171, %v6175
          %v6177 = vrot.slane %v6139, 4
          %v6178 = vsel %vm6164, %v6173, %v6177
          %v6179 = vrot.slane %v6140, 4
          %v6180 = vsel %vm6164, %v6175, %v6179
          %v6181 = vrot.slane %v6141, 4
          %v6182 = vsel %vm6164, %v6177, %v6181
          %v6183 = vrot.slane %v6142, 4
          %v6184 = vsel %vm6164, %v6179, %v6183
          %v6185 = vrot.slane %v6143, 4
          %v6186 = vsel %vm6164, %v6181, %v6185
          %v6187 = vrot.slane %v6144, 4
          %v6188 = vsel %vm6164, %v6183, %v6187
          %v6189 = vrot.slane %v6145, 4
          %v6190 = vsel %vm6164, %v6185, %v6189
          %v6191 = vrot.slane %v6146, 4
          %v6192 = vsel %vm6164, %v6187, %v6191
          %v6193 = vrot.slane %v6147, 4
          %v6194 = vsel %vm6164, %v6189, %v6193
          %6213 = vst [vmem:[#allocation3] sm:$0xf0] %v6165
          %vm6214 = vcmask 523268
          %6215 = vst.msk [vmem:[#allocation3 + $0x8] sm:$0xf0] %vm6214, %v6166
          %6216 = vst [vmem:[#allocation3 + $0x10] sm:$0xff] %v6168
          %6217 = vst.msk [vmem:[#allocation3 + $0x18] sm:$0xff] %vm900, %v6170
          %6218 = vst [vmem:[#allocation3 + $0x20] sm:$0xff] %v6172
          %6219 = vst.msk [vmem:[#allocation3 + $0x28] sm:$0xff] %vm900, %v6174
          %6220 = vst [vmem:[#allocation3 + $0x30] sm:$0xff] %v6176
          %6221 = vst.msk [vmem:[#allocation3 + $0x38] sm:$0xff] %vm900, %v6178
          %6222 = vst [vmem:[#allocation3 + $0x40] sm:$0xff] %v6180
          %6223 = vst.msk [vmem:[#allocation3 + $0x48] sm:$0xff] %vm900, %v6182
          %6224 = vst [vmem:[#allocation3 + $0x50] sm:$0xff] %v6184
          %6225 = vst.msk [vmem:[#allocation3 + $0x58] sm:$0xff] %vm900, %v6186
          %6226 = vst [vmem:[#allocation3 + $0x60] sm:$0xff] %v6188
          %6227 = vst.msk [vmem:[#allocation3 + $0x68] sm:$0xff] %vm900, %v6190
          %6228 = vst [vmem:[#allocation3 + $0x70] sm:$0xff] %v6192
          %6229 = vst.msk [vmem:[#allocation3 + $0x78] sm:$0xff] %vm900, %v6194
          %6230 = vst [vmem:[#allocation3 + $0x80] sm:$0xf] %v6191
          %vm6231 = vcmask 519168
          %6232 = vst.msk [vmem:[#allocation3 + $0x88] sm:$0xf] %vm6231, %v6193
          %v6233 = vld [vmem:[#allocation3] sm:$0xf8]
          %v6234 = vld [vmem:[#allocation3 + $0x8] sm:$0xf8]
          %v6235 = vld [vmem:[#allocation3 + $0x10] sm:$0xff]
          %v6236 = vld [vmem:[#allocation3 + $0x18] sm:$0xff]
          %v6237 = vld [vmem:[#allocation3 + $0x20] sm:$0xff]
          %v6238 = vld [vmem:[#allocation3 + $0x28] sm:$0xff]
          %v6239 = vld [vmem:[#allocation3 + $0x30] sm:$0xff]
          %v6240 = vld [vmem:[#allocation3 + $0x38] sm:$0xff]
          %v6241 = vld [vmem:[#allocation3 + $0x40] sm:$0xff]
          %v6242 = vld [vmem:[#allocation3 + $0x48] sm:$0xff]
          %v6243 = vld [vmem:[#allocation3 + $0x50] sm:$0xff]
          %v6244 = vld [vmem:[#allocation3 + $0x58] sm:$0xff]
          %v6245 = vld [vmem:[#allocation3 + $0x60] sm:$0xff]
          %v6246 = vld [vmem:[#allocation3 + $0x68] sm:$0xff]
          %v6247 = vld [vmem:[#allocation3 + $0x70] sm:$0xff]
          %v6248 = vld [vmem:[#allocation3 + $0x78] sm:$0xff]
          %v6249 = vld [vmem:[#allocation3 + $0x80] sm:$0xf]
          %v6250 = vld [vmem:[#allocation3 + $0x88] sm:$0xf]
          %v6251 = vld [vmem:[%s2] sm:$0xf]
          %v6252 = vld [vmem:[%s2 + $0x4] sm:$0xf]
          %v6253 = vld [vmem:[%s2 + $0x8] sm:$0xf]
          %v6254 = vld [vmem:[%s2 + $0xc] sm:$0xf]
          %v6255 = vld [vmem:[%s2 + $0x10] sm:$0xf]
          %v6256 = vld [vmem:[%s2 + $0x14] sm:$0xf]
          %v6257 = vld [vmem:[%s2 + $0x18] sm:$0xf]
          %v6258 = vld [vmem:[%s2 + $0x1c] sm:$0xf]
          %v6259 = vld [vmem:[%s2 + $0x20] sm:$0xf]
          %v6260 = vld [vmem:[%s2 + $0x24] sm:$0xf]
          %v6261 = vld [vmem:[%s2 + $0x28] sm:$0xf]
          %v6262 = vld [vmem:[%s2 + $0x2c] sm:$0xf]
          %v6263 = vld [vmem:[%s2 + $0x30] sm:$0xf]
          %v6264 = vld [vmem:[%s2 + $0x34] sm:$0xf]
          %v6265 = vld [vmem:[%s2 + $0x38] sm:$0xf]
          %v6266 = vld [vmem:[%s2 + $0x3c] sm:$0xf]
          %6268 = vset.pattern.permute.xlu0 0
          %6269 = vperm.xlu0 %6268, %v6251
          %v6270 = vpop.permute.xlu0 %6269
          %v6273 = vunpack.c.l.s4 839922192
          %v6274 = vunpack.c.0.s8 %v6273
          %v6275 = vlaneseq
          %v6276 = vshrl.u32 %v6275, 7
          %v6277 = vsub.s32 %v6274, %v6276
          %v6278 = vrot.slane %v6270, %v6277
          %6280 = vset.pattern.permute.xlu0 0
          %6281 = vperm.xlu0 %6280, %v6252
          %v6282 = vpop.permute.xlu0 %6281
          %v6285 = vunpack.c.l.s4 839922192
          %v6286 = vunpack.c.0.s8 %v6285
          %v6287 = vlaneseq
          %v6288 = vshrl.u32 %v6287, 7
          %v6289 = vsub.s32 %v6286, %v6288
          %v6290 = vrot.slane %v6282, %v6289
          %6292 = vset.pattern.permute.xlu0 0
          %6293 = vperm.xlu0 %6292, %v6253
          %v6294 = vpop.permute.xlu0 %6293
          %v6297 = vunpack.c.l.s4 839922192
          %v6298 = vunpack.c.0.s8 %v6297
          %v6299 = vlaneseq
          %v6300 = vshrl.u32 %v6299, 7
          %v6301 = vsub.s32 %v6298, %v6300
          %v6302 = vrot.slane %v6294, %v6301
          %6304 = vset.pattern.permute.xlu0 0
          %6305 = vperm.xlu0 %6304, %v6254
          %v6306 = vpop.permute.xlu0 %6305
          %v6309 = vunpack.c.l.s4 839922192
          %v6310 = vunpack.c.0.s8 %v6309
          %v6311 = vlaneseq
          %v6312 = vshrl.u32 %v6311, 7
          %v6313 = vsub.s32 %v6310, %v6312
          %v6314 = vrot.slane %v6306, %v6313
          %6316 = vset.pattern.permute.xlu0 0
          %6317 = vperm.xlu0 %6316, %v6255
          %v6318 = vpop.permute.xlu0 %6317
          %v6321 = vunpack.c.l.s4 839922192
          %v6322 = vunpack.c.0.s8 %v6321
          %v6323 = vlaneseq
          %v6324 = vshrl.u32 %v6323, 7
          %v6325 = vsub.s32 %v6322, %v6324
          %v6326 = vrot.slane %v6318, %v6325
          %6328 = vset.pattern.permute.xlu0 0
          %6329 = vperm.xlu0 %6328, %v6256
          %v6330 = vpop.permute.xlu0 %6329
          %v6333 = vunpack.c.l.s4 839922192
          %v6334 = vunpack.c.0.s8 %v6333
          %v6335 = vlaneseq
          %v6336 = vshrl.u32 %v6335, 7
          %v6337 = vsub.s32 %v6334, %v6336
          %v6338 = vrot.slane %v6330, %v6337
          %6340 = vset.pattern.permute.xlu0 0
          %6341 = vperm.xlu0 %6340, %v6257
          %v6342 = vpop.permute.xlu0 %6341
          %v6345 = vunpack.c.l.s4 839922192
          %v6346 = vunpack.c.0.s8 %v6345
          %v6347 = vlaneseq
          %v6348 = vshrl.u32 %v6347, 7
          %v6349 = vsub.s32 %v6346, %v6348
          %v6350 = vrot.slane %v6342, %v6349
          %6352 = vset.pattern.permute.xlu0 0
          %6353 = vperm.xlu0 %6352, %v6258
          %v6354 = vpop.permute.xlu0 %6353
          %v6357 = vunpack.c.l.s4 839922192
          %v6358 = vunpack.c.0.s8 %v6357
          %v6359 = vlaneseq
          %v6360 = vshrl.u32 %v6359, 7
          %v6361 = vsub.s32 %v6358, %v6360
          %v6362 = vrot.slane %v6354, %v6361
          %6364 = vset.pattern.permute.xlu0 0
          %6365 = vperm.xlu0 %6364, %v6259
          %v6366 = vpop.permute.xlu0 %6365
          %v6369 = vunpack.c.l.s4 839922192
          %v6370 = vunpack.c.0.s8 %v6369
          %v6371 = vlaneseq
          %v6372 = vshrl.u32 %v6371, 7
          %v6373 = vsub.s32 %v6370, %v6372
          %v6374 = vrot.slane %v6366, %v6373
          %6376 = vset.pattern.permute.xlu0 0
          %6377 = vperm.xlu0 %6376, %v6260
          %v6378 = vpop.permute.xlu0 %6377
          %v6381 = vunpack.c.l.s4 839922192
          %v6382 = vunpack.c.0.s8 %v6381
          %v6383 = vlaneseq
          %v6384 = vshrl.u32 %v6383, 7
          %v6385 = vsub.s32 %v6382, %v6384
          %v6386 = vrot.slane %v6378, %v6385
          %6388 = vset.pattern.permute.xlu0 0
          %6389 = vperm.xlu0 %6388, %v6261
          %v6390 = vpop.permute.xlu0 %6389
          %v6393 = vunpack.c.l.s4 839922192
          %v6394 = vunpack.c.0.s8 %v6393
          %v6395 = vlaneseq
          %v6396 = vshrl.u32 %v6395, 7
          %v6397 = vsub.s32 %v6394, %v6396
          %v6398 = vrot.slane %v6390, %v6397
          %6400 = vset.pattern.permute.xlu0 0
          %6401 = vperm.xlu0 %6400, %v6262
          %v6402 = vpop.permute.xlu0 %6401
          %v6405 = vunpack.c.l.s4 839922192
          %v6406 = vunpack.c.0.s8 %v6405
          %v6407 = vlaneseq
          %v6408 = vshrl.u32 %v6407, 7
          %v6409 = vsub.s32 %v6406, %v6408
          %v6410 = vrot.slane %v6402, %v6409
          %6412 = vset.pattern.permute.xlu0 0
          %6413 = vperm.xlu0 %6412, %v6263
          %v6414 = vpop.permute.xlu0 %6413
          %v6417 = vunpack.c.l.s4 839922192
          %v6418 = vunpack.c.0.s8 %v6417
          %v6419 = vlaneseq
          %v6420 = vshrl.u32 %v6419, 7
          %v6421 = vsub.s32 %v6418, %v6420
          %v6422 = vrot.slane %v6414, %v6421
          %6424 = vset.pattern.permute.xlu0 0
          %6425 = vperm.xlu0 %6424, %v6264
          %v6426 = vpop.permute.xlu0 %6425
          %v6429 = vunpack.c.l.s4 839922192
          %v6430 = vunpack.c.0.s8 %v6429
          %v6431 = vlaneseq
          %v6432 = vshrl.u32 %v6431, 7
          %v6433 = vsub.s32 %v6430, %v6432
          %v6434 = vrot.slane %v6426, %v6433
          %6436 = vset.pattern.permute.xlu0 0
          %6437 = vperm.xlu0 %6436, %v6265
          %v6438 = vpop.permute.xlu0 %6437
          %v6441 = vunpack.c.l.s4 839922192
          %v6442 = vunpack.c.0.s8 %v6441
          %v6443 = vlaneseq
          %v6444 = vshrl.u32 %v6443, 7
          %v6445 = vsub.s32 %v6442, %v6444
          %v6446 = vrot.slane %v6438, %v6445
          %6448 = vset.pattern.permute.xlu0 0
          %6449 = vperm.xlu0 %6448, %v6266
          %v6450 = vpop.permute.xlu0 %6449
          %v6453 = vunpack.c.l.s4 839922192
          %v6454 = vunpack.c.0.s8 %v6453
          %v6455 = vlaneseq
          %v6456 = vshrl.u32 %v6455, 7
          %v6457 = vsub.s32 %v6454, %v6456
          %v6458 = vrot.slane %v6450, %v6457
          %v6475 = vunpack.c.l.b16 %v6278
          %v6476 = vunpack.c.l.b16 %v6290
          %v6477 = vunpack.c.l.b16 %v6302
          %v6478 = vunpack.c.l.b16 %v6314
          %v6479 = vunpack.c.l.b16 %v6326
          %v6480 = vunpack.c.l.b16 %v6338
          %v6481 = vunpack.c.l.b16 %v6350
          %v6482 = vunpack.c.l.b16 %v6362
          %v6483 = vunpack.c.l.b16 %v6374
          %v6484 = vunpack.c.l.b16 %v6386
          %v6485 = vunpack.c.l.b16 %v6398
          %v6486 = vunpack.c.l.b16 %v6410
          %v6487 = vunpack.c.l.b16 %v6422
          %v6488 = vunpack.c.l.b16 %v6434
          %v6489 = vunpack.c.l.b16 %v6446
          %v6490 = vunpack.c.l.b16 %v6458
          %v6491 = vpack.c.b16 %v6476, %v6475
          %v6492 = vpack.c.b16 %v6478, %v6477
          %v6493 = vpack.c.b16 %v6480, %v6479
          %v6494 = vpack.c.b16 %v6482, %v6481
          %v6495 = vpack.c.b16 %v6484, %v6483
          %v6496 = vpack.c.b16 %v6486, %v6485
          %v6497 = vpack.c.b16 %v6488, %v6487
          %v6498 = vpack.c.b16 %v6490, %v6489
          %vm6499 = vsmask.f32 3328
          %v6501 = vshrl.u32 %v6491, 16
          %v6503 = vrot.slane %v6501, 4
          %v6504 = vshll.u32 %v6491, 16
          %v6506 = vrot.slane %v6504, 5
          %v6507 = vor.u32 %v6503, %v6506
          %v6509 = vshrl.u32 %v6492, 16
          %v6511 = vrot.slane %v6509, 4
          %v6512 = vshll.u32 %v6492, 16
          %v6514 = vrot.slane %v6512, 5
          %v6515 = vor.u32 %v6511, %v6514
          %v6516 = vsel %vm6499, %v6507, %v6515
          %v6518 = vshrl.u32 %v6493, 16
          %v6520 = vrot.slane %v6518, 4
          %v6521 = vshll.u32 %v6493, 16
          %v6523 = vrot.slane %v6521, 5
          %v6524 = vor.u32 %v6520, %v6523
          %v6525 = vsel %vm6499, %v6515, %v6524
          %v6527 = vshrl.u32 %v6494, 16
          %v6529 = vrot.slane %v6527, 4
          %v6530 = vshll.u32 %v6494, 16
          %v6532 = vrot.slane %v6530, 5
          %v6533 = vor.u32 %v6529, %v6532
          %v6534 = vsel %vm6499, %v6524, %v6533
          %v6536 = vshrl.u32 %v6495, 16
          %v6538 = vrot.slane %v6536, 4
          %v6539 = vshll.u32 %v6495, 16
          %v6541 = vrot.slane %v6539, 5
          %v6542 = vor.u32 %v6538, %v6541
          %v6543 = vsel %vm6499, %v6533, %v6542
          %v6545 = vshrl.u32 %v6496, 16
          %v6547 = vrot.slane %v6545, 4
          %v6548 = vshll.u32 %v6496, 16
          %v6550 = vrot.slane %v6548, 5
          %v6551 = vor.u32 %v6547, %v6550
          %v6552 = vsel %vm6499, %v6542, %v6551
          %v6554 = vshrl.u32 %v6497, 16
          %v6556 = vrot.slane %v6554, 4
          %v6557 = vshll.u32 %v6497, 16
          %v6559 = vrot.slane %v6557, 5
          %v6560 = vor.u32 %v6556, %v6559
          %v6561 = vsel %vm6499, %v6551, %v6560
          %v6563 = vshrl.u32 %v6498, 16
          %v6565 = vrot.slane %v6563, 4
          %v6566 = vshll.u32 %v6498, 16
          %v6568 = vrot.slane %v6566, 5
          %v6569 = vor.u32 %v6565, %v6568
          %v6570 = vsel %vm6499, %v6560, %v6569
          %v6580 = vmul.bf16 %v6233, %v6507
          %v6581 = vmul.bf16 %v6234, %v6507
          %v6582 = vmul.bf16 %v6235, %v6516
          %v6583 = vmul.bf16 %v6236, %v6516
          %v6584 = vmul.bf16 %v6237, %v6525
          %v6585 = vmul.bf16 %v6238, %v6525
          %v6586 = vmul.bf16 %v6239, %v6534
          %v6587 = vmul.bf16 %v6240, %v6534
          %v6588 = vmul.bf16 %v6241, %v6543
          %v6589 = vmul.bf16 %v6242, %v6543
          %v6590 = vmul.bf16 %v6243, %v6552
          %v6591 = vmul.bf16 %v6244, %v6552
          %v6592 = vmul.bf16 %v6245, %v6561
          %v6593 = vmul.bf16 %v6246, %v6561
          %v6594 = vmul.bf16 %v6247, %v6570
          %v6595 = vmul.bf16 %v6248, %v6570
          %v6596 = vmul.bf16 %v6249, %v6569
          %v6597 = vmul.bf16 %v6250, %v6569
          %v6598 = vld [vmem:[#allocation3] sm:$0xf0]
          %v6599 = vld [vmem:[#allocation3 + $0x8] sm:$0xf0]
          %v6600 = vld [vmem:[#allocation3 + $0x80] sm:$0x1f]
          %v6601 = vld [vmem:[#allocation3 + $0x88] sm:$0x1f]
          %s6602 = scalar_lea.vmem %s2, 64
          %v6603 = vld [vmem:[%s6602] sm:$0xf]
          %v6604 = vld [vmem:[%s6602 + $0x4] sm:$0xf]
          %v6605 = vld [vmem:[%s6602 + $0x8] sm:$0xf]
          %v6606 = vld [vmem:[%s6602 + $0xc] sm:$0xf]
          %v6607 = vld [vmem:[%s6602 + $0x10] sm:$0xf]
          %v6608 = vld [vmem:[%s6602 + $0x14] sm:$0xf]
          %v6609 = vld [vmem:[%s6602 + $0x18] sm:$0xf]
          %v6610 = vld [vmem:[%s6602 + $0x1c] sm:$0xf]
          %v6611 = vld [vmem:[%s6602 + $0x20] sm:$0xf]
          %v6612 = vld [vmem:[%s6602 + $0x24] sm:$0xf]
          %v6613 = vld [vmem:[%s6602 + $0x28] sm:$0xf]
          %v6614 = vld [vmem:[%s6602 + $0x2c] sm:$0xf]
          %v6615 = vld [vmem:[%s6602 + $0x30] sm:$0xf]
          %v6616 = vld [vmem:[%s6602 + $0x34] sm:$0xf]
          %v6617 = vld [vmem:[%s6602 + $0x38] sm:$0xf]
          %v6618 = vld [vmem:[%s6602 + $0x3c] sm:$0xf]
          %6620 = vset.pattern.permute.xlu0 0
          %6621 = vperm.xlu0 %6620, %v6603
          %v6622 = vpop.permute.xlu0 %6621
          %v6625 = vunpack.c.l.s4 839922192
          %v6626 = vunpack.c.0.s8 %v6625
          %v6627 = vlaneseq
          %v6628 = vshrl.u32 %v6627, 7
          %v6629 = vsub.s32 %v6626, %v6628
          %v6630 = vrot.slane %v6622, %v6629
          %6632 = vset.pattern.permute.xlu0 0
          %6633 = vperm.xlu0 %6632, %v6604
          %v6634 = vpop.permute.xlu0 %6633
          %v6637 = vunpack.c.l.s4 839922192
          %v6638 = vunpack.c.0.s8 %v6637
          %v6639 = vlaneseq
          %v6640 = vshrl.u32 %v6639, 7
          %v6641 = vsub.s32 %v6638, %v6640
          %v6642 = vrot.slane %v6634, %v6641
          %6644 = vset.pattern.permute.xlu0 0
          %6645 = vperm.xlu0 %6644, %v6605
          %v6646 = vpop.permute.xlu0 %6645
          %v6649 = vunpack.c.l.s4 839922192
          %v6650 = vunpack.c.0.s8 %v6649
          %v6651 = vlaneseq
          %v6652 = vshrl.u32 %v6651, 7
          %v6653 = vsub.s32 %v6650, %v6652
          %v6654 = vrot.slane %v6646, %v6653
          %6656 = vset.pattern.permute.xlu0 0
          %6657 = vperm.xlu0 %6656, %v6606
          %v6658 = vpop.permute.xlu0 %6657
          %v6661 = vunpack.c.l.s4 839922192
          %v6662 = vunpack.c.0.s8 %v6661
          %v6663 = vlaneseq
          %v6664 = vshrl.u32 %v6663, 7
          %v6665 = vsub.s32 %v6662, %v6664
          %v6666 = vrot.slane %v6658, %v6665
          %6668 = vset.pattern.permute.xlu0 0
          %6669 = vperm.xlu0 %6668, %v6607
          %v6670 = vpop.permute.xlu0 %6669
          %v6673 = vunpack.c.l.s4 839922192
          %v6674 = vunpack.c.0.s8 %v6673
          %v6675 = vlaneseq
          %v6676 = vshrl.u32 %v6675, 7
          %v6677 = vsub.s32 %v6674, %v6676
          %v6678 = vrot.slane %v6670, %v6677
          %6680 = vset.pattern.permute.xlu0 0
          %6681 = vperm.xlu0 %6680, %v6608
          %v6682 = vpop.permute.xlu0 %6681
          %v6685 = vunpack.c.l.s4 839922192
          %v6686 = vunpack.c.0.s8 %v6685
          %v6687 = vlaneseq
          %v6688 = vshrl.u32 %v6687, 7
          %v6689 = vsub.s32 %v6686, %v6688
          %v6690 = vrot.slane %v6682, %v6689
          %6692 = vset.pattern.permute.xlu0 0
          %6693 = vperm.xlu0 %6692, %v6609
          %v6694 = vpop.permute.xlu0 %6693
          %v6697 = vunpack.c.l.s4 839922192
          %v6698 = vunpack.c.0.s8 %v6697
          %v6699 = vlaneseq
          %v6700 = vshrl.u32 %v6699, 7
          %v6701 = vsub.s32 %v6698, %v6700
          %v6702 = vrot.slane %v6694, %v6701
          %6704 = vset.pattern.permute.xlu0 0
          %6705 = vperm.xlu0 %6704, %v6610
          %v6706 = vpop.permute.xlu0 %6705
          %v6709 = vunpack.c.l.s4 839922192
          %v6710 = vunpack.c.0.s8 %v6709
          %v6711 = vlaneseq
          %v6712 = vshrl.u32 %v6711, 7
          %v6713 = vsub.s32 %v6710, %v6712
          %v6714 = vrot.slane %v6706, %v6713
          %6716 = vset.pattern.permute.xlu0 0
          %6717 = vperm.xlu0 %6716, %v6611
          %v6718 = vpop.permute.xlu0 %6717
          %v6721 = vunpack.c.l.s4 839922192
          %v6722 = vunpack.c.0.s8 %v6721
          %v6723 = vlaneseq
          %v6724 = vshrl.u32 %v6723, 7
          %v6725 = vsub.s32 %v6722, %v6724
          %v6726 = vrot.slane %v6718, %v6725
          %6728 = vset.pattern.permute.xlu0 0
          %6729 = vperm.xlu0 %6728, %v6612
          %v6730 = vpop.permute.xlu0 %6729
          %v6733 = vunpack.c.l.s4 839922192
          %v6734 = vunpack.c.0.s8 %v6733
          %v6735 = vlaneseq
          %v6736 = vshrl.u32 %v6735, 7
          %v6737 = vsub.s32 %v6734, %v6736
          %v6738 = vrot.slane %v6730, %v6737
          %6740 = vset.pattern.permute.xlu0 0
          %6741 = vperm.xlu0 %6740, %v6613
          %v6742 = vpop.permute.xlu0 %6741
          %v6745 = vunpack.c.l.s4 839922192
          %v6746 = vunpack.c.0.s8 %v6745
          %v6747 = vlaneseq
          %v6748 = vshrl.u32 %v6747, 7
          %v6749 = vsub.s32 %v6746, %v6748
          %v6750 = vrot.slane %v6742, %v6749
          %6752 = vset.pattern.permute.xlu0 0
          %6753 = vperm.xlu0 %6752, %v6614
          %v6754 = vpop.permute.xlu0 %6753
          %v6757 = vunpack.c.l.s4 839922192
          %v6758 = vunpack.c.0.s8 %v6757
          %v6759 = vlaneseq
          %v6760 = vshrl.u32 %v6759, 7
          %v6761 = vsub.s32 %v6758, %v6760
          %v6762 = vrot.slane %v6754, %v6761
          %6764 = vset.pattern.permute.xlu0 0
          %6765 = vperm.xlu0 %6764, %v6615
          %v6766 = vpop.permute.xlu0 %6765
          %v6769 = vunpack.c.l.s4 839922192
          %v6770 = vunpack.c.0.s8 %v6769
          %v6771 = vlaneseq
          %v6772 = vshrl.u32 %v6771, 7
          %v6773 = vsub.s32 %v6770, %v6772
          %v6774 = vrot.slane %v6766, %v6773
          %6776 = vset.pattern.permute.xlu0 0
          %6777 = vperm.xlu0 %6776, %v6616
          %v6778 = vpop.permute.xlu0 %6777
          %v6781 = vunpack.c.l.s4 839922192
          %v6782 = vunpack.c.0.s8 %v6781
          %v6783 = vlaneseq
          %v6784 = vshrl.u32 %v6783, 7
          %v6785 = vsub.s32 %v6782, %v6784
          %v6786 = vrot.slane %v6778, %v6785
          %6788 = vset.pattern.permute.xlu0 0
          %6789 = vperm.xlu0 %6788, %v6617
          %v6790 = vpop.permute.xlu0 %6789
          %v6793 = vunpack.c.l.s4 839922192
          %v6794 = vunpack.c.0.s8 %v6793
          %v6795 = vlaneseq
          %v6796 = vshrl.u32 %v6795, 7
          %v6797 = vsub.s32 %v6794, %v6796
          %v6798 = vrot.slane %v6790, %v6797
          %6800 = vset.pattern.permute.xlu0 0
          %6801 = vperm.xlu0 %6800, %v6618
          %v6802 = vpop.permute.xlu0 %6801
          %v6805 = vunpack.c.l.s4 839922192
          %v6806 = vunpack.c.0.s8 %v6805
          %v6807 = vlaneseq
          %v6808 = vshrl.u32 %v6807, 7
          %v6809 = vsub.s32 %v6806, %v6808
          %v6810 = vrot.slane %v6802, %v6809
          %v6827 = vunpack.c.l.b16 %v6630
          %v6828 = vunpack.c.l.b16 %v6642
          %v6829 = vunpack.c.l.b16 %v6654
          %v6830 = vunpack.c.l.b16 %v6666
          %v6831 = vunpack.c.l.b16 %v6678
          %v6832 = vunpack.c.l.b16 %v6690
          %v6833 = vunpack.c.l.b16 %v6702
          %v6834 = vunpack.c.l.b16 %v6714
          %v6835 = vunpack.c.l.b16 %v6726
          %v6836 = vunpack.c.l.b16 %v6738
          %v6837 = vunpack.c.l.b16 %v6750
          %v6838 = vunpack.c.l.b16 %v6762
          %v6839 = vunpack.c.l.b16 %v6774
          %v6840 = vunpack.c.l.b16 %v6786
          %v6841 = vunpack.c.l.b16 %v6798
          %v6842 = vunpack.c.l.b16 %v6810
          %v6843 = vpack.c.b16 %v6828, %v6827
          %v6844 = vpack.c.b16 %v6830, %v6829
          %v6845 = vpack.c.b16 %v6832, %v6831
          %v6846 = vpack.c.b16 %v6834, %v6833
          %v6847 = vpack.c.b16 %v6836, %v6835
          %v6848 = vpack.c.b16 %v6838, %v6837
          %v6849 = vpack.c.b16 %v6840, %v6839
          %v6850 = vpack.c.b16 %v6842, %v6841
          %vm6851 = vsmask.f32 4352
          %v6853 = vshrl.u32 %v6843, 16
          %v6855 = vrot.slane %v6853, 3
          %v6856 = vshll.u32 %v6843, 16
          %v6858 = vrot.slane %v6856, 4
          %v6859 = vor.u32 %v6855, %v6858
          %v6861 = vshrl.u32 %v6844, 16
          %v6863 = vrot.slane %v6861, 3
          %v6864 = vshll.u32 %v6844, 16
          %v6866 = vrot.slane %v6864, 4
          %v6867 = vor.u32 %v6863, %v6866
          %v6868 = vsel %vm6851, %v6859, %v6867
          %v6870 = vshrl.u32 %v6845, 16
          %v6872 = vrot.slane %v6870, 3
          %v6873 = vshll.u32 %v6845, 16
          %v6875 = vrot.slane %v6873, 4
          %v6876 = vor.u32 %v6872, %v6875
          %v6877 = vsel %vm6851, %v6867, %v6876
          %v6879 = vshrl.u32 %v6846, 16
          %v6881 = vrot.slane %v6879, 3
          %v6882 = vshll.u32 %v6846, 16
          %v6884 = vrot.slane %v6882, 4
          %v6885 = vor.u32 %v6881, %v6884
          %v6886 = vsel %vm6851, %v6876, %v6885
          %v6888 = vshrl.u32 %v6847, 16
          %v6890 = vrot.slane %v6888, 3
          %v6891 = vshll.u32 %v6847, 16
          %v6893 = vrot.slane %v6891, 4
          %v6894 = vor.u32 %v6890, %v6893
          %v6895 = vsel %vm6851, %v6885, %v6894
          %v6897 = vshrl.u32 %v6848, 16
          %v6899 = vrot.slane %v6897, 3
          %v6900 = vshll.u32 %v6848, 16
          %v6902 = vrot.slane %v6900, 4
          %v6903 = vor.u32 %v6899, %v6902
          %v6904 = vsel %vm6851, %v6894, %v6903
          %v6906 = vshrl.u32 %v6849, 16
          %v6908 = vrot.slane %v6906, 3
          %v6909 = vshll.u32 %v6849, 16
          %v6911 = vrot.slane %v6909, 4
          %v6912 = vor.u32 %v6908, %v6911
          %v6913 = vsel %vm6851, %v6903, %v6912
          %v6915 = vshrl.u32 %v6850, 16
          %v6917 = vrot.slane %v6915, 3
          %v6918 = vshll.u32 %v6850, 16
          %v6920 = vrot.slane %v6918, 4
          %v6921 = vor.u32 %v6917, %v6920
          %v6922 = vsel %vm6851, %v6912, %v6921
          %v6932 = vmul.bf16 %v6598, %v6859
          %v6933 = vmul.bf16 %v6599, %v6859
          %v6934 = vmul.bf16 %v6235, %v6868
          %v6935 = vmul.bf16 %v6236, %v6868
          %v6936 = vmul.bf16 %v6237, %v6877
          %v6937 = vmul.bf16 %v6238, %v6877
          %v6938 = vmul.bf16 %v6239, %v6886
          %v6939 = vmul.bf16 %v6240, %v6886
          %v6940 = vmul.bf16 %v6241, %v6895
          %v6941 = vmul.bf16 %v6242, %v6895
          %v6942 = vmul.bf16 %v6243, %v6904
          %v6943 = vmul.bf16 %v6244, %v6904
          %v6944 = vmul.bf16 %v6245, %v6913
          %v6945 = vmul.bf16 %v6246, %v6913
          %v6946 = vmul.bf16 %v6247, %v6922
          %v6947 = vmul.bf16 %v6248, %v6922
          %v6948 = vmul.bf16 %v6600, %v6921
          %v6949 = vmul.bf16 %v6601, %v6921
          %v6950 = vld [vmem:[%s9] sm:$0xff]
          %v6951 = vld [vmem:[%s9 + $0x8] sm:$0xff]
          %v6952 = vld [vmem:[%s9 + $0x10] sm:$0xff]
          %v6953 = vld [vmem:[%s9 + $0x18] sm:$0xff]
          %v6954 = vld [vmem:[%s9 + $0x20] sm:$0xff]
          %v6955 = vld [vmem:[%s9 + $0x28] sm:$0xff]
          %v6956 = vld [vmem:[%s9 + $0x30] sm:$0xff]
          %v6957 = vld [vmem:[%s9 + $0x38] sm:$0xff]
          %v6958 = vld [vmem:[%s9 + $0x40] sm:$0xff]
          %v6959 = vld [vmem:[%s9 + $0x48] sm:$0xff]
          %v6960 = vld [vmem:[%s9 + $0x50] sm:$0xff]
          %v6961 = vld [vmem:[%s9 + $0x58] sm:$0xff]
          %v6962 = vld [vmem:[%s9 + $0x60] sm:$0xff]
          %v6963 = vld [vmem:[%s9 + $0x68] sm:$0xff]
          %v6964 = vld [vmem:[%s9 + $0x70] sm:$0xff]
          %v6965 = vld [vmem:[%s9 + $0x78] sm:$0xff]
          %v6966 = vld [vmem:[%s9 + $0x80] sm:$0xff]
          %v6967 = vld [vmem:[%s9 + $0x88] sm:$0xff]
          %v6968 = vld [vmem:[%s9 + $0x90] sm:$0xff]
          %v6969 = vld [vmem:[%s9 + $0x98] sm:$0xff]
          %v6970 = vld [vmem:[%s9 + $0xa0] sm:$0xff]
          %v6971 = vld [vmem:[%s9 + $0xa8] sm:$0xff]
          %v6972 = vld [vmem:[%s9 + $0xb0] sm:$0xff]
          %v6973 = vld [vmem:[%s9 + $0xb8] sm:$0xff]
          %s6974 = scalar_lea.vmem %s9, 192
          %v6975 = vld [vmem:[%s6974] sm:$0xff]
          %v6976 = vld [vmem:[%s6974 + $0x8] sm:$0xff]
          %v6977 = vld [vmem:[%s6974 + $0x10] sm:$0xff]
          %v6978 = vld [vmem:[%s6974 + $0x18] sm:$0xff]
          %v6979 = vld [vmem:[%s6974 + $0x20] sm:$0xff]
          %v6980 = vld [vmem:[%s6974 + $0x28] sm:$0xff]
          %v6981 = vld [vmem:[%s6974 + $0x30] sm:$0xff]
          %v6982 = vld [vmem:[%s6974 + $0x38] sm:$0xff]
          %v6983 = vld [vmem:[%s6974 + $0x40] sm:$0xff]
          %v6984 = vld [vmem:[%s6974 + $0x48] sm:$0xff]
          %v6985 = vld [vmem:[%s6974 + $0x50] sm:$0xff]
          %v6986 = vld [vmem:[%s6974 + $0x58] sm:$0xff]
          %v6987 = vld [vmem:[%s6974 + $0x60] sm:$0xff]
          %v6988 = vld [vmem:[%s6974 + $0x68] sm:$0xff]
          %v6989 = vld [vmem:[%s6974 + $0x70] sm:$0xff]
          %v6990 = vld [vmem:[%s6974 + $0x78] sm:$0xff]
          %v6991 = vld [vmem:[%s6974 + $0x80] sm:$0xff]
          %v6992 = vld [vmem:[%s6974 + $0x88] sm:$0xff]
          %v6993 = vld [vmem:[%s6974 + $0x90] sm:$0xff]
          %v6994 = vld [vmem:[%s6974 + $0x98] sm:$0xff]
          %v6995 = vld [vmem:[%s6974 + $0xa0] sm:$0xff]
          %v6996 = vld [vmem:[%s6974 + $0xa8] sm:$0xff]
          %v6997 = vld [vmem:[%s6974 + $0xb0] sm:$0xff]
          %v6998 = vld [vmem:[%s6974 + $0xb8] sm:$0xff]
          %v7023 = vunpack.c.l.b16 %v6975
          %v7024 = vunpack.c.h.b16 %v6975
          %v7025 = vunpack.c.l.b16 %v6976
          %v7026 = vunpack.c.h.b16 %v6976
          %v7027 = vunpack.c.l.b16 %v6977
          %v7028 = vunpack.c.h.b16 %v6977
          %v7029 = vunpack.c.l.b16 %v6978
          %v7030 = vunpack.c.h.b16 %v6978
          %v7031 = vunpack.c.l.b16 %v6979
          %v7032 = vunpack.c.h.b16 %v6979
          %v7033 = vunpack.c.l.b16 %v6980
          %v7034 = vunpack.c.h.b16 %v6980
          %v7035 = vunpack.c.l.b16 %v6981
          %v7036 = vunpack.c.h.b16 %v6981
          %v7037 = vunpack.c.l.b16 %v6982
          %v7038 = vunpack.c.h.b16 %v6982
          %v7039 = vunpack.c.l.b16 %v6983
          %v7040 = vunpack.c.h.b16 %v6983
          %v7041 = vunpack.c.l.b16 %v6984
          %v7042 = vunpack.c.h.b16 %v6984
          %v7043 = vunpack.c.l.b16 %v6985
          %v7044 = vunpack.c.h.b16 %v6985
          %v7045 = vunpack.c.l.b16 %v6986
          %v7046 = vunpack.c.h.b16 %v6986
          %v7047 = vunpack.c.l.b16 %v6987
          %v7048 = vunpack.c.h.b16 %v6987
          %v7049 = vunpack.c.l.b16 %v6988
          %v7050 = vunpack.c.h.b16 %v6988
          %v7051 = vunpack.c.l.b16 %v6989
          %v7052 = vunpack.c.h.b16 %v6989
          %v7053 = vunpack.c.l.b16 %v6990
          %v7054 = vunpack.c.h.b16 %v6990
          %v7055 = vunpack.c.l.b16 %v6991
          %v7056 = vunpack.c.h.b16 %v6991
          %v7057 = vunpack.c.l.b16 %v6992
          %v7058 = vunpack.c.h.b16 %v6992
          %v7059 = vunpack.c.l.b16 %v6993
          %v7060 = vunpack.c.h.b16 %v6993
          %v7061 = vunpack.c.l.b16 %v6994
          %v7062 = vunpack.c.h.b16 %v6994
          %v7063 = vunpack.c.l.b16 %v6995
          %v7064 = vunpack.c.h.b16 %v6995
          %v7065 = vunpack.c.l.b16 %v6996
          %v7066 = vunpack.c.h.b16 %v6996
          %v7067 = vunpack.c.l.b16 %v6997
          %v7068 = vunpack.c.h.b16 %v6997
          %v7069 = vunpack.c.l.b16 %v6998
          %v7070 = vunpack.c.h.b16 %v6998
          %v7071 = vpack.c.b16 %v7025, %v7023
          %v7072 = vpack.c.b16 %v7026, %v7024
          %v7073 = vpack.c.b16 %v7029, %v7027
          %v7074 = vpack.c.b16 %v7030, %v7028
          %v7075 = vpack.c.b16 %v7033, %v7031
          %v7076 = vpack.c.b16 %v7034, %v7032
          %v7077 = vpack.c.b16 %v7037, %v7035
          %v7078 = vpack.c.b16 %v7038, %v7036
          %v7079 = vpack.c.b16 %v7041, %v7039
          %v7080 = vpack.c.b16 %v7042, %v7040
          %v7081 = vpack.c.b16 %v7045, %v7043
          %v7082 = vpack.c.b16 %v7046, %v7044
          %v7083 = vpack.c.b16 %v7049, %v7047
          %v7084 = vpack.c.b16 %v7050, %v7048
          %v7085 = vpack.c.b16 %v7053, %v7051
          %v7086 = vpack.c.b16 %v7054, %v7052
          %v7087 = vpack.c.b16 %v7057, %v7055
          %v7088 = vpack.c.b16 %v7058, %v7056
          %v7089 = vpack.c.b16 %v7061, %v7059
          %v7090 = vpack.c.b16 %v7062, %v7060
          %v7091 = vpack.c.b16 %v7065, %v7063
          %v7092 = vpack.c.b16 %v7066, %v7064
          %v7093 = vpack.c.b16 %v7069, %v7067
          %v7094 = vpack.c.b16 %v7070, %v7068
          %v7120 = vsel %vm900, %v6133, 0
          %v7123 = vsel %vm900, %v6135, 0
          %v7126 = vsel %vm900, %v6137, 0
          %v7129 = vsel %vm900, %v6139, 0
          %v7132 = vsel %vm900, %v6141, 0
          %v7135 = vsel %vm900, %v6143, 0
          %v7138 = vsel %vm900, %v6145, 0
          %v7141 = vsel %vm900, %v6147, 0
          %7143 = vmatprep.subr.bf16.mxu0 %v7072
          %7144 = vmatpush1.bf16.msra.mxu0 %v7071
          %7145 = vmatprep.subr.bf16.mxu0 %v7074
          %7146 = vmatpush1.bf16.msra.mxu0 %v7073
          %7147 = vmatprep.subr.bf16.mxu0 %v7076
          %7148 = vmatpush1.bf16.msra.mxu0 %v7075
          %7149 = vmatprep.subr.bf16.mxu0 %v7078
          %7150 = vmatpush1.bf16.msra.mxu0 %v7077
          %7151 = vmatprep.subr.bf16.mxu0 %v7080
          %7152 = vmatpush1.bf16.msra.mxu0 %v7079
          %7153 = vmatprep.subr.bf16.mxu0 %v7082
          %7154 = vmatpush1.bf16.msra.mxu0 %v7081
          %7155 = vmatprep.subr.bf16.mxu0 %v7084
          %7156 = vmatpush1.bf16.msra.mxu0 %v7083
          %7157 = vmatprep.subr.bf16.mxu0 %v7086
          %7158 = vmatpush1.bf16.msra.mxu0 %v7085
          %7159 = vmatprep.subr.bf16.mxu0 %v7088
          %7160 = vmatpush1.bf16.msra.mxu0 %v7087
          %7161 = vmatprep.subr.bf16.mxu0 %v7090
          %7162 = vmatpush1.bf16.msra.mxu0 %v7089
          %7163 = vmatprep.subr.bf16.mxu0 %v7092
          %7164 = vmatpush1.bf16.msra.mxu0 %v7091
          %7165 = vmatprep.subr.bf16.mxu0 %v7094
          %7166 = vmatpush1.bf16.msra.mxu0 %v7093
          %7167 = vmatprep.subr.bf16.mxu0 0
          %7168 = vmatpush1.bf16.msra.mxu0 0
          %7169 = vmatprep.subr.bf16.mxu0 0
          %7170 = vmatpush1.bf16.msra.mxu0 0
          %7171 = vmatprep.subr.bf16.mxu0 0
          %7172 = vmatpush1.bf16.msra.mxu0 0
          %7173 = vmatprep.subr.bf16.mxu0 0
          %7174 = vmatpush1.bf16.msra.mxu0 0
          %7175 = vmatprep.mubr.bf16.mxu0 %v7120
          %7176 = vmatmul.mubr.bf16.gmra.mrb[0].mxu0 %v6132
          %v7177 = vpop.f32.mrb[0].mxu0
          %v7178 = vadd.f32 0.0, %v7177
          %v7179 = vpop.f32.mrb[0].mxu0
          %v7180 = vadd.f32 0.0, %v7179
          %v7181 = vpop.f32.mrb[0].mxu0
          %v7182 = vadd.f32 0.0, %v7181
          %v7183 = vpop.f32.mrb[0].mxu0
          %v7184 = vadd.f32 0.0, %v7183
          %7185 = vmatprep.mubr.bf16.mxu0 %v7123
          %7186 = vmatmul.mubr.bf16.gmra.mrb[0].mxu0 %v6134
          %v7187 = vpop.f32.mrb[0].mxu0
          %v7188 = vadd.f32 0.0, %v7187
          %v7189 = vpop.f32.mrb[0].mxu0
          %v7190 = vadd.f32 0.0, %v7189
          %v7191 = vpop.f32.mrb[0].mxu0
          %v7192 = vadd.f32 0.0, %v7191
          %v7193 = vpop.f32.mrb[0].mxu0
          %v7194 = vadd.f32 0.0, %v7193
          %7195 = vmatprep.mubr.bf16.mxu0 %v7126
          %7196 = vmatmul.mubr.bf16.gmra.mrb[0].mxu0 %v6136
          %v7197 = vpop.f32.mrb[0].mxu0
          %v7198 = vadd.f32 0.0, %v7197
          %v7199 = vpop.f32.mrb[0].mxu0
          %v7200 = vadd.f32 0.0, %v7199
          %v7201 = vpop.f32.mrb[0].mxu0
          %v7202 = vadd.f32 0.0, %v7201
          %v7203 = vpop.f32.mrb[0].mxu0
          %v7204 = vadd.f32 0.0, %v7203
          %7205 = vmatprep.mubr.bf16.mxu0 %v7129
          %7206 = vmatmul.mubr.bf16.gmra.mrb[0].mxu0 %v6138
          %v7207 = vpop.f32.mrb[0].mxu0
          %v7208 = vadd.f32 0.0, %v7207
          %v7209 = vpop.f32.mrb[0].mxu0
          %v7210 = vadd.f32 0.0, %v7209
          %v7211 = vpop.f32.mrb[0].mxu0
          %v7212 = vadd.f32 0.0, %v7211
          %v7213 = vpop.f32.mrb[0].mxu0
          %v7214 = vadd.f32 0.0, %v7213
          %7215 = vmatprep.mubr.bf16.mxu0 %v7132
          %7216 = vmatmul.mubr.bf16.gmra.mrb[0].mxu0 %v6140
          %v7217 = vpop.f32.mrb[0].mxu0
          %v7218 = vadd.f32 0.0, %v7217
          %v7219 = vpop.f32.mrb[0].mxu0
          %v7220 = vadd.f32 0.0, %v7219
          %v7221 = vpop.f32.mrb[0].mxu0
          %v7222 = vadd.f32 0.0, %v7221
          %v7223 = vpop.f32.mrb[0].mxu0
          %v7224 = vadd.f32 0.0, %v7223
          %7225 = vmatprep.mubr.bf16.mxu0 %v7135
          %7226 = vmatmul.mubr.bf16.gmra.mrb[0].mxu0 %v6142
          %v7227 = vpop.f32.mrb[0].mxu0
          %v7228 = vadd.f32 0.0, %v7227
          %v7229 = vpop.f32.mrb[0].mxu0
          %v7230 = vadd.f32 0.0, %v7229
          %v7231 = vpop.f32.mrb[0].mxu0
          %v7232 = vadd.f32 0.0, %v7231
          %v7233 = vpop.f32.mrb[0].mxu0
          %v7234 = vadd.f32 0.0, %v7233
          %7235 = vmatprep.mubr.bf16.mxu0 %v7138
          %7236 = vmatmul.mubr.bf16.gmra.mrb[0].mxu0 %v6144
          %v7237 = vpop.f32.mrb[0].mxu0
          %v7238 = vadd.f32 0.0, %v7237
          %v7239 = vpop.f32.mrb[0].mxu0
          %v7240 = vadd.f32 0.0, %v7239
          %v7241 = vpop.f32.mrb[0].mxu0
          %v7242 = vadd.f32 0.0, %v7241
          %v7243 = vpop.f32.mrb[0].mxu0
          %v7244 = vadd.f32 0.0, %v7243
          %7245 = vmatprep.mubr.bf16.mxu0 %v7141
          %7246 = vmatmul.mubr.bf16.gmra.mrb[0].mxu0 %v6146
          %v7247 = vpop.f32.mrb[0].mxu0
          %v7248 = vadd.f32 0.0, %v7247
          %v7249 = vpop.f32.mrb[0].mxu0
          %v7250 = vadd.f32 0.0, %v7249
          %v7251 = vpop.f32.mrb[0].mxu0
          %v7252 = vadd.f32 0.0, %v7251
          %v7253 = vpop.f32.mrb[0].mxu0
          %v7254 = vadd.f32 0.0, %v7253
          %7255 = vdwg.mxu0
          %v7257 = vshrl.u32 %v6580, 16
          %v7259 = vrot.slane %v7257, 3
          %v7260 = vshll.u32 %v6580, 16
          %v7262 = vrot.slane %v7260, 4
          %v7263 = vor.u32 %v7259, %v7262
          %v7265 = vshrl.u32 %v6582, 16
          %v7267 = vrot.slane %v7265, 3
          %v7268 = vshll.u32 %v6582, 16
          %v7270 = vrot.slane %v7268, 4
          %v7271 = vor.u32 %v7267, %v7270
          %v7272 = vsel %vm6851, %v7263, %v7271
          %v7274 = vshrl.u32 %v6581, 16
          %v7276 = vrot.slane %v7274, 3
          %v7277 = vshll.u32 %v6581, 16
          %v7279 = vrot.slane %v7277, 4
          %v7280 = vor.u32 %v7276, %v7279
          %v7282 = vshrl.u32 %v6583, 16
          %v7284 = vrot.slane %v7282, 3
          %v7285 = vshll.u32 %v6583, 16
          %v7287 = vrot.slane %v7285, 4
          %v7288 = vor.u32 %v7284, %v7287
          %v7289 = vsel %vm6851, %v7280, %v7288
          %v7291 = vshrl.u32 %v6584, 16
          %v7293 = vrot.slane %v7291, 3
          %v7294 = vshll.u32 %v6584, 16
          %v7296 = vrot.slane %v7294, 4
          %v7297 = vor.u32 %v7293, %v7296
          %v7298 = vsel %vm6851, %v7271, %v7297
          %v7300 = vshrl.u32 %v6585, 16
          %v7302 = vrot.slane %v7300, 3
          %v7303 = vshll.u32 %v6585, 16
          %v7305 = vrot.slane %v7303, 4
          %v7306 = vor.u32 %v7302, %v7305
          %v7307 = vsel %vm6851, %v7288, %v7306
          %v7309 = vshrl.u32 %v6586, 16
          %v7311 = vrot.slane %v7309, 3
          %v7312 = vshll.u32 %v6586, 16
          %v7314 = vrot.slane %v7312, 4
          %v7315 = vor.u32 %v7311, %v7314
          %v7316 = vsel %vm6851, %v7297, %v7315
          %v7318 = vshrl.u32 %v6587, 16
          %v7320 = vrot.slane %v7318, 3
          %v7321 = vshll.u32 %v6587, 16
          %v7323 = vrot.slane %v7321, 4
          %v7324 = vor.u32 %v7320, %v7323
          %v7325 = vsel %vm6851, %v7306, %v7324
          %v7327 = vshrl.u32 %v6588, 16
          %v7329 = vrot.slane %v7327, 3
          %v7330 = vshll.u32 %v6588, 16
          %v7332 = vrot.slane %v7330, 4
          %v7333 = vor.u32 %v7329, %v7332
          %v7334 = vsel %vm6851, %v7315, %v7333
          %v7336 = vshrl.u32 %v6589, 16
          %v7338 = vrot.slane %v7336, 3
          %v7339 = vshll.u32 %v6589, 16
          %v7341 = vrot.slane %v7339, 4
          %v7342 = vor.u32 %v7338, %v7341
          %v7343 = vsel %vm6851, %v7324, %v7342
          %v7345 = vshrl.u32 %v6590, 16
          %v7347 = vrot.slane %v7345, 3
          %v7348 = vshll.u32 %v6590, 16
          %v7350 = vrot.slane %v7348, 4
          %v7351 = vor.u32 %v7347, %v7350
          %v7352 = vsel %vm6851, %v7333, %v7351
          %v7354 = vshrl.u32 %v6591, 16
          %v7356 = vrot.slane %v7354, 3
          %v7357 = vshll.u32 %v6591, 16
          %v7359 = vrot.slane %v7357, 4
          %v7360 = vor.u32 %v7356, %v7359
          %v7361 = vsel %vm6851, %v7342, %v7360
          %v7363 = vshrl.u32 %v6592, 16
          %v7365 = vrot.slane %v7363, 3
          %v7366 = vshll.u32 %v6592, 16
          %v7368 = vrot.slane %v7366, 4
          %v7369 = vor.u32 %v7365, %v7368
          %v7370 = vsel %vm6851, %v7351, %v7369
          %v7372 = vshrl.u32 %v6593, 16
          %v7374 = vrot.slane %v7372, 3
          %v7375 = vshll.u32 %v6593, 16
          %v7377 = vrot.slane %v7375, 4
          %v7378 = vor.u32 %v7374, %v7377
          %v7379 = vsel %vm6851, %v7360, %v7378
          %v7381 = vshrl.u32 %v6594, 16
          %v7383 = vrot.slane %v7381, 3
          %v7384 = vshll.u32 %v6594, 16
          %v7386 = vrot.slane %v7384, 4
          %v7387 = vor.u32 %v7383, %v7386
          %v7388 = vsel %vm6851, %v7369, %v7387
          %v7390 = vshrl.u32 %v6595, 16
          %v7392 = vrot.slane %v7390, 3
          %v7393 = vshll.u32 %v6595, 16
          %v7395 = vrot.slane %v7393, 4
          %v7396 = vor.u32 %v7392, %v7395
          %v7397 = vsel %vm6851, %v7378, %v7396
          %v7399 = vshrl.u32 %v6596, 16
          %v7401 = vrot.slane %v7399, 3
          %v7402 = vshll.u32 %v6596, 16
          %v7404 = vrot.slane %v7402, 4
          %v7405 = vor.u32 %v7401, %v7404
          %v7406 = vsel %vm6851, %v7387, %v7405
          %v7408 = vshrl.u32 %v6597, 16
          %v7410 = vrot.slane %v7408, 3
          %v7411 = vshll.u32 %v6597, 16
          %v7413 = vrot.slane %v7411, 4
          %v7414 = vor.u32 %v7410, %v7413
          %v7415 = vsel %vm6851, %v7396, %v7414
          %v7448 = vunpack.c.l.b16 %v6950
          %v7449 = vunpack.c.h.b16 %v6950
          %v7450 = vunpack.c.l.b16 %v6951
          %v7451 = vunpack.c.h.b16 %v6951
          %v7452 = vunpack.c.l.b16 %v6952
          %v7453 = vunpack.c.h.b16 %v6952
          %v7454 = vunpack.c.l.b16 %v6953
          %v7455 = vunpack.c.h.b16 %v6953
          %v7456 = vunpack.c.l.b16 %v6954
          %v7457 = vunpack.c.h.b16 %v6954
          %v7458 = vunpack.c.l.b16 %v6955
          %v7459 = vunpack.c.h.b16 %v6955
          %v7460 = vunpack.c.l.b16 %v6956
          %v7461 = vunpack.c.h.b16 %v6956
          %v7462 = vunpack.c.l.b16 %v6957
          %v7463 = vunpack.c.h.b16 %v6957
          %v7464 = vunpack.c.l.b16 %v6958
          %v7465 = vunpack.c.h.b16 %v6958
          %v7466 = vunpack.c.l.b16 %v6959
          %v7467 = vunpack.c.h.b16 %v6959
          %v7468 = vunpack.c.l.b16 %v6960
          %v7469 = vunpack.c.h.b16 %v6960
          %v7470 = vunpack.c.l.b16 %v6961
          %v7471 = vunpack.c.h.b16 %v6961
          %v7472 = vunpack.c.l.b16 %v6962
          %v7473 = vunpack.c.h.b16 %v6962
          %v7474 = vunpack.c.l.b16 %v6963
          %v7475 = vunpack.c.h.b16 %v6963
          %v7476 = vunpack.c.l.b16 %v6964
          %v7477 = vunpack.c.h.b16 %v6964
          %v7478 = vunpack.c.l.b16 %v6965
          %v7479 = vunpack.c.h.b16 %v6965
          %v7480 = vunpack.c.l.b16 %v6966
          %v7481 = vunpack.c.h.b16 %v6966
          %v7482 = vunpack.c.l.b16 %v6967
          %v7483 = vunpack.c.h.b16 %v6967
          %v7484 = vunpack.c.l.b16 %v6968
          %v7485 = vunpack.c.h.b16 %v6968
          %v7486 = vunpack.c.l.b16 %v6969
          %v7487 = vunpack.c.h.b16 %v6969
          %v7488 = vunpack.c.l.b16 %v6970
          %v7489 = vunpack.c.h.b16 %v6970
          %v7490 = vunpack.c.l.b16 %v6971
          %v7491 = vunpack.c.h.b16 %v6971
          %v7492 = vunpack.c.l.b16 %v6972
          %v7493 = vunpack.c.h.b16 %v6972
          %v7494 = vunpack.c.l.b16 %v6973
          %v7495 = vunpack.c.h.b16 %v6973
          %v7496 = vpack.c.b16 %v7450, %v7448
          %v7497 = vpack.c.b16 %v7451, %v7449
          %v7498 = vpack.c.b16 %v7454, %v7452
          %v7499 = vpack.c.b16 %v7455, %v7453
          %v7500 = vpack.c.b16 %v7458, %v7456
          %v7501 = vpack.c.b16 %v7459, %v7457
          %v7502 = vpack.c.b16 %v7462, %v7460
          %v7503 = vpack.c.b16 %v7463, %v7461
          %v7504 = vpack.c.b16 %v7466, %v7464
          %v7505 = vpack.c.b16 %v7467, %v7465
          %v7506 = vpack.c.b16 %v7470, %v7468
          %v7507 = vpack.c.b16 %v7471, %v7469
          %v7508 = vpack.c.b16 %v7474, %v7472
          %v7509 = vpack.c.b16 %v7475, %v7473
          %v7510 = vpack.c.b16 %v7478, %v7476
          %v7511 = vpack.c.b16 %v7479, %v7477
          %v7512 = vpack.c.b16 %v7482, %v7480
          %v7513 = vpack.c.b16 %v7483, %v7481
          %v7514 = vpack.c.b16 %v7486, %v7484
          %v7515 = vpack.c.b16 %v7487, %v7485
          %v7516 = vpack.c.b16 %v7490, %v7488
          %v7517 = vpack.c.b16 %v7491, %v7489
          %v7518 = vpack.c.b16 %v7494, %v7492
          %v7519 = vpack.c.b16 %v7495, %v7493
          %v7545 = vsel %vm900, %v7289, 0
          %v7548 = vsel %vm900, %v7307, 0
          %v7551 = vsel %vm900, %v7325, 0
          %v7554 = vsel %vm900, %v7343, 0
          %v7557 = vsel %vm900, %v7361, 0
          %v7560 = vsel %vm900, %v7379, 0
          %v7563 = vsel %vm900, %v7397, 0
          %v7566 = vsel %vm900, %v7415, 0
          %7568 = vmatprep.subr.bf16.mxu0 %v7497
          %7569 = vmatpush1.bf16.msra.mxu0 %v7496
          %7570 = vmatprep.subr.bf16.mxu0 %v7499
          %7571 = vmatpush1.bf16.msra.mxu0 %v7498
          %7572 = vmatprep.subr.bf16.mxu0 %v7501
          %7573 = vmatpush1.bf16.msra.mxu0 %v7500
          %7574 = vmatprep.subr.bf16.mxu0 %v7503
          %7575 = vmatpush1.bf16.msra.mxu0 %v7502
          %7576 = vmatprep.subr.bf16.mxu0 %v7505
          %7577 = vmatpush1.bf16.msra.mxu0 %v7504
          %7578 = vmatprep.subr.bf16.mxu0 %v7507
          %7579 = vmatpush1.bf16.msra.mxu0 %v7506
          %7580 = vmatprep.subr.bf16.mxu0 %v7509
          %7581 = vmatpush1.bf16.msra.mxu0 %v7508
          %7582 = vmatprep.subr.bf16.mxu0 %v7511
          %7583 = vmatpush1.bf16.msra.mxu0 %v7510
          %7584 = vmatprep.subr.bf16.mxu0 %v7513
          %7585 = vmatpush1.bf16.msra.mxu0 %v7512
          %7586 = vmatprep.subr.bf16.mxu0 %v7515
          %7587 = vmatpush1.bf16.msra.mxu0 %v7514
          %7588 = vmatprep.subr.bf16.mxu0 %v7517
          %7589 = vmatpush1.bf16.msra.mxu0 %v7516
          %7590 = vmatprep.subr.bf16.mxu0 %v7519
          %7591 = vmatpush1.bf16.msra.mxu0 %v7518
          %7592 = vmatprep.subr.bf16.mxu0 0
          %7593 = vmatpush1.bf16.msra.mxu0 0
          %7594 = vmatprep.subr.bf16.mxu0 0
          %7595 = vmatpush1.bf16.msra.mxu0 0
          %7596 = vmatprep.subr.bf16.mxu0 0
          %7597 = vmatpush1.bf16.msra.mxu0 0
          %7598 = vmatprep.subr.bf16.mxu0 0
          %7599 = vmatpush1.bf16.msra.mxu0 0
          %7600 = vmatprep.mubr.bf16.mxu0 %v7545
          %7601 = vmatmul.mubr.bf16.gmra.mrb[0].mxu0 %v7272
          %v7602 = vpop.f32.mrb[0].mxu0
          %v7603 = vadd.f32 %v7178, %v7602
          %v7604 = vpop.f32.mrb[0].mxu0
          %v7605 = vadd.f32 %v7180, %v7604
          %v7606 = vpop.f32.mrb[0].mxu0
          %v7607 = vadd.f32 %v7182, %v7606
          %v7608 = vpop.f32.mrb[0].mxu0
          %v7609 = vadd.f32 %v7184, %v7608
          %7610 = vmatprep.mubr.bf16.mxu0 %v7548
          %7611 = vmatmul.mubr.bf16.gmra.mrb[0].mxu0 %v7298
          %v7612 = vpop.f32.mrb[0].mxu0
          %v7613 = vadd.f32 %v7188, %v7612
          %v7614 = vpop.f32.mrb[0].mxu0
          %v7615 = vadd.f32 %v7190, %v7614
          %v7616 = vpop.f32.mrb[0].mxu0
          %v7617 = vadd.f32 %v7192, %v7616
          %v7618 = vpop.f32.mrb[0].mxu0
          %v7619 = vadd.f32 %v7194, %v7618
          %7620 = vmatprep.mubr.bf16.mxu0 %v7551
          %7621 = vmatmul.mubr.bf16.gmra.mrb[0].mxu0 %v7316
          %v7622 = vpop.f32.mrb[0].mxu0
          %v7623 = vadd.f32 %v7198, %v7622
          %v7624 = vpop.f32.mrb[0].mxu0
          %v7625 = vadd.f32 %v7200, %v7624
          %v7626 = vpop.f32.mrb[0].mxu0
          %v7627 = vadd.f32 %v7202, %v7626
          %v7628 = vpop.f32.mrb[0].mxu0
          %v7629 = vadd.f32 %v7204, %v7628
          %7630 = vmatprep.mubr.bf16.mxu0 %v7554
          %7631 = vmatmul.mubr.bf16.gmra.mrb[0].mxu0 %v7334
          %v7632 = vpop.f32.mrb[0].mxu0
          %v7633 = vadd.f32 %v7208, %v7632
          %v7634 = vpop.f32.mrb[0].mxu0
          %v7635 = vadd.f32 %v7210, %v7634
          %v7636 = vpop.f32.mrb[0].mxu0
          %v7637 = vadd.f32 %v7212, %v7636
          %v7638 = vpop.f32.mrb[0].mxu0
          %v7639 = vadd.f32 %v7214, %v7638
          %7640 = vmatprep.mubr.bf16.mxu0 %v7557
          %7641 = vmatmul.mubr.bf16.gmra.mrb[0].mxu0 %v7352
          %v7642 = vpop.f32.mrb[0].mxu0
          %v7643 = vadd.f32 %v7218, %v7642
          %v7644 = vpop.f32.mrb[0].mxu0
          %v7645 = vadd.f32 %v7220, %v7644
          %v7646 = vpop.f32.mrb[0].mxu0
          %v7647 = vadd.f32 %v7222, %v7646
          %v7648 = vpop.f32.mrb[0].mxu0
          %v7649 = vadd.f32 %v7224, %v7648
          %7650 = vmatprep.mubr.bf16.mxu0 %v7560
          %7651 = vmatmul.mubr.bf16.gmra.mrb[0].mxu0 %v7370
          %v7652 = vpop.f32.mrb[0].mxu0
          %v7653 = vadd.f32 %v7228, %v7652
          %v7654 = vpop.f32.mrb[0].mxu0
          %v7655 = vadd.f32 %v7230, %v7654
          %v7656 = vpop.f32.mrb[0].mxu0
          %v7657 = vadd.f32 %v7232, %v7656
          %v7658 = vpop.f32.mrb[0].mxu0
          %v7659 = vadd.f32 %v7234, %v7658
          %7660 = vmatprep.mubr.bf16.mxu0 %v7563
          %7661 = vmatmul.mubr.bf16.gmra.mrb[0].mxu0 %v7388
          %v7662 = vpop.f32.mrb[0].mxu0
          %v7663 = vadd.f32 %v7238, %v7662
          %v7664 = vpop.f32.mrb[0].mxu0
          %v7665 = vadd.f32 %v7240, %v7664
          %v7666 = vpop.f32.mrb[0].mxu0
          %v7667 = vadd.f32 %v7242, %v7666
          %v7668 = vpop.f32.mrb[0].mxu0
          %v7669 = vadd.f32 %v7244, %v7668
          %7670 = vmatprep.mubr.bf16.mxu0 %v7566
          %7671 = vmatmul.mubr.bf16.gmra.mrb[0].mxu0 %v7406
          %v7672 = vpop.f32.mrb[0].mxu0
          %v7673 = vadd.f32 %v7248, %v7672
          %v7674 = vpop.f32.mrb[0].mxu0
          %v7675 = vadd.f32 %v7250, %v7674
          %v7676 = vpop.f32.mrb[0].mxu0
          %v7677 = vadd.f32 %v7252, %v7676
          %v7678 = vpop.f32.mrb[0].mxu0
          %v7679 = vadd.f32 %v7254, %v7678
          %7680 = vdwg.mxu0
          %s7681 = scalar_lea.vmem %s9, 384
          %v7682 = vld [vmem:[%s7681] sm:$0xff]
          %v7683 = vld [vmem:[%s7681 + $0x8] sm:$0xff]
          %v7684 = vld [vmem:[%s7681 + $0x10] sm:$0xff]
          %v7685 = vld [vmem:[%s7681 + $0x18] sm:$0xff]
          %v7686 = vld [vmem:[%s7681 + $0x20] sm:$0xff]
          %v7687 = vld [vmem:[%s7681 + $0x28] sm:$0xff]
          %v7688 = vld [vmem:[%s7681 + $0x30] sm:$0xff]
          %v7689 = vld [vmem:[%s7681 + $0x38] sm:$0xff]
          %v7690 = vld [vmem:[%s7681 + $0x40] sm:$0xff]
          %v7691 = vld [vmem:[%s7681 + $0x48] sm:$0xff]
          %v7692 = vld [vmem:[%s7681 + $0x50] sm:$0xff]
          %v7693 = vld [vmem:[%s7681 + $0x58] sm:$0xff]
          %v7694 = vld [vmem:[%s7681 + $0x60] sm:$0xff]
          %v7695 = vld [vmem:[%s7681 + $0x68] sm:$0xff]
          %v7696 = vld [vmem:[%s7681 + $0x70] sm:$0xff]
          %v7697 = vld [vmem:[%s7681 + $0x78] sm:$0xff]
          %v7698 = vld [vmem:[%s7681 + $0x80] sm:$0xff]
          %v7699 = vld [vmem:[%s7681 + $0x88] sm:$0xff]
          %v7700 = vld [vmem:[%s7681 + $0x90] sm:$0xff]
          %v7701 = vld [vmem:[%s7681 + $0x98] sm:$0xff]
          %v7702 = vld [vmem:[%s7681 + $0xa0] sm:$0xff]
          %v7703 = vld [vmem:[%s7681 + $0xa8] sm:$0xff]
          %v7704 = vld [vmem:[%s7681 + $0xb0] sm:$0xff]
          %v7705 = vld [vmem:[%s7681 + $0xb8] sm:$0xff]
          %v7707 = vshrl.u32 %v6932, 16
          %v7709 = vrot.slane %v7707, 4
          %v7710 = vshll.u32 %v6932, 16
          %v7712 = vrot.slane %v7710, 5
          %v7713 = vor.u32 %v7709, %v7712
          %v7715 = vshrl.u32 %v6934, 16
          %v7717 = vrot.slane %v7715, 4
          %v7718 = vshll.u32 %v6934, 16
          %v7720 = vrot.slane %v7718, 5
          %v7721 = vor.u32 %v7717, %v7720
          %v7722 = vsel %vm6499, %v7713, %v7721
          %v7724 = vshrl.u32 %v6933, 16
          %v7726 = vrot.slane %v7724, 4
          %v7727 = vshll.u32 %v6933, 16
          %v7729 = vrot.slane %v7727, 5
          %v7730 = vor.u32 %v7726, %v7729
          %v7732 = vshrl.u32 %v6935, 16
          %v7734 = vrot.slane %v7732, 4
          %v7735 = vshll.u32 %v6935, 16
          %v7737 = vrot.slane %v7735, 5
          %v7738 = vor.u32 %v7734, %v7737
          %v7739 = vsel %vm6499, %v7730, %v7738
          %v7741 = vshrl.u32 %v6936, 16
          %v7743 = vrot.slane %v7741, 4
          %v7744 = vshll.u32 %v6936, 16
          %v7746 = vrot.slane %v7744, 5
          %v7747 = vor.u32 %v7743, %v7746
          %v7748 = vsel %vm6499, %v7721, %v7747
          %v7750 = vshrl.u32 %v6937, 16
          %v7752 = vrot.slane %v7750, 4
          %v7753 = vshll.u32 %v6937, 16
          %v7755 = vrot.slane %v7753, 5
          %v7756 = vor.u32 %v7752, %v7755
          %v7757 = vsel %vm6499, %v7738, %v7756
          %v7759 = vshrl.u32 %v6938, 16
          %v7761 = vrot.slane %v7759, 4
          %v7762 = vshll.u32 %v6938, 16
          %v7764 = vrot.slane %v7762, 5
          %v7765 = vor.u32 %v7761, %v7764
          %v7766 = vsel %vm6499, %v7747, %v7765
          %v7768 = vshrl.u32 %v6939, 16
          %v7770 = vrot.slane %v7768, 4
          %v7771 = vshll.u32 %v6939, 16
          %v7773 = vrot.slane %v7771, 5
          %v7774 = vor.u32 %v7770, %v7773
          %v7775 = vsel %vm6499, %v7756, %v7774
          %v7777 = vshrl.u32 %v6940, 16
          %v7779 = vrot.slane %v7777, 4
          %v7780 = vshll.u32 %v6940, 16
          %v7782 = vrot.slane %v7780, 5
          %v7783 = vor.u32 %v7779, %v7782
          %v7784 = vsel %vm6499, %v7765, %v7783
          %v7786 = vshrl.u32 %v6941, 16
          %v7788 = vrot.slane %v7786, 4
          %v7789 = vshll.u32 %v6941, 16
          %v7791 = vrot.slane %v7789, 5
          %v7792 = vor.u32 %v7788, %v7791
          %v7793 = vsel %vm6499, %v7774, %v7792
          %v7795 = vshrl.u32 %v6942, 16
          %v7797 = vrot.slane %v7795, 4
          %v7798 = vshll.u32 %v6942, 16
          %v7800 = vrot.slane %v7798, 5
          %v7801 = vor.u32 %v7797, %v7800
          %v7802 = vsel %vm6499, %v7783, %v7801
          %v7804 = vshrl.u32 %v6943, 16
          %v7806 = vrot.slane %v7804, 4
          %v7807 = vshll.u32 %v6943, 16
          %v7809 = vrot.slane %v7807, 5
          %v7810 = vor.u32 %v7806, %v7809
          %v7811 = vsel %vm6499, %v7792, %v7810
          %v7813 = vshrl.u32 %v6944, 16
          %v7815 = vrot.slane %v7813, 4
          %v7816 = vshll.u32 %v6944, 16
          %v7818 = vrot.slane %v7816, 5
          %v7819 = vor.u32 %v7815, %v7818
          %v7820 = vsel %vm6499, %v7801, %v7819
          %v7822 = vshrl.u32 %v6945, 16
          %v7824 = vrot.slane %v7822, 4
          %v7825 = vshll.u32 %v6945, 16
          %v7827 = vrot.slane %v7825, 5
          %v7828 = vor.u32 %v7824, %v7827
          %v7829 = vsel %vm6499, %v7810, %v7828
          %v7831 = vshrl.u32 %v6946, 16
          %v7833 = vrot.slane %v7831, 4
          %v7834 = vshll.u32 %v6946, 16
          %v7836 = vrot.slane %v7834, 5
          %v7837 = vor.u32 %v7833, %v7836
          %v7838 = vsel %vm6499, %v7819, %v7837
          %v7840 = vshrl.u32 %v6947, 16
          %v7842 = vrot.slane %v7840, 4
          %v7843 = vshll.u32 %v6947, 16
          %v7845 = vrot.slane %v7843, 5
          %v7846 = vor.u32 %v7842, %v7845
          %v7847 = vsel %vm6499, %v7828, %v7846
          %v7849 = vshrl.u32 %v6948, 16
          %v7851 = vrot.slane %v7849, 4
          %v7852 = vshll.u32 %v6948, 16
          %v7854 = vrot.slane %v7852, 5
          %v7855 = vor.u32 %v7851, %v7854
          %v7856 = vsel %vm6499, %v7837, %v7855
          %v7858 = vshrl.u32 %v6949, 16
          %v7860 = vrot.slane %v7858, 4
          %v7861 = vshll.u32 %v6949, 16
          %v7863 = vrot.slane %v7861, 5
          %v7864 = vor.u32 %v7860, %v7863
          %v7865 = vsel %vm6499, %v7846, %v7864
          %v7898 = vunpack.c.l.b16 %v7682
          %v7899 = vunpack.c.h.b16 %v7682
          %v7900 = vunpack.c.l.b16 %v7683
          %v7901 = vunpack.c.h.b16 %v7683
          %v7902 = vunpack.c.l.b16 %v7684
          %v7903 = vunpack.c.h.b16 %v7684
          %v7904 = vunpack.c.l.b16 %v7685
          %v7905 = vunpack.c.h.b16 %v7685
          %v7906 = vunpack.c.l.b16 %v7686
          %v7907 = vunpack.c.h.b16 %v7686
          %v7908 = vunpack.c.l.b16 %v7687
          %v7909 = vunpack.c.h.b16 %v7687
          %v7910 = vunpack.c.l.b16 %v7688
          %v7911 = vunpack.c.h.b16 %v7688
          %v7912 = vunpack.c.l.b16 %v7689
          %v7913 = vunpack.c.h.b16 %v7689
          %v7914 = vunpack.c.l.b16 %v7690
          %v7915 = vunpack.c.h.b16 %v7690
          %v7916 = vunpack.c.l.b16 %v7691
          %v7917 = vunpack.c.h.b16 %v7691
          %v7918 = vunpack.c.l.b16 %v7692
          %v7919 = vunpack.c.h.b16 %v7692
          %v7920 = vunpack.c.l.b16 %v7693
          %v7921 = vunpack.c.h.b16 %v7693
          %v7922 = vunpack.c.l.b16 %v7694
          %v7923 = vunpack.c.h.b16 %v7694
          %v7924 = vunpack.c.l.b16 %v7695
          %v7925 = vunpack.c.h.b16 %v7695
          %v7926 = vunpack.c.l.b16 %v7696
          %v7927 = vunpack.c.h.b16 %v7696
          %v7928 = vunpack.c.l.b16 %v7697
          %v7929 = vunpack.c.h.b16 %v7697
          %v7930 = vunpack.c.l.b16 %v7698
          %v7931 = vunpack.c.h.b16 %v7698
          %v7932 = vunpack.c.l.b16 %v7699
          %v7933 = vunpack.c.h.b16 %v7699
          %v7934 = vunpack.c.l.b16 %v7700
          %v7935 = vunpack.c.h.b16 %v7700
          %v7936 = vunpack.c.l.b16 %v7701
          %v7937 = vunpack.c.h.b16 %v7701
          %v7938 = vunpack.c.l.b16 %v7702
          %v7939 = vunpack.c.h.b16 %v7702
          %v7940 = vunpack.c.l.b16 %v7703
          %v7941 = vunpack.c.h.b16 %v7703
          %v7942 = vunpack.c.l.b16 %v7704
          %v7943 = vunpack.c.h.b16 %v7704
          %v7944 = vunpack.c.l.b16 %v7705
          %v7945 = vunpack.c.h.b16 %v7705
          %v7946 = vpack.c.b16 %v7900, %v7898
          %v7947 = vpack.c.b16 %v7901, %v7899
          %v7948 = vpack.c.b16 %v7904, %v7902
          %v7949 = vpack.c.b16 %v7905, %v7903
          %v7950 = vpack.c.b16 %v7908, %v7906
          %v7951 = vpack.c.b16 %v7909, %v7907
          %v7952 = vpack.c.b16 %v7912, %v7910
          %v7953 = vpack.c.b16 %v7913, %v7911
          %v7954 = vpack.c.b16 %v7916, %v7914
          %v7955 = vpack.c.b16 %v7917, %v7915
          %v7956 = vpack.c.b16 %v7920, %v7918
          %v7957 = vpack.c.b16 %v7921, %v7919
          %v7958 = vpack.c.b16 %v7924, %v7922
          %v7959 = vpack.c.b16 %v7925, %v7923
          %v7960 = vpack.c.b16 %v7928, %v7926
          %v7961 = vpack.c.b16 %v7929, %v7927
          %v7962 = vpack.c.b16 %v7932, %v7930
          %v7963 = vpack.c.b16 %v7933, %v7931
          %v7964 = vpack.c.b16 %v7936, %v7934
          %v7965 = vpack.c.b16 %v7937, %v7935
          %v7966 = vpack.c.b16 %v7940, %v7938
          %v7967 = vpack.c.b16 %v7941, %v7939
          %v7968 = vpack.c.b16 %v7944, %v7942
          %v7969 = vpack.c.b16 %v7945, %v7943
          %v7995 = vsel %vm900, %v7739, 0
          %v7998 = vsel %vm900, %v7757, 0
          %v8001 = vsel %vm900, %v7775, 0
          %v8004 = vsel %vm900, %v7793, 0
          %v8007 = vsel %vm900, %v7811, 0
          %v8010 = vsel %vm900, %v7829, 0
          %v8013 = vsel %vm900, %v7847, 0
          %v8016 = vsel %vm900, %v7865, 0
          %8018 = vmatprep.subr.bf16.mxu0 %v7947
          %8019 = vmatpush1.bf16.msra.mxu0 %v7946
          %8020 = vmatprep.subr.bf16.mxu0 %v7949
          %8021 = vmatpush1.bf16.msra.mxu0 %v7948
          %8022 = vmatprep.subr.bf16.mxu0 %v7951
          %8023 = vmatpush1.bf16.msra.mxu0 %v7950
          %8024 = vmatprep.subr.bf16.mxu0 %v7953
          %8025 = vmatpush1.bf16.msra.mxu0 %v7952
          %8026 = vmatprep.subr.bf16.mxu0 %v7955
          %8027 = vmatpush1.bf16.msra.mxu0 %v7954
          %8028 = vmatprep.subr.bf16.mxu0 %v7957
          %8029 = vmatpush1.bf16.msra.mxu0 %v7956
          %8030 = vmatprep.subr.bf16.mxu0 %v7959
          %8031 = vmatpush1.bf16.msra.mxu0 %v7958
          %8032 = vmatprep.subr.bf16.mxu0 %v7961
          %8033 = vmatpush1.bf16.msra.mxu0 %v7960
          %8034 = vmatprep.subr.bf16.mxu0 %v7963
          %8035 = vmatpush1.bf16.msra.mxu0 %v7962
          %8036 = vmatprep.subr.bf16.mxu0 %v7965
          %8037 = vmatpush1.bf16.msra.mxu0 %v7964
          %8038 = vmatprep.subr.bf16.mxu0 %v7967
          %8039 = vmatpush1.bf16.msra.mxu0 %v7966
          %8040 = vmatprep.subr.bf16.mxu0 %v7969
          %8041 = vmatpush1.bf16.msra.mxu0 %v7968
          %8042 = vmatprep.subr.bf16.mxu0 0
          %8043 = vmatpush1.bf16.msra.mxu0 0
          %8044 = vmatprep.subr.bf16.mxu0 0
          %8045 = vmatpush1.bf16.msra.mxu0 0
          %8046 = vmatprep.subr.bf16.mxu0 0
          %8047 = vmatpush1.bf16.msra.mxu0 0
          %8048 = vmatprep.subr.bf16.mxu0 0
          %8049 = vmatpush1.bf16.msra.mxu0 0
          %8050 = vmatprep.mubr.bf16.mxu0 %v7995
          %8051 = vmatmul.mubr.bf16.gmra.mrb[0].mxu0 %v7722
          %v8052 = vpop.f32.mrb[0].mxu0
          %v8053 = vadd.f32 0.0, %v8052
          %v8054 = vpop.f32.mrb[0].mxu0
          %v8055 = vadd.f32 0.0, %v8054
          %v8056 = vpop.f32.mrb[0].mxu0
          %v8057 = vadd.f32 0.0, %v8056
          %v8058 = vpop.f32.mrb[0].mxu0
          %v8059 = vadd.f32 0.0, %v8058
          %8060 = vmatprep.mubr.bf16.mxu0 %v7998
          %8061 = vmatmul.mubr.bf16.gmra.mrb[0].mxu0 %v7748
          %v8062 = vpop.f32.mrb[0].mxu0
          %v8063 = vadd.f32 0.0, %v8062
          %v8064 = vpop.f32.mrb[0].mxu0
          %v8065 = vadd.f32 0.0, %v8064
          %v8066 = vpop.f32.mrb[0].mxu0
          %v8067 = vadd.f32 0.0, %v8066
          %v8068 = vpop.f32.mrb[0].mxu0
          %v8069 = vadd.f32 0.0, %v8068
          %8070 = vmatprep.mubr.bf16.mxu0 %v8001
          %8071 = vmatmul.mubr.bf16.gmra.mrb[0].mxu0 %v7766
          %v8072 = vpop.f32.mrb[0].mxu0
          %v8073 = vadd.f32 0.0, %v8072
          %v8074 = vpop.f32.mrb[0].mxu0
          %v8075 = vadd.f32 0.0, %v8074
          %v8076 = vpop.f32.mrb[0].mxu0
          %v8077 = vadd.f32 0.0, %v8076
          %v8078 = vpop.f32.mrb[0].mxu0
          %v8079 = vadd.f32 0.0, %v8078
          %8080 = vmatprep.mubr.bf16.mxu0 %v8004
          %8081 = vmatmul.mubr.bf16.gmra.mrb[0].mxu0 %v7784
          %v8082 = vpop.f32.mrb[0].mxu0
          %v8083 = vadd.f32 0.0, %v8082
          %v8084 = vpop.f32.mrb[0].mxu0
          %v8085 = vadd.f32 0.0, %v8084
          %v8086 = vpop.f32.mrb[0].mxu0
          %v8087 = vadd.f32 0.0, %v8086
          %v8088 = vpop.f32.mrb[0].mxu0
          %v8089 = vadd.f32 0.0, %v8088
          %8090 = vmatprep.mubr.bf16.mxu0 %v8007
          %8091 = vmatmul.mubr.bf16.gmra.mrb[0].mxu0 %v7802
          %v8092 = vpop.f32.mrb[0].mxu0
          %v8093 = vadd.f32 0.0, %v8092
          %v8094 = vpop.f32.mrb[0].mxu0
          %v8095 = vadd.f32 0.0, %v8094
          %v8096 = vpop.f32.mrb[0].mxu0
          %v8097 = vadd.f32 0.0, %v8096
          %v8098 = vpop.f32.mrb[0].mxu0
          %v8099 = vadd.f32 0.0, %v8098
          %8100 = vmatprep.mubr.bf16.mxu0 %v8010
          %8101 = vmatmul.mubr.bf16.gmra.mrb[0].mxu0 %v7820
          %v8102 = vpop.f32.mrb[0].mxu0
          %v8103 = vadd.f32 0.0, %v8102
          %v8104 = vpop.f32.mrb[0].mxu0
          %v8105 = vadd.f32 0.0, %v8104
          %v8106 = vpop.f32.mrb[0].mxu0
          %v8107 = vadd.f32 0.0, %v8106
          %v8108 = vpop.f32.mrb[0].mxu0
          %v8109 = vadd.f32 0.0, %v8108
          %8110 = vmatprep.mubr.bf16.mxu0 %v8013
          %8111 = vmatmul.mubr.bf16.gmra.mrb[0].mxu0 %v7838
          %v8112 = vpop.f32.mrb[0].mxu0
          %v8113 = vadd.f32 0.0, %v8112
          %v8114 = vpop.f32.mrb[0].mxu0
          %v8115 = vadd.f32 0.0, %v8114
          %v8116 = vpop.f32.mrb[0].mxu0
          %v8117 = vadd.f32 0.0, %v8116
          %v8118 = vpop.f32.mrb[0].mxu0
          %v8119 = vadd.f32 0.0, %v8118
          %8120 = vmatprep.mubr.bf16.mxu0 %v8016
          %8121 = vmatmul.mubr.bf16.gmra.mrb[0].mxu0 %v7856
          %v8122 = vpop.f32.mrb[0].mxu0
          %v8123 = vadd.f32 0.0, %v8122
          %v8124 = vpop.f32.mrb[0].mxu0
          %v8125 = vadd.f32 0.0, %v8124
          %v8126 = vpop.f32.mrb[0].mxu0
          %v8127 = vadd.f32 0.0, %v8126
          %v8128 = vpop.f32.mrb[0].mxu0
          %v8129 = vadd.f32 0.0, %v8128
          %8130 = vdwg.mxu0
          %v8131 = vadd.f32 %v7603, %v8053
          %v8132 = vadd.f32 %v7605, %v8055
          %v8133 = vadd.f32 %v7607, %v8057
          %v8134 = vadd.f32 %v7609, %v8059
          %v8135 = vadd.f32 %v7613, %v8063
          %v8136 = vadd.f32 %v7615, %v8065
          %v8137 = vadd.f32 %v7617, %v8067
          %v8138 = vadd.f32 %v7619, %v8069
          %v8139 = vadd.f32 %v7623, %v8073
          %v8140 = vadd.f32 %v7625, %v8075
          %v8141 = vadd.f32 %v7627, %v8077
          %v8142 = vadd.f32 %v7629, %v8079
          %v8143 = vadd.f32 %v7633, %v8083
          %v8144 = vadd.f32 %v7635, %v8085
          %v8145 = vadd.f32 %v7637, %v8087
          %v8146 = vadd.f32 %v7639, %v8089
          %v8147 = vadd.f32 %v7643, %v8093
          %v8148 = vadd.f32 %v7645, %v8095
          %v8149 = vadd.f32 %v7647, %v8097
          %v8150 = vadd.f32 %v7649, %v8099
          %v8151 = vadd.f32 %v7653, %v8103
          %v8152 = vadd.f32 %v7655, %v8105
          %v8153 = vadd.f32 %v7657, %v8107
          %v8154 = vadd.f32 %v7659, %v8109
          %v8155 = vadd.f32 %v7663, %v8113
          %v8156 = vadd.f32 %v7665, %v8115
          %v8157 = vadd.f32 %v7667, %v8117
          %v8158 = vadd.f32 %v7669, %v8119
          %v8159 = vadd.f32 %v7673, %v8123
          %v8160 = vadd.f32 %v7675, %v8125
          %v8161 = vadd.f32 %v7677, %v8127
          %v8162 = vadd.f32 %v7679, %v8129
          %v8163 = vld [vmem:[%s10] sm:$0x3]
          %v8165 = vlaneseq
          %v8166 = vshrl.u32 %v8165, 7
          %v8167 = vsub.s32 0, %v8166
          %v8168 = vrot.slane %v8163, %v8167
          %v8169 = vlaneseq
          %v8170 = vshrl.u32 %v8169, 7
          %v8171 = vsub.s32 1, %v8170
          %v8172 = vrot.slane %v8163, %v8171
          %v8175 = vmul.f32 %v8131, %v8168
          %v8176 = vmul.f32 %v8132, %v8172
          %v8177 = vmul.f32 %v8133, %v8168
          %v8178 = vmul.f32 %v8134, %v8172
          %v8179 = vmul.f32 %v8135, %v8168
          %v8180 = vmul.f32 %v8136, %v8172
          %v8181 = vmul.f32 %v8137, %v8168
          %v8182 = vmul.f32 %v8138, %v8172
          %v8183 = vmul.f32 %v8139, %v8168
          %v8184 = vmul.f32 %v8140, %v8172
          %v8185 = vmul.f32 %v8141, %v8168
          %v8186 = vmul.f32 %v8142, %v8172
          %v8187 = vmul.f32 %v8143, %v8168
          %v8188 = vmul.f32 %v8144, %v8172
          %v8189 = vmul.f32 %v8145, %v8168
          %v8190 = vmul.f32 %v8146, %v8172
          %v8191 = vmul.f32 %v8147, %v8168
          %v8192 = vmul.f32 %v8148, %v8172
          %v8193 = vmul.f32 %v8149, %v8168
          %v8194 = vmul.f32 %v8150, %v8172
          %v8195 = vmul.f32 %v8151, %v8168
          %v8196 = vmul.f32 %v8152, %v8172
          %v8197 = vmul.f32 %v8153, %v8168
          %v8198 = vmul.f32 %v8154, %v8172
          %v8199 = vmul.f32 %v8155, %v8168
          %v8200 = vmul.f32 %v8156, %v8172
          %v8201 = vmul.f32 %v8157, %v8168
          %v8202 = vmul.f32 %v8158, %v8172
          %v8203 = vmul.f32 %v8159, %v8168
          %v8204 = vmul.f32 %v8160, %v8172
          %v8205 = vmul.f32 %v8161, %v8168
          %v8206 = vmul.f32 %v8162, %v8172
          %v8207 = vld [vmem:[%s11] sm:$0x3]
          %v8209 = vlaneseq
          %v8210 = vshrl.u32 %v8209, 7
          %v8211 = vsub.s32 0, %v8210
          %v8212 = vrot.slane %v8207, %v8211
          %v8213 = vlaneseq
          %v8214 = vshrl.u32 %v8213, 7
          %v8215 = vsub.s32 1, %v8214
          %v8216 = vrot.slane %v8207, %v8215
          %v8219 = vadd.f32 %v8175, %v8212
          %v8220 = vadd.f32 %v8176, %v8216
          %v8221 = vadd.f32 %v8177, %v8212
          %v8222 = vadd.f32 %v8178, %v8216
          %v8223 = vadd.f32 %v8179, %v8212
          %v8224 = vadd.f32 %v8180, %v8216
          %v8225 = vadd.f32 %v8181, %v8212
          %v8226 = vadd.f32 %v8182, %v8216
          %v8227 = vadd.f32 %v8183, %v8212
          %v8228 = vadd.f32 %v8184, %v8216
          %v8229 = vadd.f32 %v8185, %v8212
          %v8230 = vadd.f32 %v8186, %v8216
          %v8231 = vadd.f32 %v8187, %v8212
          %v8232 = vadd.f32 %v8188, %v8216
          %v8233 = vadd.f32 %v8189, %v8212
          %v8234 = vadd.f32 %v8190, %v8216
          %v8235 = vadd.f32 %v8191, %v8212
          %v8236 = vadd.f32 %v8192, %v8216
          %v8237 = vadd.f32 %v8193, %v8212
          %v8238 = vadd.f32 %v8194, %v8216
          %v8239 = vadd.f32 %v8195, %v8212
          %v8240 = vadd.f32 %v8196, %v8216
          %v8241 = vadd.f32 %v8197, %v8212
          %v8242 = vadd.f32 %v8198, %v8216
          %v8243 = vadd.f32 %v8199, %v8212
          %v8244 = vadd.f32 %v8200, %v8216
          %v8245 = vadd.f32 %v8201, %v8212
          %v8246 = vadd.f32 %v8202, %v8216
          %v8247 = vadd.f32 %v8203, %v8212
          %v8248 = vadd.f32 %v8204, %v8216
          %v8249 = vadd.f32 %v8205, %v8212
          %v8250 = vadd.f32 %v8206, %v8216
          %v8251 = vmax.f32 %v8219, 0.0
          %v8252 = vmax.f32 %v8220, 0.0
          %v8253 = vmax.f32 %v8221, 0.0
          %v8254 = vmax.f32 %v8222, 0.0
          %v8255 = vmax.f32 %v8223, 0.0
          %v8256 = vmax.f32 %v8224, 0.0
          %v8257 = vmax.f32 %v8225, 0.0
          %v8258 = vmax.f32 %v8226, 0.0
          %v8259 = vmax.f32 %v8227, 0.0
          %v8260 = vmax.f32 %v8228, 0.0
          %v8261 = vmax.f32 %v8229, 0.0
          %v8262 = vmax.f32 %v8230, 0.0
          %v8263 = vmax.f32 %v8231, 0.0
          %v8264 = vmax.f32 %v8232, 0.0
          %v8265 = vmax.f32 %v8233, 0.0
          %v8266 = vmax.f32 %v8234, 0.0
          %v8267 = vmax.f32 %v8235, 0.0
          %v8268 = vmax.f32 %v8236, 0.0
          %v8269 = vmax.f32 %v8237, 0.0
          %v8270 = vmax.f32 %v8238, 0.0
          %v8271 = vmax.f32 %v8239, 0.0
          %v8272 = vmax.f32 %v8240, 0.0
          %v8273 = vmax.f32 %v8241, 0.0
          %v8274 = vmax.f32 %v8242, 0.0
          %v8275 = vmax.f32 %v8243, 0.0
          %v8276 = vmax.f32 %v8244, 0.0
          %v8277 = vmax.f32 %v8245, 0.0
          %v8278 = vmax.f32 %v8246, 0.0
          %v8279 = vmax.f32 %v8247, 0.0
          %v8280 = vmax.f32 %v8248, 0.0
          %v8281 = vmax.f32 %v8249, 0.0
          %v8282 = vmax.f32 %v8250, 0.0
          %v8283 = vpack.c.bf16 %v8253, %v8251
          %v8284 = vpack.c.bf16 %v8254, %v8252
          %v8285 = vpack.c.bf16 %v8257, %v8255
          %v8286 = vpack.c.bf16 %v8258, %v8256
          %v8287 = vpack.c.bf16 %v8261, %v8259
          %v8288 = vpack.c.bf16 %v8262, %v8260
          %v8289 = vpack.c.bf16 %v8265, %v8263
          %v8290 = vpack.c.bf16 %v8266, %v8264
          %v8291 = vpack.c.bf16 %v8269, %v8267
          %v8292 = vpack.c.bf16 %v8270, %v8268
          %v8293 = vpack.c.bf16 %v8273, %v8271
          %v8294 = vpack.c.bf16 %v8274, %v8272
          %v8295 = vpack.c.bf16 %v8277, %v8275
          %v8296 = vpack.c.bf16 %v8278, %v8276
          %v8297 = vpack.c.bf16 %v8281, %v8279
          %v8298 = vpack.c.bf16 %v8282, %v8280
          %v8315 = vrot.slane %v8283, 4
          %v8316 = vrot.slane %v8284, 4
          %v8317 = vrot.slane %v8285, 4
          %v8318 = vsel %vm6164, %v8315, %v8317
          %v8319 = vrot.slane %v8286, 4
          %v8320 = vsel %vm6164, %v8316, %v8319
          %v8321 = vrot.slane %v8287, 4
          %v8322 = vsel %vm6164, %v8317, %v8321
          %v8323 = vrot.slane %v8288, 4
          %v8324 = vsel %vm6164, %v8319, %v8323
          %v8325 = vrot.slane %v8289, 4
          %v8326 = vsel %vm6164, %v8321, %v8325
          %v8327 = vrot.slane %v8290, 4
          %v8328 = vsel %vm6164, %v8323, %v8327
          %v8329 = vrot.slane %v8291, 4
          %v8330 = vsel %vm6164, %v8325, %v8329
          %v8331 = vrot.slane %v8292, 4
          %v8332 = vsel %vm6164, %v8327, %v8331
          %v8333 = vrot.slane %v8293, 4
          %v8334 = vsel %vm6164, %v8329, %v8333
          %v8335 = vrot.slane %v8294, 4
          %v8336 = vsel %vm6164, %v8331, %v8335
          %v8337 = vrot.slane %v8295, 4
          %v8338 = vsel %vm6164, %v8333, %v8337
          %v8339 = vrot.slane %v8296, 4
          %v8340 = vsel %vm6164, %v8335, %v8339
          %v8341 = vrot.slane %v8297, 4
          %v8342 = vsel %vm6164, %v8337, %v8341
          %v8343 = vrot.slane %v8298, 4
          %v8344 = vsel %vm6164, %v8339, %v8343
          %8363 = vst [vmem:[#allocation3] sm:$0xf0] %v8315
          %8364 = vst.msk [vmem:[#allocation3 + $0x8] sm:$0xf0] %vm6214, %v8316
          %8365 = vst [vmem:[#allocation3 + $0x10] sm:$0xff] %v8318
          %8366 = vst.msk [vmem:[#allocation3 + $0x18] sm:$0xff] %vm900, %v8320
          %8367 = vst [vmem:[#allocation3 + $0x20] sm:$0xff] %v8322
          %8368 = vst.msk [vmem:[#allocation3 + $0x28] sm:$0xff] %vm900, %v8324
          %8369 = vst [vmem:[#allocation3 + $0x30] sm:$0xff] %v8326
          %8370 = vst.msk [vmem:[#allocation3 + $0x38] sm:$0xff] %vm900, %v8328
          %8371 = vst [vmem:[#allocation3 + $0x40] sm:$0xff] %v8330
          %8372 = vst.msk [vmem:[#allocation3 + $0x48] sm:$0xff] %vm900, %v8332
          %8373 = vst [vmem:[#allocation3 + $0x50] sm:$0xff] %v8334
          %8374 = vst.msk [vmem:[#allocation3 + $0x58] sm:$0xff] %vm900, %v8336
          %8375 = vst [vmem:[#allocation3 + $0x60] sm:$0xff] %v8338
          %8376 = vst.msk [vmem:[#allocation3 + $0x68] sm:$0xff] %vm900, %v8340
          %8377 = vst [vmem:[#allocation3 + $0x70] sm:$0xff] %v8342
          %8378 = vst.msk [vmem:[#allocation3 + $0x78] sm:$0xff] %vm900, %v8344
          %8379 = vst [vmem:[#allocation3 + $0x80] sm:$0xf] %v8341
          %8380 = vst.msk [vmem:[#allocation3 + $0x88] sm:$0xf] %vm6231, %v8343
          %v8381 = vld [vmem:[#allocation3] sm:$0xff]
          %v8382 = vld [vmem:[#allocation3 + $0x8] sm:$0xff]
          %v8383 = vld [vmem:[#allocation3 + $0x10] sm:$0xff]
          %v8384 = vld [vmem:[#allocation3 + $0x18] sm:$0xff]
          %v8385 = vld [vmem:[#allocation3 + $0x20] sm:$0xff]
          %v8386 = vld [vmem:[#allocation3 + $0x28] sm:$0xff]
          %v8387 = vld [vmem:[#allocation3 + $0x30] sm:$0xff]
          %v8388 = vld [vmem:[#allocation3 + $0x38] sm:$0xff]
          %v8389 = vld [vmem:[#allocation3 + $0x40] sm:$0xff]
          %v8390 = vld [vmem:[#allocation3 + $0x48] sm:$0xff]
          %v8391 = vld [vmem:[#allocation3 + $0x50] sm:$0xff]
          %v8392 = vld [vmem:[#allocation3 + $0x58] sm:$0xff]
          %v8393 = vld [vmem:[#allocation3 + $0x60] sm:$0xff]
          %v8394 = vld [vmem:[#allocation3 + $0x68] sm:$0xff]
          %v8395 = vld [vmem:[#allocation3 + $0x70] sm:$0xff]
          %v8396 = vld [vmem:[#allocation3 + $0x78] sm:$0xff]
          %s8397 = scalar_lea.vmem %s2, 128
          %v8398 = vld [vmem:[%s8397] sm:$0xf]
          %v8399 = vld [vmem:[%s8397 + $0x4] sm:$0xf]
          %v8400 = vld [vmem:[%s8397 + $0x8] sm:$0xf]
          %v8401 = vld [vmem:[%s8397 + $0xc] sm:$0xf]
          %v8402 = vld [vmem:[%s8397 + $0x10] sm:$0xf]
          %v8403 = vld [vmem:[%s8397 + $0x14] sm:$0xf]
          %v8404 = vld [vmem:[%s8397 + $0x18] sm:$0xf]
          %v8405 = vld [vmem:[%s8397 + $0x1c] sm:$0xf]
          %v8406 = vld [vmem:[%s8397 + $0x20] sm:$0xf]
          %v8407 = vld [vmem:[%s8397 + $0x24] sm:$0xf]
          %v8408 = vld [vmem:[%s8397 + $0x28] sm:$0xf]
          %v8409 = vld [vmem:[%s8397 + $0x2c] sm:$0xf]
          %v8410 = vld [vmem:[%s8397 + $0x30] sm:$0xf]
          %v8411 = vld [vmem:[%s8397 + $0x34] sm:$0xf]
          %v8412 = vld [vmem:[%s8397 + $0x38] sm:$0xf]
          %v8413 = vld [vmem:[%s8397 + $0x3c] sm:$0xf]
          %8415 = vset.pattern.permute.xlu0 0
          %8416 = vperm.xlu0 %8415, %v8398
          %v8417 = vpop.permute.xlu0 %8416
          %v8420 = vunpack.c.l.s4 839922192
          %v8421 = vunpack.c.0.s8 %v8420
          %v8422 = vlaneseq
          %v8423 = vshrl.u32 %v8422, 7
          %v8424 = vsub.s32 %v8421, %v8423
          %v8425 = vrot.slane %v8417, %v8424
          %8427 = vset.pattern.permute.xlu0 0
          %8428 = vperm.xlu0 %8427, %v8399
          %v8429 = vpop.permute.xlu0 %8428
          %v8432 = vunpack.c.l.s4 839922192
          %v8433 = vunpack.c.0.s8 %v8432
          %v8434 = vlaneseq
          %v8435 = vshrl.u32 %v8434, 7
          %v8436 = vsub.s32 %v8433, %v8435
          %v8437 = vrot.slane %v8429, %v8436
          %8439 = vset.pattern.permute.xlu0 0
          %8440 = vperm.xlu0 %8439, %v8400
          %v8441 = vpop.permute.xlu0 %8440
          %v8444 = vunpack.c.l.s4 839922192
          %v8445 = vunpack.c.0.s8 %v8444
          %v8446 = vlaneseq
          %v8447 = vshrl.u32 %v8446, 7
          %v8448 = vsub.s32 %v8445, %v8447
          %v8449 = vrot.slane %v8441, %v8448
          %8451 = vset.pattern.permute.xlu0 0
          %8452 = vperm.xlu0 %8451, %v8401
          %v8453 = vpop.permute.xlu0 %8452
          %v8456 = vunpack.c.l.s4 839922192
          %v8457 = vunpack.c.0.s8 %v8456
          %v8458 = vlaneseq
          %v8459 = vshrl.u32 %v8458, 7
          %v8460 = vsub.s32 %v8457, %v8459
          %v8461 = vrot.slane %v8453, %v8460
          %8463 = vset.pattern.permute.xlu0 0
          %8464 = vperm.xlu0 %8463, %v8402
          %v8465 = vpop.permute.xlu0 %8464
          %v8468 = vunpack.c.l.s4 839922192
          %v8469 = vunpack.c.0.s8 %v8468
          %v8470 = vlaneseq
          %v8471 = vshrl.u32 %v8470, 7
          %v8472 = vsub.s32 %v8469, %v8471
          %v8473 = vrot.slane %v8465, %v8472
          %8475 = vset.pattern.permute.xlu0 0
          %8476 = vperm.xlu0 %8475, %v8403
          %v8477 = vpop.permute.xlu0 %8476
          %v8480 = vunpack.c.l.s4 839922192
          %v8481 = vunpack.c.0.s8 %v8480
          %v8482 = vlaneseq
          %v8483 = vshrl.u32 %v8482, 7
          %v8484 = vsub.s32 %v8481, %v8483
          %v8485 = vrot.slane %v8477, %v8484
          %8487 = vset.pattern.permute.xlu0 0
          %8488 = vperm.xlu0 %8487, %v8404
          %v8489 = vpop.permute.xlu0 %8488
          %v8492 = vunpack.c.l.s4 839922192
          %v8493 = vunpack.c.0.s8 %v8492
          %v8494 = vlaneseq
          %v8495 = vshrl.u32 %v8494, 7
          %v8496 = vsub.s32 %v8493, %v8495
          %v8497 = vrot.slane %v8489, %v8496
          %8499 = vset.pattern.permute.xlu0 0
          %8500 = vperm.xlu0 %8499, %v8405
          %v8501 = vpop.permute.xlu0 %8500
          %v8504 = vunpack.c.l.s4 839922192
          %v8505 = vunpack.c.0.s8 %v8504
          %v8506 = vlaneseq
          %v8507 = vshrl.u32 %v8506, 7
          %v8508 = vsub.s32 %v8505, %v8507
          %v8509 = vrot.slane %v8501, %v8508
          %8511 = vset.pattern.permute.xlu0 0
          %8512 = vperm.xlu0 %8511, %v8406
          %v8513 = vpop.permute.xlu0 %8512
          %v8516 = vunpack.c.l.s4 839922192
          %v8517 = vunpack.c.0.s8 %v8516
          %v8518 = vlaneseq
          %v8519 = vshrl.u32 %v8518, 7
          %v8520 = vsub.s32 %v8517, %v8519
          %v8521 = vrot.slane %v8513, %v8520
          %8523 = vset.pattern.permute.xlu0 0
          %8524 = vperm.xlu0 %8523, %v8407
          %v8525 = vpop.permute.xlu0 %8524
          %v8528 = vunpack.c.l.s4 839922192
          %v8529 = vunpack.c.0.s8 %v8528
          %v8530 = vlaneseq
          %v8531 = vshrl.u32 %v8530, 7
          %v8532 = vsub.s32 %v8529, %v8531
          %v8533 = vrot.slane %v8525, %v8532
          %8535 = vset.pattern.permute.xlu0 0
          %8536 = vperm.xlu0 %8535, %v8408
          %v8537 = vpop.permute.xlu0 %8536
          %v8540 = vunpack.c.l.s4 839922192
          %v8541 = vunpack.c.0.s8 %v8540
          %v8542 = vlaneseq
          %v8543 = vshrl.u32 %v8542, 7
          %v8544 = vsub.s32 %v8541, %v8543
          %v8545 = vrot.slane %v8537, %v8544
          %8547 = vset.pattern.permute.xlu0 0
          %8548 = vperm.xlu0 %8547, %v8409
          %v8549 = vpop.permute.xlu0 %8548
          %v8552 = vunpack.c.l.s4 839922192
          %v8553 = vunpack.c.0.s8 %v8552
          %v8554 = vlaneseq
          %v8555 = vshrl.u32 %v8554, 7
          %v8556 = vsub.s32 %v8553, %v8555
          %v8557 = vrot.slane %v8549, %v8556
          %8559 = vset.pattern.permute.xlu0 0
          %8560 = vperm.xlu0 %8559, %v8410
          %v8561 = vpop.permute.xlu0 %8560
          %v8564 = vunpack.c.l.s4 839922192
          %v8565 = vunpack.c.0.s8 %v8564
          %v8566 = vlaneseq
          %v8567 = vshrl.u32 %v8566, 7
          %v8568 = vsub.s32 %v8565, %v8567
          %v8569 = vrot.slane %v8561, %v8568
          %8571 = vset.pattern.permute.xlu0 0
          %8572 = vperm.xlu0 %8571, %v8411
          %v8573 = vpop.permute.xlu0 %8572
          %v8576 = vunpack.c.l.s4 839922192
          %v8577 = vunpack.c.0.s8 %v8576
          %v8578 = vlaneseq
          %v8579 = vshrl.u32 %v8578, 7
          %v8580 = vsub.s32 %v8577, %v8579
          %v8581 = vrot.slane %v8573, %v8580
          %8583 = vset.pattern.permute.xlu0 0
          %8584 = vperm.xlu0 %8583, %v8412
          %v8585 = vpop.permute.xlu0 %8584
          %v8588 = vunpack.c.l.s4 839922192
          %v8589 = vunpack.c.0.s8 %v8588
          %v8590 = vlaneseq
          %v8591 = vshrl.u32 %v8590, 7
          %v8592 = vsub.s32 %v8589, %v8591
          %v8593 = vrot.slane %v8585, %v8592
          %8595 = vset.pattern.permute.xlu0 0
          %8596 = vperm.xlu0 %8595, %v8413
          %v8597 = vpop.permute.xlu0 %8596
          %v8600 = vunpack.c.l.s4 839922192
          %v8601 = vunpack.c.0.s8 %v8600
          %v8602 = vlaneseq
          %v8603 = vshrl.u32 %v8602, 7
          %v8604 = vsub.s32 %v8601, %v8603
          %v8605 = vrot.slane %v8597, %v8604
          %v8622 = vunpack.c.l.b16 %v8425
          %v8623 = vunpack.c.l.b16 %v8437
          %v8624 = vunpack.c.l.b16 %v8449
          %v8625 = vunpack.c.l.b16 %v8461
          %v8626 = vunpack.c.l.b16 %v8473
          %v8627 = vunpack.c.l.b16 %v8485
          %v8628 = vunpack.c.l.b16 %v8497
          %v8629 = vunpack.c.l.b16 %v8509
          %v8630 = vunpack.c.l.b16 %v8521
          %v8631 = vunpack.c.l.b16 %v8533
          %v8632 = vunpack.c.l.b16 %v8545
          %v8633 = vunpack.c.l.b16 %v8557
          %v8634 = vunpack.c.l.b16 %v8569
          %v8635 = vunpack.c.l.b16 %v8581
          %v8636 = vunpack.c.l.b16 %v8593
          %v8637 = vunpack.c.l.b16 %v8605
          %v8638 = vpack.c.b16 %v8623, %v8622
          %v8639 = vpack.c.b16 %v8625, %v8624
          %v8640 = vpack.c.b16 %v8627, %v8626
          %v8641 = vpack.c.b16 %v8629, %v8628
          %v8642 = vpack.c.b16 %v8631, %v8630
          %v8643 = vpack.c.b16 %v8633, %v8632
          %v8644 = vpack.c.b16 %v8635, %v8634
          %v8645 = vpack.c.b16 %v8637, %v8636
          %v8654 = vmul.bf16 %v8381, %v8638
          %v8655 = vmul.bf16 %v8382, %v8638
          %v8656 = vmul.bf16 %v8383, %v8639
          %v8657 = vmul.bf16 %v8384, %v8639
          %v8658 = vmul.bf16 %v8385, %v8640
          %v8659 = vmul.bf16 %v8386, %v8640
          %v8660 = vmul.bf16 %v8387, %v8641
          %v8661 = vmul.bf16 %v8388, %v8641
          %v8662 = vmul.bf16 %v8389, %v8642
          %v8663 = vmul.bf16 %v8390, %v8642
          %v8664 = vmul.bf16 %v8391, %v8643
          %v8665 = vmul.bf16 %v8392, %v8643
          %v8666 = vmul.bf16 %v8393, %v8644
          %v8667 = vmul.bf16 %v8394, %v8644
          %v8668 = vmul.bf16 %v8395, %v8645
          %v8669 = vmul.bf16 %v8396, %v8645
          %v8670 = vld [vmem:[#allocation3 + $0x10] sm:$0xff]
          %v8671 = vld [vmem:[#allocation3 + $0x18] sm:$0xff]
          %v8672 = vld [vmem:[#allocation3 + $0x20] sm:$0xff]
          %v8673 = vld [vmem:[#allocation3 + $0x28] sm:$0xff]
          %v8674 = vld [vmem:[#allocation3 + $0x30] sm:$0xff]
          %v8675 = vld [vmem:[#allocation3 + $0x38] sm:$0xff]
          %v8676 = vld [vmem:[#allocation3 + $0x40] sm:$0xff]
          %v8677 = vld [vmem:[#allocation3 + $0x48] sm:$0xff]
          %v8678 = vld [vmem:[#allocation3 + $0x50] sm:$0xff]
          %v8679 = vld [vmem:[#allocation3 + $0x58] sm:$0xff]
          %v8680 = vld [vmem:[#allocation3 + $0x60] sm:$0xff]
          %v8681 = vld [vmem:[#allocation3 + $0x68] sm:$0xff]
          %v8682 = vld [vmem:[#allocation3 + $0x70] sm:$0xff]
          %v8683 = vld [vmem:[#allocation3 + $0x78] sm:$0xff]
          %v8684 = vld [vmem:[#allocation3 + $0x80] sm:$0xff]
          %v8685 = vld [vmem:[#allocation3 + $0x88] sm:$0xff]
          %s8686 = scalar_lea.vmem %s2, 192
          %v8687 = vld [vmem:[%s8686] sm:$0xf]
          %v8688 = vld [vmem:[%s8686 + $0x4] sm:$0xf]
          %v8689 = vld [vmem:[%s8686 + $0x8] sm:$0xf]
          %v8690 = vld [vmem:[%s8686 + $0xc] sm:$0xf]
          %v8691 = vld [vmem:[%s8686 + $0x10] sm:$0xf]
          %v8692 = vld [vmem:[%s8686 + $0x14] sm:$0xf]
          %v8693 = vld [vmem:[%s8686 + $0x18] sm:$0xf]
          %v8694 = vld [vmem:[%s8686 + $0x1c] sm:$0xf]
          %v8695 = vld [vmem:[%s8686 + $0x20] sm:$0xf]
          %v8696 = vld [vmem:[%s8686 + $0x24] sm:$0xf]
          %v8697 = vld [vmem:[%s8686 + $0x28] sm:$0xf]
          %v8698 = vld [vmem:[%s8686 + $0x2c] sm:$0xf]
          %v8699 = vld [vmem:[%s8686 + $0x30] sm:$0xf]
          %v8700 = vld [vmem:[%s8686 + $0x34] sm:$0xf]
          %v8701 = vld [vmem:[%s8686 + $0x38] sm:$0xf]
          %v8702 = vld [vmem:[%s8686 + $0x3c] sm:$0xf]
          %8704 = vset.pattern.permute.xlu0 0
          %8705 = vperm.xlu0 %8704, %v8687
          %v8706 = vpop.permute.xlu0 %8705
          %v8709 = vunpack.c.l.s4 839922192
          %v8710 = vunpack.c.0.s8 %v8709
          %v8711 = vlaneseq
          %v8712 = vshrl.u32 %v8711, 7
          %v8713 = vsub.s32 %v8710, %v8712
          %v8714 = vrot.slane %v8706, %v8713
          %8716 = vset.pattern.permute.xlu0 0
          %8717 = vperm.xlu0 %8716, %v8688
          %v8718 = vpop.permute.xlu0 %8717
          %v8721 = vunpack.c.l.s4 839922192
          %v8722 = vunpack.c.0.s8 %v8721
          %v8723 = vlaneseq
          %v8724 = vshrl.u32 %v8723, 7
          %v8725 = vsub.s32 %v8722, %v8724
          %v8726 = vrot.slane %v8718, %v8725
          %8728 = vset.pattern.permute.xlu0 0
          %8729 = vperm.xlu0 %8728, %v8689
          %v8730 = vpop.permute.xlu0 %8729
          %v8733 = vunpack.c.l.s4 839922192
          %v8734 = vunpack.c.0.s8 %v8733
          %v8735 = vlaneseq
          %v8736 = vshrl.u32 %v8735, 7
          %v8737 = vsub.s32 %v8734, %v8736
          %v8738 = vrot.slane %v8730, %v8737
          %8740 = vset.pattern.permute.xlu0 0
          %8741 = vperm.xlu0 %8740, %v8690
          %v8742 = vpop.permute.xlu0 %8741
          %v8745 = vunpack.c.l.s4 839922192
          %v8746 = vunpack.c.0.s8 %v8745
          %v8747 = vlaneseq
          %v8748 = vshrl.u32 %v8747, 7
          %v8749 = vsub.s32 %v8746, %v8748
          %v8750 = vrot.slane %v8742, %v8749
          %8752 = vset.pattern.permute.xlu0 0
          %8753 = vperm.xlu0 %8752, %v8691
          %v8754 = vpop.permute.xlu0 %8753
          %v8757 = vunpack.c.l.s4 839922192
          %v8758 = vunpack.c.0.s8 %v8757
          %v8759 = vlaneseq
          %v8760 = vshrl.u32 %v8759, 7
          %v8761 = vsub.s32 %v8758, %v8760
          %v8762 = vrot.slane %v8754, %v8761
          %8764 = vset.pattern.permute.xlu0 0
          %8765 = vperm.xlu0 %8764, %v8692
          %v8766 = vpop.permute.xlu0 %8765
          %v8769 = vunpack.c.l.s4 839922192
          %v8770 = vunpack.c.0.s8 %v8769
          %v8771 = vlaneseq
          %v8772 = vshrl.u32 %v8771, 7
          %v8773 = vsub.s32 %v8770, %v8772
          %v8774 = vrot.slane %v8766, %v8773
          %8776 = vset.pattern.permute.xlu0 0
          %8777 = vperm.xlu0 %8776, %v8693
          %v8778 = vpop.permute.xlu0 %8777
          %v8781 = vunpack.c.l.s4 839922192
          %v8782 = vunpack.c.0.s8 %v8781
          %v8783 = vlaneseq
          %v8784 = vshrl.u32 %v8783, 7
          %v8785 = vsub.s32 %v8782, %v8784
          %v8786 = vrot.slane %v8778, %v8785
          %8788 = vset.pattern.permute.xlu0 0
          %8789 = vperm.xlu0 %8788, %v8694
          %v8790 = vpop.permute.xlu0 %8789
          %v8793 = vunpack.c.l.s4 839922192
          %v8794 = vunpack.c.0.s8 %v8793
          %v8795 = vlaneseq
          %v8796 = vshrl.u32 %v8795, 7
          %v8797 = vsub.s32 %v8794, %v8796
          %v8798 = vrot.slane %v8790, %v8797
          %8800 = vset.pattern.permute.xlu0 0
          %8801 = vperm.xlu0 %8800, %v8695
          %v8802 = vpop.permute.xlu0 %8801
          %v8805 = vunpack.c.l.s4 839922192
          %v8806 = vunpack.c.0.s8 %v8805
          %v8807 = vlaneseq
          %v8808 = vshrl.u32 %v8807, 7
          %v8809 = vsub.s32 %v8806, %v8808
          %v8810 = vrot.slane %v8802, %v8809
          %8812 = vset.pattern.permute.xlu0 0
          %8813 = vperm.xlu0 %8812, %v8696
          %v8814 = vpop.permute.xlu0 %8813
          %v8817 = vunpack.c.l.s4 839922192
          %v8818 = vunpack.c.0.s8 %v8817
          %v8819 = vlaneseq
          %v8820 = vshrl.u32 %v8819, 7
          %v8821 = vsub.s32 %v8818, %v8820
          %v8822 = vrot.slane %v8814, %v8821
          %8824 = vset.pattern.permute.xlu0 0
          %8825 = vperm.xlu0 %8824, %v8697
          %v8826 = vpop.permute.xlu0 %8825
          %v8829 = vunpack.c.l.s4 839922192
          %v8830 = vunpack.c.0.s8 %v8829
          %v8831 = vlaneseq
          %v8832 = vshrl.u32 %v8831, 7
          %v8833 = vsub.s32 %v8830, %v8832
          %v8834 = vrot.slane %v8826, %v8833
          %8836 = vset.pattern.permute.xlu0 0
          %8837 = vperm.xlu0 %8836, %v8698
          %v8838 = vpop.permute.xlu0 %8837
          %v8841 = vunpack.c.l.s4 839922192
          %v8842 = vunpack.c.0.s8 %v8841
          %v8843 = vlaneseq
          %v8844 = vshrl.u32 %v8843, 7
          %v8845 = vsub.s32 %v8842, %v8844
          %v8846 = vrot.slane %v8838, %v8845
          %8848 = vset.pattern.permute.xlu0 0
          %8849 = vperm.xlu0 %8848, %v8699
          %v8850 = vpop.permute.xlu0 %8849
          %v8853 = vunpack.c.l.s4 839922192
          %v8854 = vunpack.c.0.s8 %v8853
          %v8855 = vlaneseq
          %v8856 = vshrl.u32 %v8855, 7
          %v8857 = vsub.s32 %v8854, %v8856
          %v8858 = vrot.slane %v8850, %v8857
          %8860 = vset.pattern.permute.xlu0 0
          %8861 = vperm.xlu0 %8860, %v8700
          %v8862 = vpop.permute.xlu0 %8861
          %v8865 = vunpack.c.l.s4 839922192
          %v8866 = vunpack.c.0.s8 %v8865
          %v8867 = vlaneseq
          %v8868 = vshrl.u32 %v8867, 7
          %v8869 = vsub.s32 %v8866, %v8868
          %v8870 = vrot.slane %v8862, %v8869
          %8872 = vset.pattern.permute.xlu0 0
          %8873 = vperm.xlu0 %8872, %v8701
          %v8874 = vpop.permute.xlu0 %8873
          %v8877 = vunpack.c.l.s4 839922192
          %v8878 = vunpack.c.0.s8 %v8877
          %v8879 = vlaneseq
          %v8880 = vshrl.u32 %v8879, 7
          %v8881 = vsub.s32 %v8878, %v8880
          %v8882 = vrot.slane %v8874, %v8881
          %8884 = vset.pattern.permute.xlu0 0
          %8885 = vperm.xlu0 %8884, %v8702
          %v8886 = vpop.permute.xlu0 %8885
          %v8889 = vunpack.c.l.s4 839922192
          %v8890 = vunpack.c.0.s8 %v8889
          %v8891 = vlaneseq
          %v8892 = vshrl.u32 %v8891, 7
          %v8893 = vsub.s32 %v8890, %v8892
          %v8894 = vrot.slane %v8886, %v8893
          %v8911 = vunpack.c.l.b16 %v8714
          %v8912 = vunpack.c.l.b16 %v8726
          %v8913 = vunpack.c.l.b16 %v8738
          %v8914 = vunpack.c.l.b16 %v8750
          %v8915 = vunpack.c.l.b16 %v8762
          %v8916 = vunpack.c.l.b16 %v8774
          %v8917 = vunpack.c.l.b16 %v8786
          %v8918 = vunpack.c.l.b16 %v8798
          %v8919 = vunpack.c.l.b16 %v8810
          %v8920 = vunpack.c.l.b16 %v8822
          %v8921 = vunpack.c.l.b16 %v8834
          %v8922 = vunpack.c.l.b16 %v8846
          %v8923 = vunpack.c.l.b16 %v8858
          %v8924 = vunpack.c.l.b16 %v8870
          %v8925 = vunpack.c.l.b16 %v8882
          %v8926 = vunpack.c.l.b16 %v8894
          %v8927 = vpack.c.b16 %v8912, %v8911
          %v8928 = vpack.c.b16 %v8914, %v8913
          %v8929 = vpack.c.b16 %v8916, %v8915
          %v8930 = vpack.c.b16 %v8918, %v8917
          %v8931 = vpack.c.b16 %v8920, %v8919
          %v8932 = vpack.c.b16 %v8922, %v8921
          %v8933 = vpack.c.b16 %v8924, %v8923
          %v8934 = vpack.c.b16 %v8926, %v8925
          %v8943 = vmul.bf16 %v8670, %v8927
          %v8944 = vmul.bf16 %v8671, %v8927
          %v8945 = vmul.bf16 %v8672, %v8928
          %v8946 = vmul.bf16 %v8673, %v8928
          %v8947 = vmul.bf16 %v8674, %v8929
          %v8948 = vmul.bf16 %v8675, %v8929
          %v8949 = vmul.bf16 %v8676, %v8930
          %v8950 = vmul.bf16 %v8677, %v8930
          %v8951 = vmul.bf16 %v8678, %v8931
          %v8952 = vmul.bf16 %v8679, %v8931
          %v8953 = vmul.bf16 %v8680, %v8932
          %v8954 = vmul.bf16 %v8681, %v8932
          %v8955 = vmul.bf16 %v8682, %v8933
          %v8956 = vmul.bf16 %v8683, %v8933
          %v8957 = vmul.bf16 %v8684, %v8934
          %v8958 = vmul.bf16 %v8685, %v8934
          %v8959 = vld [vmem:[%s12] sm:$0xff]
          %v8960 = vld [vmem:[%s12 + $0x8] sm:$0xff]
          %v8961 = vld [vmem:[%s12 + $0x10] sm:$0xff]
          %v8962 = vld [vmem:[%s12 + $0x18] sm:$0xff]
          %v8963 = vld [vmem:[%s12 + $0x20] sm:$0xff]
          %v8964 = vld [vmem:[%s12 + $0x28] sm:$0xff]
          %v8965 = vld [vmem:[%s12 + $0x30] sm:$0xff]
          %v8966 = vld [vmem:[%s12 + $0x38] sm:$0xff]
          %v8967 = vld [vmem:[%s12 + $0x40] sm:$0xff]
          %v8968 = vld [vmem:[%s12 + $0x48] sm:$0xff]
          %v8969 = vld [vmem:[%s12 + $0x50] sm:$0xff]
          %v8970 = vld [vmem:[%s12 + $0x58] sm:$0xff]
          %v8971 = vld [vmem:[%s12 + $0x60] sm:$0xff]
          %v8972 = vld [vmem:[%s12 + $0x68] sm:$0xff]
          %v8973 = vld [vmem:[%s12 + $0x70] sm:$0xff]
          %v8974 = vld [vmem:[%s12 + $0x78] sm:$0xff]
          %v8975 = vld [vmem:[%s12 + $0x80] sm:$0xff]
          %v8976 = vld [vmem:[%s12 + $0x88] sm:$0xff]
          %v8977 = vld [vmem:[%s12 + $0x90] sm:$0xff]
          %v8978 = vld [vmem:[%s12 + $0x98] sm:$0xff]
          %v8979 = vld [vmem:[%s12 + $0xa0] sm:$0xff]
          %v8980 = vld [vmem:[%s12 + $0xa8] sm:$0xff]
          %v8981 = vld [vmem:[%s12 + $0xb0] sm:$0xff]
          %v8982 = vld [vmem:[%s12 + $0xb8] sm:$0xff]
          %s8983 = scalar_lea.vmem %s12, 192
          %v8984 = vld [vmem:[%s8983] sm:$0xff]
          %v8985 = vld [vmem:[%s8983 + $0x8] sm:$0xff]
          %v8986 = vld [vmem:[%s8983 + $0x10] sm:$0xff]
          %v8987 = vld [vmem:[%s8983 + $0x18] sm:$0xff]
          %v8988 = vld [vmem:[%s8983 + $0x20] sm:$0xff]
          %v8989 = vld [vmem:[%s8983 + $0x28] sm:$0xff]
          %v8990 = vld [vmem:[%s8983 + $0x30] sm:$0xff]
          %v8991 = vld [vmem:[%s8983 + $0x38] sm:$0xff]
          %v8992 = vld [vmem:[%s8983 + $0x40] sm:$0xff]
          %v8993 = vld [vmem:[%s8983 + $0x48] sm:$0xff]
          %v8994 = vld [vmem:[%s8983 + $0x50] sm:$0xff]
          %v8995 = vld [vmem:[%s8983 + $0x58] sm:$0xff]
          %v8996 = vld [vmem:[%s8983 + $0x60] sm:$0xff]
          %v8997 = vld [vmem:[%s8983 + $0x68] sm:$0xff]
          %v8998 = vld [vmem:[%s8983 + $0x70] sm:$0xff]
          %v8999 = vld [vmem:[%s8983 + $0x78] sm:$0xff]
          %v9000 = vld [vmem:[%s8983 + $0x80] sm:$0xff]
          %v9001 = vld [vmem:[%s8983 + $0x88] sm:$0xff]
          %v9002 = vld [vmem:[%s8983 + $0x90] sm:$0xff]
          %v9003 = vld [vmem:[%s8983 + $0x98] sm:$0xff]
          %v9004 = vld [vmem:[%s8983 + $0xa0] sm:$0xff]
          %v9005 = vld [vmem:[%s8983 + $0xa8] sm:$0xff]
          %v9006 = vld [vmem:[%s8983 + $0xb0] sm:$0xff]
          %v9007 = vld [vmem:[%s8983 + $0xb8] sm:$0xff]
          %v9032 = vunpack.c.l.b16 %v8984
          %v9033 = vunpack.c.h.b16 %v8984
          %v9034 = vunpack.c.l.b16 %v8985
          %v9035 = vunpack.c.h.b16 %v8985
          %v9036 = vunpack.c.l.b16 %v8986
          %v9037 = vunpack.c.h.b16 %v8986
          %v9038 = vunpack.c.l.b16 %v8987
          %v9039 = vunpack.c.h.b16 %v8987
          %v9040 = vunpack.c.l.b16 %v8988
          %v9041 = vunpack.c.h.b16 %v8988
          %v9042 = vunpack.c.l.b16 %v8989
          %v9043 = vunpack.c.h.b16 %v8989
          %v9044 = vunpack.c.l.b16 %v8990
          %v9045 = vunpack.c.h.b16 %v8990
          %v9046 = vunpack.c.l.b16 %v8991
          %v9047 = vunpack.c.h.b16 %v8991
          %v9048 = vunpack.c.l.b16 %v8992
          %v9049 = vunpack.c.h.b16 %v8992
          %v9050 = vunpack.c.l.b16 %v8993
          %v9051 = vunpack.c.h.b16 %v8993
          %v9052 = vunpack.c.l.b16 %v8994
          %v9053 = vunpack.c.h.b16 %v8994
          %v9054 = vunpack.c.l.b16 %v8995
          %v9055 = vunpack.c.h.b16 %v8995
          %v9056 = vunpack.c.l.b16 %v8996
          %v9057 = vunpack.c.h.b16 %v8996
          %v9058 = vunpack.c.l.b16 %v8997
          %v9059 = vunpack.c.h.b16 %v8997
          %v9060 = vunpack.c.l.b16 %v8998
          %v9061 = vunpack.c.h.b16 %v8998
          %v9062 = vunpack.c.l.b16 %v8999
          %v9063 = vunpack.c.h.b16 %v8999
          %v9064 = vunpack.c.l.b16 %v9000
          %v9065 = vunpack.c.h.b16 %v9000
          %v9066 = vunpack.c.l.b16 %v9001
          %v9067 = vunpack.c.h.b16 %v9001
          %v9068 = vunpack.c.l.b16 %v9002
          %v9069 = vunpack.c.h.b16 %v9002
          %v9070 = vunpack.c.l.b16 %v9003
          %v9071 = vunpack.c.h.b16 %v9003
          %v9072 = vunpack.c.l.b16 %v9004
          %v9073 = vunpack.c.h.b16 %v9004
          %v9074 = vunpack.c.l.b16 %v9005
          %v9075 = vunpack.c.h.b16 %v9005
          %v9076 = vunpack.c.l.b16 %v9006
          %v9077 = vunpack.c.h.b16 %v9006
          %v9078 = vunpack.c.l.b16 %v9007
          %v9079 = vunpack.c.h.b16 %v9007
          %v9080 = vpack.c.b16 %v9034, %v9032
          %v9081 = vpack.c.b16 %v9035, %v9033
          %v9082 = vpack.c.b16 %v9038, %v9036
          %v9083 = vpack.c.b16 %v9039, %v9037
          %v9084 = vpack.c.b16 %v9042, %v9040
          %v9085 = vpack.c.b16 %v9043, %v9041
          %v9086 = vpack.c.b16 %v9046, %v9044
          %v9087 = vpack.c.b16 %v9047, %v9045
          %v9088 = vpack.c.b16 %v9050, %v9048
          %v9089 = vpack.c.b16 %v9051, %v9049
          %v9090 = vpack.c.b16 %v9054, %v9052
          %v9091 = vpack.c.b16 %v9055, %v9053
          %v9092 = vpack.c.b16 %v9058, %v9056
          %v9093 = vpack.c.b16 %v9059, %v9057
          %v9094 = vpack.c.b16 %v9062, %v9060
          %v9095 = vpack.c.b16 %v9063, %v9061
          %v9096 = vpack.c.b16 %v9066, %v9064
          %v9097 = vpack.c.b16 %v9067, %v9065
          %v9098 = vpack.c.b16 %v9070, %v9068
          %v9099 = vpack.c.b16 %v9071, %v9069
          %v9100 = vpack.c.b16 %v9074, %v9072
          %v9101 = vpack.c.b16 %v9075, %v9073
          %v9102 = vpack.c.b16 %v9078, %v9076
          %v9103 = vpack.c.b16 %v9079, %v9077
          %v9129 = vsel %vm900, %v8284, 0
          %v9132 = vsel %vm900, %v8286, 0
          %v9135 = vsel %vm900, %v8288, 0
          %v9138 = vsel %vm900, %v8290, 0
          %v9141 = vsel %vm900, %v8292, 0
          %v9144 = vsel %vm900, %v8294, 0
          %v9147 = vsel %vm900, %v8296, 0
          %v9150 = vsel %vm900, %v8298, 0
          %9152 = vmatprep.subr.bf16.mxu0 %v9081
          %9153 = vmatpush1.bf16.msra.mxu0 %v9080
          %9154 = vmatprep.subr.bf16.mxu0 %v9083
          %9155 = vmatpush1.bf16.msra.mxu0 %v9082
          %9156 = vmatprep.subr.bf16.mxu0 %v9085
          %9157 = vmatpush1.bf16.msra.mxu0 %v9084
          %9158 = vmatprep.subr.bf16.mxu0 %v9087
          %9159 = vmatpush1.bf16.msra.mxu0 %v9086
          %9160 = vmatprep.subr.bf16.mxu0 %v9089
          %9161 = vmatpush1.bf16.msra.mxu0 %v9088
          %9162 = vmatprep.subr.bf16.mxu0 %v9091
          %9163 = vmatpush1.bf16.msra.mxu0 %v9090
          %9164 = vmatprep.subr.bf16.mxu0 %v9093
          %9165 = vmatpush1.bf16.msra.mxu0 %v9092
          %9166 = vmatprep.subr.bf16.mxu0 %v9095
          %9167 = vmatpush1.bf16.msra.mxu0 %v9094
          %9168 = vmatprep.subr.bf16.mxu0 %v9097
          %9169 = vmatpush1.bf16.msra.mxu0 %v9096
          %9170 = vmatprep.subr.bf16.mxu0 %v9099
          %9171 = vmatpush1.bf16.msra.mxu0 %v9098
          %9172 = vmatprep.subr.bf16.mxu0 %v9101
          %9173 = vmatpush1.bf16.msra.mxu0 %v9100
          %9174 = vmatprep.subr.bf16.mxu0 %v9103
          %9175 = vmatpush1.bf16.msra.mxu0 %v9102
          %9176 = vmatprep.subr.bf16.mxu0 0
          %9177 = vmatpush1.bf16.msra.mxu0 0
          %9178 = vmatprep.subr.bf16.mxu0 0
          %9179 = vmatpush1.bf16.msra.mxu0 0
          %9180 = vmatprep.subr.bf16.mxu0 0
          %9181 = vmatpush1.bf16.msra.mxu0 0
          %9182 = vmatprep.subr.bf16.mxu0 0
          %9183 = vmatpush1.bf16.msra.mxu0 0
          %9184 = vmatprep.mubr.bf16.mxu0 %v9129
          %9185 = vmatmul.mubr.bf16.gmra.mrb[0].mxu0 %v8283
          %v9186 = vpop.f32.mrb[0].mxu0
          %v9187 = vadd.f32 0.0, %v9186
          %v9188 = vpop.f32.mrb[0].mxu0
          %v9189 = vadd.f32 0.0, %v9188
          %v9190 = vpop.f32.mrb[0].mxu0
          %v9191 = vadd.f32 0.0, %v9190
          %v9192 = vpop.f32.mrb[0].mxu0
          %v9193 = vadd.f32 0.0, %v9192
          %9194 = vmatprep.mubr.bf16.mxu0 %v9132
          %9195 = vmatmul.mubr.bf16.gmra.mrb[0].mxu0 %v8285
          %v9196 = vpop.f32.mrb[0].mxu0
          %v9197 = vadd.f32 0.0, %v9196
          %v9198 = vpop.f32.mrb[0].mxu0
          %v9199 = vadd.f32 0.0, %v9198
          %v9200 = vpop.f32.mrb[0].mxu0
          %v9201 = vadd.f32 0.0, %v9200
          %v9202 = vpop.f32.mrb[0].mxu0
          %v9203 = vadd.f32 0.0, %v9202
          %9204 = vmatprep.mubr.bf16.mxu0 %v9135
          %9205 = vmatmul.mubr.bf16.gmra.mrb[0].mxu0 %v8287
          %v9206 = vpop.f32.mrb[0].mxu0
          %v9207 = vadd.f32 0.0, %v9206
          %v9208 = vpop.f32.mrb[0].mxu0
          %v9209 = vadd.f32 0.0, %v9208
          %v9210 = vpop.f32.mrb[0].mxu0
          %v9211 = vadd.f32 0.0, %v9210
          %v9212 = vpop.f32.mrb[0].mxu0
          %v9213 = vadd.f32 0.0, %v9212
          %9214 = vmatprep.mubr.bf16.mxu0 %v9138
          %9215 = vmatmul.mubr.bf16.gmra.mrb[0].mxu0 %v8289
          %v9216 = vpop.f32.mrb[0].mxu0
          %v9217 = vadd.f32 0.0, %v9216
          %v9218 = vpop.f32.mrb[0].mxu0
          %v9219 = vadd.f32 0.0, %v9218
          %v9220 = vpop.f32.mrb[0].mxu0
          %v9221 = vadd.f32 0.0, %v9220
          %v9222 = vpop.f32.mrb[0].mxu0
          %v9223 = vadd.f32 0.0, %v9222
          %9224 = vmatprep.mubr.bf16.mxu0 %v9141
          %9225 = vmatmul.mubr.bf16.gmra.mrb[0].mxu0 %v8291
          %v9226 = vpop.f32.mrb[0].mxu0
          %v9227 = vadd.f32 0.0, %v9226
          %v9228 = vpop.f32.mrb[0].mxu0
          %v9229 = vadd.f32 0.0, %v9228
          %v9230 = vpop.f32.mrb[0].mxu0
          %v9231 = vadd.f32 0.0, %v9230
          %v9232 = vpop.f32.mrb[0].mxu0
          %v9233 = vadd.f32 0.0, %v9232
          %9234 = vmatprep.mubr.bf16.mxu0 %v9144
          %9235 = vmatmul.mubr.bf16.gmra.mrb[0].mxu0 %v8293
          %v9236 = vpop.f32.mrb[0].mxu0
          %v9237 = vadd.f32 0.0, %v9236
          %v9238 = vpop.f32.mrb[0].mxu0
          %v9239 = vadd.f32 0.0, %v9238
          %v9240 = vpop.f32.mrb[0].mxu0
          %v9241 = vadd.f32 0.0, %v9240
          %v9242 = vpop.f32.mrb[0].mxu0
          %v9243 = vadd.f32 0.0, %v9242
          %9244 = vmatprep.mubr.bf16.mxu0 %v9147
          %9245 = vmatmul.mubr.bf16.gmra.mrb[0].mxu0 %v8295
          %v9246 = vpop.f32.mrb[0].mxu0
          %v9247 = vadd.f32 0.0, %v9246
          %v9248 = vpop.f32.mrb[0].mxu0
          %v9249 = vadd.f32 0.0, %v9248
          %v9250 = vpop.f32.mrb[0].mxu0
          %v9251 = vadd.f32 0.0, %v9250
          %v9252 = vpop.f32.mrb[0].mxu0
          %v9253 = vadd.f32 0.0, %v9252
          %9254 = vmatprep.mubr.bf16.mxu0 %v9150
          %9255 = vmatmul.mubr.bf16.gmra.mrb[0].mxu0 %v8297
          %v9256 = vpop.f32.mrb[0].mxu0
          %v9257 = vadd.f32 0.0, %v9256
          %v9258 = vpop.f32.mrb[0].mxu0
          %v9259 = vadd.f32 0.0, %v9258
          %v9260 = vpop.f32.mrb[0].mxu0
          %v9261 = vadd.f32 0.0, %v9260
          %v9262 = vpop.f32.mrb[0].mxu0
          %v9263 = vadd.f32 0.0, %v9262
          %9264 = vdwg.mxu0
          %v9289 = vunpack.c.l.b16 %v8959
          %v9290 = vunpack.c.h.b16 %v8959
          %v9291 = vunpack.c.l.b16 %v8960
          %v9292 = vunpack.c.h.b16 %v8960
          %v9293 = vunpack.c.l.b16 %v8961
          %v9294 = vunpack.c.h.b16 %v8961
          %v9295 = vunpack.c.l.b16 %v8962
          %v9296 = vunpack.c.h.b16 %v8962
          %v9297 = vunpack.c.l.b16 %v8963
          %v9298 = vunpack.c.h.b16 %v8963
          %v9299 = vunpack.c.l.b16 %v8964
          %v9300 = vunpack.c.h.b16 %v8964
          %v9301 = vunpack.c.l.b16 %v8965
          %v9302 = vunpack.c.h.b16 %v8965
          %v9303 = vunpack.c.l.b16 %v8966
          %v9304 = vunpack.c.h.b16 %v8966
          %v9305 = vunpack.c.l.b16 %v8967
          %v9306 = vunpack.c.h.b16 %v8967
          %v9307 = vunpack.c.l.b16 %v8968
          %v9308 = vunpack.c.h.b16 %v8968
          %v9309 = vunpack.c.l.b16 %v8969
          %v9310 = vunpack.c.h.b16 %v8969
          %v9311 = vunpack.c.l.b16 %v8970
          %v9312 = vunpack.c.h.b16 %v8970
          %v9313 = vunpack.c.l.b16 %v8971
          %v9314 = vunpack.c.h.b16 %v8971
          %v9315 = vunpack.c.l.b16 %v8972
          %v9316 = vunpack.c.h.b16 %v8972
          %v9317 = vunpack.c.l.b16 %v8973
          %v9318 = vunpack.c.h.b16 %v8973
          %v9319 = vunpack.c.l.b16 %v8974
          %v9320 = vunpack.c.h.b16 %v8974
          %v9321 = vunpack.c.l.b16 %v8975
          %v9322 = vunpack.c.h.b16 %v8975
          %v9323 = vunpack.c.l.b16 %v8976
          %v9324 = vunpack.c.h.b16 %v8976
          %v9325 = vunpack.c.l.b16 %v8977
          %v9326 = vunpack.c.h.b16 %v8977
          %v9327 = vunpack.c.l.b16 %v8978
          %v9328 = vunpack.c.h.b16 %v8978
          %v9329 = vunpack.c.l.b16 %v8979
          %v9330 = vunpack.c.h.b16 %v8979
          %v9331 = vunpack.c.l.b16 %v8980
          %v9332 = vunpack.c.h.b16 %v8980
          %v9333 = vunpack.c.l.b16 %v8981
          %v9334 = vunpack.c.h.b16 %v8981
          %v9335 = vunpack.c.l.b16 %v8982
          %v9336 = vunpack.c.h.b16 %v8982
          %v9337 = vpack.c.b16 %v9291, %v9289
          %v9338 = vpack.c.b16 %v9292, %v9290
          %v9339 = vpack.c.b16 %v9295, %v9293
          %v9340 = vpack.c.b16 %v9296, %v9294
          %v9341 = vpack.c.b16 %v9299, %v9297
          %v9342 = vpack.c.b16 %v9300, %v9298
          %v9343 = vpack.c.b16 %v9303, %v9301
          %v9344 = vpack.c.b16 %v9304, %v9302
          %v9345 = vpack.c.b16 %v9307, %v9305
          %v9346 = vpack.c.b16 %v9308, %v9306
          %v9347 = vpack.c.b16 %v9311, %v9309
          %v9348 = vpack.c.b16 %v9312, %v9310
          %v9349 = vpack.c.b16 %v9315, %v9313
          %v9350 = vpack.c.b16 %v9316, %v9314
          %v9351 = vpack.c.b16 %v9319, %v9317
          %v9352 = vpack.c.b16 %v9320, %v9318
          %v9353 = vpack.c.b16 %v9323, %v9321
          %v9354 = vpack.c.b16 %v9324, %v9322
          %v9355 = vpack.c.b16 %v9327, %v9325
          %v9356 = vpack.c.b16 %v9328, %v9326
          %v9357 = vpack.c.b16 %v9331, %v9329
          %v9358 = vpack.c.b16 %v9332, %v9330
          %v9359 = vpack.c.b16 %v9335, %v9333
          %v9360 = vpack.c.b16 %v9336, %v9334
          %v9386 = vsel %vm900, %v8655, 0
          %v9389 = vsel %vm900, %v8657, 0
          %v9392 = vsel %vm900, %v8659, 0
          %v9395 = vsel %vm900, %v8661, 0
          %v9398 = vsel %vm900, %v8663, 0
          %v9401 = vsel %vm900, %v8665, 0
          %v9404 = vsel %vm900, %v8667, 0
          %v9407 = vsel %vm900, %v8669, 0
          %9409 = vmatprep.subr.bf16.mxu0 %v9338
          %9410 = vmatpush1.bf16.msra.mxu0 %v9337
          %9411 = vmatprep.subr.bf16.mxu0 %v9340
          %9412 = vmatpush1.bf16.msra.mxu0 %v9339
          %9413 = vmatprep.subr.bf16.mxu0 %v9342
          %9414 = vmatpush1.bf16.msra.mxu0 %v9341
          %9415 = vmatprep.subr.bf16.mxu0 %v9344
          %9416 = vmatpush1.bf16.msra.mxu0 %v9343
          %9417 = vmatprep.subr.bf16.mxu0 %v9346
          %9418 = vmatpush1.bf16.msra.mxu0 %v9345
          %9419 = vmatprep.subr.bf16.mxu0 %v9348
          %9420 = vmatpush1.bf16.msra.mxu0 %v9347
          %9421 = vmatprep.subr.bf16.mxu0 %v9350
          %9422 = vmatpush1.bf16.msra.mxu0 %v9349
          %9423 = vmatprep.subr.bf16.mxu0 %v9352
          %9424 = vmatpush1.bf16.msra.mxu0 %v9351
          %9425 = vmatprep.subr.bf16.mxu0 %v9354
          %9426 = vmatpush1.bf16.msra.mxu0 %v9353
          %9427 = vmatprep.subr.bf16.mxu0 %v9356
          %9428 = vmatpush1.bf16.msra.mxu0 %v9355
          %9429 = vmatprep.subr.bf16.mxu0 %v9358
          %9430 = vmatpush1.bf16.msra.mxu0 %v9357
          %9431 = vmatprep.subr.bf16.mxu0 %v9360
          %9432 = vmatpush1.bf16.msra.mxu0 %v9359
          %9433 = vmatprep.subr.bf16.mxu0 0
          %9434 = vmatpush1.bf16.msra.mxu0 0
          %9435 = vmatprep.subr.bf16.mxu0 0
          %9436 = vmatpush1.bf16.msra.mxu0 0
          %9437 = vmatprep.subr.bf16.mxu0 0
          %9438 = vmatpush1.bf16.msra.mxu0 0
          %9439 = vmatprep.subr.bf16.mxu0 0
          %9440 = vmatpush1.bf16.msra.mxu0 0
          %9441 = vmatprep.mubr.bf16.mxu0 %v9386
          %9442 = vmatmul.mubr.bf16.gmra.mrb[0].mxu0 %v8654
          %v9443 = vpop.f32.mrb[0].mxu0
          %v9444 = vadd.f32 %v9187, %v9443
          %v9445 = vpop.f32.mrb[0].mxu0
          %v9446 = vadd.f32 %v9189, %v9445
          %v9447 = vpop.f32.mrb[0].mxu0
          %v9448 = vadd.f32 %v9191, %v9447
          %v9449 = vpop.f32.mrb[0].mxu0
          %v9450 = vadd.f32 %v9193, %v9449
          %9451 = vmatprep.mubr.bf16.mxu0 %v9389
          %9452 = vmatmul.mubr.bf16.gmra.mrb[0].mxu0 %v8656
          %v9453 = vpop.f32.mrb[0].mxu0
          %v9454 = vadd.f32 %v9197, %v9453
          %v9455 = vpop.f32.mrb[0].mxu0
          %v9456 = vadd.f32 %v9199, %v9455
          %v9457 = vpop.f32.mrb[0].mxu0
          %v9458 = vadd.f32 %v9201, %v9457
          %v9459 = vpop.f32.mrb[0].mxu0
          %v9460 = vadd.f32 %v9203, %v9459
          %9461 = vmatprep.mubr.bf16.mxu0 %v9392
          %9462 = vmatmul.mubr.bf16.gmra.mrb[0].mxu0 %v8658
          %v9463 = vpop.f32.mrb[0].mxu0
          %v9464 = vadd.f32 %v9207, %v9463
          %v9465 = vpop.f32.mrb[0].mxu0
          %v9466 = vadd.f32 %v9209, %v9465
          %v9467 = vpop.f32.mrb[0].mxu0
          %v9468 = vadd.f32 %v9211, %v9467
          %v9469 = vpop.f32.mrb[0].mxu0
          %v9470 = vadd.f32 %v9213, %v9469
          %9471 = vmatprep.mubr.bf16.mxu0 %v9395
          %9472 = vmatmul.mubr.bf16.gmra.mrb[0].mxu0 %v8660
          %v9473 = vpop.f32.mrb[0].mxu0
          %v9474 = vadd.f32 %v9217, %v9473
          %v9475 = vpop.f32.mrb[0].mxu0
          %v9476 = vadd.f32 %v9219, %v9475
          %v9477 = vpop.f32.mrb[0].mxu0
          %v9478 = vadd.f32 %v9221, %v9477
          %v9479 = vpop.f32.mrb[0].mxu0
          %v9480 = vadd.f32 %v9223, %v9479
          %9481 = vmatprep.mubr.bf16.mxu0 %v9398
          %9482 = vmatmul.mubr.bf16.gmra.mrb[0].mxu0 %v8662
          %v9483 = vpop.f32.mrb[0].mxu0
          %v9484 = vadd.f32 %v9227, %v9483
          %v9485 = vpop.f32.mrb[0].mxu0
          %v9486 = vadd.f32 %v9229, %v9485
          %v9487 = vpop.f32.mrb[0].mxu0
          %v9488 = vadd.f32 %v9231, %v9487
          %v9489 = vpop.f32.mrb[0].mxu0
          %v9490 = vadd.f32 %v9233, %v9489
          %9491 = vmatprep.mubr.bf16.mxu0 %v9401
          %9492 = vmatmul.mubr.bf16.gmra.mrb[0].mxu0 %v8664
          %v9493 = vpop.f32.mrb[0].mxu0
          %v9494 = vadd.f32 %v9237, %v9493
          %v9495 = vpop.f32.mrb[0].mxu0
          %v9496 = vadd.f32 %v9239, %v9495
          %v9497 = vpop.f32.mrb[0].mxu0
          %v9498 = vadd.f32 %v9241, %v9497
          %v9499 = vpop.f32.mrb[0].mxu0
          %v9500 = vadd.f32 %v9243, %v9499
          %9501 = vmatprep.mubr.bf16.mxu0 %v9404
          %9502 = vmatmul.mubr.bf16.gmra.mrb[0].mxu0 %v8666
          %v9503 = vpop.f32.mrb[0].mxu0
          %v9504 = vadd.f32 %v9247, %v9503
          %v9505 = vpop.f32.mrb[0].mxu0
          %v9506 = vadd.f32 %v9249, %v9505
          %v9507 = vpop.f32.mrb[0].mxu0
          %v9508 = vadd.f32 %v9251, %v9507
          %v9509 = vpop.f32.mrb[0].mxu0
          %v9510 = vadd.f32 %v9253, %v9509
          %9511 = vmatprep.mubr.bf16.mxu0 %v9407
          %9512 = vmatmul.mubr.bf16.gmra.mrb[0].mxu0 %v8668
          %v9513 = vpop.f32.mrb[0].mxu0
          %v9514 = vadd.f32 %v9257, %v9513
          %v9515 = vpop.f32.mrb[0].mxu0
          %v9516 = vadd.f32 %v9259, %v9515
          %v9517 = vpop.f32.mrb[0].mxu0
          %v9518 = vadd.f32 %v9261, %v9517
          %v9519 = vpop.f32.mrb[0].mxu0
          %v9520 = vadd.f32 %v9263, %v9519
          %9521 = vdwg.mxu0
          %s9522 = scalar_lea.vmem %s12, 384
          %v9523 = vld [vmem:[%s9522] sm:$0xff]
          %v9524 = vld [vmem:[%s9522 + $0x8] sm:$0xff]
          %v9525 = vld [vmem:[%s9522 + $0x10] sm:$0xff]
          %v9526 = vld [vmem:[%s9522 + $0x18] sm:$0xff]
          %v9527 = vld [vmem:[%s9522 + $0x20] sm:$0xff]
          %v9528 = vld [vmem:[%s9522 + $0x28] sm:$0xff]
          %v9529 = vld [vmem:[%s9522 + $0x30] sm:$0xff]
          %v9530 = vld [vmem:[%s9522 + $0x38] sm:$0xff]
          %v9531 = vld [vmem:[%s9522 + $0x40] sm:$0xff]
          %v9532 = vld [vmem:[%s9522 + $0x48] sm:$0xff]
          %v9533 = vld [vmem:[%s9522 + $0x50] sm:$0xff]
          %v9534 = vld [vmem:[%s9522 + $0x58] sm:$0xff]
          %v9535 = vld [vmem:[%s9522 + $0x60] sm:$0xff]
          %v9536 = vld [vmem:[%s9522 + $0x68] sm:$0xff]
          %v9537 = vld [vmem:[%s9522 + $0x70] sm:$0xff]
          %v9538 = vld [vmem:[%s9522 + $0x78] sm:$0xff]
          %v9539 = vld [vmem:[%s9522 + $0x80] sm:$0xff]
          %v9540 = vld [vmem:[%s9522 + $0x88] sm:$0xff]
          %v9541 = vld [vmem:[%s9522 + $0x90] sm:$0xff]
          %v9542 = vld [vmem:[%s9522 + $0x98] sm:$0xff]
          %v9543 = vld [vmem:[%s9522 + $0xa0] sm:$0xff]
          %v9544 = vld [vmem:[%s9522 + $0xa8] sm:$0xff]
          %v9545 = vld [vmem:[%s9522 + $0xb0] sm:$0xff]
          %v9546 = vld [vmem:[%s9522 + $0xb8] sm:$0xff]
          %v9571 = vunpack.c.l.b16 %v9523
          %v9572 = vunpack.c.h.b16 %v9523
          %v9573 = vunpack.c.l.b16 %v9524
          %v9574 = vunpack.c.h.b16 %v9524
          %v9575 = vunpack.c.l.b16 %v9525
          %v9576 = vunpack.c.h.b16 %v9525
          %v9577 = vunpack.c.l.b16 %v9526
          %v9578 = vunpack.c.h.b16 %v9526
          %v9579 = vunpack.c.l.b16 %v9527
          %v9580 = vunpack.c.h.b16 %v9527
          %v9581 = vunpack.c.l.b16 %v9528
          %v9582 = vunpack.c.h.b16 %v9528
          %v9583 = vunpack.c.l.b16 %v9529
          %v9584 = vunpack.c.h.b16 %v9529
          %v9585 = vunpack.c.l.b16 %v9530
          %v9586 = vunpack.c.h.b16 %v9530
          %v9587 = vunpack.c.l.b16 %v9531
          %v9588 = vunpack.c.h.b16 %v9531
          %v9589 = vunpack.c.l.b16 %v9532
          %v9590 = vunpack.c.h.b16 %v9532
          %v9591 = vunpack.c.l.b16 %v9533
          %v9592 = vunpack.c.h.b16 %v9533
          %v9593 = vunpack.c.l.b16 %v9534
          %v9594 = vunpack.c.h.b16 %v9534
          %v9595 = vunpack.c.l.b16 %v9535
          %v9596 = vunpack.c.h.b16 %v9535
          %v9597 = vunpack.c.l.b16 %v9536
          %v9598 = vunpack.c.h.b16 %v9536
          %v9599 = vunpack.c.l.b16 %v9537
          %v9600 = vunpack.c.h.b16 %v9537
          %v9601 = vunpack.c.l.b16 %v9538
          %v9602 = vunpack.c.h.b16 %v9538
          %v9603 = vunpack.c.l.b16 %v9539
          %v9604 = vunpack.c.h.b16 %v9539
          %v9605 = vunpack.c.l.b16 %v9540
          %v9606 = vunpack.c.h.b16 %v9540
          %v9607 = vunpack.c.l.b16 %v9541
          %v9608 = vunpack.c.h.b16 %v9541
          %v9609 = vunpack.c.l.b16 %v9542
          %v9610 = vunpack.c.h.b16 %v9542
          %v9611 = vunpack.c.l.b16 %v9543
          %v9612 = vunpack.c.h.b16 %v9543
          %v9613 = vunpack.c.l.b16 %v9544
          %v9614 = vunpack.c.h.b16 %v9544
          %v9615 = vunpack.c.l.b16 %v9545
          %v9616 = vunpack.c.h.b16 %v9545
          %v9617 = vunpack.c.l.b16 %v9546
          %v9618 = vunpack.c.h.b16 %v9546
          %v9619 = vpack.c.b16 %v9573, %v9571
          %v9620 = vpack.c.b16 %v9574, %v9572
          %v9621 = vpack.c.b16 %v9577, %v9575
          %v9622 = vpack.c.b16 %v9578, %v9576
          %v9623 = vpack.c.b16 %v9581, %v9579
          %v9624 = vpack.c.b16 %v9582, %v9580
          %v9625 = vpack.c.b16 %v9585, %v9583
          %v9626 = vpack.c.b16 %v9586, %v9584
          %v9627 = vpack.c.b16 %v9589, %v9587
          %v9628 = vpack.c.b16 %v9590, %v9588
          %v9629 = vpack.c.b16 %v9593, %v9591
          %v9630 = vpack.c.b16 %v9594, %v9592
          %v9631 = vpack.c.b16 %v9597, %v9595
          %v9632 = vpack.c.b16 %v9598, %v9596
          %v9633 = vpack.c.b16 %v9601, %v9599
          %v9634 = vpack.c.b16 %v9602, %v9600
          %v9635 = vpack.c.b16 %v9605, %v9603
          %v9636 = vpack.c.b16 %v9606, %v9604
          %v9637 = vpack.c.b16 %v9609, %v9607
          %v9638 = vpack.c.b16 %v9610, %v9608
          %v9639 = vpack.c.b16 %v9613, %v9611
          %v9640 = vpack.c.b16 %v9614, %v9612
          %v9641 = vpack.c.b16 %v9617, %v9615
          %v9642 = vpack.c.b16 %v9618, %v9616
          %v9668 = vsel %vm900, %v8944, 0
          %v9671 = vsel %vm900, %v8946, 0
          %v9674 = vsel %vm900, %v8948, 0
          %v9677 = vsel %vm900, %v8950, 0
          %v9680 = vsel %vm900, %v8952, 0
          %v9683 = vsel %vm900, %v8954, 0
          %v9686 = vsel %vm900, %v8956, 0
          %v9689 = vsel %vm900, %v8958, 0
          %9691 = vmatprep.subr.bf16.mxu0 %v9620
          %9692 = vmatpush1.bf16.msra.mxu0 %v9619
          %9693 = vmatprep.subr.bf16.mxu0 %v9622
          %9694 = vmatpush1.bf16.msra.mxu0 %v9621
          %9695 = vmatprep.subr.bf16.mxu0 %v9624
          %9696 = vmatpush1.bf16.msra.mxu0 %v9623
          %9697 = vmatprep.subr.bf16.mxu0 %v9626
          %9698 = vmatpush1.bf16.msra.mxu0 %v9625
          %9699 = vmatprep.subr.bf16.mxu0 %v9628
          %9700 = vmatpush1.bf16.msra.mxu0 %v9627
          %9701 = vmatprep.subr.bf16.mxu0 %v9630
          %9702 = vmatpush1.bf16.msra.mxu0 %v9629
          %9703 = vmatprep.subr.bf16.mxu0 %v9632
          %9704 = vmatpush1.bf16.msra.mxu0 %v9631
          %9705 = vmatprep.subr.bf16.mxu0 %v9634
          %9706 = vmatpush1.bf16.msra.mxu0 %v9633
          %9707 = vmatprep.subr.bf16.mxu0 %v9636
          %9708 = vmatpush1.bf16.msra.mxu0 %v9635
          %9709 = vmatprep.subr.bf16.mxu0 %v9638
          %9710 = vmatpush1.bf16.msra.mxu0 %v9637
          %9711 = vmatprep.subr.bf16.mxu0 %v9640
          %9712 = vmatpush1.bf16.msra.mxu0 %v9639
          %9713 = vmatprep.subr.bf16.mxu0 %v9642
          %9714 = vmatpush1.bf16.msra.mxu0 %v9641
          %9715 = vmatprep.subr.bf16.mxu0 0
          %9716 = vmatpush1.bf16.msra.mxu0 0
          %9717 = vmatprep.subr.bf16.mxu0 0
          %9718 = vmatpush1.bf16.msra.mxu0 0
          %9719 = vmatprep.subr.bf16.mxu0 0
          %9720 = vmatpush1.bf16.msra.mxu0 0
          %9721 = vmatprep.subr.bf16.mxu0 0
          %9722 = vmatpush1.bf16.msra.mxu0 0
          %9723 = vmatprep.mubr.bf16.mxu0 %v9668
          %9724 = vmatmul.mubr.bf16.gmra.mrb[0].mxu0 %v8943
          %v9725 = vpop.f32.mrb[0].mxu0
          %v9726 = vadd.f32 0.0, %v9725
          %v9727 = vpop.f32.mrb[0].mxu0
          %v9728 = vadd.f32 0.0, %v9727
          %v9729 = vpop.f32.mrb[0].mxu0
          %v9730 = vadd.f32 0.0, %v9729
          %v9731 = vpop.f32.mrb[0].mxu0
          %v9732 = vadd.f32 0.0, %v9731
          %9733 = vmatprep.mubr.bf16.mxu0 %v9671
          %9734 = vmatmul.mubr.bf16.gmra.mrb[0].mxu0 %v8945
          %v9735 = vpop.f32.mrb[0].mxu0
          %v9736 = vadd.f32 0.0, %v9735
          %v9737 = vpop.f32.mrb[0].mxu0
          %v9738 = vadd.f32 0.0, %v9737
          %v9739 = vpop.f32.mrb[0].mxu0
          %v9740 = vadd.f32 0.0, %v9739
          %v9741 = vpop.f32.mrb[0].mxu0
          %v9742 = vadd.f32 0.0, %v9741
          %9743 = vmatprep.mubr.bf16.mxu0 %v9674
          %9744 = vmatmul.mubr.bf16.gmra.mrb[0].mxu0 %v8947
          %v9745 = vpop.f32.mrb[0].mxu0
          %v9746 = vadd.f32 0.0, %v9745
          %v9747 = vpop.f32.mrb[0].mxu0
          %v9748 = vadd.f32 0.0, %v9747
          %v9749 = vpop.f32.mrb[0].mxu0
          %v9750 = vadd.f32 0.0, %v9749
          %v9751 = vpop.f32.mrb[0].mxu0
          %v9752 = vadd.f32 0.0, %v9751
          %9753 = vmatprep.mubr.bf16.mxu0 %v9677
          %9754 = vmatmul.mubr.bf16.gmra.mrb[0].mxu0 %v8949
          %v9755 = vpop.f32.mrb[0].mxu0
          %v9756 = vadd.f32 0.0, %v9755
          %v9757 = vpop.f32.mrb[0].mxu0
          %v9758 = vadd.f32 0.0, %v9757
          %v9759 = vpop.f32.mrb[0].mxu0
          %v9760 = vadd.f32 0.0, %v9759
          %v9761 = vpop.f32.mrb[0].mxu0
          %v9762 = vadd.f32 0.0, %v9761
          %9763 = vmatprep.mubr.bf16.mxu0 %v9680
          %9764 = vmatmul.mubr.bf16.gmra.mrb[0].mxu0 %v8951
          %v9765 = vpop.f32.mrb[0].mxu0
          %v9766 = vadd.f32 0.0, %v9765
          %v9767 = vpop.f32.mrb[0].mxu0
          %v9768 = vadd.f32 0.0, %v9767
          %v9769 = vpop.f32.mrb[0].mxu0
          %v9770 = vadd.f32 0.0, %v9769
          %v9771 = vpop.f32.mrb[0].mxu0
          %v9772 = vadd.f32 0.0, %v9771
          %9773 = vmatprep.mubr.bf16.mxu0 %v9683
          %9774 = vmatmul.mubr.bf16.gmra.mrb[0].mxu0 %v8953
          %v9775 = vpop.f32.mrb[0].mxu0
          %v9776 = vadd.f32 0.0, %v9775
          %v9777 = vpop.f32.mrb[0].mxu0
          %v9778 = vadd.f32 0.0, %v9777
          %v9779 = vpop.f32.mrb[0].mxu0
          %v9780 = vadd.f32 0.0, %v9779
          %v9781 = vpop.f32.mrb[0].mxu0
          %v9782 = vadd.f32 0.0, %v9781
          %9783 = vmatprep.mubr.bf16.mxu0 %v9686
          %9784 = vmatmul.mubr.bf16.gmra.mrb[0].mxu0 %v8955
          %v9785 = vpop.f32.mrb[0].mxu0
          %v9786 = vadd.f32 0.0, %v9785
          %v9787 = vpop.f32.mrb[0].mxu0
          %v9788 = vadd.f32 0.0, %v9787
          %v9789 = vpop.f32.mrb[0].mxu0
          %v9790 = vadd.f32 0.0, %v9789
          %v9791 = vpop.f32.mrb[0].mxu0
          %v9792 = vadd.f32 0.0, %v9791
          %9793 = vmatprep.mubr.bf16.mxu0 %v9689
          %9794 = vmatmul.mubr.bf16.gmra.mrb[0].mxu0 %v8957
          %v9795 = vpop.f32.mrb[0].mxu0
          %v9796 = vadd.f32 0.0, %v9795
          %v9797 = vpop.f32.mrb[0].mxu0
          %v9798 = vadd.f32 0.0, %v9797
          %v9799 = vpop.f32.mrb[0].mxu0
          %v9800 = vadd.f32 0.0, %v9799
          %v9801 = vpop.f32.mrb[0].mxu0
          %v9802 = vadd.f32 0.0, %v9801
          %9803 = vdwg.mxu0
          %v9804 = vadd.f32 %v9444, %v9726
          %v9805 = vadd.f32 %v9446, %v9728
          %v9806 = vadd.f32 %v9448, %v9730
          %v9807 = vadd.f32 %v9450, %v9732
          %v9808 = vadd.f32 %v9454, %v9736
          %v9809 = vadd.f32 %v9456, %v9738
          %v9810 = vadd.f32 %v9458, %v9740
          %v9811 = vadd.f32 %v9460, %v9742
          %v9812 = vadd.f32 %v9464, %v9746
          %v9813 = vadd.f32 %v9466, %v9748
          %v9814 = vadd.f32 %v9468, %v9750
          %v9815 = vadd.f32 %v9470, %v9752
          %v9816 = vadd.f32 %v9474, %v9756
          %v9817 = vadd.f32 %v9476, %v9758
          %v9818 = vadd.f32 %v9478, %v9760
          %v9819 = vadd.f32 %v9480, %v9762
          %v9820 = vadd.f32 %v9484, %v9766
          %v9821 = vadd.f32 %v9486, %v9768
          %v9822 = vadd.f32 %v9488, %v9770
          %v9823 = vadd.f32 %v9490, %v9772
          %v9824 = vadd.f32 %v9494, %v9776
          %v9825 = vadd.f32 %v9496, %v9778
          %v9826 = vadd.f32 %v9498, %v9780
          %v9827 = vadd.f32 %v9500, %v9782
          %v9828 = vadd.f32 %v9504, %v9786
          %v9829 = vadd.f32 %v9506, %v9788
          %v9830 = vadd.f32 %v9508, %v9790
          %v9831 = vadd.f32 %v9510, %v9792
          %v9832 = vadd.f32 %v9514, %v9796
          %v9833 = vadd.f32 %v9516, %v9798
          %v9834 = vadd.f32 %v9518, %v9800
          %v9835 = vadd.f32 %v9520, %v9802
          %v9836 = vld [vmem:[%s13] sm:$0x3]
          %v9838 = vlaneseq
          %v9839 = vshrl.u32 %v9838, 7
          %v9840 = vsub.s32 0, %v9839
          %v9841 = vrot.slane %v9836, %v9840
          %v9842 = vlaneseq
          %v9843 = vshrl.u32 %v9842, 7
          %v9844 = vsub.s32 1, %v9843
          %v9845 = vrot.slane %v9836, %v9844
          %v9848 = vmul.f32 %v9804, %v9841
          %v9849 = vmul.f32 %v9805, %v9845
          %v9850 = vmul.f32 %v9806, %v9841
          %v9851 = vmul.f32 %v9807, %v9845
          %v9852 = vmul.f32 %v9808, %v9841
          %v9853 = vmul.f32 %v9809, %v9845
          %v9854 = vmul.f32 %v9810, %v9841
          %v9855 = vmul.f32 %v9811, %v9845
          %v9856 = vmul.f32 %v9812, %v9841
          %v9857 = vmul.f32 %v9813, %v9845
          %v9858 = vmul.f32 %v9814, %v9841
          %v9859 = vmul.f32 %v9815, %v9845
          %v9860 = vmul.f32 %v9816, %v9841
          %v9861 = vmul.f32 %v9817, %v9845
          %v9862 = vmul.f32 %v9818, %v9841
          %v9863 = vmul.f32 %v9819, %v9845
          %v9864 = vmul.f32 %v9820, %v9841
          %v9865 = vmul.f32 %v9821, %v9845
          %v9866 = vmul.f32 %v9822, %v9841
          %v9867 = vmul.f32 %v9823, %v9845
          %v9868 = vmul.f32 %v9824, %v9841
          %v9869 = vmul.f32 %v9825, %v9845
          %v9870 = vmul.f32 %v9826, %v9841
          %v9871 = vmul.f32 %v9827, %v9845
          %v9872 = vmul.f32 %v9828, %v9841
          %v9873 = vmul.f32 %v9829, %v9845
          %v9874 = vmul.f32 %v9830, %v9841
          %v9875 = vmul.f32 %v9831, %v9845
          %v9876 = vmul.f32 %v9832, %v9841
          %v9877 = vmul.f32 %v9833, %v9845
          %v9878 = vmul.f32 %v9834, %v9841
          %v9879 = vmul.f32 %v9835, %v9845
          %v9880 = vld [vmem:[%s14] sm:$0x3]
          %v9882 = vlaneseq
          %v9883 = vshrl.u32 %v9882, 7
          %v9884 = vsub.s32 0, %v9883
          %v9885 = vrot.slane %v9880, %v9884
          %v9886 = vlaneseq
          %v9887 = vshrl.u32 %v9886, 7
          %v9888 = vsub.s32 1, %v9887
          %v9889 = vrot.slane %v9880, %v9888
          %v9892 = vadd.f32 %v9848, %v9885
          %v9893 = vadd.f32 %v9849, %v9889
          %v9894 = vadd.f32 %v9850, %v9885
          %v9895 = vadd.f32 %v9851, %v9889
          %v9896 = vadd.f32 %v9852, %v9885
          %v9897 = vadd.f32 %v9853, %v9889
          %v9898 = vadd.f32 %v9854, %v9885
          %v9899 = vadd.f32 %v9855, %v9889
          %v9900 = vadd.f32 %v9856, %v9885
          %v9901 = vadd.f32 %v9857, %v9889
          %v9902 = vadd.f32 %v9858, %v9885
          %v9903 = vadd.f32 %v9859, %v9889
          %v9904 = vadd.f32 %v9860, %v9885
          %v9905 = vadd.f32 %v9861, %v9889
          %v9906 = vadd.f32 %v9862, %v9885
          %v9907 = vadd.f32 %v9863, %v9889
          %v9908 = vadd.f32 %v9864, %v9885
          %v9909 = vadd.f32 %v9865, %v9889
          %v9910 = vadd.f32 %v9866, %v9885
          %v9911 = vadd.f32 %v9867, %v9889
          %v9912 = vadd.f32 %v9868, %v9885
          %v9913 = vadd.f32 %v9869, %v9889
          %v9914 = vadd.f32 %v9870, %v9885
          %v9915 = vadd.f32 %v9871, %v9889
          %v9916 = vadd.f32 %v9872, %v9885
          %v9917 = vadd.f32 %v9873, %v9889
          %v9918 = vadd.f32 %v9874, %v9885
          %v9919 = vadd.f32 %v9875, %v9889
          %v9920 = vadd.f32 %v9876, %v9885
          %v9921 = vadd.f32 %v9877, %v9889
          %v9922 = vadd.f32 %v9878, %v9885
          %v9923 = vadd.f32 %v9879, %v9889
          %v9924 = vmax.f32 %v9892, 0.0
          %v9925 = vmax.f32 %v9893, 0.0
          %v9926 = vmax.f32 %v9894, 0.0
          %v9927 = vmax.f32 %v9895, 0.0
          %v9928 = vmax.f32 %v9896, 0.0
          %v9929 = vmax.f32 %v9897, 0.0
          %v9930 = vmax.f32 %v9898, 0.0
          %v9931 = vmax.f32 %v9899, 0.0
          %v9932 = vmax.f32 %v9900, 0.0
          %v9933 = vmax.f32 %v9901, 0.0
          %v9934 = vmax.f32 %v9902, 0.0
          %v9935 = vmax.f32 %v9903, 0.0
          %v9936 = vmax.f32 %v9904, 0.0
          %v9937 = vmax.f32 %v9905, 0.0
          %v9938 = vmax.f32 %v9906, 0.0
          %v9939 = vmax.f32 %v9907, 0.0
          %v9940 = vmax.f32 %v9908, 0.0
          %v9941 = vmax.f32 %v9909, 0.0
          %v9942 = vmax.f32 %v9910, 0.0
          %v9943 = vmax.f32 %v9911, 0.0
          %v9944 = vmax.f32 %v9912, 0.0
          %v9945 = vmax.f32 %v9913, 0.0
          %v9946 = vmax.f32 %v9914, 0.0
          %v9947 = vmax.f32 %v9915, 0.0
          %v9948 = vmax.f32 %v9916, 0.0
          %v9949 = vmax.f32 %v9917, 0.0
          %v9950 = vmax.f32 %v9918, 0.0
          %v9951 = vmax.f32 %v9919, 0.0
          %v9952 = vmax.f32 %v9920, 0.0
          %v9953 = vmax.f32 %v9921, 0.0
          %v9954 = vmax.f32 %v9922, 0.0
          %v9955 = vmax.f32 %v9923, 0.0
          %v9956 = vpack.c.bf16 %v9926, %v9924
          %v9957 = vpack.c.bf16 %v9927, %v9925
          %v9958 = vpack.c.bf16 %v9930, %v9928
          %v9959 = vpack.c.bf16 %v9931, %v9929
          %v9960 = vpack.c.bf16 %v9934, %v9932
          %v9961 = vpack.c.bf16 %v9935, %v9933
          %v9962 = vpack.c.bf16 %v9938, %v9936
          %v9963 = vpack.c.bf16 %v9939, %v9937
          %v9964 = vpack.c.bf16 %v9942, %v9940
          %v9965 = vpack.c.bf16 %v9943, %v9941
          %v9966 = vpack.c.bf16 %v9946, %v9944
          %v9967 = vpack.c.bf16 %v9947, %v9945
          %v9968 = vpack.c.bf16 %v9950, %v9948
          %v9969 = vpack.c.bf16 %v9951, %v9949
          %v9970 = vpack.c.bf16 %v9954, %v9952
          %v9971 = vpack.c.bf16 %v9955, %v9953
          %s9972 = scalar_lea.vmem [#allocation2], 128
          %9973 = vst [vmem:[%s9972] sm:$0xff] %v9956
          %9974 = vst.msk [vmem:[%s9972 + $0x8] sm:$0xff] %vm900, %v9957
          %9975 = vst [vmem:[%s9972 + $0x10] sm:$0xff] %v9958
          %9976 = vst.msk [vmem:[%s9972 + $0x18] sm:$0xff] %vm900, %v9959
          %9977 = vst [vmem:[%s9972 + $0x20] sm:$0xff] %v9960
          %9978 = vst.msk [vmem:[%s9972 + $0x28] sm:$0xff] %vm900, %v9961
          %9979 = vst [vmem:[%s9972 + $0x30] sm:$0xff] %v9962
          %9980 = vst.msk [vmem:[%s9972 + $0x38] sm:$0xff] %vm900, %v9963
          %9981 = vst [vmem:[%s9972 + $0x40] sm:$0xff] %v9964
          %9982 = vst.msk [vmem:[%s9972 + $0x48] sm:$0xff] %vm900, %v9965
          %9983 = vst [vmem:[%s9972 + $0x50] sm:$0xff] %v9966
          %9984 = vst.msk [vmem:[%s9972 + $0x58] sm:$0xff] %vm900, %v9967
          %9985 = vst [vmem:[%s9972 + $0x60] sm:$0xff] %v9968
          %9986 = vst.msk [vmem:[%s9972 + $0x68] sm:$0xff] %vm900, %v9969
          %9987 = vst [vmem:[%s9972 + $0x70] sm:$0xff] %v9970
          %9988 = vst.msk [vmem:[%s9972 + $0x78] sm:$0xff] %vm900, %v9971
        $region153: #{block8_forward.1} parent=140 // pred_fallthru
          _
        %v9989 = vld [vmem:[#allocation2] sm:$0xff]
        %v9990 = vld [vmem:[#allocation2 + $0x8] sm:$0xff]
        %v9991 = vld [vmem:[#allocation2 + $0x10] sm:$0xff]
        %v9992 = vld [vmem:[#allocation2 + $0x18] sm:$0xff]
        %v9993 = vld [vmem:[#allocation2 + $0x20] sm:$0xff]
        %v9994 = vld [vmem:[#allocation2 + $0x28] sm:$0xff]
        %v9995 = vld [vmem:[#allocation2 + $0x30] sm:$0xff]
        %v9996 = vld [vmem:[#allocation2 + $0x38] sm:$0xff]
        %v9997 = vld [vmem:[#allocation2 + $0x40] sm:$0xff]
        %v9998 = vld [vmem:[#allocation2 + $0x48] sm:$0xff]
        %v9999 = vld [vmem:[#allocation2 + $0x50] sm:$0xff]
        %v10000 = vld [vmem:[#allocation2 + $0x58] sm:$0xff]
        %v10001 = vld [vmem:[#allocation2 + $0x60] sm:$0xff]
        %v10002 = vld [vmem:[#allocation2 + $0x68] sm:$0xff]
        %v10003 = vld [vmem:[#allocation2 + $0x70] sm:$0xff]
        %v10004 = vld [vmem:[#allocation2 + $0x78] sm:$0xff]
        %v10005 = vld [vmem:[%s829] sm:$0xff]
        %v10006 = vld [vmem:[%s829 + $0x8] sm:$0xff]
        %v10007 = vld [vmem:[%s829 + $0x10] sm:$0xff]
        %v10008 = vld [vmem:[%s829 + $0x18] sm:$0xff]
        %v10009 = vld [vmem:[%s829 + $0x20] sm:$0xff]
        %v10010 = vld [vmem:[%s829 + $0x28] sm:$0xff]
        %v10011 = vld [vmem:[%s829 + $0x30] sm:$0xff]
        %v10012 = vld [vmem:[%s829 + $0x38] sm:$0xff]
        %v10013 = vld [vmem:[%s829 + $0x40] sm:$0xff]
        %v10014 = vld [vmem:[%s829 + $0x48] sm:$0xff]
        %v10015 = vld [vmem:[%s829 + $0x50] sm:$0xff]
        %v10016 = vld [vmem:[%s829 + $0x58] sm:$0xff]
        %v10017 = vld [vmem:[%s829 + $0x60] sm:$0xff]
        %v10018 = vld [vmem:[%s829 + $0x68] sm:$0xff]
        %v10019 = vld [vmem:[%s829 + $0x70] sm:$0xff]
        %v10020 = vld [vmem:[%s829 + $0x78] sm:$0xff]
        %v10021 = vld [vmem:[%s829 + $0x80] sm:$0xff]
        %v10022 = vld [vmem:[%s829 + $0x88] sm:$0xff]
        %v10023 = vld [vmem:[%s829 + $0x90] sm:$0xff]
        %v10024 = vld [vmem:[%s829 + $0x98] sm:$0xff]
        %v10025 = vld [vmem:[%s829 + $0xa0] sm:$0xff]
        %v10026 = vld [vmem:[%s829 + $0xa8] sm:$0xff]
        %v10027 = vld [vmem:[%s829 + $0xb0] sm:$0xff]
        %v10028 = vld [vmem:[%s829 + $0xb8] sm:$0xff]
        %s10029 = scalar_lea.vmem [#allocation2], 128
        %v10030 = vld [vmem:[%s10029] sm:$0xff]
        %v10031 = vld [vmem:[%s10029 + $0x8] sm:$0xff]
        %v10032 = vld [vmem:[%s10029 + $0x10] sm:$0xff]
        %v10033 = vld [vmem:[%s10029 + $0x18] sm:$0xff]
        %v10034 = vld [vmem:[%s10029 + $0x20] sm:$0xff]
        %v10035 = vld [vmem:[%s10029 + $0x28] sm:$0xff]
        %v10036 = vld [vmem:[%s10029 + $0x30] sm:$0xff]
        %v10037 = vld [vmem:[%s10029 + $0x38] sm:$0xff]
        %v10038 = vld [vmem:[%s10029 + $0x40] sm:$0xff]
        %v10039 = vld [vmem:[%s10029 + $0x48] sm:$0xff]
        %v10040 = vld [vmem:[%s10029 + $0x50] sm:$0xff]
        %v10041 = vld [vmem:[%s10029 + $0x58] sm:$0xff]
        %v10042 = vld [vmem:[%s10029 + $0x60] sm:$0xff]
        %v10043 = vld [vmem:[%s10029 + $0x68] sm:$0xff]
        %v10044 = vld [vmem:[%s10029 + $0x70] sm:$0xff]
        %v10045 = vld [vmem:[%s10029 + $0x78] sm:$0xff]
        %s10046 = scalar_lea.vmem %s829, 192 [#allocation5]
        %v10047 = vld [vmem:[%s10046] sm:$0xff]
        %v10048 = vld [vmem:[%s10046 + $0x8] sm:$0xff]
        %v10049 = vld [vmem:[%s10046 + $0x10] sm:$0xff]
        %v10050 = vld [vmem:[%s10046 + $0x18] sm:$0xff]
        %v10051 = vld [vmem:[%s10046 + $0x20] sm:$0xff]
        %v10052 = vld [vmem:[%s10046 + $0x28] sm:$0xff]
        %v10053 = vld [vmem:[%s10046 + $0x30] sm:$0xff]
        %v10054 = vld [vmem:[%s10046 + $0x38] sm:$0xff]
        %v10055 = vld [vmem:[%s10046 + $0x40] sm:$0xff]
        %v10056 = vld [vmem:[%s10046 + $0x48] sm:$0xff]
        %v10057 = vld [vmem:[%s10046 + $0x50] sm:$0xff]
        %v10058 = vld [vmem:[%s10046 + $0x58] sm:$0xff]
        %v10059 = vld [vmem:[%s10046 + $0x60] sm:$0xff]
        %v10060 = vld [vmem:[%s10046 + $0x68] sm:$0xff]
        %v10061 = vld [vmem:[%s10046 + $0x70] sm:$0xff]
        %v10062 = vld [vmem:[%s10046 + $0x78] sm:$0xff]
        %v10063 = vld [vmem:[%s10046 + $0x80] sm:$0xff]
        %v10064 = vld [vmem:[%s10046 + $0x88] sm:$0xff]
        %v10065 = vld [vmem:[%s10046 + $0x90] sm:$0xff]
        %v10066 = vld [vmem:[%s10046 + $0x98] sm:$0xff]
        %v10067 = vld [vmem:[%s10046 + $0xa0] sm:$0xff]
        %v10068 = vld [vmem:[%s10046 + $0xa8] sm:$0xff]
        %v10069 = vld [vmem:[%s10046 + $0xb0] sm:$0xff]
        %v10070 = vld [vmem:[%s10046 + $0xb8] sm:$0xff]
        %v10095 = vunpack.c.l.b16 %v10047
        %v10096 = vunpack.c.h.b16 %v10047
        %v10097 = vunpack.c.l.b16 %v10048
        %v10098 = vunpack.c.h.b16 %v10048
        %v10099 = vunpack.c.l.b16 %v10049
        %v10100 = vunpack.c.h.b16 %v10049
        %v10101 = vunpack.c.l.b16 %v10050
        %v10102 = vunpack.c.h.b16 %v10050
        %v10103 = vunpack.c.l.b16 %v10051
        %v10104 = vunpack.c.h.b16 %v10051
        %v10105 = vunpack.c.l.b16 %v10052
        %v10106 = vunpack.c.h.b16 %v10052
        %v10107 = vunpack.c.l.b16 %v10053
        %v10108 = vunpack.c.h.b16 %v10053
        %v10109 = vunpack.c.l.b16 %v10054
        %v10110 = vunpack.c.h.b16 %v10054
        %v10111 = vunpack.c.l.b16 %v10055
        %v10112 = vunpack.c.h.b16 %v10055
        %v10113 = vunpack.c.l.b16 %v10056
        %v10114 = vunpack.c.h.b16 %v10056
        %v10115 = vunpack.c.l.b16 %v10057
        %v10116 = vunpack.c.h.b16 %v10057
        %v10117 = vunpack.c.l.b16 %v10058
        %v10118 = vunpack.c.h.b16 %v10058
        %v10119 = vunpack.c.l.b16 %v10059
        %v10120 = vunpack.c.h.b16 %v10059
        %v10121 = vunpack.c.l.b16 %v10060
        %v10122 = vunpack.c.h.b16 %v10060
        %v10123 = vunpack.c.l.b16 %v10061
        %v10124 = vunpack.c.h.b16 %v10061
        %v10125 = vunpack.c.l.b16 %v10062
        %v10126 = vunpack.c.h.b16 %v10062
        %v10127 = vunpack.c.l.b16 %v10063
        %v10128 = vunpack.c.h.b16 %v10063
        %v10129 = vunpack.c.l.b16 %v10064
        %v10130 = vunpack.c.h.b16 %v10064
        %v10131 = vunpack.c.l.b16 %v10065
        %v10132 = vunpack.c.h.b16 %v10065
        %v10133 = vunpack.c.l.b16 %v10066
        %v10134 = vunpack.c.h.b16 %v10066
        %v10135 = vunpack.c.l.b16 %v10067
        %v10136 = vunpack.c.h.b16 %v10067
        %v10137 = vunpack.c.l.b16 %v10068
        %v10138 = vunpack.c.h.b16 %v10068
        %v10139 = vunpack.c.l.b16 %v10069
        %v10140 = vunpack.c.h.b16 %v10069
        %v10141 = vunpack.c.l.b16 %v10070
        %v10142 = vunpack.c.h.b16 %v10070
        %v10143 = vpack.c.b16 %v10097, %v10095
        %v10144 = vpack.c.b16 %v10098, %v10096
        %v10145 = vpack.c.b16 %v10101, %v10099
        %v10146 = vpack.c.b16 %v10102, %v10100
        %v10147 = vpack.c.b16 %v10105, %v10103
        %v10148 = vpack.c.b16 %v10106, %v10104
        %v10149 = vpack.c.b16 %v10109, %v10107
        %v10150 = vpack.c.b16 %v10110, %v10108
        %v10151 = vpack.c.b16 %v10113, %v10111
        %v10152 = vpack.c.b16 %v10114, %v10112
        %v10153 = vpack.c.b16 %v10117, %v10115
        %v10154 = vpack.c.b16 %v10118, %v10116
        %v10155 = vpack.c.b16 %v10121, %v10119
        %v10156 = vpack.c.b16 %v10122, %v10120
        %v10157 = vpack.c.b16 %v10125, %v10123
        %v10158 = vpack.c.b16 %v10126, %v10124
        %v10159 = vpack.c.b16 %v10129, %v10127
        %v10160 = vpack.c.b16 %v10130, %v10128
        %v10161 = vpack.c.b16 %v10133, %v10131
        %v10162 = vpack.c.b16 %v10134, %v10132
        %v10163 = vpack.c.b16 %v10137, %v10135
        %v10164 = vpack.c.b16 %v10138, %v10136
        %v10165 = vpack.c.b16 %v10141, %v10139
        %v10166 = vpack.c.b16 %v10142, %v10140
        %vm10191 = vcmask 523264
        %v10193 = vsel %vm10191, %v10031, 0
        %v10196 = vsel %vm10191, %v10033, 0
        %v10199 = vsel %vm10191, %v10035, 0
        %v10202 = vsel %vm10191, %v10037, 0
        %v10205 = vsel %vm10191, %v10039, 0
        %v10208 = vsel %vm10191, %v10041, 0
        %v10211 = vsel %vm10191, %v10043, 0
        %v10214 = vsel %vm10191, %v10045, 0
        %10216 = vmatprep.subr.bf16.mxu0 %v10144
        %10217 = vmatpush1.bf16.msra.mxu0 %v10143
        %10218 = vmatprep.subr.bf16.mxu0 %v10146
        %10219 = vmatpush1.bf16.msra.mxu0 %v10145
        %10220 = vmatprep.subr.bf16.mxu0 %v10148
        %10221 = vmatpush1.bf16.msra.mxu0 %v10147
        %10222 = vmatprep.subr.bf16.mxu0 %v10150
        %10223 = vmatpush1.bf16.msra.mxu0 %v10149
        %10224 = vmatprep.subr.bf16.mxu0 %v10152
        %10225 = vmatpush1.bf16.msra.mxu0 %v10151
        %10226 = vmatprep.subr.bf16.mxu0 %v10154
        %10227 = vmatpush1.bf16.msra.mxu0 %v10153
        %10228 = vmatprep.subr.bf16.mxu0 %v10156
        %10229 = vmatpush1.bf16.msra.mxu0 %v10155
        %10230 = vmatprep.subr.bf16.mxu0 %v10158
        %10231 = vmatpush1.bf16.msra.mxu0 %v10157
        %10232 = vmatprep.subr.bf16.mxu0 %v10160
        %10233 = vmatpush1.bf16.msra.mxu0 %v10159
        %10234 = vmatprep.subr.bf16.mxu0 %v10162
        %10235 = vmatpush1.bf16.msra.mxu0 %v10161
        %10236 = vmatprep.subr.bf16.mxu0 %v10164
        %10237 = vmatpush1.bf16.msra.mxu0 %v10163
        %10238 = vmatprep.subr.bf16.mxu0 %v10166
        %10239 = vmatpush1.bf16.msra.mxu0 %v10165
        %10240 = vmatprep.subr.bf16.mxu0 0
        %10241 = vmatpush1.bf16.msra.mxu0 0
        %10242 = vmatprep.subr.bf16.mxu0 0
        %10243 = vmatpush1.bf16.msra.mxu0 0
        %10244 = vmatprep.subr.bf16.mxu0 0
        %10245 = vmatpush1.bf16.msra.mxu0 0
        %10246 = vmatprep.subr.bf16.mxu0 0
        %10247 = vmatpush1.bf16.msra.mxu0 0
        %10248 = vmatprep.mubr.bf16.mxu0 %v10193
        %10249 = vmatmul.mubr.bf16.gmra.mrb[0].mxu0 %v10030
        %v10250 = vpop.f32.mrb[0].mxu0
        %v10251 = vadd.f32 0.0, %v10250
        %v10252 = vpop.f32.mrb[0].mxu0
        %v10253 = vadd.f32 0.0, %v10252
        %v10254 = vpop.f32.mrb[0].mxu0
        %v10255 = vadd.f32 0.0, %v10254
        %v10256 = vpop.f32.mrb[0].mxu0
        %v10257 = vadd.f32 0.0, %v10256
        %10258 = vmatprep.mubr.bf16.mxu0 %v10196
        %10259 = vmatmul.mubr.bf16.gmra.mrb[0].mxu0 %v10032
        %v10260 = vpop.f32.mrb[0].mxu0
        %v10261 = vadd.f32 0.0, %v10260
        %v10262 = vpop.f32.mrb[0].mxu0
        %v10263 = vadd.f32 0.0, %v10262
        %v10264 = vpop.f32.mrb[0].mxu0
        %v10265 = vadd.f32 0.0, %v10264
        %v10266 = vpop.f32.mrb[0].mxu0
        %v10267 = vadd.f32 0.0, %v10266
        %10268 = vmatprep.mubr.bf16.mxu0 %v10199
        %10269 = vmatmul.mubr.bf16.gmra.mrb[0].mxu0 %v10034
        %v10270 = vpop.f32.mrb[0].mxu0
        %v10271 = vadd.f32 0.0, %v10270
        %v10272 = vpop.f32.mrb[0].mxu0
        %v10273 = vadd.f32 0.0, %v10272
        %v10274 = vpop.f32.mrb[0].mxu0
        %v10275 = vadd.f32 0.0, %v10274
        %v10276 = vpop.f32.mrb[0].mxu0
        %v10277 = vadd.f32 0.0, %v10276
        %10278 = vmatprep.mubr.bf16.mxu0 %v10202
        %10279 = vmatmul.mubr.bf16.gmra.mrb[0].mxu0 %v10036
        %v10280 = vpop.f32.mrb[0].mxu0
        %v10281 = vadd.f32 0.0, %v10280
        %v10282 = vpop.f32.mrb[0].mxu0
        %v10283 = vadd.f32 0.0, %v10282
        %v10284 = vpop.f32.mrb[0].mxu0
        %v10285 = vadd.f32 0.0, %v10284
        %v10286 = vpop.f32.mrb[0].mxu0
        %v10287 = vadd.f32 0.0, %v10286
        %10288 = vmatprep.mubr.bf16.mxu0 %v10205
        %10289 = vmatmul.mubr.bf16.gmra.mrb[0].mxu0 %v10038
        %v10290 = vpop.f32.mrb[0].mxu0
        %v10291 = vadd.f32 0.0, %v10290
        %v10292 = vpop.f32.mrb[0].mxu0
        %v10293 = vadd.f32 0.0, %v10292
        %v10294 = vpop.f32.mrb[0].mxu0
        %v10295 = vadd.f32 0.0, %v10294
        %v10296 = vpop.f32.mrb[0].mxu0
        %v10297 = vadd.f32 0.0, %v10296
        %10298 = vmatprep.mubr.bf16.mxu0 %v10208
        %10299 = vmatmul.mubr.bf16.gmra.mrb[0].mxu0 %v10040
        %v10300 = vpop.f32.mrb[0].mxu0
        %v10301 = vadd.f32 0.0, %v10300
        %v10302 = vpop.f32.mrb[0].mxu0
        %v10303 = vadd.f32 0.0, %v10302
        %v10304 = vpop.f32.mrb[0].mxu0
        %v10305 = vadd.f32 0.0, %v10304
        %v10306 = vpop.f32.mrb[0].mxu0
        %v10307 = vadd.f32 0.0, %v10306
        %10308 = vmatprep.mubr.bf16.mxu0 %v10211
        %10309 = vmatmul.mubr.bf16.gmra.mrb[0].mxu0 %v10042
        %v10310 = vpop.f32.mrb[0].mxu0
        %v10311 = vadd.f32 0.0, %v10310
        %v10312 = vpop.f32.mrb[0].mxu0
        %v10313 = vadd.f32 0.0, %v10312
        %v10314 = vpop.f32.mrb[0].mxu0
        %v10315 = vadd.f32 0.0, %v10314
        %v10316 = vpop.f32.mrb[0].mxu0
        %v10317 = vadd.f32 0.0, %v10316
        %10318 = vmatprep.mubr.bf16.mxu0 %v10214
        %10319 = vmatmul.mubr.bf16.gmra.mrb[0].mxu0 %v10044
        %v10320 = vpop.f32.mrb[0].mxu0
        %v10321 = vadd.f32 0.0, %v10320
        %v10322 = vpop.f32.mrb[0].mxu0
        %v10323 = vadd.f32 0.0, %v10322
        %v10324 = vpop.f32.mrb[0].mxu0
        %v10325 = vadd.f32 0.0, %v10324
        %v10326 = vpop.f32.mrb[0].mxu0
        %v10327 = vadd.f32 0.0, %v10326
        %10328 = vdwg.mxu0
        %v10353 = vunpack.c.l.b16 %v10005
        %v10354 = vunpack.c.h.b16 %v10005
        %v10355 = vunpack.c.l.b16 %v10006
        %v10356 = vunpack.c.h.b16 %v10006
        %v10357 = vunpack.c.l.b16 %v10007
        %v10358 = vunpack.c.h.b16 %v10007
        %v10359 = vunpack.c.l.b16 %v10008
        %v10360 = vunpack.c.h.b16 %v10008
        %v10361 = vunpack.c.l.b16 %v10009
        %v10362 = vunpack.c.h.b16 %v10009
        %v10363 = vunpack.c.l.b16 %v10010
        %v10364 = vunpack.c.h.b16 %v10010
        %v10365 = vunpack.c.l.b16 %v10011
        %v10366 = vunpack.c.h.b16 %v10011
        %v10367 = vunpack.c.l.b16 %v10012
        %v10368 = vunpack.c.h.b16 %v10012
        %v10369 = vunpack.c.l.b16 %v10013
        %v10370 = vunpack.c.h.b16 %v10013
        %v10371 = vunpack.c.l.b16 %v10014
        %v10372 = vunpack.c.h.b16 %v10014
        %v10373 = vunpack.c.l.b16 %v10015
        %v10374 = vunpack.c.h.b16 %v10015
        %v10375 = vunpack.c.l.b16 %v10016
        %v10376 = vunpack.c.h.b16 %v10016
        %v10377 = vunpack.c.l.b16 %v10017
        %v10378 = vunpack.c.h.b16 %v10017
        %v10379 = vunpack.c.l.b16 %v10018
        %v10380 = vunpack.c.h.b16 %v10018
        %v10381 = vunpack.c.l.b16 %v10019
        %v10382 = vunpack.c.h.b16 %v10019
        %v10383 = vunpack.c.l.b16 %v10020
        %v10384 = vunpack.c.h.b16 %v10020
        %v10385 = vunpack.c.l.b16 %v10021
        %v10386 = vunpack.c.h.b16 %v10021
        %v10387 = vunpack.c.l.b16 %v10022
        %v10388 = vunpack.c.h.b16 %v10022
        %v10389 = vunpack.c.l.b16 %v10023
        %v10390 = vunpack.c.h.b16 %v10023
        %v10391 = vunpack.c.l.b16 %v10024
        %v10392 = vunpack.c.h.b16 %v10024
        %v10393 = vunpack.c.l.b16 %v10025
        %v10394 = vunpack.c.h.b16 %v10025
        %v10395 = vunpack.c.l.b16 %v10026
        %v10396 = vunpack.c.h.b16 %v10026
        %v10397 = vunpack.c.l.b16 %v10027
        %v10398 = vunpack.c.h.b16 %v10027
        %v10399 = vunpack.c.l.b16 %v10028
        %v10400 = vunpack.c.h.b16 %v10028
        %v10401 = vpack.c.b16 %v10355, %v10353
        %v10402 = vpack.c.b16 %v10356, %v10354
        %v10403 = vpack.c.b16 %v10359, %v10357
        %v10404 = vpack.c.b16 %v10360, %v10358
        %v10405 = vpack.c.b16 %v10363, %v10361
        %v10406 = vpack.c.b16 %v10364, %v10362
        %v10407 = vpack.c.b16 %v10367, %v10365
        %v10408 = vpack.c.b16 %v10368, %v10366
        %v10409 = vpack.c.b16 %v10371, %v10369
        %v10410 = vpack.c.b16 %v10372, %v10370
        %v10411 = vpack.c.b16 %v10375, %v10373
        %v10412 = vpack.c.b16 %v10376, %v10374
        %v10413 = vpack.c.b16 %v10379, %v10377
        %v10414 = vpack.c.b16 %v10380, %v10378
        %v10415 = vpack.c.b16 %v10383, %v10381
        %v10416 = vpack.c.b16 %v10384, %v10382
        %v10417 = vpack.c.b16 %v10387, %v10385
        %v10418 = vpack.c.b16 %v10388, %v10386
        %v10419 = vpack.c.b16 %v10391, %v10389
        %v10420 = vpack.c.b16 %v10392, %v10390
        %v10421 = vpack.c.b16 %v10395, %v10393
        %v10422 = vpack.c.b16 %v10396, %v10394
        %v10423 = vpack.c.b16 %v10399, %v10397
        %v10424 = vpack.c.b16 %v10400, %v10398
        %v10450 = vsel %vm10191, %v9990, 0
        %v10453 = vsel %vm10191, %v9992, 0
        %v10456 = vsel %vm10191, %v9994, 0
        %v10459 = vsel %vm10191, %v9996, 0
        %v10462 = vsel %vm10191, %v9998, 0
        %v10465 = vsel %vm10191, %v10000, 0
        %v10468 = vsel %vm10191, %v10002, 0
        %v10471 = vsel %vm10191, %v10004, 0
        %10473 = vmatprep.subr.bf16.mxu0 %v10402
        %10474 = vmatpush1.bf16.msra.mxu0 %v10401
        %10475 = vmatprep.subr.bf16.mxu0 %v10404
        %10476 = vmatpush1.bf16.msra.mxu0 %v10403
        %10477 = vmatprep.subr.bf16.mxu0 %v10406
        %10478 = vmatpush1.bf16.msra.mxu0 %v10405
        %10479 = vmatprep.subr.bf16.mxu0 %v10408
        %10480 = vmatpush1.bf16.msra.mxu0 %v10407
        %10481 = vmatprep.subr.bf16.mxu0 %v10410
        %10482 = vmatpush1.bf16.msra.mxu0 %v10409
        %10483 = vmatprep.subr.bf16.mxu0 %v10412
        %10484 = vmatpush1.bf16.msra.mxu0 %v10411
        %10485 = vmatprep.subr.bf16.mxu0 %v10414
        %10486 = vmatpush1.bf16.msra.mxu0 %v10413
        %10487 = vmatprep.subr.bf16.mxu0 %v10416
        %10488 = vmatpush1.bf16.msra.mxu0 %v10415
        %10489 = vmatprep.subr.bf16.mxu0 %v10418
        %10490 = vmatpush1.bf16.msra.mxu0 %v10417
        %10491 = vmatprep.subr.bf16.mxu0 %v10420
        %10492 = vmatpush1.bf16.msra.mxu0 %v10419
        %10493 = vmatprep.subr.bf16.mxu0 %v10422
        %10494 = vmatpush1.bf16.msra.mxu0 %v10421
        %10495 = vmatprep.subr.bf16.mxu0 %v10424
        %10496 = vmatpush1.bf16.msra.mxu0 %v10423
        %10497 = vmatprep.subr.bf16.mxu0 0
        %10498 = vmatpush1.bf16.msra.mxu0 0
        %10499 = vmatprep.subr.bf16.mxu0 0
        %10500 = vmatpush1.bf16.msra.mxu0 0
        %10501 = vmatprep.subr.bf16.mxu0 0
        %10502 = vmatpush1.bf16.msra.mxu0 0
        %10503 = vmatprep.subr.bf16.mxu0 0
        %10504 = vmatpush1.bf16.msra.mxu0 0
        %10505 = vmatprep.mubr.bf16.mxu0 %v10450
        %10506 = vmatmul.mubr.bf16.gmra.mrb[0].mxu0 %v9989
        %v10507 = vpop.f32.mrb[0].mxu0
        %v10508 = vadd.f32 %v10251, %v10507
        %v10509 = vpop.f32.mrb[0].mxu0
        %v10510 = vadd.f32 %v10253, %v10509
        %v10511 = vpop.f32.mrb[0].mxu0
        %v10512 = vadd.f32 %v10255, %v10511
        %v10513 = vpop.f32.mrb[0].mxu0
        %v10514 = vadd.f32 %v10257, %v10513
        %10515 = vmatprep.mubr.bf16.mxu0 %v10453
        %10516 = vmatmul.mubr.bf16.gmra.mrb[0].mxu0 %v9991
        %v10517 = vpop.f32.mrb[0].mxu0
        %v10518 = vadd.f32 %v10261, %v10517
        %v10519 = vpop.f32.mrb[0].mxu0
        %v10520 = vadd.f32 %v10263, %v10519
        %v10521 = vpop.f32.mrb[0].mxu0
        %v10522 = vadd.f32 %v10265, %v10521
        %v10523 = vpop.f32.mrb[0].mxu0
        %v10524 = vadd.f32 %v10267, %v10523
        %10525 = vmatprep.mubr.bf16.mxu0 %v10456
        %10526 = vmatmul.mubr.bf16.gmra.mrb[0].mxu0 %v9993
        %v10527 = vpop.f32.mrb[0].mxu0
        %v10528 = vadd.f32 %v10271, %v10527
        %v10529 = vpop.f32.mrb[0].mxu0
        %v10530 = vadd.f32 %v10273, %v10529
        %v10531 = vpop.f32.mrb[0].mxu0
        %v10532 = vadd.f32 %v10275, %v10531
        %v10533 = vpop.f32.mrb[0].mxu0
        %v10534 = vadd.f32 %v10277, %v10533
        %10535 = vmatprep.mubr.bf16.mxu0 %v10459
        %10536 = vmatmul.mubr.bf16.gmra.mrb[0].mxu0 %v9995
        %v10537 = vpop.f32.mrb[0].mxu0
        %v10538 = vadd.f32 %v10281, %v10537
        %v10539 = vpop.f32.mrb[0].mxu0
        %v10540 = vadd.f32 %v10283, %v10539
        %v10541 = vpop.f32.mrb[0].mxu0
        %v10542 = vadd.f32 %v10285, %v10541
        %v10543 = vpop.f32.mrb[0].mxu0
        %v10544 = vadd.f32 %v10287, %v10543
        %10545 = vmatprep.mubr.bf16.mxu0 %v10462
        %10546 = vmatmul.mubr.bf16.gmra.mrb[0].mxu0 %v9997
        %v10547 = vpop.f32.mrb[0].mxu0
        %v10548 = vadd.f32 %v10291, %v10547
        %v10549 = vpop.f32.mrb[0].mxu0
        %v10550 = vadd.f32 %v10293, %v10549
        %v10551 = vpop.f32.mrb[0].mxu0
        %v10552 = vadd.f32 %v10295, %v10551
        %v10553 = vpop.f32.mrb[0].mxu0
        %v10554 = vadd.f32 %v10297, %v10553
        %10555 = vmatprep.mubr.bf16.mxu0 %v10465
        %10556 = vmatmul.mubr.bf16.gmra.mrb[0].mxu0 %v9999
        %v10557 = vpop.f32.mrb[0].mxu0
        %v10558 = vadd.f32 %v10301, %v10557
        %v10559 = vpop.f32.mrb[0].mxu0
        %v10560 = vadd.f32 %v10303, %v10559
        %v10561 = vpop.f32.mrb[0].mxu0
        %v10562 = vadd.f32 %v10305, %v10561
        %v10563 = vpop.f32.mrb[0].mxu0
        %v10564 = vadd.f32 %v10307, %v10563
        %10565 = vmatprep.mubr.bf16.mxu0 %v10468
        %10566 = vmatmul.mubr.bf16.gmra.mrb[0].mxu0 %v10001
        %v10567 = vpop.f32.mrb[0].mxu0
        %v10568 = vadd.f32 %v10311, %v10567
        %v10569 = vpop.f32.mrb[0].mxu0
        %v10570 = vadd.f32 %v10313, %v10569
        %v10571 = vpop.f32.mrb[0].mxu0
        %v10572 = vadd.f32 %v10315, %v10571
        %v10573 = vpop.f32.mrb[0].mxu0
        %v10574 = vadd.f32 %v10317, %v10573
        %10575 = vmatprep.mubr.bf16.mxu0 %v10471
        %10576 = vmatmul.mubr.bf16.gmra.mrb[0].mxu0 %v10003
        %v10577 = vpop.f32.mrb[0].mxu0
        %v10578 = vadd.f32 %v10321, %v10577
        %v10579 = vpop.f32.mrb[0].mxu0
        %v10580 = vadd.f32 %v10323, %v10579
        %v10581 = vpop.f32.mrb[0].mxu0
        %v10582 = vadd.f32 %v10325, %v10581
        %v10583 = vpop.f32.mrb[0].mxu0
        %v10584 = vadd.f32 %v10327, %v10583
        %10585 = vdwg.mxu0
        %v10586 = vld [vmem:[%s891] sm:$0x3]
        %v10588 = vlaneseq
        %v10589 = vshrl.u32 %v10588, 7
        %v10590 = vsub.s32 0, %v10589
        %v10591 = vrot.slane %v10586, %v10590
        %v10592 = vlaneseq
        %v10593 = vshrl.u32 %v10592, 7
        %v10594 = vsub.s32 1, %v10593
        %v10595 = vrot.slane %v10586, %v10594
        %v10598 = vadd.f32 %v10508, %v10591
        %v10599 = vadd.f32 %v10510, %v10595
        %v10600 = vadd.f32 %v10512, %v10591
        %v10601 = vadd.f32 %v10514, %v10595
        %v10602 = vadd.f32 %v10518, %v10591
        %v10603 = vadd.f32 %v10520, %v10595
        %v10604 = vadd.f32 %v10522, %v10591
        %v10605 = vadd.f32 %v10524, %v10595
        %v10606 = vadd.f32 %v10528, %v10591
        %v10607 = vadd.f32 %v10530, %v10595
        %v10608 = vadd.f32 %v10532, %v10591
        %v10609 = vadd.f32 %v10534, %v10595
        %v10610 = vadd.f32 %v10538, %v10591
        %v10611 = vadd.f32 %v10540, %v10595
        %v10612 = vadd.f32 %v10542, %v10591
        %v10613 = vadd.f32 %v10544, %v10595
        %v10614 = vadd.f32 %v10548, %v10591
        %v10615 = vadd.f32 %v10550, %v10595
        %v10616 = vadd.f32 %v10552, %v10591
        %v10617 = vadd.f32 %v10554, %v10595
        %v10618 = vadd.f32 %v10558, %v10591
        %v10619 = vadd.f32 %v10560, %v10595
        %v10620 = vadd.f32 %v10562, %v10591
        %v10621 = vadd.f32 %v10564, %v10595
        %v10622 = vadd.f32 %v10568, %v10591
        %v10623 = vadd.f32 %v10570, %v10595
        %v10624 = vadd.f32 %v10572, %v10591
        %v10625 = vadd.f32 %v10574, %v10595
        %v10626 = vadd.f32 %v10578, %v10591
        %v10627 = vadd.f32 %v10580, %v10595
        %v10628 = vadd.f32 %v10582, %v10591
        %v10629 = vadd.f32 %v10584, %v10595
        %v10630 = vld [vmem:[%s822] sm:$0xff]
        %v10631 = vld [vmem:[%s822 + $0x8] sm:$0xff]
        %v10632 = vld [vmem:[%s822 + $0x10] sm:$0xff]
        %v10633 = vld [vmem:[%s822 + $0x18] sm:$0xff]
        %v10634 = vld [vmem:[%s822 + $0x20] sm:$0xff]
        %v10635 = vld [vmem:[%s822 + $0x28] sm:$0xff]
        %v10636 = vld [vmem:[%s822 + $0x30] sm:$0xff]
        %v10637 = vld [vmem:[%s822 + $0x38] sm:$0xff]
        %v10638 = vld [vmem:[%s822 + $0x40] sm:$0xff]
        %v10639 = vld [vmem:[%s822 + $0x48] sm:$0xff]
        %v10640 = vld [vmem:[%s822 + $0x50] sm:$0xff]
        %v10641 = vld [vmem:[%s822 + $0x58] sm:$0xff]
        %v10642 = vld [vmem:[%s822 + $0x60] sm:$0xff]
        %v10643 = vld [vmem:[%s822 + $0x68] sm:$0xff]
        %v10644 = vld [vmem:[%s822 + $0x70] sm:$0xff]
        %v10645 = vld [vmem:[%s822 + $0x78] sm:$0xff]
        %v10646 = vld [vmem:[%s822 + $0x80] sm:$0xff]
        %v10647 = vld [vmem:[%s822 + $0x88] sm:$0xff]
        %v10648 = vld [vmem:[%s822 + $0x90] sm:$0xff]
        %v10649 = vld [vmem:[%s822 + $0x98] sm:$0xff]
        %v10650 = vld [vmem:[%s822 + $0xa0] sm:$0xff]
        %v10651 = vld [vmem:[%s822 + $0xa8] sm:$0xff]
        %v10652 = vld [vmem:[%s822 + $0xb0] sm:$0xff]
        %v10653 = vld [vmem:[%s822 + $0xb8] sm:$0xff]
        %v10654 = vld [vmem:[%s822 + $0xc0] sm:$0xff]
        %v10655 = vld [vmem:[%s822 + $0xc8] sm:$0xff]
        %v10656 = vld [vmem:[%s822 + $0xd0] sm:$0xff]
        %v10657 = vld [vmem:[%s822 + $0xd8] sm:$0xff]
        %v10658 = vld [vmem:[%s822 + $0xe0] sm:$0xff]
        %v10659 = vld [vmem:[%s822 + $0xe8] sm:$0xff]
        %v10660 = vld [vmem:[%s822 + $0xf0] sm:$0xff]
        %v10661 = vld [vmem:[%s822 + $0xf8] sm:$0xff]
        %v10662 = vadd.f32 %v10598, %v10630
        %v10663 = vadd.f32 %v10599, %v10631
        %v10664 = vadd.f32 %v10600, %v10632
        %v10665 = vadd.f32 %v10601, %v10633
        %v10666 = vadd.f32 %v10602, %v10634
        %v10667 = vadd.f32 %v10603, %v10635
        %v10668 = vadd.f32 %v10604, %v10636
        %v10669 = vadd.f32 %v10605, %v10637
        %v10670 = vadd.f32 %v10606, %v10638
        %v10671 = vadd.f32 %v10607, %v10639
        %v10672 = vadd.f32 %v10608, %v10640
        %v10673 = vadd.f32 %v10609, %v10641
        %v10674 = vadd.f32 %v10610, %v10642
        %v10675 = vadd.f32 %v10611, %v10643
        %v10676 = vadd.f32 %v10612, %v10644
        %v10677 = vadd.f32 %v10613, %v10645
        %v10678 = vadd.f32 %v10614, %v10646
        %v10679 = vadd.f32 %v10615, %v10647
        %v10680 = vadd.f32 %v10616, %v10648
        %v10681 = vadd.f32 %v10617, %v10649
        %v10682 = vadd.f32 %v10618, %v10650
        %v10683 = vadd.f32 %v10619, %v10651
        %v10684 = vadd.f32 %v10620, %v10652
        %v10685 = vadd.f32 %v10621, %v10653
        %v10686 = vadd.f32 %v10622, %v10654
        %v10687 = vadd.f32 %v10623, %v10655
        %v10688 = vadd.f32 %v10624, %v10656
        %v10689 = vadd.f32 %v10625, %v10657
        %v10690 = vadd.f32 %v10626, %v10658
        %v10691 = vadd.f32 %v10627, %v10659
        %v10692 = vadd.f32 %v10628, %v10660
        %v10693 = vadd.f32 %v10629, %v10661
        %v10694 = vmax.f32 %v10662, 0.0
        %v10695 = vmax.f32 %v10663, 0.0
        %v10696 = vmax.f32 %v10664, 0.0
        %v10697 = vmax.f32 %v10665, 0.0
        %v10698 = vmax.f32 %v10666, 0.0
        %v10699 = vmax.f32 %v10667, 0.0
        %v10700 = vmax.f32 %v10668, 0.0
        %v10701 = vmax.f32 %v10669, 0.0
        %v10702 = vmax.f32 %v10670, 0.0
        %v10703 = vmax.f32 %v10671, 0.0
        %v10704 = vmax.f32 %v10672, 0.0
        %v10705 = vmax.f32 %v10673, 0.0
        %v10706 = vmax.f32 %v10674, 0.0
        %v10707 = vmax.f32 %v10675, 0.0
        %v10708 = vmax.f32 %v10676, 0.0
        %v10709 = vmax.f32 %v10677, 0.0
        %v10710 = vmax.f32 %v10678, 0.0
        %v10711 = vmax.f32 %v10679, 0.0
        %v10712 = vmax.f32 %v10680, 0.0
        %v10713 = vmax.f32 %v10681, 0.0
        %v10714 = vmax.f32 %v10682, 0.0
        %v10715 = vmax.f32 %v10683, 0.0
        %v10716 = vmax.f32 %v10684, 0.0
        %v10717 = vmax.f32 %v10685, 0.0
        %v10718 = vmax.f32 %v10686, 0.0
        %v10719 = vmax.f32 %v10687, 0.0
        %v10720 = vmax.f32 %v10688, 0.0
        %v10721 = vmax.f32 %v10689, 0.0
        %v10722 = vmax.f32 %v10690, 0.0
        %v10723 = vmax.f32 %v10691, 0.0
        %v10724 = vmax.f32 %v10692, 0.0
        %v10725 = vmax.f32 %v10693, 0.0
        %10726 = vst [vmem:[%s885] sm:$0xff] %v10694
        %10727 = vst [vmem:[%s885 + $0x8] sm:$0xff] %v10695
        %10728 = vst [vmem:[%s885 + $0x10] sm:$0xff] %v10696
        %10729 = vst [vmem:[%s885 + $0x18] sm:$0xff] %v10697
        %10730 = vst [vmem:[%s885 + $0x20] sm:$0xff] %v10698
        %10731 = vst [vmem:[%s885 + $0x28] sm:$0xff] %v10699
        %10732 = vst [vmem:[%s885 + $0x30] sm:$0xff] %v10700
        %10733 = vst [vmem:[%s885 + $0x38] sm:$0xff] %v10701
        %10734 = vst [vmem:[%s885 + $0x40] sm:$0xff] %v10702
        %10735 = vst [vmem:[%s885 + $0x48] sm:$0xff] %v10703
        %10736 = vst [vmem:[%s885 + $0x50] sm:$0xff] %v10704
        %10737 = vst [vmem:[%s885 + $0x58] sm:$0xff] %v10705
        %10738 = vst [vmem:[%s885 + $0x60] sm:$0xff] %v10706
        %10739 = vst [vmem:[%s885 + $0x68] sm:$0xff] %v10707
        %10740 = vst [vmem:[%s885 + $0x70] sm:$0xff] %v10708
        %10741 = vst [vmem:[%s885 + $0x78] sm:$0xff] %v10709
        %10742 = vst [vmem:[%s885 + $0x80] sm:$0xff] %v10710
        %10743 = vst [vmem:[%s885 + $0x88] sm:$0xff] %v10711
        %10744 = vst [vmem:[%s885 + $0x90] sm:$0xff] %v10712
        %10745 = vst [vmem:[%s885 + $0x98] sm:$0xff] %v10713
        %10746 = vst [vmem:[%s885 + $0xa0] sm:$0xff] %v10714
        %10747 = vst [vmem:[%s885 + $0xa8] sm:$0xff] %v10715
        %10748 = vst [vmem:[%s885 + $0xb0] sm:$0xff] %v10716
        %10749 = vst [vmem:[%s885 + $0xb8] sm:$0xff] %v10717
        %10750 = vst [vmem:[%s885 + $0xc0] sm:$0xff] %v10718
        %10751 = vst [vmem:[%s885 + $0xc8] sm:$0xff] %v10719
        %10752 = vst [vmem:[%s885 + $0xd0] sm:$0xff] %v10720
        %10753 = vst [vmem:[%s885 + $0xd8] sm:$0xff] %v10721
        %10754 = vst [vmem:[%s885 + $0xe0] sm:$0xff] %v10722
        %10755 = vst [vmem:[%s885 + $0xe8] sm:$0xff] %v10723
        %10756 = vst [vmem:[%s885 + $0xf0] sm:$0xff] %v10724
        %10757 = vst [vmem:[%s885 + $0xf8] sm:$0xff] %v10725
        %s10758 = sand.u32 %s411, 1
        %s10759 = scalar_lea.sflag [#allocation7], %s10758
        %s10760 = sand.u32 %s411, 1
        %s10761 = smul.addr %s10760, 256
        %s10762 = scalar_lea.vmem [#allocation6], %s10761
        // Predicated region
        $region154: #{block8_forward.1} parent=140 // pred_check
          %p10763 = pneg %p421
        $region155: #{block8_forward.1} parent=140 // pred_check_branch
          %10765 = sbr.rel (%p10763) target = $region157
        $region156: #{block8_forward.1} parent=140 // pred_region
          %s10766 = smul.u32 2, %s31
          %s10768 = ssub.s32 4096, 4096
          %10769 = vsyncadd %s10759, %s10768
          %s10770 = smul.addr %s10766, 128
          %s10771 = scalar_lea.hbm %s17, %s10770
          %s10772 = sshll.u32 %s10762, 4
          %s10773 = int_to_ptr.vmem [resolvable:$true] %s10772
          %10778 = dma.vmem_to_hbm [thread:$0]  %s10773, 4096, %s10771, %s10759, 256, 1792, 16
        $region157: #{block8_forward.1} parent=140 // pred_fallthru
          _
      $region141: #{block8_forward.1} parent=5 // pred_fallthru
        _
      %p10779 = scmp.le.s32.totalorder 2, %s26
      // Predicated region
      $region158: #{block8_forward.1} parent=5 // pred_check
        %p10780 = pneg %p10779
      $region159: #{block8_forward.1} parent=5 // pred_check_branch
        %10782 = sbr.rel (%p10780) target = $region161
      $region160: #{block8_forward.1} parent=5 // pred_region
        %s10783 = ssub.s32 %s26, 2
        // Predicated region
        $region162: #{block8_forward.1} parent=160 // pred_check
          %p10784 = pneg %p427
        $region163: #{block8_forward.1} parent=160 // pred_check_branch
          %10786 = sbr.rel (%p10784) target = $region165
        $region164: #{block8_forward.1} parent=160 // pred_region
          %s10787 = sand.u32 %s412, 1
          %s10788 = scalar_lea.sflag [#allocation7], %s10787
          %s10789 = sand.u32 %s412, 1
          %s10790 = smul.addr %s10789, 256
          %s10791 = scalar_lea.vmem [#allocation6], %s10790
          %10792 = dma.done %s10788, 4096
        $region165: #{block8_forward.1} parent=160 // pred_fallthru
          _
      $region161: #{block8_forward.1} parent=5 // pred_fallthru
        _
    $region6: #{block8_forward.1} parent=1 // loop_footer
      %s30 = sadd.s32 1, %s26
    $region7: #{block8_forward.1} parent=1 // loop_footer_branch
      %25 = sbr.rel target = $region3
    $region8: #{block8_forward.1} parent=1 // loop_exit
      _
    %10793 = vsyncpa [#allocation7], 1
    %s10794 = scalar_lea.sflag [#allocation7], 1
    %10795 = vsyncpa %s10794, 1

</llo_original>
